<compile_context>
chip_gen: v6e
topology: v6e:2x2x1
jax: 0.10.0
libtpu: 0.0.40
codegen_flags: <defaults>
</compile_context>

<pallas_src>
import functools
import math

import jax
import jax.numpy as jnp
from jax.experimental import pallas as pl
from jax.experimental.pallas import tpu as pltpu

# ------------------------- config (small, synthetic) -------------------------
N_MODALITY = 3
VOCAB_BODY = 48
VOCAB_HANDS = 40
N_EMBD = 32
N_HEAD = 4
HEAD_DIM = N_EMBD // N_HEAD
N_LAYER = 2
BLOCK_SIZE = 15          # per-modality sequence length (reshape(-1, 15) in the module)
N_MUSIC = 16
EPS = 1e-5               # PyTorch LayerNorm / TransformerEncoderLayer default


# ------------------------------ kernel helpers -------------------------------
def _layer_norm(x, g, b):
    mu = jnp.mean(x, axis=-1, keepdims=True)
    var = jnp.mean(jnp.square(x - mu), axis=-1, keepdims=True)
    return (x - mu) * jax.lax.rsqrt(var + EPS) * g + b


def _argmax_last(x):
    """First arg-max along last axis (matches torch.topk(k=1) tie-breaking)."""
    m = jnp.max(x, axis=-1, keepdims=True)
    idx = jax.lax.broadcasted_iota(jnp.int32, x.shape, 1)
    cand = jnp.where(x == m, idx, jnp.int32(x.shape[-1]))
    return jnp.min(cand, axis=-1, keepdims=True)        # (rows, 1) int32


def _onehot_embed(idx_col, emb_ref):
    """nn.Embedding lookup as one-hot @ table (MXU); idx_col: (t, 1) int32."""
    vocab = emb_ref.shape[0]
    iota = jax.lax.broadcasted_iota(jnp.int32, (idx_col.shape[0], vocab), 1)
    onehot = jnp.where(idx_col == iota, 1.0, 0.0).astype(jnp.float32)
    return jnp.dot(onehot, emb_ref[...], preferred_element_type=jnp.float32)


def _gelu_exact(x):
    """Exact (erf) GELU == F.gelu default, via A&S 7.1.26 erf (|err| < 1.5e-7)."""
    z = x * (1.0 / math.sqrt(2.0))
    az = jnp.abs(z)
    tt = 1.0 / (1.0 + 0.3275911 * az)
    poly = ((((1.061405429 * tt - 1.453152027) * tt + 1.421413741) * tt
             - 0.284496736) * tt + 0.254829592) * tt
    erf_abs = 1.0 - poly * jnp.exp(-az * az)
    erf = jnp.where(z >= 0.0, erf_abs, -erf_abs)
    return 0.5 * x * (1.0 + erf)


# ------------------------------ fused kernel ---------------------------------
def _fused_forward_kernel(
        idxb_ref, idxh_ref, cond_ref,                    # per-batch inputs
        embb_ref, embh_ref, pos_ref, wc_ref, bc_ref,     # embeddings / assembly
        wq_ref, wk_ref, wv_ref, bq_ref, bk_ref, bv_ref,  # attention (L, H, ...)
        wo_ref, bo_ref,
        ln1g_ref, ln1b_ref, ln2g_ref, ln2b_ref,          # layer norms (L, 1, D)
        w1_ref, b1_ref, w2_ref, b2_ref,                  # FFN (L, ...)
        lnfg_ref, lnfb_ref, whb_ref, whh_ref,            # ln_f + heads
        outb_ref, outh_ref,                              # (1, t, 1) int32 each
        x_scr,                                           # VMEM (T, D) scratch
        *, t, n_layer, n_head):
    D = wc_ref.shape[1]
    hd = D // n_head
    scale = 1.0 / math.sqrt(hd)
    block = pos_ref.shape[1] // N_MODALITY               # module's block_size
    T = N_MODALITY * t

    # ---- embeddings + cond Linear + pos-emb add (module's torch.cat assembly) ----
    tok_b = _onehot_embed(idxb_ref[0], embb_ref)
    tok_h = _onehot_embed(idxh_ref[0], embh_ref)
    ce = jnp.dot(cond_ref[0], wc_ref[...],
                 preferred_element_type=jnp.float32) + bc_ref[...]
    # Assemble the (T, D) sequence with masked stores into VMEM scratch (no
    # unaligned value-level concatenate / relayouts).
    x_scr[0:t, :] = ce + pos_ref[0, 0:t, :]
    x_scr[t:2 * t, :] = tok_b + pos_ref[0, block:block + t, :]
    x_scr[2 * t:3 * t, :] = tok_h + pos_ref[0, 2 * block:2 * block + t, :]
    x = x_scr[...]                                       # (T, D)
    # self.drop and all in-layer dropouts are identity at inference.

    # ---- n_layer post-norm (norm_first=False) TransformerEncoder layers ----
    for l in range(n_layer):                             # static unroll (L=2)
        attn = jnp.zeros((T, D), jnp.float32) + bo_ref[l]
        for h in range(n_head):                          # static unroll (H=4), 2-D matmuls only
            q = jnp.dot(x, wq_ref[l, h], preferred_element_type=jnp.float32) + bq_ref[l, h]
            k = jnp.dot(x, wk_ref[l, h], preferred_element_type=jnp.float32) + bk_ref[l, h]
            v = jnp.dot(x, wv_ref[l, h], preferred_element_type=jnp.float32) + bv_ref[l, h]
            s = jax.lax.dot_general(q * scale, k, (((1,), (1,)), ((), ())),
                                    preferred_element_type=jnp.float32)     # (T, T)
            s = s - jnp.max(s, axis=-1, keepdims=True)
            p = jnp.exp(s)
            p = p * pl.reciprocal(jnp.sum(p, axis=-1, keepdims=True), approx=True)
            o = jnp.dot(p, v, preferred_element_type=jnp.float32)           # (T, hd)
            # concat(heads) @ Wo == sum_h o[h] @ Wo[h*hd:(h+1)*hd, :]
            attn = attn + jnp.dot(o, wo_ref[l, h], preferred_element_type=jnp.float32)

        x = _layer_norm(x + attn, ln1g_ref[l], ln1b_ref[l])
        h1 = jnp.dot(x, w1_ref[l], preferred_element_type=jnp.float32) + b1_ref[l]
        h1 = _gelu_exact(h1)                             # exact erf-GELU (F.gelu default)
        ff = jnp.dot(h1, w2_ref[l], preferred_element_type=jnp.float32) + b2_ref[l]
        x = _layer_norm(x + ff, ln2g_ref[l], ln2b_ref[l])

    # ---- ln_f + heads + argmax(softmax) == argmax(logits) ----
    x_scr[...] = _layer_norm(x, lnfg_ref[...], lnfb_ref[...])
    lb = jnp.dot(x_scr[t:2 * t, :], whb_ref[...], preferred_element_type=jnp.float32)
    lh = jnp.dot(x_scr[2 * t:3 * t, :], whh_ref[...], preferred_element_type=jnp.float32)
    outb_ref[0] = _argmax_last(lb)
    outh_ref[0] = _argmax_last(lh)


# ------------------------------ pallas_call glue ------------------------------
def _full_spec(arr):
    nd = arr.ndim
    return pl.BlockSpec(arr.shape, lambda b, _nd=nd: (0,) * _nd)


WEIGHT_KEYS = ('tok_emb_body', 'tok_emb_hands', 'pos_emb', 'cond_w', 'cond_b',
               'wq', 'wk', 'wv', 'bq', 'bk', 'bv', 'wo', 'bo',
               'ln1g', 'ln1b', 'ln2g', 'ln2b', 'w1', 'b1', 'w2', 'b2',
               'ln_f_g', 'ln_f_b', 'head_body_w', 'head_hands_w')


def fused_forward(params, idx_body, idx_hands, cond):
    B, t = idx_body.shape
    n_music = cond.shape[-1]
    T = N_MODALITY * t
    idxb = idx_body.reshape(B, t, 1).astype(jnp.int32)
    idxh = idx_hands.reshape(B, t, 1).astype(jnp.int32)
    weights = [params[k] for k in WEIGHT_KEYS]
    kern = functools.partial(_fused_forward_kernel, t=t,
                             n_layer=N_LAYER, n_head=N_HEAD)
    outb, outh = pl.pallas_call(
        kern,
        out_shape=(jax.ShapeDtypeStruct((B, t, 1), jnp.int32),
                   jax.ShapeDtypeStruct((B, t, 1), jnp.int32)),
        grid=(B,),
        in_specs=[pl.BlockSpec((1, t, 1), lambda b: (b, 0, 0)),
                  pl.BlockSpec((1, t, 1), lambda b: (b, 0, 0)),
                  pl.BlockSpec((1, t, n_music), lambda b: (b, 0, 0))]
                 + [_full_spec(w) for w in weights],
        out_specs=(pl.BlockSpec((1, t, 1), lambda b: (b, 0, 0)),
                   pl.BlockSpec((1, t, 1), lambda b: (b, 0, 0))),
        scratch_shapes=[pltpu.VMEM((T, N_EMBD), jnp.float32)],
        compiler_params=pltpu.CompilerParams(dimension_semantics=("parallel",)),
    )(idxb, idxh, cond, *weights)
    return outb, outh


# ------------------------------ params / forward ------------------------------
def init_params(key):
    ks = iter(jax.random.split(key, 64))

    def nrm(shape):  # _init_weights: Linear/Embedding weights ~ N(0, 0.02)
        return (0.02 * jax.random.normal(next(ks), shape)).astype(jnp.float32)

    D, H, hd, FF = N_EMBD, N_HEAD, HEAD_DIM, 4 * N_EMBD

    def split_in(w):    # in_proj block W.T (D, D) -> (H, D, hd): [h] = w[:, h*hd:(h+1)*hd]
        return jnp.transpose(w.reshape(D, H, hd), (1, 0, 2))

    def split_out(w):   # out_proj.weight.T (D, D) -> (H, hd, D): [h] = w[h*hd:(h+1)*hd, :]
        return w.reshape(H, hd, D)

    stacks = {k: [] for k in ('wq', 'wk', 'wv', 'bq', 'bk', 'bv', 'wo', 'bo',
                              'ln1g', 'ln1b', 'ln2g', 'ln2b', 'w1', 'b1', 'w2', 'b2')}
    for _ in range(N_LAYER):
        stacks['wq'].append(split_in(nrm((D, D))))        # in_proj_weight[:D].T
        stacks['wk'].append(split_in(nrm((D, D))))        # in_proj_weight[D:2D].T
        stacks['wv'].append(split_in(nrm((D, D))))        # in_proj_weight[2D:3D].T
        stacks['bq'].append(jnp.zeros((H, 1, hd), jnp.float32))
        stacks['bk'].append(jnp.zeros((H, 1, hd), jnp.float32))
        stacks['bv'].append(jnp.zeros((H, 1, hd), jnp.float32))
        stacks['wo'].append(split_out(nrm((D, D))))       # out_proj.weight.T
        stacks['bo'].append(jnp.zeros((1, D), jnp.float32))
        stacks['ln1g'].append(jnp.ones((1, D), jnp.float32))
        stacks['ln1b'].append(jnp.zeros((1, D), jnp.float32))
        stacks['ln2g'].append(jnp.ones((1, D), jnp.float32))
        stacks['ln2b'].append(jnp.zeros((1, D), jnp.float32))
        stacks['w1'].append(nrm((D, FF)))                 # linear1.weight.T
        stacks['b1'].append(jnp.zeros((1, FF), jnp.float32))
        stacks['w2'].append(nrm((FF, D)))                 # linear2.weight.T
        stacks['b2'].append(jnp.zeros((1, D), jnp.float32))

    params = dict(
        tok_emb_body=nrm((VOCAB_BODY, D)),
        tok_emb_hands=nrm((VOCAB_HANDS, D)),
        pos_emb=jnp.zeros((1, BLOCK_SIZE * N_MODALITY, D), jnp.float32),  # torch.zeros
        cond_w=nrm((N_MUSIC, D)),                          # cond_emb.weight.T
        cond_b=jnp.zeros((1, D), jnp.float32),
        ln_f_g=jnp.ones((1, D), jnp.float32),
        ln_f_b=jnp.zeros((1, D), jnp.float32),
        head_body_w=nrm((D, VOCAB_BODY)),                  # head_body.weight.T (no bias)
        head_hands_w=nrm((D, VOCAB_HANDS)),
    )
    for k, v in stacks.items():                            # stack layers: leading L dim
        params[k] = jnp.stack(v, axis=0)
    return params


def forward(params, idxs, cond):
    # layer_no == 1 branch of the module; targets=None -> loss / metrics are None.
    # TODO(synk): training-only branch (cross_entropy loss, accuracy metrics) and the
    # layer_no == 2/3 multi-embedding variants are not implemented.
    idx_body, idx_hands = idxs
    outb, outh = fused_forward(params, idx_body, idx_hands, cond)   # (B, t, 1) int32 each
    ix_body = outb[..., 0].reshape(-1, 15)
    ix_hands = outh[..., 0].reshape(-1, 15)
    return (ix_body, ix_hands), None, None


if __name__ == "__main__":
    key = jax.random.PRNGKey(0)
    pkey, k1, k2, k3 = jax.random.split(key, 4)
    params = init_params(pkey)

    B, t = 2, BLOCK_SIZE
    idx_body = jax.random.randint(k1, (B, t), 0, VOCAB_BODY, dtype=jnp.int32)
    idx_hands = jax.random.randint(k2, (B, t), 0, VOCAB_HANDS, dtype=jnp.int32)
    cond = jax.random.normal(k3, (B, t, N_MUSIC), jnp.float32)

    (ix_body, ix_hands), loss, metrics = jax.jit(forward)(
        params, (idx_body, idx_hands), cond)
    jax.block_until_ready((ix_body, ix_hands))

    assert ix_body.shape == (B * t // 15, 15)
    assert ix_hands.shape == (B * t // 15, 15)
    assert ix_body.dtype == jnp.int32 and ix_hands.dtype == jnp.int32
    assert loss is None and metrics is None
    assert 0 <= int(ix_body.min()) and int(ix_body.max()) < VOCAB_BODY
    assert 0 <= int(ix_hands.min()) and int(ix_hands.max()) < VOCAB_HANDS
    print("KERNEL_OK")
</pallas_src>

<mosaic_0001>
module attributes {stable_mosaic.version = 11 : i64} {
  func.func @_fused_forward_kernel(%arg0: i32, %arg1: memref<1x15x1xi32, #tpu.memory_space<vmem>>, %arg2: memref<1x15x1xi32, #tpu.memory_space<vmem>>, %arg3: memref<1x15x16xf32, #tpu.memory_space<vmem>>, %arg4: memref<48x32xf32, #tpu.memory_space<vmem>>, %arg5: memref<40x32xf32, #tpu.memory_space<vmem>>, %arg6: memref<1x45x32xf32, #tpu.memory_space<vmem>>, %arg7: memref<16x32xf32, #tpu.memory_space<vmem>>, %arg8: memref<1x32xf32, #tpu.memory_space<vmem>>, %arg9: memref<2x4x32x8xf32, #tpu.memory_space<vmem>>, %arg10: memref<2x4x32x8xf32, #tpu.memory_space<vmem>>, %arg11: memref<2x4x32x8xf32, #tpu.memory_space<vmem>>, %arg12: memref<2x4x1x8xf32, #tpu.memory_space<vmem>>, %arg13: memref<2x4x1x8xf32, #tpu.memory_space<vmem>>, %arg14: memref<2x4x1x8xf32, #tpu.memory_space<vmem>>, %arg15: memref<2x4x8x32xf32, #tpu.memory_space<vmem>>, %arg16: memref<2x1x32xf32, #tpu.memory_space<vmem>>, %arg17: memref<2x1x32xf32, #tpu.memory_space<vmem>>, %arg18: memref<2x1x32xf32, #tpu.memory_space<vmem>>, %arg19: memref<2x1x32xf32, #tpu.memory_space<vmem>>, %arg20: memref<2x1x32xf32, #tpu.memory_space<vmem>>, %arg21: memref<2x32x128xf32, #tpu.memory_space<vmem>>, %arg22: memref<2x1x128xf32, #tpu.memory_space<vmem>>, %arg23: memref<2x128x32xf32, #tpu.memory_space<vmem>>, %arg24: memref<2x1x32xf32, #tpu.memory_space<vmem>>, %arg25: memref<1x32xf32, #tpu.memory_space<vmem>>, %arg26: memref<1x32xf32, #tpu.memory_space<vmem>>, %arg27: memref<32x48xf32, #tpu.memory_space<vmem>>, %arg28: memref<32x40xf32, #tpu.memory_space<vmem>>, %arg29: memref<1x15x1xi32, #tpu.memory_space<vmem>>, %arg30: memref<1x15x1xi32, #tpu.memory_space<vmem>>, %arg31: memref<45x32xf32, #tpu.memory_space<vmem>>) attributes {dimension_semantics = [#tpu.dimension_semantics<parallel>], iteration_bounds = array<i64: 2>, scalar_prefetch = 0 : i64, scratch_operands = 1 : i64, tpu.core_type = #tpu.core_type<tc>, window_params = [{transform_indices = @transform_0, window_bounds = array<i64: 1, 15, 1>}, {transform_indices = @transform_1, window_bounds = array<i64: 1, 15, 1>}, {transform_indices = @transform_2, window_bounds = array<i64: 1, 15, 16>}, {pipeline_mode = #tpu.pipeline_mode<synchronous>, transform_indices = @transform_3, window_bounds = array<i64: 48, 32>}, {pipeline_mode = #tpu.pipeline_mode<synchronous>, transform_indices = @transform_4, window_bounds = array<i64: 40, 32>}, {pipeline_mode = #tpu.pipeline_mode<synchronous>, transform_indices = @transform_5, window_bounds = array<i64: 1, 45, 32>}, {pipeline_mode = #tpu.pipeline_mode<synchronous>, transform_indices = @transform_6, window_bounds = array<i64: 16, 32>}, {pipeline_mode = #tpu.pipeline_mode<synchronous>, transform_indices = @transform_7, window_bounds = array<i64: 1, 32>}, {pipeline_mode = #tpu.pipeline_mode<synchronous>, transform_indices = @transform_8, window_bounds = array<i64: 2, 4, 32, 8>}, {pipeline_mode = #tpu.pipeline_mode<synchronous>, transform_indices = @transform_9, window_bounds = array<i64: 2, 4, 32, 8>}, {pipeline_mode = #tpu.pipeline_mode<synchronous>, transform_indices = @transform_10, window_bounds = array<i64: 2, 4, 32, 8>}, {pipeline_mode = #tpu.pipeline_mode<synchronous>, transform_indices = @transform_11, window_bounds = array<i64: 2, 4, 1, 8>}, {pipeline_mode = #tpu.pipeline_mode<synchronous>, transform_indices = @transform_12, window_bounds = array<i64: 2, 4, 1, 8>}, {pipeline_mode = #tpu.pipeline_mode<synchronous>, transform_indices = @transform_13, window_bounds = array<i64: 2, 4, 1, 8>}, {pipeline_mode = #tpu.pipeline_mode<synchronous>, transform_indices = @transform_14, window_bounds = array<i64: 2, 4, 8, 32>}, {pipeline_mode = #tpu.pipeline_mode<synchronous>, transform_indices = @transform_15, window_bounds = array<i64: 2, 1, 32>}, {pipeline_mode = #tpu.pipeline_mode<synchronous>, transform_indices = @transform_16, window_bounds = array<i64: 2, 1, 32>}, {pipeline_mode = #tpu.pipeline_mode<synchronous>, transform_indices = @transform_17, window_bounds = array<i64: 2, 1, 32>}, {pipeline_mode = #tpu.pipeline_mode<synchronous>, transform_indices = @transform_18, window_bounds = array<i64: 2, 1, 32>}, {pipeline_mode = #tpu.pipeline_mode<synchronous>, transform_indices = @transform_19, window_bounds = array<i64: 2, 1, 32>}, {pipeline_mode = #tpu.pipeline_mode<synchronous>, transform_indices = @transform_20, window_bounds = array<i64: 2, 32, 128>}, {pipeline_mode = #tpu.pipeline_mode<synchronous>, transform_indices = @transform_21, window_bounds = array<i64: 2, 1, 128>}, {pipeline_mode = #tpu.pipeline_mode<synchronous>, transform_indices = @transform_22, window_bounds = array<i64: 2, 128, 32>}, {pipeline_mode = #tpu.pipeline_mode<synchronous>, transform_indices = @transform_23, window_bounds = array<i64: 2, 1, 32>}, {pipeline_mode = #tpu.pipeline_mode<synchronous>, transform_indices = @transform_24, window_bounds = array<i64: 1, 32>}, {pipeline_mode = #tpu.pipeline_mode<synchronous>, transform_indices = @transform_25, window_bounds = array<i64: 1, 32>}, {pipeline_mode = #tpu.pipeline_mode<synchronous>, transform_indices = @transform_26, window_bounds = array<i64: 32, 48>}, {pipeline_mode = #tpu.pipeline_mode<synchronous>, transform_indices = @transform_27, window_bounds = array<i64: 32, 40>}, {transform_indices = @transform_28, window_bounds = array<i64: 1, 15, 1>}, {transform_indices = @transform_29, window_bounds = array<i64: 1, 15, 1>}]} {
    %c0 = arith.constant 0 : index
    %c0_0 = arith.constant 0 : index
    %c0_1 = arith.constant 0 : index
    %0 = vector.load %arg1[%c0, %c0_0, %c0_1] : memref<1x15x1xi32, #tpu.memory_space<vmem>>, vector<1x15x1xi32>
    %1 = vector.shape_cast %0 : vector<1x15x1xi32> to vector<15x1xi32>
    %2 = tpu.iota {dimensions = array<i32: 1>} : vector<15x48xi32>
    %3 = vector.broadcast %1 : vector<15x1xi32> to vector<15x48xi32>
    %4 = arith.cmpi eq, %3, %2 : vector<15x48xi32>
    %cst = arith.constant 1.000000e+00 : f32
    %cst_2 = arith.constant 0.000000e+00 : f32
    %5 = vector.broadcast %cst : f32 to vector<15x48xf32>
    %6 = vector.broadcast %cst_2 : f32 to vector<15x48xf32>
    %7 = arith.select %4, %5, %6 : vector<15x48xi1>, vector<15x48xf32>
    %c0_3 = arith.constant 0 : index
    %c0_4 = arith.constant 0 : index
    %8 = vector.load %arg4[%c0_3, %c0_4] : memref<48x32xf32, #tpu.memory_space<vmem>>, vector<48x32xf32>
    %cst_5 = arith.constant dense<0.000000e+00> : vector<15x32xf32>
    %9 = tpu.matmul %7, %8, %cst_5 {dimension_numbers = #tpu.dot_dimension_numbers<[1], [0], [0], [1], [0, 0, 1, 1], [], []>} : vector<15x48xf32>, vector<48x32xf32>, vector<15x32xf32> -> vector<15x32xf32>
    %c0_6 = arith.constant 0 : index
    %c0_7 = arith.constant 0 : index
    %c0_8 = arith.constant 0 : index
    %10 = vector.load %arg2[%c0_6, %c0_7, %c0_8] : memref<1x15x1xi32, #tpu.memory_space<vmem>>, vector<1x15x1xi32>
    %11 = vector.shape_cast %10 : vector<1x15x1xi32> to vector<15x1xi32>
    %12 = tpu.iota {dimensions = array<i32: 1>} : vector<15x40xi32>
    %13 = vector.broadcast %11 : vector<15x1xi32> to vector<15x40xi32>
    %14 = arith.cmpi eq, %13, %12 : vector<15x40xi32>
    %cst_9 = arith.constant 1.000000e+00 : f32
    %cst_10 = arith.constant 0.000000e+00 : f32
    %15 = vector.broadcast %cst_9 : f32 to vector<15x40xf32>
    %16 = vector.broadcast %cst_10 : f32 to vector<15x40xf32>
    %17 = arith.select %14, %15, %16 : vector<15x40xi1>, vector<15x40xf32>
    %c0_11 = arith.constant 0 : index
    %c0_12 = arith.constant 0 : index
    %18 = vector.load %arg5[%c0_11, %c0_12] : memref<40x32xf32, #tpu.memory_space<vmem>>, vector<40x32xf32>
    %cst_13 = arith.constant dense<0.000000e+00> : vector<15x32xf32>
    %19 = tpu.matmul %17, %18, %cst_13 {dimension_numbers = #tpu.dot_dimension_numbers<[1], [0], [0], [1], [0, 0, 1, 1], [], []>} : vector<15x40xf32>, vector<40x32xf32>, vector<15x32xf32> -> vector<15x32xf32>
    %c0_14 = arith.constant 0 : index
    %c0_15 = arith.constant 0 : index
    %c0_16 = arith.constant 0 : index
    %20 = vector.load %arg3[%c0_14, %c0_15, %c0_16] : memref<1x15x16xf32, #tpu.memory_space<vmem>>, vector<1x15x16xf32>
    %21 = vector.shape_cast %20 : vector<1x15x16xf32> to vector<15x16xf32>
    %c0_17 = arith.constant 0 : index
    %c0_18 = arith.constant 0 : index
    %22 = vector.load %arg7[%c0_17, %c0_18] : memref<16x32xf32, #tpu.memory_space<vmem>>, vector<16x32xf32>
    %cst_19 = arith.constant dense<0.000000e+00> : vector<15x32xf32>
    %23 = tpu.matmul %21, %22, %cst_19 {dimension_numbers = #tpu.dot_dimension_numbers<[1], [0], [0], [1], [0, 0, 1, 1], [], []>} : vector<15x16xf32>, vector<16x32xf32>, vector<15x32xf32> -> vector<15x32xf32>
    %c0_20 = arith.constant 0 : index
    %c0_21 = arith.constant 0 : index
    %24 = vector.load %arg8[%c0_20, %c0_21] : memref<1x32xf32, #tpu.memory_space<vmem>>, vector<1x32xf32>
    %25 = vector.broadcast %24 : vector<1x32xf32> to vector<15x32xf32>
    %26 = arith.addf %23, %25 : vector<15x32xf32>
    %c0_22 = arith.constant 0 : index
    %c0_23 = arith.constant 0 : index
    %c0_24 = arith.constant 0 : index
    %27 = vector.load %arg6[%c0_22, %c0_23, %c0_24] : memref<1x45x32xf32, #tpu.memory_space<vmem>>, vector<1x15x32xf32>
    %28 = vector.shape_cast %27 : vector<1x15x32xf32> to vector<15x32xf32>
    %29 = arith.addf %26, %28 : vector<15x32xf32>
    %c0_25 = arith.constant 0 : index
    %c0_26 = arith.constant 0 : index
    %30 = vector.load %arg31[%c0_25, %c0_26] : memref<45x32xf32, #tpu.memory_space<vmem>>, vector<15x32xf32>
    tpu.vector_store %arg31[%c0_25, %c0_26], %29 {strides = array<i32>} : memref<45x32xf32, #tpu.memory_space<vmem>>, vector<15x32xf32>,
    %c0_27 = arith.constant 0 : index
    %c15 = arith.constant 15 : index
    %c0_28 = arith.constant 0 : index
    %31 = vector.load %arg6[%c0_27, %c15, %c0_28] : memref<1x45x32xf32, #tpu.memory_space<vmem>>, vector<1x15x32xf32>
    %32 = vector.shape_cast %31 : vector<1x15x32xf32> to vector<15x32xf32>
    %33 = arith.addf %9, %32 : vector<15x32xf32>
    %c15_29 = arith.constant 15 : index
    %c0_30 = arith.constant 0 : index
    %34 = vector.load %arg31[%c15_29, %c0_30] : memref<45x32xf32, #tpu.memory_space<vmem>>, vector<15x32xf32>
    tpu.vector_store %arg31[%c15_29, %c0_30], %33 {strides = array<i32>} : memref<45x32xf32, #tpu.memory_space<vmem>>, vector<15x32xf32>,
    %c0_31 = arith.constant 0 : index
    %c30 = arith.constant 30 : index
    %c0_32 = arith.constant 0 : index
    %35 = vector.load %arg6[%c0_31, %c30, %c0_32] : memref<1x45x32xf32, #tpu.memory_space<vmem>>, vector<1x15x32xf32>
    %36 = vector.shape_cast %35 : vector<1x15x32xf32> to vector<15x32xf32>
    %37 = arith.addf %19, %36 : vector<15x32xf32>
    %c30_33 = arith.constant 30 : index
    %c0_34 = arith.constant 0 : index
    %38 = vector.load %arg31[%c30_33, %c0_34] : memref<45x32xf32, #tpu.memory_space<vmem>>, vector<15x32xf32>
    tpu.vector_store %arg31[%c30_33, %c0_34], %37 {strides = array<i32>} : memref<45x32xf32, #tpu.memory_space<vmem>>, vector<15x32xf32>,
    %c0_35 = arith.constant 0 : index
    %c0_36 = arith.constant 0 : index
    %39 = vector.load %arg31[%c0_35, %c0_36] : memref<45x32xf32, #tpu.memory_space<vmem>>, vector<45x32xf32>
    %cst_37 = arith.constant 0.000000e+00 : f32
    %40 = vector.broadcast %cst_37 : f32 to vector<45x32xf32>
    %c0_38 = arith.constant 0 : index
    %c0_39 = arith.constant 0 : index
    %c0_40 = arith.constant 0 : index
    %41 = vector.load %arg16[%c0_38, %c0_39, %c0_40] : memref<2x1x32xf32, #tpu.memory_space<vmem>>, vector<1x1x32xf32>
    %42 = vector.shape_cast %41 : vector<1x1x32xf32> to vector<1x32xf32>
    %43 = vector.broadcast %42 : vector<1x32xf32> to vector<45x32xf32>
    %44 = arith.addf %40, %43 : vector<45x32xf32>
    %c0_41 = arith.constant 0 : index
    %c0_42 = arith.constant 0 : index
    %c0_43 = arith.constant 0 : index
    %c0_44 = arith.constant 0 : index
    %45 = vector.load %arg9[%c0_41, %c0_42, %c0_43, %c0_44] : memref<2x4x32x8xf32, #tpu.memory_space<vmem>>, vector<1x1x32x8xf32>
    %46 = vector.shape_cast %45 : vector<1x1x32x8xf32> to vector<32x8xf32>
    %cst_45 = arith.constant dense<0.000000e+00> : vector<45x8xf32>
    %47 = tpu.matmul %39, %46, %cst_45 {dimension_numbers = #tpu.dot_dimension_numbers<[1], [0], [0], [1], [0, 0, 1, 1], [], []>} : vector<45x32xf32>, vector<32x8xf32>, vector<45x8xf32> -> vector<45x8xf32>
    %c0_46 = arith.constant 0 : index
    %c0_47 = arith.constant 0 : index
    %c0_48 = arith.constant 0 : index
    %c0_49 = arith.constant 0 : index
    %48 = vector.load %arg12[%c0_46, %c0_47, %c0_48, %c0_49] : memref<2x4x1x8xf32, #tpu.memory_space<vmem>>, vector<1x1x1x8xf32>
    %49 = vector.shape_cast %48 : vector<1x1x1x8xf32> to vector<1x8xf32>
    %50 = vector.broadcast %49 : vector<1x8xf32> to vector<45x8xf32>
    %51 = arith.addf %47, %50 : vector<45x8xf32>
    %c0_50 = arith.constant 0 : index
    %c0_51 = arith.constant 0 : index
    %c0_52 = arith.constant 0 : index
    %c0_53 = arith.constant 0 : index
    %52 = vector.load %arg10[%c0_50, %c0_51, %c0_52, %c0_53] : memref<2x4x32x8xf32, #tpu.memory_space<vmem>>, vector<1x1x32x8xf32>
    %53 = vector.shape_cast %52 : vector<1x1x32x8xf32> to vector<32x8xf32>
    %cst_54 = arith.constant dense<0.000000e+00> : vector<45x8xf32>
    %54 = tpu.matmul %39, %53, %cst_54 {dimension_numbers = #tpu.dot_dimension_numbers<[1], [0], [0], [1], [0, 0, 1, 1], [], []>} : vector<45x32xf32>, vector<32x8xf32>, vector<45x8xf32> -> vector<45x8xf32>
    %c0_55 = arith.constant 0 : index
    %c0_56 = arith.constant 0 : index
    %c0_57 = arith.constant 0 : index
    %c0_58 = arith.constant 0 : index
    %55 = vector.load %arg13[%c0_55, %c0_56, %c0_57, %c0_58] : memref<2x4x1x8xf32, #tpu.memory_space<vmem>>, vector<1x1x1x8xf32>
    %56 = vector.shape_cast %55 : vector<1x1x1x8xf32> to vector<1x8xf32>
    %57 = vector.broadcast %56 : vector<1x8xf32> to vector<45x8xf32>
    %58 = arith.addf %54, %57 : vector<45x8xf32>
    %c0_59 = arith.constant 0 : index
    %c0_60 = arith.constant 0 : index
    %c0_61 = arith.constant 0 : index
    %c0_62 = arith.constant 0 : index
    %59 = vector.load %arg11[%c0_59, %c0_60, %c0_61, %c0_62] : memref<2x4x32x8xf32, #tpu.memory_space<vmem>>, vector<1x1x32x8xf32>
    %60 = vector.shape_cast %59 : vector<1x1x32x8xf32> to vector<32x8xf32>
    %cst_63 = arith.constant dense<0.000000e+00> : vector<45x8xf32>
    %61 = tpu.matmul %39, %60, %cst_63 {dimension_numbers = #tpu.dot_dimension_numbers<[1], [0], [0], [1], [0, 0, 1, 1], [], []>} : vector<45x32xf32>, vector<32x8xf32>, vector<45x8xf32> -> vector<45x8xf32>
    %c0_64 = arith.constant 0 : index
    %c0_65 = arith.constant 0 : index
    %c0_66 = arith.constant 0 : index
    %c0_67 = arith.constant 0 : index
    %62 = vector.load %arg14[%c0_64, %c0_65, %c0_66, %c0_67] : memref<2x4x1x8xf32, #tpu.memory_space<vmem>>, vector<1x1x1x8xf32>
    %63 = vector.shape_cast %62 : vector<1x1x1x8xf32> to vector<1x8xf32>
    %64 = vector.broadcast %63 : vector<1x8xf32> to vector<45x8xf32>
    %65 = arith.addf %61, %64 : vector<45x8xf32>
    %cst_68 = arith.constant 0.353553385 : f32
    %66 = vector.broadcast %cst_68 : f32 to vector<45x8xf32>
    %67 = arith.mulf %51, %66 : vector<45x8xf32>
    %cst_69 = arith.constant dense<0.000000e+00> : vector<45x45xf32>
    %68 = tpu.matmul %67, %58, %cst_69 {dimension_numbers = #tpu.dot_dimension_numbers<[1], [1], [0], [0], [0, 0, 1, 0], [], []>} : vector<45x8xf32>, vector<45x8xf32>, vector<45x45xf32> -> vector<45x45xf32>
    %cst_70 = arith.constant dense<0xFF800000> : vector<45xf32>
    %69 = vector.multi_reduction <maximumf>, %68, %cst_70 [1] : vector<45x45xf32> to vector<45xf32>
    %70 = vector.shape_cast %69 : vector<45xf32> to vector<45x1xf32>
    %71 = vector.broadcast %70 : vector<45x1xf32> to vector<45x45xf32>
    %72 = arith.subf %68, %71 : vector<45x45xf32>
    %73 = math.exp %72 : vector<45x45xf32>
    %cst_71 = arith.constant dense<0.000000e+00> : vector<45xf32>
    %74 = vector.multi_reduction <add>, %73, %cst_71 [1] : vector<45x45xf32> to vector<45xf32>
    %75 = vector.shape_cast %74 : vector<45xf32> to vector<45x1xf32>
    %76 = tpu.reciprocal %75 {approx = true} : vector<45x1xf32> -> vector<45x1xf32>
    %77 = vector.broadcast %76 : vector<45x1xf32> to vector<45x45xf32>
    %78 = arith.mulf %73, %77 : vector<45x45xf32>
    %cst_72 = arith.constant dense<0.000000e+00> : vector<45x8xf32>
    %79 = tpu.matmul %78, %65, %cst_72 {dimension_numbers = #tpu.dot_dimension_numbers<[1], [0], [0], [1], [0, 0, 1, 1], [], []>} : vector<45x45xf32>, vector<45x8xf32>, vector<45x8xf32> -> vector<45x8xf32>
    %c0_73 = arith.constant 0 : index
    %c0_74 = arith.constant 0 : index
    %c0_75 = arith.constant 0 : index
    %c0_76 = arith.constant 0 : index
    %80 = vector.load %arg15[%c0_73, %c0_74, %c0_75, %c0_76] : memref<2x4x8x32xf32, #tpu.memory_space<vmem>>, vector<1x1x8x32xf32>
    %81 = vector.shape_cast %80 : vector<1x1x8x32xf32> to vector<8x32xf32>
    %cst_77 = arith.constant dense<0.000000e+00> : vector<45x32xf32>
    %82 = tpu.matmul %79, %81, %cst_77 {dimension_numbers = #tpu.dot_dimension_numbers<[1], [0], [0], [1], [0, 0, 1, 1], [], []>} : vector<45x8xf32>, vector<8x32xf32>, vector<45x32xf32> -> vector<45x32xf32>
    %83 = arith.addf %44, %82 : vector<45x32xf32>
    %c0_78 = arith.constant 0 : index
    %c1 = arith.constant 1 : index
    %c0_79 = arith.constant 0 : index
    %c0_80 = arith.constant 0 : index
    %84 = vector.load %arg9[%c0_78, %c1, %c0_79, %c0_80] : memref<2x4x32x8xf32, #tpu.memory_space<vmem>>, vector<1x1x32x8xf32>
    %85 = vector.shape_cast %84 : vector<1x1x32x8xf32> to vector<32x8xf32>
    %cst_81 = arith.constant dense<0.000000e+00> : vector<45x8xf32>
    %86 = tpu.matmul %39, %85, %cst_81 {dimension_numbers = #tpu.dot_dimension_numbers<[1], [0], [0], [1], [0, 0, 1, 1], [], []>} : vector<45x32xf32>, vector<32x8xf32>, vector<45x8xf32> -> vector<45x8xf32>
    %c0_82 = arith.constant 0 : index
    %c1_83 = arith.constant 1 : index
    %c0_84 = arith.constant 0 : index
    %c0_85 = arith.constant 0 : index
    %87 = vector.load %arg12[%c0_82, %c1_83, %c0_84, %c0_85] : memref<2x4x1x8xf32, #tpu.memory_space<vmem>>, vector<1x1x1x8xf32>
    %88 = vector.shape_cast %87 : vector<1x1x1x8xf32> to vector<1x8xf32>
    %89 = vector.broadcast %88 : vector<1x8xf32> to vector<45x8xf32>
    %90 = arith.addf %86, %89 : vector<45x8xf32>
    %c0_86 = arith.constant 0 : index
    %c1_87 = arith.constant 1 : index
    %c0_88 = arith.constant 0 : index
    %c0_89 = arith.constant 0 : index
    %91 = vector.load %arg10[%c0_86, %c1_87, %c0_88, %c0_89] : memref<2x4x32x8xf32, #tpu.memory_space<vmem>>, vector<1x1x32x8xf32>
    %92 = vector.shape_cast %91 : vector<1x1x32x8xf32> to vector<32x8xf32>
    %cst_90 = arith.constant dense<0.000000e+00> : vector<45x8xf32>
    %93 = tpu.matmul %39, %92, %cst_90 {dimension_numbers = #tpu.dot_dimension_numbers<[1], [0], [0], [1], [0, 0, 1, 1], [], []>} : vector<45x32xf32>, vector<32x8xf32>, vector<45x8xf32> -> vector<45x8xf32>
    %c0_91 = arith.constant 0 : index
    %c1_92 = arith.constant 1 : index
    %c0_93 = arith.constant 0 : index
    %c0_94 = arith.constant 0 : index
    %94 = vector.load %arg13[%c0_91, %c1_92, %c0_93, %c0_94] : memref<2x4x1x8xf32, #tpu.memory_space<vmem>>, vector<1x1x1x8xf32>
    %95 = vector.shape_cast %94 : vector<1x1x1x8xf32> to vector<1x8xf32>
    %96 = vector.broadcast %95 : vector<1x8xf32> to vector<45x8xf32>
    %97 = arith.addf %93, %96 : vector<45x8xf32>
    %c0_95 = arith.constant 0 : index
    %c1_96 = arith.constant 1 : index
    %c0_97 = arith.constant 0 : index
    %c0_98 = arith.constant 0 : index
    %98 = vector.load %arg11[%c0_95, %c1_96, %c0_97, %c0_98] : memref<2x4x32x8xf32, #tpu.memory_space<vmem>>, vector<1x1x32x8xf32>
    %99 = vector.shape_cast %98 : vector<1x1x32x8xf32> to vector<32x8xf32>
    %cst_99 = arith.constant dense<0.000000e+00> : vector<45x8xf32>
    %100 = tpu.matmul %39, %99, %cst_99 {dimension_numbers = #tpu.dot_dimension_numbers<[1], [0], [0], [1], [0, 0, 1, 1], [], []>} : vector<45x32xf32>, vector<32x8xf32>, vector<45x8xf32> -> vector<45x8xf32>
    %c0_100 = arith.constant 0 : index
    %c1_101 = arith.constant 1 : index
    %c0_102 = arith.constant 0 : index
    %c0_103 = arith.constant 0 : index
    %101 = vector.load %arg14[%c0_100, %c1_101, %c0_102, %c0_103] : memref<2x4x1x8xf32, #tpu.memory_space<vmem>>, vector<1x1x1x8xf32>
    %102 = vector.shape_cast %101 : vector<1x1x1x8xf32> to vector<1x8xf32>
    %103 = vector.broadcast %102 : vector<1x8xf32> to vector<45x8xf32>
    %104 = arith.addf %100, %103 : vector<45x8xf32>
    %cst_104 = arith.constant 0.353553385 : f32
    %105 = vector.broadcast %cst_104 : f32 to vector<45x8xf32>
    %106 = arith.mulf %90, %105 : vector<45x8xf32>
    %cst_105 = arith.constant dense<0.000000e+00> : vector<45x45xf32>
    %107 = tpu.matmul %106, %97, %cst_105 {dimension_numbers = #tpu.dot_dimension_numbers<[1], [1], [0], [0], [0, 0, 1, 0], [], []>} : vector<45x8xf32>, vector<45x8xf32>, vector<45x45xf32> -> vector<45x45xf32>
    %cst_106 = arith.constant dense<0xFF800000> : vector<45xf32>
    %108 = vector.multi_reduction <maximumf>, %107, %cst_106 [1] : vector<45x45xf32> to vector<45xf32>
    %109 = vector.shape_cast %108 : vector<45xf32> to vector<45x1xf32>
    %110 = vector.broadcast %109 : vector<45x1xf32> to vector<45x45xf32>
    %111 = arith.subf %107, %110 : vector<45x45xf32>
    %112 = math.exp %111 : vector<45x45xf32>
    %cst_107 = arith.constant dense<0.000000e+00> : vector<45xf32>
    %113 = vector.multi_reduction <add>, %112, %cst_107 [1] : vector<45x45xf32> to vector<45xf32>
    %114 = vector.shape_cast %113 : vector<45xf32> to vector<45x1xf32>
    %115 = tpu.reciprocal %114 {approx = true} : vector<45x1xf32> -> vector<45x1xf32>
    %116 = vector.broadcast %115 : vector<45x1xf32> to vector<45x45xf32>
    %117 = arith.mulf %112, %116 : vector<45x45xf32>
    %cst_108 = arith.constant dense<0.000000e+00> : vector<45x8xf32>
    %118 = tpu.matmul %117, %104, %cst_108 {dimension_numbers = #tpu.dot_dimension_numbers<[1], [0], [0], [1], [0, 0, 1, 1], [], []>} : vector<45x45xf32>, vector<45x8xf32>, vector<45x8xf32> -> vector<45x8xf32>
    %c0_109 = arith.constant 0 : index
    %c1_110 = arith.constant 1 : index
    %c0_111 = arith.constant 0 : index
    %c0_112 = arith.constant 0 : index
    %119 = vector.load %arg15[%c0_109, %c1_110, %c0_111, %c0_112] : memref<2x4x8x32xf32, #tpu.memory_space<vmem>>, vector<1x1x8x32xf32>
    %120 = vector.shape_cast %119 : vector<1x1x8x32xf32> to vector<8x32xf32>
    %cst_113 = arith.constant dense<0.000000e+00> : vector<45x32xf32>
    %121 = tpu.matmul %118, %120, %cst_113 {dimension_numbers = #tpu.dot_dimension_numbers<[1], [0], [0], [1], [0, 0, 1, 1], [], []>} : vector<45x8xf32>, vector<8x32xf32>, vector<45x32xf32> -> vector<45x32xf32>
    %122 = arith.addf %83, %121 : vector<45x32xf32>
    %c0_114 = arith.constant 0 : index
    %c2 = arith.constant 2 : index
    %c0_115 = arith.constant 0 : index
    %c0_116 = arith.constant 0 : index
    %123 = vector.load %arg9[%c0_114, %c2, %c0_115, %c0_116] : memref<2x4x32x8xf32, #tpu.memory_space<vmem>>, vector<1x1x32x8xf32>
    %124 = vector.shape_cast %123 : vector<1x1x32x8xf32> to vector<32x8xf32>
    %cst_117 = arith.constant dense<0.000000e+00> : vector<45x8xf32>
    %125 = tpu.matmul %39, %124, %cst_117 {dimension_numbers = #tpu.dot_dimension_numbers<[1], [0], [0], [1], [0, 0, 1, 1], [], []>} : vector<45x32xf32>, vector<32x8xf32>, vector<45x8xf32> -> vector<45x8xf32>
    %c0_118 = arith.constant 0 : index
    %c2_119 = arith.constant 2 : index
    %c0_120 = arith.constant 0 : index
    %c0_121 = arith.constant 0 : index
    %126 = vector.load %arg12[%c0_118, %c2_119, %c0_120, %c0_121] : memref<2x4x1x8xf32, #tpu.memory_space<vmem>>, vector<1x1x1x8xf32>
    %127 = vector.shape_cast %126 : vector<1x1x1x8xf32> to vector<1x8xf32>
    %128 = vector.broadcast %127 : vector<1x8xf32> to vector<45x8xf32>
    %129 = arith.addf %125, %128 : vector<45x8xf32>
    %c0_122 = arith.constant 0 : index
    %c2_123 = arith.constant 2 : index
    %c0_124 = arith.constant 0 : index
    %c0_125 = arith.constant 0 : index
    %130 = vector.load %arg10[%c0_122, %c2_123, %c0_124, %c0_125] : memref<2x4x32x8xf32, #tpu.memory_space<vmem>>, vector<1x1x32x8xf32>
    %131 = vector.shape_cast %130 : vector<1x1x32x8xf32> to vector<32x8xf32>
    %cst_126 = arith.constant dense<0.000000e+00> : vector<45x8xf32>
    %132 = tpu.matmul %39, %131, %cst_126 {dimension_numbers = #tpu.dot_dimension_numbers<[1], [0], [0], [1], [0, 0, 1, 1], [], []>} : vector<45x32xf32>, vector<32x8xf32>, vector<45x8xf32> -> vector<45x8xf32>
    %c0_127 = arith.constant 0 : index
    %c2_128 = arith.constant 2 : index
    %c0_129 = arith.constant 0 : index
    %c0_130 = arith.constant 0 : index
    %133 = vector.load %arg13[%c0_127, %c2_128, %c0_129, %c0_130] : memref<2x4x1x8xf32, #tpu.memory_space<vmem>>, vector<1x1x1x8xf32>
    %134 = vector.shape_cast %133 : vector<1x1x1x8xf32> to vector<1x8xf32>
    %135 = vector.broadcast %134 : vector<1x8xf32> to vector<45x8xf32>
    %136 = arith.addf %132, %135 : vector<45x8xf32>
    %c0_131 = arith.constant 0 : index
    %c2_132 = arith.constant 2 : index
    %c0_133 = arith.constant 0 : index
    %c0_134 = arith.constant 0 : index
    %137 = vector.load %arg11[%c0_131, %c2_132, %c0_133, %c0_134] : memref<2x4x32x8xf32, #tpu.memory_space<vmem>>, vector<1x1x32x8xf32>
    %138 = vector.shape_cast %137 : vector<1x1x32x8xf32> to vector<32x8xf32>
    %cst_135 = arith.constant dense<0.000000e+00> : vector<45x8xf32>
    %139 = tpu.matmul %39, %138, %cst_135 {dimension_numbers = #tpu.dot_dimension_numbers<[1], [0], [0], [1], [0, 0, 1, 1], [], []>} : vector<45x32xf32>, vector<32x8xf32>, vector<45x8xf32> -> vector<45x8xf32>
    %c0_136 = arith.constant 0 : index
    %c2_137 = arith.constant 2 : index
    %c0_138 = arith.constant 0 : index
    %c0_139 = arith.constant 0 : index
    %140 = vector.load %arg14[%c0_136, %c2_137, %c0_138, %c0_139] : memref<2x4x1x8xf32, #tpu.memory_space<vmem>>, vector<1x1x1x8xf32>
    %141 = vector.shape_cast %140 : vector<1x1x1x8xf32> to vector<1x8xf32>
    %142 = vector.broadcast %141 : vector<1x8xf32> to vector<45x8xf32>
    %143 = arith.addf %139, %142 : vector<45x8xf32>
    %cst_140 = arith.constant 0.353553385 : f32
    %144 = vector.broadcast %cst_140 : f32 to vector<45x8xf32>
    %145 = arith.mulf %129, %144 : vector<45x8xf32>
    %cst_141 = arith.constant dense<0.000000e+00> : vector<45x45xf32>
    %146 = tpu.matmul %145, %136, %cst_141 {dimension_numbers = #tpu.dot_dimension_numbers<[1], [1], [0], [0], [0, 0, 1, 0], [], []>} : vector<45x8xf32>, vector<45x8xf32>, vector<45x45xf32> -> vector<45x45xf32>
    %cst_142 = arith.constant dense<0xFF800000> : vector<45xf32>
    %147 = vector.multi_reduction <maximumf>, %146, %cst_142 [1] : vector<45x45xf32> to vector<45xf32>
    %148 = vector.shape_cast %147 : vector<45xf32> to vector<45x1xf32>
    %149 = vector.broadcast %148 : vector<45x1xf32> to vector<45x45xf32>
    %150 = arith.subf %146, %149 : vector<45x45xf32>
    %151 = math.exp %150 : vector<45x45xf32>
    %cst_143 = arith.constant dense<0.000000e+00> : vector<45xf32>
    %152 = vector.multi_reduction <add>, %151, %cst_143 [1] : vector<45x45xf32> to vector<45xf32>
    %153 = vector.shape_cast %152 : vector<45xf32> to vector<45x1xf32>
    %154 = tpu.reciprocal %153 {approx = true} : vector<45x1xf32> -> vector<45x1xf32>
    %155 = vector.broadcast %154 : vector<45x1xf32> to vector<45x45xf32>
    %156 = arith.mulf %151, %155 : vector<45x45xf32>
    %cst_144 = arith.constant dense<0.000000e+00> : vector<45x8xf32>
    %157 = tpu.matmul %156, %143, %cst_144 {dimension_numbers = #tpu.dot_dimension_numbers<[1], [0], [0], [1], [0, 0, 1, 1], [], []>} : vector<45x45xf32>, vector<45x8xf32>, vector<45x8xf32> -> vector<45x8xf32>
    %c0_145 = arith.constant 0 : index
    %c2_146 = arith.constant 2 : index
    %c0_147 = arith.constant 0 : index
    %c0_148 = arith.constant 0 : index
    %158 = vector.load %arg15[%c0_145, %c2_146, %c0_147, %c0_148] : memref<2x4x8x32xf32, #tpu.memory_space<vmem>>, vector<1x1x8x32xf32>
    %159 = vector.shape_cast %158 : vector<1x1x8x32xf32> to vector<8x32xf32>
    %cst_149 = arith.constant dense<0.000000e+00> : vector<45x32xf32>
    %160 = tpu.matmul %157, %159, %cst_149 {dimension_numbers = #tpu.dot_dimension_numbers<[1], [0], [0], [1], [0, 0, 1, 1], [], []>} : vector<45x8xf32>, vector<8x32xf32>, vector<45x32xf32> -> vector<45x32xf32>
    %161 = arith.addf %122, %160 : vector<45x32xf32>
    %c0_150 = arith.constant 0 : index
    %c3 = arith.constant 3 : index
    %c0_151 = arith.constant 0 : index
    %c0_152 = arith.constant 0 : index
    %162 = vector.load %arg9[%c0_150, %c3, %c0_151, %c0_152] : memref<2x4x32x8xf32, #tpu.memory_space<vmem>>, vector<1x1x32x8xf32>
    %163 = vector.shape_cast %162 : vector<1x1x32x8xf32> to vector<32x8xf32>
    %cst_153 = arith.constant dense<0.000000e+00> : vector<45x8xf32>
    %164 = tpu.matmul %39, %163, %cst_153 {dimension_numbers = #tpu.dot_dimension_numbers<[1], [0], [0], [1], [0, 0, 1, 1], [], []>} : vector<45x32xf32>, vector<32x8xf32>, vector<45x8xf32> -> vector<45x8xf32>
    %c0_154 = arith.constant 0 : index
    %c3_155 = arith.constant 3 : index
    %c0_156 = arith.constant 0 : index
    %c0_157 = arith.constant 0 : index
    %165 = vector.load %arg12[%c0_154, %c3_155, %c0_156, %c0_157] : memref<2x4x1x8xf32, #tpu.memory_space<vmem>>, vector<1x1x1x8xf32>
    %166 = vector.shape_cast %165 : vector<1x1x1x8xf32> to vector<1x8xf32>
    %167 = vector.broadcast %166 : vector<1x8xf32> to vector<45x8xf32>
    %168 = arith.addf %164, %167 : vector<45x8xf32>
    %c0_158 = arith.constant 0 : index
    %c3_159 = arith.constant 3 : index
    %c0_160 = arith.constant 0 : index
    %c0_161 = arith.constant 0 : index
    %169 = vector.load %arg10[%c0_158, %c3_159, %c0_160, %c0_161] : memref<2x4x32x8xf32, #tpu.memory_space<vmem>>, vector<1x1x32x8xf32>
    %170 = vector.shape_cast %169 : vector<1x1x32x8xf32> to vector<32x8xf32>
    %cst_162 = arith.constant dense<0.000000e+00> : vector<45x8xf32>
    %171 = tpu.matmul %39, %170, %cst_162 {dimension_numbers = #tpu.dot_dimension_numbers<[1], [0], [0], [1], [0, 0, 1, 1], [], []>} : vector<45x32xf32>, vector<32x8xf32>, vector<45x8xf32> -> vector<45x8xf32>
    %c0_163 = arith.constant 0 : index
    %c3_164 = arith.constant 3 : index
    %c0_165 = arith.constant 0 : index
    %c0_166 = arith.constant 0 : index
    %172 = vector.load %arg13[%c0_163, %c3_164, %c0_165, %c0_166] : memref<2x4x1x8xf32, #tpu.memory_space<vmem>>, vector<1x1x1x8xf32>
    %173 = vector.shape_cast %172 : vector<1x1x1x8xf32> to vector<1x8xf32>
    %174 = vector.broadcast %173 : vector<1x8xf32> to vector<45x8xf32>
    %175 = arith.addf %171, %174 : vector<45x8xf32>
    %c0_167 = arith.constant 0 : index
    %c3_168 = arith.constant 3 : index
    %c0_169 = arith.constant 0 : index
    %c0_170 = arith.constant 0 : index
    %176 = vector.load %arg11[%c0_167, %c3_168, %c0_169, %c0_170] : memref<2x4x32x8xf32, #tpu.memory_space<vmem>>, vector<1x1x32x8xf32>
    %177 = vector.shape_cast %176 : vector<1x1x32x8xf32> to vector<32x8xf32>
    %cst_171 = arith.constant dense<0.000000e+00> : vector<45x8xf32>
    %178 = tpu.matmul %39, %177, %cst_171 {dimension_numbers = #tpu.dot_dimension_numbers<[1], [0], [0], [1], [0, 0, 1, 1], [], []>} : vector<45x32xf32>, vector<32x8xf32>, vector<45x8xf32> -> vector<45x8xf32>
    %c0_172 = arith.constant 0 : index
    %c3_173 = arith.constant 3 : index
    %c0_174 = arith.constant 0 : index
    %c0_175 = arith.constant 0 : index
    %179 = vector.load %arg14[%c0_172, %c3_173, %c0_174, %c0_175] : memref<2x4x1x8xf32, #tpu.memory_space<vmem>>, vector<1x1x1x8xf32>
    %180 = vector.shape_cast %179 : vector<1x1x1x8xf32> to vector<1x8xf32>
    %181 = vector.broadcast %180 : vector<1x8xf32> to vector<45x8xf32>
    %182 = arith.addf %178, %181 : vector<45x8xf32>
    %cst_176 = arith.constant 0.353553385 : f32
    %183 = vector.broadcast %cst_176 : f32 to vector<45x8xf32>
    %184 = arith.mulf %168, %183 : vector<45x8xf32>
    %cst_177 = arith.constant dense<0.000000e+00> : vector<45x45xf32>
    %185 = tpu.matmul %184, %175, %cst_177 {dimension_numbers = #tpu.dot_dimension_numbers<[1], [1], [0], [0], [0, 0, 1, 0], [], []>} : vector<45x8xf32>, vector<45x8xf32>, vector<45x45xf32> -> vector<45x45xf32>
    %cst_178 = arith.constant dense<0xFF800000> : vector<45xf32>
    %186 = vector.multi_reduction <maximumf>, %185, %cst_178 [1] : vector<45x45xf32> to vector<45xf32>
    %187 = vector.shape_cast %186 : vector<45xf32> to vector<45x1xf32>
    %188 = vector.broadcast %187 : vector<45x1xf32> to vector<45x45xf32>
    %189 = arith.subf %185, %188 : vector<45x45xf32>
    %190 = math.exp %189 : vector<45x45xf32>
    %cst_179 = arith.constant dense<0.000000e+00> : vector<45xf32>
    %191 = vector.multi_reduction <add>, %190, %cst_179 [1] : vector<45x45xf32> to vector<45xf32>
    %192 = vector.shape_cast %191 : vector<45xf32> to vector<45x1xf32>
    %193 = tpu.reciprocal %192 {approx = true} : vector<45x1xf32> -> vector<45x1xf32>
    %194 = vector.broadcast %193 : vector<45x1xf32> to vector<45x45xf32>
    %195 = arith.mulf %190, %194 : vector<45x45xf32>
    %cst_180 = arith.constant dense<0.000000e+00> : vector<45x8xf32>
    %196 = tpu.matmul %195, %182, %cst_180 {dimension_numbers = #tpu.dot_dimension_numbers<[1], [0], [0], [1], [0, 0, 1, 1], [], []>} : vector<45x45xf32>, vector<45x8xf32>, vector<45x8xf32> -> vector<45x8xf32>
    %c0_181 = arith.constant 0 : index
    %c3_182 = arith.constant 3 : index
    %c0_183 = arith.constant 0 : index
    %c0_184 = arith.constant 0 : index
    %197 = vector.load %arg15[%c0_181, %c3_182, %c0_183, %c0_184] : memref<2x4x8x32xf32, #tpu.memory_space<vmem>>, vector<1x1x8x32xf32>
    %198 = vector.shape_cast %197 : vector<1x1x8x32xf32> to vector<8x32xf32>
    %cst_185 = arith.constant dense<0.000000e+00> : vector<45x32xf32>
    %199 = tpu.matmul %196, %198, %cst_185 {dimension_numbers = #tpu.dot_dimension_numbers<[1], [0], [0], [1], [0, 0, 1, 1], [], []>} : vector<45x8xf32>, vector<8x32xf32>, vector<45x32xf32> -> vector<45x32xf32>
    %200 = arith.addf %161, %199 : vector<45x32xf32>
    %201 = arith.addf %39, %200 : vector<45x32xf32>
    %c0_186 = arith.constant 0 : index
    %c0_187 = arith.constant 0 : index
    %c0_188 = arith.constant 0 : index
    %202 = vector.load %arg17[%c0_186, %c0_187, %c0_188] : memref<2x1x32xf32, #tpu.memory_space<vmem>>, vector<1x1x32xf32>
    %203 = vector.shape_cast %202 : vector<1x1x32xf32> to vector<1x32xf32>
    %c0_189 = arith.constant 0 : index
    %c0_190 = arith.constant 0 : index
    %c0_191 = arith.constant 0 : index
    %204 = vector.load %arg18[%c0_189, %c0_190, %c0_191] : memref<2x1x32xf32, #tpu.memory_space<vmem>>, vector<1x1x32xf32>
    %205 = vector.shape_cast %204 : vector<1x1x32xf32> to vector<1x32xf32>
    %cst_192 = arith.constant dense<0.000000e+00> : vector<45xf32>
    %206 = vector.multi_reduction <add>, %201, %cst_192 [1] : vector<45x32xf32> to vector<45xf32>
    %207 = vector.shape_cast %206 : vector<45xf32> to vector<45x1xf32>
    %cst_193 = arith.constant 3.200000e+01 : f32
    %208 = vector.broadcast %cst_193 : f32 to vector<45x1xf32>
    %209 = arith.divf %207, %208 : vector<45x1xf32>
    %210 = vector.broadcast %209 : vector<45x1xf32> to vector<45x32xf32>
    %211 = arith.subf %201, %210 : vector<45x32xf32>
    %212 = arith.mulf %211, %211 : vector<45x32xf32>
    %cst_194 = arith.constant dense<0.000000e+00> : vector<45xf32>
    %213 = vector.multi_reduction <add>, %212, %cst_194 [1] : vector<45x32xf32> to vector<45xf32>
    %214 = vector.shape_cast %213 : vector<45xf32> to vector<45x1xf32>
    %cst_195 = arith.constant 3.200000e+01 : f32
    %215 = vector.broadcast %cst_195 : f32 to vector<45x1xf32>
    %216 = arith.divf %214, %215 : vector<45x1xf32>
    %217 = vector.broadcast %209 : vector<45x1xf32> to vector<45x32xf32>
    %218 = arith.subf %201, %217 : vector<45x32xf32>
    %cst_196 = arith.constant 9.99999974E-6 : f32
    %219 = vector.broadcast %cst_196 : f32 to vector<45x1xf32>
    %220 = arith.addf %216, %219 : vector<45x1xf32>
    %221 = math.rsqrt %220 : vector<45x1xf32>
    %222 = vector.broadcast %221 : vector<45x1xf32> to vector<45x32xf32>
    %223 = arith.mulf %218, %222 : vector<45x32xf32>
    %224 = vector.broadcast %203 : vector<1x32xf32> to vector<45x32xf32>
    %225 = arith.mulf %223, %224 : vector<45x32xf32>
    %226 = vector.broadcast %205 : vector<1x32xf32> to vector<45x32xf32>
    %227 = arith.addf %225, %226 : vector<45x32xf32>
    %c0_197 = arith.constant 0 : index
    %c0_198 = arith.constant 0 : index
    %c0_199 = arith.constant 0 : index
    %228 = vector.load %arg21[%c0_197, %c0_198, %c0_199] : memref<2x32x128xf32, #tpu.memory_space<vmem>>, vector<1x32x128xf32>
    %229 = vector.shape_cast %228 : vector<1x32x128xf32> to vector<32x128xf32>
    %cst_200 = arith.constant dense<0.000000e+00> : vector<45x128xf32>
    %230 = tpu.matmul %227, %229, %cst_200 {dimension_numbers = #tpu.dot_dimension_numbers<[1], [0], [0], [1], [0, 0, 1, 1], [], []>} : vector<45x32xf32>, vector<32x128xf32>, vector<45x128xf32> -> vector<45x128xf32>
    %c0_201 = arith.constant 0 : index
    %c0_202 = arith.constant 0 : index
    %c0_203 = arith.constant 0 : index
    %231 = vector.load %arg22[%c0_201, %c0_202, %c0_203] : memref<2x1x128xf32, #tpu.memory_space<vmem>>, vector<1x1x128xf32>
    %232 = vector.shape_cast %231 : vector<1x1x128xf32> to vector<1x128xf32>
    %233 = vector.broadcast %232 : vector<1x128xf32> to vector<45x128xf32>
    %234 = arith.addf %230, %233 : vector<45x128xf32>
    %cst_204 = arith.constant 0.707106769 : f32
    %235 = vector.broadcast %cst_204 : f32 to vector<45x128xf32>
    %236 = arith.mulf %234, %235 : vector<45x128xf32>
    %237 = math.absf %236 : vector<45x128xf32>
    %cst_205 = arith.constant 0.327591091 : f32
    %238 = vector.broadcast %cst_205 : f32 to vector<45x128xf32>
    %239 = arith.mulf %238, %237 : vector<45x128xf32>
    %cst_206 = arith.constant 1.000000e+00 : f32
    %240 = vector.broadcast %cst_206 : f32 to vector<45x128xf32>
    %241 = arith.addf %240, %239 : vector<45x128xf32>
    %cst_207 = arith.constant 1.000000e+00 : f32
    %242 = vector.broadcast %cst_207 : f32 to vector<45x128xf32>
    %243 = arith.divf %242, %241 : vector<45x128xf32>
    %cst_208 = arith.constant 1.06140542 : f32
    %244 = vector.broadcast %cst_208 : f32 to vector<45x128xf32>
    %245 = arith.mulf %244, %243 : vector<45x128xf32>
    %cst_209 = arith.constant 1.45315206 : f32
    %246 = vector.broadcast %cst_209 : f32 to vector<45x128xf32>
    %247 = arith.subf %245, %246 : vector<45x128xf32>
    %248 = arith.mulf %247, %243 : vector<45x128xf32>
    %cst_210 = arith.constant 1.42141378 : f32
    %249 = vector.broadcast %cst_210 : f32 to vector<45x128xf32>
    %250 = arith.addf %248, %249 : vector<45x128xf32>
    %251 = arith.mulf %250, %243 : vector<45x128xf32>
    %cst_211 = arith.constant 0.284496725 : f32
    %252 = vector.broadcast %cst_211 : f32 to vector<45x128xf32>
    %253 = arith.subf %251, %252 : vector<45x128xf32>
    %254 = arith.mulf %253, %243 : vector<45x128xf32>
    %cst_212 = arith.constant 0.254829586 : f32
    %255 = vector.broadcast %cst_212 : f32 to vector<45x128xf32>
    %256 = arith.addf %254, %255 : vector<45x128xf32>
    %257 = arith.mulf %256, %243 : vector<45x128xf32>
    %cst_213 = arith.constant 0.000000e+00 : f32
    %258 = vector.broadcast %cst_213 : f32 to vector<45x128xf32>
    %259 = arith.subf %258, %237 : vector<45x128xf32>
    %260 = arith.mulf %259, %237 : vector<45x128xf32>
    %261 = math.exp %260 : vector<45x128xf32>
    %262 = arith.mulf %257, %261 : vector<45x128xf32>
    %cst_214 = arith.constant 1.000000e+00 : f32
    %263 = vector.broadcast %cst_214 : f32 to vector<45x128xf32>
    %264 = arith.subf %263, %262 : vector<45x128xf32>
    %cst_215 = arith.constant 0.000000e+00 : f32
    %265 = vector.broadcast %cst_215 : f32 to vector<45x128xf32>
    %266 = arith.cmpf oge, %236, %265 : vector<45x128xf32>
    %cst_216 = arith.constant 0.000000e+00 : f32
    %267 = vector.broadcast %cst_216 : f32 to vector<45x128xf32>
    %268 = arith.subf %267, %264 : vector<45x128xf32>
    %269 = arith.select %266, %264, %268 : vector<45x128xi1>, vector<45x128xf32>
    %cst_217 = arith.constant 5.000000e-01 : f32
    %270 = vector.broadcast %cst_217 : f32 to vector<45x128xf32>
    %271 = arith.mulf %270, %234 : vector<45x128xf32>
    %cst_218 = arith.constant 1.000000e+00 : f32
    %272 = vector.broadcast %cst_218 : f32 to vector<45x128xf32>
    %273 = arith.addf %272, %269 : vector<45x128xf32>
    %274 = arith.mulf %271, %273 : vector<45x128xf32>
    %c0_219 = arith.constant 0 : index
    %c0_220 = arith.constant 0 : index
    %c0_221 = arith.constant 0 : index
    %275 = vector.load %arg23[%c0_219, %c0_220, %c0_221] : memref<2x128x32xf32, #tpu.memory_space<vmem>>, vector<1x128x32xf32>
    %276 = vector.shape_cast %275 : vector<1x128x32xf32> to vector<128x32xf32>
    %cst_222 = arith.constant dense<0.000000e+00> : vector<45x32xf32>
    %277 = tpu.matmul %274, %276, %cst_222 {dimension_numbers = #tpu.dot_dimension_numbers<[1], [0], [0], [1], [0, 0, 1, 1], [], []>} : vector<45x128xf32>, vector<128x32xf32>, vector<45x32xf32> -> vector<45x32xf32>
    %c0_223 = arith.constant 0 : index
    %c0_224 = arith.constant 0 : index
    %c0_225 = arith.constant 0 : index
    %278 = vector.load %arg24[%c0_223, %c0_224, %c0_225] : memref<2x1x32xf32, #tpu.memory_space<vmem>>, vector<1x1x32xf32>
    %279 = vector.shape_cast %278 : vector<1x1x32xf32> to vector<1x32xf32>
    %280 = vector.broadcast %279 : vector<1x32xf32> to vector<45x32xf32>
    %281 = arith.addf %277, %280 : vector<45x32xf32>
    %282 = arith.addf %227, %281 : vector<45x32xf32>
    %c0_226 = arith.constant 0 : index
    %c0_227 = arith.constant 0 : index
    %c0_228 = arith.constant 0 : index
    %283 = vector.load %arg19[%c0_226, %c0_227, %c0_228] : memref<2x1x32xf32, #tpu.memory_space<vmem>>, vector<1x1x32xf32>
    %284 = vector.shape_cast %283 : vector<1x1x32xf32> to vector<1x32xf32>
    %c0_229 = arith.constant 0 : index
    %c0_230 = arith.constant 0 : index
    %c0_231 = arith.constant 0 : index
    %285 = vector.load %arg20[%c0_229, %c0_230, %c0_231] : memref<2x1x32xf32, #tpu.memory_space<vmem>>, vector<1x1x32xf32>
    %286 = vector.shape_cast %285 : vector<1x1x32xf32> to vector<1x32xf32>
    %cst_232 = arith.constant dense<0.000000e+00> : vector<45xf32>
    %287 = vector.multi_reduction <add>, %282, %cst_232 [1] : vector<45x32xf32> to vector<45xf32>
    %288 = vector.shape_cast %287 : vector<45xf32> to vector<45x1xf32>
    %cst_233 = arith.constant 3.200000e+01 : f32
    %289 = vector.broadcast %cst_233 : f32 to vector<45x1xf32>
    %290 = arith.divf %288, %289 : vector<45x1xf32>
    %291 = vector.broadcast %290 : vector<45x1xf32> to vector<45x32xf32>
    %292 = arith.subf %282, %291 : vector<45x32xf32>
    %293 = arith.mulf %292, %292 : vector<45x32xf32>
    %cst_234 = arith.constant dense<0.000000e+00> : vector<45xf32>
    %294 = vector.multi_reduction <add>, %293, %cst_234 [1] : vector<45x32xf32> to vector<45xf32>
    %295 = vector.shape_cast %294 : vector<45xf32> to vector<45x1xf32>
    %cst_235 = arith.constant 3.200000e+01 : f32
    %296 = vector.broadcast %cst_235 : f32 to vector<45x1xf32>
    %297 = arith.divf %295, %296 : vector<45x1xf32>
    %298 = vector.broadcast %290 : vector<45x1xf32> to vector<45x32xf32>
    %299 = arith.subf %282, %298 : vector<45x32xf32>
    %cst_236 = arith.constant 9.99999974E-6 : f32
    %300 = vector.broadcast %cst_236 : f32 to vector<45x1xf32>
    %301 = arith.addf %297, %300 : vector<45x1xf32>
    %302 = math.rsqrt %301 : vector<45x1xf32>
    %303 = vector.broadcast %302 : vector<45x1xf32> to vector<45x32xf32>
    %304 = arith.mulf %299, %303 : vector<45x32xf32>
    %305 = vector.broadcast %284 : vector<1x32xf32> to vector<45x32xf32>
    %306 = arith.mulf %304, %305 : vector<45x32xf32>
    %307 = vector.broadcast %286 : vector<1x32xf32> to vector<45x32xf32>
    %308 = arith.addf %306, %307 : vector<45x32xf32>
    %cst_237 = arith.constant 0.000000e+00 : f32
    %309 = vector.broadcast %cst_237 : f32 to vector<45x32xf32>
    %c1_238 = arith.constant 1 : index
    %c0_239 = arith.constant 0 : index
    %c0_240 = arith.constant 0 : index
    %310 = vector.load %arg16[%c1_238, %c0_239, %c0_240] : memref<2x1x32xf32, #tpu.memory_space<vmem>>, vector<1x1x32xf32>
    %311 = vector.shape_cast %310 : vector<1x1x32xf32> to vector<1x32xf32>
    %312 = vector.broadcast %311 : vector<1x32xf32> to vector<45x32xf32>
    %313 = arith.addf %309, %312 : vector<45x32xf32>
    %c1_241 = arith.constant 1 : index
    %c0_242 = arith.constant 0 : index
    %c0_243 = arith.constant 0 : index
    %c0_244 = arith.constant 0 : index
    %314 = vector.load %arg9[%c1_241, %c0_242, %c0_243, %c0_244] : memref<2x4x32x8xf32, #tpu.memory_space<vmem>>, vector<1x1x32x8xf32>
    %315 = vector.shape_cast %314 : vector<1x1x32x8xf32> to vector<32x8xf32>
    %cst_245 = arith.constant dense<0.000000e+00> : vector<45x8xf32>
    %316 = tpu.matmul %308, %315, %cst_245 {dimension_numbers = #tpu.dot_dimension_numbers<[1], [0], [0], [1], [0, 0, 1, 1], [], []>} : vector<45x32xf32>, vector<32x8xf32>, vector<45x8xf32> -> vector<45x8xf32>
    %c1_246 = arith.constant 1 : index
    %c0_247 = arith.constant 0 : index
    %c0_248 = arith.constant 0 : index
    %c0_249 = arith.constant 0 : index
    %317 = vector.load %arg12[%c1_246, %c0_247, %c0_248, %c0_249] : memref<2x4x1x8xf32, #tpu.memory_space<vmem>>, vector<1x1x1x8xf32>
    %318 = vector.shape_cast %317 : vector<1x1x1x8xf32> to vector<1x8xf32>
    %319 = vector.broadcast %318 : vector<1x8xf32> to vector<45x8xf32>
    %320 = arith.addf %316, %319 : vector<45x8xf32>
    %c1_250 = arith.constant 1 : index
    %c0_251 = arith.constant 0 : index
    %c0_252 = arith.constant 0 : index
    %c0_253 = arith.constant 0 : index
    %321 = vector.load %arg10[%c1_250, %c0_251, %c0_252, %c0_253] : memref<2x4x32x8xf32, #tpu.memory_space<vmem>>, vector<1x1x32x8xf32>
    %322 = vector.shape_cast %321 : vector<1x1x32x8xf32> to vector<32x8xf32>
    %cst_254 = arith.constant dense<0.000000e+00> : vector<45x8xf32>
    %323 = tpu.matmul %308, %322, %cst_254 {dimension_numbers = #tpu.dot_dimension_numbers<[1], [0], [0], [1], [0, 0, 1, 1], [], []>} : vector<45x32xf32>, vector<32x8xf32>, vector<45x8xf32> -> vector<45x8xf32>
    %c1_255 = arith.constant 1 : index
    %c0_256 = arith.constant 0 : index
    %c0_257 = arith.constant 0 : index
    %c0_258 = arith.constant 0 : index
    %324 = vector.load %arg13[%c1_255, %c0_256, %c0_257, %c0_258] : memref<2x4x1x8xf32, #tpu.memory_space<vmem>>, vector<1x1x1x8xf32>
    %325 = vector.shape_cast %324 : vector<1x1x1x8xf32> to vector<1x8xf32>
    %326 = vector.broadcast %325 : vector<1x8xf32> to vector<45x8xf32>
    %327 = arith.addf %323, %326 : vector<45x8xf32>
    %c1_259 = arith.constant 1 : index
    %c0_260 = arith.constant 0 : index
    %c0_261 = arith.constant 0 : index
    %c0_262 = arith.constant 0 : index
    %328 = vector.load %arg11[%c1_259, %c0_260, %c0_261, %c0_262] : memref<2x4x32x8xf32, #tpu.memory_space<vmem>>, vector<1x1x32x8xf32>
    %329 = vector.shape_cast %328 : vector<1x1x32x8xf32> to vector<32x8xf32>
    %cst_263 = arith.constant dense<0.000000e+00> : vector<45x8xf32>
    %330 = tpu.matmul %308, %329, %cst_263 {dimension_numbers = #tpu.dot_dimension_numbers<[1], [0], [0], [1], [0, 0, 1, 1], [], []>} : vector<45x32xf32>, vector<32x8xf32>, vector<45x8xf32> -> vector<45x8xf32>
    %c1_264 = arith.constant 1 : index
    %c0_265 = arith.constant 0 : index
    %c0_266 = arith.constant 0 : index
    %c0_267 = arith.constant 0 : index
    %331 = vector.load %arg14[%c1_264, %c0_265, %c0_266, %c0_267] : memref<2x4x1x8xf32, #tpu.memory_space<vmem>>, vector<1x1x1x8xf32>
    %332 = vector.shape_cast %331 : vector<1x1x1x8xf32> to vector<1x8xf32>
    %333 = vector.broadcast %332 : vector<1x8xf32> to vector<45x8xf32>
    %334 = arith.addf %330, %333 : vector<45x8xf32>
    %cst_268 = arith.constant 0.353553385 : f32
    %335 = vector.broadcast %cst_268 : f32 to vector<45x8xf32>
    %336 = arith.mulf %320, %335 : vector<45x8xf32>
    %cst_269 = arith.constant dense<0.000000e+00> : vector<45x45xf32>
    %337 = tpu.matmul %336, %327, %cst_269 {dimension_numbers = #tpu.dot_dimension_numbers<[1], [1], [0], [0], [0, 0, 1, 0], [], []>} : vector<45x8xf32>, vector<45x8xf32>, vector<45x45xf32> -> vector<45x45xf32>
    %cst_270 = arith.constant dense<0xFF800000> : vector<45xf32>
    %338 = vector.multi_reduction <maximumf>, %337, %cst_270 [1] : vector<45x45xf32> to vector<45xf32>
    %339 = vector.shape_cast %338 : vector<45xf32> to vector<45x1xf32>
    %340 = vector.broadcast %339 : vector<45x1xf32> to vector<45x45xf32>
    %341 = arith.subf %337, %340 : vector<45x45xf32>
    %342 = math.exp %341 : vector<45x45xf32>
    %cst_271 = arith.constant dense<0.000000e+00> : vector<45xf32>
    %343 = vector.multi_reduction <add>, %342, %cst_271 [1] : vector<45x45xf32> to vector<45xf32>
    %344 = vector.shape_cast %343 : vector<45xf32> to vector<45x1xf32>
    %345 = tpu.reciprocal %344 {approx = true} : vector<45x1xf32> -> vector<45x1xf32>
    %346 = vector.broadcast %345 : vector<45x1xf32> to vector<45x45xf32>
    %347 = arith.mulf %342, %346 : vector<45x45xf32>
    %cst_272 = arith.constant dense<0.000000e+00> : vector<45x8xf32>
    %348 = tpu.matmul %347, %334, %cst_272 {dimension_numbers = #tpu.dot_dimension_numbers<[1], [0], [0], [1], [0, 0, 1, 1], [], []>} : vector<45x45xf32>, vector<45x8xf32>, vector<45x8xf32> -> vector<45x8xf32>
    %c1_273 = arith.constant 1 : index
    %c0_274 = arith.constant 0 : index
    %c0_275 = arith.constant 0 : index
    %c0_276 = arith.constant 0 : index
    %349 = vector.load %arg15[%c1_273, %c0_274, %c0_275, %c0_276] : memref<2x4x8x32xf32, #tpu.memory_space<vmem>>, vector<1x1x8x32xf32>
    %350 = vector.shape_cast %349 : vector<1x1x8x32xf32> to vector<8x32xf32>
    %cst_277 = arith.constant dense<0.000000e+00> : vector<45x32xf32>
    %351 = tpu.matmul %348, %350, %cst_277 {dimension_numbers = #tpu.dot_dimension_numbers<[1], [0], [0], [1], [0, 0, 1, 1], [], []>} : vector<45x8xf32>, vector<8x32xf32>, vector<45x32xf32> -> vector<45x32xf32>
    %352 = arith.addf %313, %351 : vector<45x32xf32>
    %c1_278 = arith.constant 1 : index
    %c1_279 = arith.constant 1 : index
    %c0_280 = arith.constant 0 : index
    %c0_281 = arith.constant 0 : index
    %353 = vector.load %arg9[%c1_278, %c1_279, %c0_280, %c0_281] : memref<2x4x32x8xf32, #tpu.memory_space<vmem>>, vector<1x1x32x8xf32>
    %354 = vector.shape_cast %353 : vector<1x1x32x8xf32> to vector<32x8xf32>
    %cst_282 = arith.constant dense<0.000000e+00> : vector<45x8xf32>
    %355 = tpu.matmul %308, %354, %cst_282 {dimension_numbers = #tpu.dot_dimension_numbers<[1], [0], [0], [1], [0, 0, 1, 1], [], []>} : vector<45x32xf32>, vector<32x8xf32>, vector<45x8xf32> -> vector<45x8xf32>
    %c1_283 = arith.constant 1 : index
    %c1_284 = arith.constant 1 : index
    %c0_285 = arith.constant 0 : index
    %c0_286 = arith.constant 0 : index
    %356 = vector.load %arg12[%c1_283, %c1_284, %c0_285, %c0_286] : memref<2x4x1x8xf32, #tpu.memory_space<vmem>>, vector<1x1x1x8xf32>
    %357 = vector.shape_cast %356 : vector<1x1x1x8xf32> to vector<1x8xf32>
    %358 = vector.broadcast %357 : vector<1x8xf32> to vector<45x8xf32>
    %359 = arith.addf %355, %358 : vector<45x8xf32>
    %c1_287 = arith.constant 1 : index
    %c1_288 = arith.constant 1 : index
    %c0_289 = arith.constant 0 : index
    %c0_290 = arith.constant 0 : index
    %360 = vector.load %arg10[%c1_287, %c1_288, %c0_289, %c0_290] : memref<2x4x32x8xf32, #tpu.memory_space<vmem>>, vector<1x1x32x8xf32>
    %361 = vector.shape_cast %360 : vector<1x1x32x8xf32> to vector<32x8xf32>
    %cst_291 = arith.constant dense<0.000000e+00> : vector<45x8xf32>
    %362 = tpu.matmul %308, %361, %cst_291 {dimension_numbers = #tpu.dot_dimension_numbers<[1], [0], [0], [1], [0, 0, 1, 1], [], []>} : vector<45x32xf32>, vector<32x8xf32>, vector<45x8xf32> -> vector<45x8xf32>
    %c1_292 = arith.constant 1 : index
    %c1_293 = arith.constant 1 : index
    %c0_294 = arith.constant 0 : index
    %c0_295 = arith.constant 0 : index
    %363 = vector.load %arg13[%c1_292, %c1_293, %c0_294, %c0_295] : memref<2x4x1x8xf32, #tpu.memory_space<vmem>>, vector<1x1x1x8xf32>
    %364 = vector.shape_cast %363 : vector<1x1x1x8xf32> to vector<1x8xf32>
    %365 = vector.broadcast %364 : vector<1x8xf32> to vector<45x8xf32>
    %366 = arith.addf %362, %365 : vector<45x8xf32>
    %c1_296 = arith.constant 1 : index
    %c1_297 = arith.constant 1 : index
    %c0_298 = arith.constant 0 : index
    %c0_299 = arith.constant 0 : index
    %367 = vector.load %arg11[%c1_296, %c1_297, %c0_298, %c0_299] : memref<2x4x32x8xf32, #tpu.memory_space<vmem>>, vector<1x1x32x8xf32>
    %368 = vector.shape_cast %367 : vector<1x1x32x8xf32> to vector<32x8xf32>
    %cst_300 = arith.constant dense<0.000000e+00> : vector<45x8xf32>
    %369 = tpu.matmul %308, %368, %cst_300 {dimension_numbers = #tpu.dot_dimension_numbers<[1], [0], [0], [1], [0, 0, 1, 1], [], []>} : vector<45x32xf32>, vector<32x8xf32>, vector<45x8xf32> -> vector<45x8xf32>
    %c1_301 = arith.constant 1 : index
    %c1_302 = arith.constant 1 : index
    %c0_303 = arith.constant 0 : index
    %c0_304 = arith.constant 0 : index
    %370 = vector.load %arg14[%c1_301, %c1_302, %c0_303, %c0_304] : memref<2x4x1x8xf32, #tpu.memory_space<vmem>>, vector<1x1x1x8xf32>
    %371 = vector.shape_cast %370 : vector<1x1x1x8xf32> to vector<1x8xf32>
    %372 = vector.broadcast %371 : vector<1x8xf32> to vector<45x8xf32>
    %373 = arith.addf %369, %372 : vector<45x8xf32>
    %cst_305 = arith.constant 0.353553385 : f32
    %374 = vector.broadcast %cst_305 : f32 to vector<45x8xf32>
    %375 = arith.mulf %359, %374 : vector<45x8xf32>
    %cst_306 = arith.constant dense<0.000000e+00> : vector<45x45xf32>
    %376 = tpu.matmul %375, %366, %cst_306 {dimension_numbers = #tpu.dot_dimension_numbers<[1], [1], [0], [0], [0, 0, 1, 0], [], []>} : vector<45x8xf32>, vector<45x8xf32>, vector<45x45xf32> -> vector<45x45xf32>
    %cst_307 = arith.constant dense<0xFF800000> : vector<45xf32>
    %377 = vector.multi_reduction <maximumf>, %376, %cst_307 [1] : vector<45x45xf32> to vector<45xf32>
    %378 = vector.shape_cast %377 : vector<45xf32> to vector<45x1xf32>
    %379 = vector.broadcast %378 : vector<45x1xf32> to vector<45x45xf32>
    %380 = arith.subf %376, %379 : vector<45x45xf32>
    %381 = math.exp %380 : vector<45x45xf32>
    %cst_308 = arith.constant dense<0.000000e+00> : vector<45xf32>
    %382 = vector.multi_reduction <add>, %381, %cst_308 [1] : vector<45x45xf32> to vector<45xf32>
    %383 = vector.shape_cast %382 : vector<45xf32> to vector<45x1xf32>
    %384 = tpu.reciprocal %383 {approx = true} : vector<45x1xf32> -> vector<45x1xf32>
    %385 = vector.broadcast %384 : vector<45x1xf32> to vector<45x45xf32>
    %386 = arith.mulf %381, %385 : vector<45x45xf32>
    %cst_309 = arith.constant dense<0.000000e+00> : vector<45x8xf32>
    %387 = tpu.matmul %386, %373, %cst_309 {dimension_numbers = #tpu.dot_dimension_numbers<[1], [0], [0], [1], [0, 0, 1, 1], [], []>} : vector<45x45xf32>, vector<45x8xf32>, vector<45x8xf32> -> vector<45x8xf32>
    %c1_310 = arith.constant 1 : index
    %c1_311 = arith.constant 1 : index
    %c0_312 = arith.constant 0 : index
    %c0_313 = arith.constant 0 : index
    %388 = vector.load %arg15[%c1_310, %c1_311, %c0_312, %c0_313] : memref<2x4x8x32xf32, #tpu.memory_space<vmem>>, vector<1x1x8x32xf32>
    %389 = vector.shape_cast %388 : vector<1x1x8x32xf32> to vector<8x32xf32>
    %cst_314 = arith.constant dense<0.000000e+00> : vector<45x32xf32>
    %390 = tpu.matmul %387, %389, %cst_314 {dimension_numbers = #tpu.dot_dimension_numbers<[1], [0], [0], [1], [0, 0, 1, 1], [], []>} : vector<45x8xf32>, vector<8x32xf32>, vector<45x32xf32> -> vector<45x32xf32>
    %391 = arith.addf %352, %390 : vector<45x32xf32>
    %c1_315 = arith.constant 1 : index
    %c2_316 = arith.constant 2 : index
    %c0_317 = arith.constant 0 : index
    %c0_318 = arith.constant 0 : index
    %392 = vector.load %arg9[%c1_315, %c2_316, %c0_317, %c0_318] : memref<2x4x32x8xf32, #tpu.memory_space<vmem>>, vector<1x1x32x8xf32>
    %393 = vector.shape_cast %392 : vector<1x1x32x8xf32> to vector<32x8xf32>
    %cst_319 = arith.constant dense<0.000000e+00> : vector<45x8xf32>
    %394 = tpu.matmul %308, %393, %cst_319 {dimension_numbers = #tpu.dot_dimension_numbers<[1], [0], [0], [1], [0, 0, 1, 1], [], []>} : vector<45x32xf32>, vector<32x8xf32>, vector<45x8xf32> -> vector<45x8xf32>
    %c1_320 = arith.constant 1 : index
    %c2_321 = arith.constant 2 : index
    %c0_322 = arith.constant 0 : index
    %c0_323 = arith.constant 0 : index
    %395 = vector.load %arg12[%c1_320, %c2_321, %c0_322, %c0_323] : memref<2x4x1x8xf32, #tpu.memory_space<vmem>>, vector<1x1x1x8xf32>
    %396 = vector.shape_cast %395 : vector<1x1x1x8xf32> to vector<1x8xf32>
    %397 = vector.broadcast %396 : vector<1x8xf32> to vector<45x8xf32>
    %398 = arith.addf %394, %397 : vector<45x8xf32>
    %c1_324 = arith.constant 1 : index
    %c2_325 = arith.constant 2 : index
    %c0_326 = arith.constant 0 : index
    %c0_327 = arith.constant 0 : index
    %399 = vector.load %arg10[%c1_324, %c2_325, %c0_326, %c0_327] : memref<2x4x32x8xf32, #tpu.memory_space<vmem>>, vector<1x1x32x8xf32>
    %400 = vector.shape_cast %399 : vector<1x1x32x8xf32> to vector<32x8xf32>
    %cst_328 = arith.constant dense<0.000000e+00> : vector<45x8xf32>
    %401 = tpu.matmul %308, %400, %cst_328 {dimension_numbers = #tpu.dot_dimension_numbers<[1], [0], [0], [1], [0, 0, 1, 1], [], []>} : vector<45x32xf32>, vector<32x8xf32>, vector<45x8xf32> -> vector<45x8xf32>
    %c1_329 = arith.constant 1 : index
    %c2_330 = arith.constant 2 : index
    %c0_331 = arith.constant 0 : index
    %c0_332 = arith.constant 0 : index
    %402 = vector.load %arg13[%c1_329, %c2_330, %c0_331, %c0_332] : memref<2x4x1x8xf32, #tpu.memory_space<vmem>>, vector<1x1x1x8xf32>
    %403 = vector.shape_cast %402 : vector<1x1x1x8xf32> to vector<1x8xf32>
    %404 = vector.broadcast %403 : vector<1x8xf32> to vector<45x8xf32>
    %405 = arith.addf %401, %404 : vector<45x8xf32>
    %c1_333 = arith.constant 1 : index
    %c2_334 = arith.constant 2 : index
    %c0_335 = arith.constant 0 : index
    %c0_336 = arith.constant 0 : index
    %406 = vector.load %arg11[%c1_333, %c2_334, %c0_335, %c0_336] : memref<2x4x32x8xf32, #tpu.memory_space<vmem>>, vector<1x1x32x8xf32>
    %407 = vector.shape_cast %406 : vector<1x1x32x8xf32> to vector<32x8xf32>
    %cst_337 = arith.constant dense<0.000000e+00> : vector<45x8xf32>
    %408 = tpu.matmul %308, %407, %cst_337 {dimension_numbers = #tpu.dot_dimension_numbers<[1], [0], [0], [1], [0, 0, 1, 1], [], []>} : vector<45x32xf32>, vector<32x8xf32>, vector<45x8xf32> -> vector<45x8xf32>
    %c1_338 = arith.constant 1 : index
    %c2_339 = arith.constant 2 : index
    %c0_340 = arith.constant 0 : index
    %c0_341 = arith.constant 0 : index
    %409 = vector.load %arg14[%c1_338, %c2_339, %c0_340, %c0_341] : memref<2x4x1x8xf32, #tpu.memory_space<vmem>>, vector<1x1x1x8xf32>
    %410 = vector.shape_cast %409 : vector<1x1x1x8xf32> to vector<1x8xf32>
    %411 = vector.broadcast %410 : vector<1x8xf32> to vector<45x8xf32>
    %412 = arith.addf %408, %411 : vector<45x8xf32>
    %cst_342 = arith.constant 0.353553385 : f32
    %413 = vector.broadcast %cst_342 : f32 to vector<45x8xf32>
    %414 = arith.mulf %398, %413 : vector<45x8xf32>
    %cst_343 = arith.constant dense<0.000000e+00> : vector<45x45xf32>
    %415 = tpu.matmul %414, %405, %cst_343 {dimension_numbers = #tpu.dot_dimension_numbers<[1], [1], [0], [0], [0, 0, 1, 0], [], []>} : vector<45x8xf32>, vector<45x8xf32>, vector<45x45xf32> -> vector<45x45xf32>
    %cst_344 = arith.constant dense<0xFF800000> : vector<45xf32>
    %416 = vector.multi_reduction <maximumf>, %415, %cst_344 [1] : vector<45x45xf32> to vector<45xf32>
    %417 = vector.shape_cast %416 : vector<45xf32> to vector<45x1xf32>
    %418 = vector.broadcast %417 : vector<45x1xf32> to vector<45x45xf32>
    %419 = arith.subf %415, %418 : vector<45x45xf32>
    %420 = math.exp %419 : vector<45x45xf32>
    %cst_345 = arith.constant dense<0.000000e+00> : vector<45xf32>
    %421 = vector.multi_reduction <add>, %420, %cst_345 [1] : vector<45x45xf32> to vector<45xf32>
    %422 = vector.shape_cast %421 : vector<45xf32> to vector<45x1xf32>
    %423 = tpu.reciprocal %422 {approx = true} : vector<45x1xf32> -> vector<45x1xf32>
    %424 = vector.broadcast %423 : vector<45x1xf32> to vector<45x45xf32>
    %425 = arith.mulf %420, %424 : vector<45x45xf32>
    %cst_346 = arith.constant dense<0.000000e+00> : vector<45x8xf32>
    %426 = tpu.matmul %425, %412, %cst_346 {dimension_numbers = #tpu.dot_dimension_numbers<[1], [0], [0], [1], [0, 0, 1, 1], [], []>} : vector<45x45xf32>, vector<45x8xf32>, vector<45x8xf32> -> vector<45x8xf32>
    %c1_347 = arith.constant 1 : index
    %c2_348 = arith.constant 2 : index
    %c0_349 = arith.constant 0 : index
    %c0_350 = arith.constant 0 : index
    %427 = vector.load %arg15[%c1_347, %c2_348, %c0_349, %c0_350] : memref<2x4x8x32xf32, #tpu.memory_space<vmem>>, vector<1x1x8x32xf32>
    %428 = vector.shape_cast %427 : vector<1x1x8x32xf32> to vector<8x32xf32>
    %cst_351 = arith.constant dense<0.000000e+00> : vector<45x32xf32>
    %429 = tpu.matmul %426, %428, %cst_351 {dimension_numbers = #tpu.dot_dimension_numbers<[1], [0], [0], [1], [0, 0, 1, 1], [], []>} : vector<45x8xf32>, vector<8x32xf32>, vector<45x32xf32> -> vector<45x32xf32>
    %430 = arith.addf %391, %429 : vector<45x32xf32>
    %c1_352 = arith.constant 1 : index
    %c3_353 = arith.constant 3 : index
    %c0_354 = arith.constant 0 : index
    %c0_355 = arith.constant 0 : index
    %431 = vector.load %arg9[%c1_352, %c3_353, %c0_354, %c0_355] : memref<2x4x32x8xf32, #tpu.memory_space<vmem>>, vector<1x1x32x8xf32>
    %432 = vector.shape_cast %431 : vector<1x1x32x8xf32> to vector<32x8xf32>
    %cst_356 = arith.constant dense<0.000000e+00> : vector<45x8xf32>
    %433 = tpu.matmul %308, %432, %cst_356 {dimension_numbers = #tpu.dot_dimension_numbers<[1], [0], [0], [1], [0, 0, 1, 1], [], []>} : vector<45x32xf32>, vector<32x8xf32>, vector<45x8xf32> -> vector<45x8xf32>
    %c1_357 = arith.constant 1 : index
    %c3_358 = arith.constant 3 : index
    %c0_359 = arith.constant 0 : index
    %c0_360 = arith.constant 0 : index
    %434 = vector.load %arg12[%c1_357, %c3_358, %c0_359, %c0_360] : memref<2x4x1x8xf32, #tpu.memory_space<vmem>>, vector<1x1x1x8xf32>
    %435 = vector.shape_cast %434 : vector<1x1x1x8xf32> to vector<1x8xf32>
    %436 = vector.broadcast %435 : vector<1x8xf32> to vector<45x8xf32>
    %437 = arith.addf %433, %436 : vector<45x8xf32>
    %c1_361 = arith.constant 1 : index
    %c3_362 = arith.constant 3 : index
    %c0_363 = arith.constant 0 : index
    %c0_364 = arith.constant 0 : index
    %438 = vector.load %arg10[%c1_361, %c3_362, %c0_363, %c0_364] : memref<2x4x32x8xf32, #tpu.memory_space<vmem>>, vector<1x1x32x8xf32>
    %439 = vector.shape_cast %438 : vector<1x1x32x8xf32> to vector<32x8xf32>
    %cst_365 = arith.constant dense<0.000000e+00> : vector<45x8xf32>
    %440 = tpu.matmul %308, %439, %cst_365 {dimension_numbers = #tpu.dot_dimension_numbers<[1], [0], [0], [1], [0, 0, 1, 1], [], []>} : vector<45x32xf32>, vector<32x8xf32>, vector<45x8xf32> -> vector<45x8xf32>
    %c1_366 = arith.constant 1 : index
    %c3_367 = arith.constant 3 : index
    %c0_368 = arith.constant 0 : index
    %c0_369 = arith.constant 0 : index
    %441 = vector.load %arg13[%c1_366, %c3_367, %c0_368, %c0_369] : memref<2x4x1x8xf32, #tpu.memory_space<vmem>>, vector<1x1x1x8xf32>
    %442 = vector.shape_cast %441 : vector<1x1x1x8xf32> to vector<1x8xf32>
    %443 = vector.broadcast %442 : vector<1x8xf32> to vector<45x8xf32>
    %444 = arith.addf %440, %443 : vector<45x8xf32>
    %c1_370 = arith.constant 1 : index
    %c3_371 = arith.constant 3 : index
    %c0_372 = arith.constant 0 : index
    %c0_373 = arith.constant 0 : index
    %445 = vector.load %arg11[%c1_370, %c3_371, %c0_372, %c0_373] : memref<2x4x32x8xf32, #tpu.memory_space<vmem>>, vector<1x1x32x8xf32>
    %446 = vector.shape_cast %445 : vector<1x1x32x8xf32> to vector<32x8xf32>
    %cst_374 = arith.constant dense<0.000000e+00> : vector<45x8xf32>
    %447 = tpu.matmul %308, %446, %cst_374 {dimension_numbers = #tpu.dot_dimension_numbers<[1], [0], [0], [1], [0, 0, 1, 1], [], []>} : vector<45x32xf32>, vector<32x8xf32>, vector<45x8xf32> -> vector<45x8xf32>
    %c1_375 = arith.constant 1 : index
    %c3_376 = arith.constant 3 : index
    %c0_377 = arith.constant 0 : index
    %c0_378 = arith.constant 0 : index
    %448 = vector.load %arg14[%c1_375, %c3_376, %c0_377, %c0_378] : memref<2x4x1x8xf32, #tpu.memory_space<vmem>>, vector<1x1x1x8xf32>
    %449 = vector.shape_cast %448 : vector<1x1x1x8xf32> to vector<1x8xf32>
    %450 = vector.broadcast %449 : vector<1x8xf32> to vector<45x8xf32>
    %451 = arith.addf %447, %450 : vector<45x8xf32>
    %cst_379 = arith.constant 0.353553385 : f32
    %452 = vector.broadcast %cst_379 : f32 to vector<45x8xf32>
    %453 = arith.mulf %437, %452 : vector<45x8xf32>
    %cst_380 = arith.constant dense<0.000000e+00> : vector<45x45xf32>
    %454 = tpu.matmul %453, %444, %cst_380 {dimension_numbers = #tpu.dot_dimension_numbers<[1], [1], [0], [0], [0, 0, 1, 0], [], []>} : vector<45x8xf32>, vector<45x8xf32>, vector<45x45xf32> -> vector<45x45xf32>
    %cst_381 = arith.constant dense<0xFF800000> : vector<45xf32>
    %455 = vector.multi_reduction <maximumf>, %454, %cst_381 [1] : vector<45x45xf32> to vector<45xf32>
    %456 = vector.shape_cast %455 : vector<45xf32> to vector<45x1xf32>
    %457 = vector.broadcast %456 : vector<45x1xf32> to vector<45x45xf32>
    %458 = arith.subf %454, %457 : vector<45x45xf32>
    %459 = math.exp %458 : vector<45x45xf32>
    %cst_382 = arith.constant dense<0.000000e+00> : vector<45xf32>
    %460 = vector.multi_reduction <add>, %459, %cst_382 [1] : vector<45x45xf32> to vector<45xf32>
    %461 = vector.shape_cast %460 : vector<45xf32> to vector<45x1xf32>
    %462 = tpu.reciprocal %461 {approx = true} : vector<45x1xf32> -> vector<45x1xf32>
    %463 = vector.broadcast %462 : vector<45x1xf32> to vector<45x45xf32>
    %464 = arith.mulf %459, %463 : vector<45x45xf32>
    %cst_383 = arith.constant dense<0.000000e+00> : vector<45x8xf32>
    %465 = tpu.matmul %464, %451, %cst_383 {dimension_numbers = #tpu.dot_dimension_numbers<[1], [0], [0], [1], [0, 0, 1, 1], [], []>} : vector<45x45xf32>, vector<45x8xf32>, vector<45x8xf32> -> vector<45x8xf32>
    %c1_384 = arith.constant 1 : index
    %c3_385 = arith.constant 3 : index
    %c0_386 = arith.constant 0 : index
    %c0_387 = arith.constant 0 : index
    %466 = vector.load %arg15[%c1_384, %c3_385, %c0_386, %c0_387] : memref<2x4x8x32xf32, #tpu.memory_space<vmem>>, vector<1x1x8x32xf32>
    %467 = vector.shape_cast %466 : vector<1x1x8x32xf32> to vector<8x32xf32>
    %cst_388 = arith.constant dense<0.000000e+00> : vector<45x32xf32>
    %468 = tpu.matmul %465, %467, %cst_388 {dimension_numbers = #tpu.dot_dimension_numbers<[1], [0], [0], [1], [0, 0, 1, 1], [], []>} : vector<45x8xf32>, vector<8x32xf32>, vector<45x32xf32> -> vector<45x32xf32>
    %469 = arith.addf %430, %468 : vector<45x32xf32>
    %470 = arith.addf %308, %469 : vector<45x32xf32>
    %c1_389 = arith.constant 1 : index
    %c0_390 = arith.constant 0 : index
    %c0_391 = arith.constant 0 : index
    %471 = vector.load %arg17[%c1_389, %c0_390, %c0_391] : memref<2x1x32xf32, #tpu.memory_space<vmem>>, vector<1x1x32xf32>
    %472 = vector.shape_cast %471 : vector<1x1x32xf32> to vector<1x32xf32>
    %c1_392 = arith.constant 1 : index
    %c0_393 = arith.constant 0 : index
    %c0_394 = arith.constant 0 : index
    %473 = vector.load %arg18[%c1_392, %c0_393, %c0_394] : memref<2x1x32xf32, #tpu.memory_space<vmem>>, vector<1x1x32xf32>
    %474 = vector.shape_cast %473 : vector<1x1x32xf32> to vector<1x32xf32>
    %cst_395 = arith.constant dense<0.000000e+00> : vector<45xf32>
    %475 = vector.multi_reduction <add>, %470, %cst_395 [1] : vector<45x32xf32> to vector<45xf32>
    %476 = vector.shape_cast %475 : vector<45xf32> to vector<45x1xf32>
    %cst_396 = arith.constant 3.200000e+01 : f32
    %477 = vector.broadcast %cst_396 : f32 to vector<45x1xf32>
    %478 = arith.divf %476, %477 : vector<45x1xf32>
    %479 = vector.broadcast %478 : vector<45x1xf32> to vector<45x32xf32>
    %480 = arith.subf %470, %479 : vector<45x32xf32>
    %481 = arith.mulf %480, %480 : vector<45x32xf32>
    %cst_397 = arith.constant dense<0.000000e+00> : vector<45xf32>
    %482 = vector.multi_reduction <add>, %481, %cst_397 [1] : vector<45x32xf32> to vector<45xf32>
    %483 = vector.shape_cast %482 : vector<45xf32> to vector<45x1xf32>
    %cst_398 = arith.constant 3.200000e+01 : f32
    %484 = vector.broadcast %cst_398 : f32 to vector<45x1xf32>
    %485 = arith.divf %483, %484 : vector<45x1xf32>
    %486 = vector.broadcast %478 : vector<45x1xf32> to vector<45x32xf32>
    %487 = arith.subf %470, %486 : vector<45x32xf32>
    %cst_399 = arith.constant 9.99999974E-6 : f32
    %488 = vector.broadcast %cst_399 : f32 to vector<45x1xf32>
    %489 = arith.addf %485, %488 : vector<45x1xf32>
    %490 = math.rsqrt %489 : vector<45x1xf32>
    %491 = vector.broadcast %490 : vector<45x1xf32> to vector<45x32xf32>
    %492 = arith.mulf %487, %491 : vector<45x32xf32>
    %493 = vector.broadcast %472 : vector<1x32xf32> to vector<45x32xf32>
    %494 = arith.mulf %492, %493 : vector<45x32xf32>
    %495 = vector.broadcast %474 : vector<1x32xf32> to vector<45x32xf32>
    %496 = arith.addf %494, %495 : vector<45x32xf32>
    %c1_400 = arith.constant 1 : index
    %c0_401 = arith.constant 0 : index
    %c0_402 = arith.constant 0 : index
    %497 = vector.load %arg21[%c1_400, %c0_401, %c0_402] : memref<2x32x128xf32, #tpu.memory_space<vmem>>, vector<1x32x128xf32>
    %498 = vector.shape_cast %497 : vector<1x32x128xf32> to vector<32x128xf32>
    %cst_403 = arith.constant dense<0.000000e+00> : vector<45x128xf32>
    %499 = tpu.matmul %496, %498, %cst_403 {dimension_numbers = #tpu.dot_dimension_numbers<[1], [0], [0], [1], [0, 0, 1, 1], [], []>} : vector<45x32xf32>, vector<32x128xf32>, vector<45x128xf32> -> vector<45x128xf32>
    %c1_404 = arith.constant 1 : index
    %c0_405 = arith.constant 0 : index
    %c0_406 = arith.constant 0 : index
    %500 = vector.load %arg22[%c1_404, %c0_405, %c0_406] : memref<2x1x128xf32, #tpu.memory_space<vmem>>, vector<1x1x128xf32>
    %501 = vector.shape_cast %500 : vector<1x1x128xf32> to vector<1x128xf32>
    %502 = vector.broadcast %501 : vector<1x128xf32> to vector<45x128xf32>
    %503 = arith.addf %499, %502 : vector<45x128xf32>
    %cst_407 = arith.constant 0.707106769 : f32
    %504 = vector.broadcast %cst_407 : f32 to vector<45x128xf32>
    %505 = arith.mulf %503, %504 : vector<45x128xf32>
    %506 = math.absf %505 : vector<45x128xf32>
    %cst_408 = arith.constant 0.327591091 : f32
    %507 = vector.broadcast %cst_408 : f32 to vector<45x128xf32>
    %508 = arith.mulf %507, %506 : vector<45x128xf32>
    %cst_409 = arith.constant 1.000000e+00 : f32
    %509 = vector.broadcast %cst_409 : f32 to vector<45x128xf32>
    %510 = arith.addf %509, %508 : vector<45x128xf32>
    %cst_410 = arith.constant 1.000000e+00 : f32
    %511 = vector.broadcast %cst_410 : f32 to vector<45x128xf32>
    %512 = arith.divf %511, %510 : vector<45x128xf32>
    %cst_411 = arith.constant 1.06140542 : f32
    %513 = vector.broadcast %cst_411 : f32 to vector<45x128xf32>
    %514 = arith.mulf %513, %512 : vector<45x128xf32>
    %cst_412 = arith.constant 1.45315206 : f32
    %515 = vector.broadcast %cst_412 : f32 to vector<45x128xf32>
    %516 = arith.subf %514, %515 : vector<45x128xf32>
    %517 = arith.mulf %516, %512 : vector<45x128xf32>
    %cst_413 = arith.constant 1.42141378 : f32
    %518 = vector.broadcast %cst_413 : f32 to vector<45x128xf32>
    %519 = arith.addf %517, %518 : vector<45x128xf32>
    %520 = arith.mulf %519, %512 : vector<45x128xf32>
    %cst_414 = arith.constant 0.284496725 : f32
    %521 = vector.broadcast %cst_414 : f32 to vector<45x128xf32>
    %522 = arith.subf %520, %521 : vector<45x128xf32>
    %523 = arith.mulf %522, %512 : vector<45x128xf32>
    %cst_415 = arith.constant 0.254829586 : f32
    %524 = vector.broadcast %cst_415 : f32 to vector<45x128xf32>
    %525 = arith.addf %523, %524 : vector<45x128xf32>
    %526 = arith.mulf %525, %512 : vector<45x128xf32>
    %cst_416 = arith.constant 0.000000e+00 : f32
    %527 = vector.broadcast %cst_416 : f32 to vector<45x128xf32>
    %528 = arith.subf %527, %506 : vector<45x128xf32>
    %529 = arith.mulf %528, %506 : vector<45x128xf32>
    %530 = math.exp %529 : vector<45x128xf32>
    %531 = arith.mulf %526, %530 : vector<45x128xf32>
    %cst_417 = arith.constant 1.000000e+00 : f32
    %532 = vector.broadcast %cst_417 : f32 to vector<45x128xf32>
    %533 = arith.subf %532, %531 : vector<45x128xf32>
    %cst_418 = arith.constant 0.000000e+00 : f32
    %534 = vector.broadcast %cst_418 : f32 to vector<45x128xf32>
    %535 = arith.cmpf oge, %505, %534 : vector<45x128xf32>
    %cst_419 = arith.constant 0.000000e+00 : f32
    %536 = vector.broadcast %cst_419 : f32 to vector<45x128xf32>
    %537 = arith.subf %536, %533 : vector<45x128xf32>
    %538 = arith.select %535, %533, %537 : vector<45x128xi1>, vector<45x128xf32>
    %cst_420 = arith.constant 5.000000e-01 : f32
    %539 = vector.broadcast %cst_420 : f32 to vector<45x128xf32>
    %540 = arith.mulf %539, %503 : vector<45x128xf32>
    %cst_421 = arith.constant 1.000000e+00 : f32
    %541 = vector.broadcast %cst_421 : f32 to vector<45x128xf32>
    %542 = arith.addf %541, %538 : vector<45x128xf32>
    %543 = arith.mulf %540, %542 : vector<45x128xf32>
    %c1_422 = arith.constant 1 : index
    %c0_423 = arith.constant 0 : index
    %c0_424 = arith.constant 0 : index
    %544 = vector.load %arg23[%c1_422, %c0_423, %c0_424] : memref<2x128x32xf32, #tpu.memory_space<vmem>>, vector<1x128x32xf32>
    %545 = vector.shape_cast %544 : vector<1x128x32xf32> to vector<128x32xf32>
    %cst_425 = arith.constant dense<0.000000e+00> : vector<45x32xf32>
    %546 = tpu.matmul %543, %545, %cst_425 {dimension_numbers = #tpu.dot_dimension_numbers<[1], [0], [0], [1], [0, 0, 1, 1], [], []>} : vector<45x128xf32>, vector<128x32xf32>, vector<45x32xf32> -> vector<45x32xf32>
    %c1_426 = arith.constant 1 : index
    %c0_427 = arith.constant 0 : index
    %c0_428 = arith.constant 0 : index
    %547 = vector.load %arg24[%c1_426, %c0_427, %c0_428] : memref<2x1x32xf32, #tpu.memory_space<vmem>>, vector<1x1x32xf32>
    %548 = vector.shape_cast %547 : vector<1x1x32xf32> to vector<1x32xf32>
    %549 = vector.broadcast %548 : vector<1x32xf32> to vector<45x32xf32>
    %550 = arith.addf %546, %549 : vector<45x32xf32>
    %551 = arith.addf %496, %550 : vector<45x32xf32>
    %c1_429 = arith.constant 1 : index
    %c0_430 = arith.constant 0 : index
    %c0_431 = arith.constant 0 : index
    %552 = vector.load %arg19[%c1_429, %c0_430, %c0_431] : memref<2x1x32xf32, #tpu.memory_space<vmem>>, vector<1x1x32xf32>
    %553 = vector.shape_cast %552 : vector<1x1x32xf32> to vector<1x32xf32>
    %c1_432 = arith.constant 1 : index
    %c0_433 = arith.constant 0 : index
    %c0_434 = arith.constant 0 : index
    %554 = vector.load %arg20[%c1_432, %c0_433, %c0_434] : memref<2x1x32xf32, #tpu.memory_space<vmem>>, vector<1x1x32xf32>
    %555 = vector.shape_cast %554 : vector<1x1x32xf32> to vector<1x32xf32>
    %cst_435 = arith.constant dense<0.000000e+00> : vector<45xf32>
    %556 = vector.multi_reduction <add>, %551, %cst_435 [1] : vector<45x32xf32> to vector<45xf32>
    %557 = vector.shape_cast %556 : vector<45xf32> to vector<45x1xf32>
    %cst_436 = arith.constant 3.200000e+01 : f32
    %558 = vector.broadcast %cst_436 : f32 to vector<45x1xf32>
    %559 = arith.divf %557, %558 : vector<45x1xf32>
    %560 = vector.broadcast %559 : vector<45x1xf32> to vector<45x32xf32>
    %561 = arith.subf %551, %560 : vector<45x32xf32>
    %562 = arith.mulf %561, %561 : vector<45x32xf32>
    %cst_437 = arith.constant dense<0.000000e+00> : vector<45xf32>
    %563 = vector.multi_reduction <add>, %562, %cst_437 [1] : vector<45x32xf32> to vector<45xf32>
    %564 = vector.shape_cast %563 : vector<45xf32> to vector<45x1xf32>
    %cst_438 = arith.constant 3.200000e+01 : f32
    %565 = vector.broadcast %cst_438 : f32 to vector<45x1xf32>
    %566 = arith.divf %564, %565 : vector<45x1xf32>
    %567 = vector.broadcast %559 : vector<45x1xf32> to vector<45x32xf32>
    %568 = arith.subf %551, %567 : vector<45x32xf32>
    %cst_439 = arith.constant 9.99999974E-6 : f32
    %569 = vector.broadcast %cst_439 : f32 to vector<45x1xf32>
    %570 = arith.addf %566, %569 : vector<45x1xf32>
    %571 = math.rsqrt %570 : vector<45x1xf32>
    %572 = vector.broadcast %571 : vector<45x1xf32> to vector<45x32xf32>
    %573 = arith.mulf %568, %572 : vector<45x32xf32>
    %574 = vector.broadcast %553 : vector<1x32xf32> to vector<45x32xf32>
    %575 = arith.mulf %573, %574 : vector<45x32xf32>
    %576 = vector.broadcast %555 : vector<1x32xf32> to vector<45x32xf32>
    %577 = arith.addf %575, %576 : vector<45x32xf32>
    %c0_440 = arith.constant 0 : index
    %c0_441 = arith.constant 0 : index
    %578 = vector.load %arg25[%c0_440, %c0_441] : memref<1x32xf32, #tpu.memory_space<vmem>>, vector<1x32xf32>
    %c0_442 = arith.constant 0 : index
    %c0_443 = arith.constant 0 : index
    %579 = vector.load %arg26[%c0_442, %c0_443] : memref<1x32xf32, #tpu.memory_space<vmem>>, vector<1x32xf32>
    %cst_444 = arith.constant dense<0.000000e+00> : vector<45xf32>
    %580 = vector.multi_reduction <add>, %577, %cst_444 [1] : vector<45x32xf32> to vector<45xf32>
    %581 = vector.shape_cast %580 : vector<45xf32> to vector<45x1xf32>
    %cst_445 = arith.constant 3.200000e+01 : f32
    %582 = vector.broadcast %cst_445 : f32 to vector<45x1xf32>
    %583 = arith.divf %581, %582 : vector<45x1xf32>
    %584 = vector.broadcast %583 : vector<45x1xf32> to vector<45x32xf32>
    %585 = arith.subf %577, %584 : vector<45x32xf32>
    %586 = arith.mulf %585, %585 : vector<45x32xf32>
    %cst_446 = arith.constant dense<0.000000e+00> : vector<45xf32>
    %587 = vector.multi_reduction <add>, %586, %cst_446 [1] : vector<45x32xf32> to vector<45xf32>
    %588 = vector.shape_cast %587 : vector<45xf32> to vector<45x1xf32>
    %cst_447 = arith.constant 3.200000e+01 : f32
    %589 = vector.broadcast %cst_447 : f32 to vector<45x1xf32>
    %590 = arith.divf %588, %589 : vector<45x1xf32>
    %591 = vector.broadcast %583 : vector<45x1xf32> to vector<45x32xf32>
    %592 = arith.subf %577, %591 : vector<45x32xf32>
    %cst_448 = arith.constant 9.99999974E-6 : f32
    %593 = vector.broadcast %cst_448 : f32 to vector<45x1xf32>
    %594 = arith.addf %590, %593 : vector<45x1xf32>
    %595 = math.rsqrt %594 : vector<45x1xf32>
    %596 = vector.broadcast %595 : vector<45x1xf32> to vector<45x32xf32>
    %597 = arith.mulf %592, %596 : vector<45x32xf32>
    %598 = vector.broadcast %578 : vector<1x32xf32> to vector<45x32xf32>
    %599 = arith.mulf %597, %598 : vector<45x32xf32>
    %600 = vector.broadcast %579 : vector<1x32xf32> to vector<45x32xf32>
    %601 = arith.addf %599, %600 : vector<45x32xf32>
    %c0_449 = arith.constant 0 : index
    %c0_450 = arith.constant 0 : index
    %602 = vector.load %arg31[%c0_449, %c0_450] : memref<45x32xf32, #tpu.memory_space<vmem>>, vector<45x32xf32>
    tpu.vector_store %arg31[%c0_449, %c0_450], %601 {strides = array<i32>} : memref<45x32xf32, #tpu.memory_space<vmem>>, vector<45x32xf32>,
    %c15_451 = arith.constant 15 : index
    %c0_452 = arith.constant 0 : index
    %603 = vector.load %arg31[%c15_451, %c0_452] : memref<45x32xf32, #tpu.memory_space<vmem>>, vector<15x32xf32>
    %c0_453 = arith.constant 0 : index
    %c0_454 = arith.constant 0 : index
    %604 = vector.load %arg27[%c0_453, %c0_454] : memref<32x48xf32, #tpu.memory_space<vmem>>, vector<32x48xf32>
    %cst_455 = arith.constant dense<0.000000e+00> : vector<15x48xf32>
    %605 = tpu.matmul %603, %604, %cst_455 {dimension_numbers = #tpu.dot_dimension_numbers<[1], [0], [0], [1], [0, 0, 1, 1], [], []>} : vector<15x32xf32>, vector<32x48xf32>, vector<15x48xf32> -> vector<15x48xf32>
    %c30_456 = arith.constant 30 : index
    %c0_457 = arith.constant 0 : index
    %606 = vector.load %arg31[%c30_456, %c0_457] : memref<45x32xf32, #tpu.memory_space<vmem>>, vector<15x32xf32>
    %c0_458 = arith.constant 0 : index
    %c0_459 = arith.constant 0 : index
    %607 = vector.load %arg28[%c0_458, %c0_459] : memref<32x40xf32, #tpu.memory_space<vmem>>, vector<32x40xf32>
    %cst_460 = arith.constant dense<0.000000e+00> : vector<15x40xf32>
    %608 = tpu.matmul %606, %607, %cst_460 {dimension_numbers = #tpu.dot_dimension_numbers<[1], [0], [0], [1], [0, 0, 1, 1], [], []>} : vector<15x32xf32>, vector<32x40xf32>, vector<15x40xf32> -> vector<15x40xf32>
    %cst_461 = arith.constant dense<0xFF800000> : vector<15xf32>
    %609 = vector.multi_reduction <maximumf>, %605, %cst_461 [1] : vector<15x48xf32> to vector<15xf32>
    %610 = vector.shape_cast %609 : vector<15xf32> to vector<15x1xf32>
    %611 = tpu.iota {dimensions = array<i32: 1>} : vector<15x48xi32>
    %612 = vector.broadcast %610 : vector<15x1xf32> to vector<15x48xf32>
    %613 = arith.cmpf oeq, %605, %612 : vector<15x48xf32>
    %c48_i32 = arith.constant 48 : i32
    %614 = vector.broadcast %c48_i32 : i32 to vector<15x48xi32>
    %615 = arith.select %613, %611, %614 : vector<15x48xi1>, vector<15x48xi32>
    %cst_462 = arith.constant dense<2147483647> : vector<15xi32>
    %616 = vector.multi_reduction <minsi>, %615, %cst_462 [1] : vector<15x48xi32> to vector<15xi32>
    %617 = vector.shape_cast %616 : vector<15xi32> to vector<15x1xi32>
    %c0_463 = arith.constant 0 : index
    %c0_464 = arith.constant 0 : index
    %c0_465 = arith.constant 0 : index
    %618 = vector.load %arg29[%c0_463, %c0_464, %c0_465] : memref<1x15x1xi32, #tpu.memory_space<vmem>>, vector<1x15x1xi32>
    %619 = vector.shape_cast %618 : vector<1x15x1xi32> to vector<15x1xi32>
    %620 = vector.shape_cast %617 : vector<15x1xi32> to vector<1x15x1xi32>
    tpu.vector_store %arg29[%c0_463, %c0_464, %c0_465], %620 {strides = array<i32>} : memref<1x15x1xi32, #tpu.memory_space<vmem>>, vector<1x15x1xi32>,
    %cst_466 = arith.constant dense<0xFF800000> : vector<15xf32>
    %621 = vector.multi_reduction <maximumf>, %608, %cst_466 [1] : vector<15x40xf32> to vector<15xf32>
    %622 = vector.shape_cast %621 : vector<15xf32> to vector<15x1xf32>
    %623 = tpu.iota {dimensions = array<i32: 1>} : vector<15x40xi32>
    %624 = vector.broadcast %622 : vector<15x1xf32> to vector<15x40xf32>
    %625 = arith.cmpf oeq, %608, %624 : vector<15x40xf32>
    %c40_i32 = arith.constant 40 : i32
    %626 = vector.broadcast %c40_i32 : i32 to vector<15x40xi32>
    %627 = arith.select %625, %623, %626 : vector<15x40xi1>, vector<15x40xi32>
    %cst_467 = arith.constant dense<2147483647> : vector<15xi32>
    %628 = vector.multi_reduction <minsi>, %627, %cst_467 [1] : vector<15x40xi32> to vector<15xi32>
    %629 = vector.shape_cast %628 : vector<15xi32> to vector<15x1xi32>
    %c0_468 = arith.constant 0 : index
    %c0_469 = arith.constant 0 : index
    %c0_470 = arith.constant 0 : index
    %630 = vector.load %arg30[%c0_468, %c0_469, %c0_470] : memref<1x15x1xi32, #tpu.memory_space<vmem>>, vector<1x15x1xi32>
    %631 = vector.shape_cast %630 : vector<1x15x1xi32> to vector<15x1xi32>
    %632 = vector.shape_cast %629 : vector<15x1xi32> to vector<1x15x1xi32>
    tpu.vector_store %arg30[%c0_468, %c0_469, %c0_470], %632 {strides = array<i32>} : memref<1x15x1xi32, #tpu.memory_space<vmem>>, vector<1x15x1xi32>,
    return
  }
  func.func @transform_0(%arg0: i32) -> (i32, i32, i32) {
    %c0_i32 = arith.constant 0 : i32
    %c0_i32_0 = arith.constant 0 : i32
    %c0_i32_1 = arith.constant 0 : i32
    return %arg0, %c0_i32, %c0_i32_0 : i32, i32, i32
  }
  func.func @transform_1(%arg0: i32) -> (i32, i32, i32) {
    %c0_i32 = arith.constant 0 : i32
    %c0_i32_0 = arith.constant 0 : i32
    %c0_i32_1 = arith.constant 0 : i32
    return %arg0, %c0_i32, %c0_i32_0 : i32, i32, i32
  }
  func.func @transform_2(%arg0: i32) -> (i32, i32, i32) {
    %c0_i32 = arith.constant 0 : i32
    %c0_i32_0 = arith.constant 0 : i32
    %c0_i32_1 = arith.constant 0 : i32
    return %arg0, %c0_i32, %c0_i32_0 : i32, i32, i32
  }
  func.func @transform_3(%arg0: i32) -> (i32, i32) {
    %c0_i32 = arith.constant 0 : i32
    %c0_i32_0 = arith.constant 0 : i32
    %c0_i32_1 = arith.constant 0 : i32
    return %c0_i32, %c0_i32_0 : i32, i32
  }
  func.func @transform_4(%arg0: i32) -> (i32, i32) {
    %c0_i32 = arith.constant 0 : i32
    %c0_i32_0 = arith.constant 0 : i32
    %c0_i32_1 = arith.constant 0 : i32
    return %c0_i32, %c0_i32_0 : i32, i32
  }
  func.func @transform_5(%arg0: i32) -> (i32, i32, i32) {
    %c0_i32 = arith.constant 0 : i32
    %c0_i32_0 = arith.constant 0 : i32
    %c0_i32_1 = arith.constant 0 : i32
    %c0_i32_2 = arith.constant 0 : i32
    return %c0_i32, %c0_i32_0, %c0_i32_1 : i32, i32, i32
  }
  func.func @transform_6(%arg0: i32) -> (i32, i32) {
    %c0_i32 = arith.constant 0 : i32
    %c0_i32_0 = arith.constant 0 : i32
    %c0_i32_1 = arith.constant 0 : i32
    return %c0_i32, %c0_i32_0 : i32, i32
  }
  func.func @transform_7(%arg0: i32) -> (i32, i32) {
    %c0_i32 = arith.constant 0 : i32
    %c0_i32_0 = arith.constant 0 : i32
    %c0_i32_1 = arith.constant 0 : i32
    return %c0_i32, %c0_i32_0 : i32, i32
  }
  func.func @transform_8(%arg0: i32) -> (i32, i32, i32, i32) {
    %c0_i32 = arith.constant 0 : i32
    %c0_i32_0 = arith.constant 0 : i32
    %c0_i32_1 = arith.constant 0 : i32
    %c0_i32_2 = arith.constant 0 : i32
    %c0_i32_3 = arith.constant 0 : i32
    return %c0_i32, %c0_i32_0, %c0_i32_1, %c0_i32_2 : i32, i32, i32, i32
  }
  func.func @transform_9(%arg0: i32) -> (i32, i32, i32, i32) {
    %c0_i32 = arith.constant 0 : i32
    %c0_i32_0 = arith.constant 0 : i32
    %c0_i32_1 = arith.constant 0 : i32
    %c0_i32_2 = arith.constant 0 : i32
    %c0_i32_3 = arith.constant 0 : i32
    return %c0_i32, %c0_i32_0, %c0_i32_1, %c0_i32_2 : i32, i32, i32, i32
  }
  func.func @transform_10(%arg0: i32) -> (i32, i32, i32, i32) {
    %c0_i32 = arith.constant 0 : i32
    %c0_i32_0 = arith.constant 0 : i32
    %c0_i32_1 = arith.constant 0 : i32
    %c0_i32_2 = arith.constant 0 : i32
    %c0_i32_3 = arith.constant 0 : i32
    return %c0_i32, %c0_i32_0, %c0_i32_1, %c0_i32_2 : i32, i32, i32, i32
  }
  func.func @transform_11(%arg0: i32) -> (i32, i32, i32, i32) {
    %c0_i32 = arith.constant 0 : i32
    %c0_i32_0 = arith.constant 0 : i32
    %c0_i32_1 = arith.constant 0 : i32
    %c0_i32_2 = arith.constant 0 : i32
    %c0_i32_3 = arith.constant 0 : i32
    return %c0_i32, %c0_i32_0, %c0_i32_1, %c0_i32_2 : i32, i32, i32, i32
  }
  func.func @transform_12(%arg0: i32) -> (i32, i32, i32, i32) {
    %c0_i32 = arith.constant 0 : i32
    %c0_i32_0 = arith.constant 0 : i32
    %c0_i32_1 = arith.constant 0 : i32
    %c0_i32_2 = arith.constant 0 : i32
    %c0_i32_3 = arith.constant 0 : i32
    return %c0_i32, %c0_i32_0, %c0_i32_1, %c0_i32_2 : i32, i32, i32, i32
  }
  func.func @transform_13(%arg0: i32) -> (i32, i32, i32, i32) {
    %c0_i32 = arith.constant 0 : i32
    %c0_i32_0 = arith.constant 0 : i32
    %c0_i32_1 = arith.constant 0 : i32
    %c0_i32_2 = arith.constant 0 : i32
    %c0_i32_3 = arith.constant 0 : i32
    return %c0_i32, %c0_i32_0, %c0_i32_1, %c0_i32_2 : i32, i32, i32, i32
  }
  func.func @transform_14(%arg0: i32) -> (i32, i32, i32, i32) {
    %c0_i32 = arith.constant 0 : i32
    %c0_i32_0 = arith.constant 0 : i32
    %c0_i32_1 = arith.constant 0 : i32
    %c0_i32_2 = arith.constant 0 : i32
    %c0_i32_3 = arith.constant 0 : i32
    return %c0_i32, %c0_i32_0, %c0_i32_1, %c0_i32_2 : i32, i32, i32, i32
  }
  func.func @transform_15(%arg0: i32) -> (i32, i32, i32) {
    %c0_i32 = arith.constant 0 : i32
    %c0_i32_0 = arith.constant 0 : i32
    %c0_i32_1 = arith.constant 0 : i32
    %c0_i32_2 = arith.constant 0 : i32
    return %c0_i32, %c0_i32_0, %c0_i32_1 : i32, i32, i32
  }
  func.func @transform_16(%arg0: i32) -> (i32, i32, i32) {
    %c0_i32 = arith.constant 0 : i32
    %c0_i32_0 = arith.constant 0 : i32
    %c0_i32_1 = arith.constant 0 : i32
    %c0_i32_2 = arith.constant 0 : i32
    return %c0_i32, %c0_i32_0, %c0_i32_1 : i32, i32, i32
  }
  func.func @transform_17(%arg0: i32) -> (i32, i32, i32) {
    %c0_i32 = arith.constant 0 : i32
    %c0_i32_0 = arith.constant 0 : i32
    %c0_i32_1 = arith.constant 0 : i32
    %c0_i32_2 = arith.constant 0 : i32
    return %c0_i32, %c0_i32_0, %c0_i32_1 : i32, i32, i32
  }
  func.func @transform_18(%arg0: i32) -> (i32, i32, i32) {
    %c0_i32 = arith.constant 0 : i32
    %c0_i32_0 = arith.constant 0 : i32
    %c0_i32_1 = arith.constant 0 : i32
    %c0_i32_2 = arith.constant 0 : i32
    return %c0_i32, %c0_i32_0, %c0_i32_1 : i32, i32, i32
  }
  func.func @transform_19(%arg0: i32) -> (i32, i32, i32) {
    %c0_i32 = arith.constant 0 : i32
    %c0_i32_0 = arith.constant 0 : i32
    %c0_i32_1 = arith.constant 0 : i32
    %c0_i32_2 = arith.constant 0 : i32
    return %c0_i32, %c0_i32_0, %c0_i32_1 : i32, i32, i32
  }
  func.func @transform_20(%arg0: i32) -> (i32, i32, i32) {
    %c0_i32 = arith.constant 0 : i32
    %c0_i32_0 = arith.constant 0 : i32
    %c0_i32_1 = arith.constant 0 : i32
    %c0_i32_2 = arith.constant 0 : i32
    return %c0_i32, %c0_i32_0, %c0_i32_1 : i32, i32, i32
  }
  func.func @transform_21(%arg0: i32) -> (i32, i32, i32) {
    %c0_i32 = arith.constant 0 : i32
    %c0_i32_0 = arith.constant 0 : i32
    %c0_i32_1 = arith.constant 0 : i32
    %c0_i32_2 = arith.constant 0 : i32
    return %c0_i32, %c0_i32_0, %c0_i32_1 : i32, i32, i32
  }
  func.func @transform_22(%arg0: i32) -> (i32, i32, i32) {
    %c0_i32 = arith.constant 0 : i32
    %c0_i32_0 = arith.constant 0 : i32
    %c0_i32_1 = arith.constant 0 : i32
    %c0_i32_2 = arith.constant 0 : i32
    return %c0_i32, %c0_i32_0, %c0_i32_1 : i32, i32, i32
  }
  func.func @transform_23(%arg0: i32) -> (i32, i32, i32) {
    %c0_i32 = arith.constant 0 : i32
    %c0_i32_0 = arith.constant 0 : i32
    %c0_i32_1 = arith.constant 0 : i32
    %c0_i32_2 = arith.constant 0 : i32
    return %c0_i32, %c0_i32_0, %c0_i32_1 : i32, i32, i32
  }
  func.func @transform_24(%arg0: i32) -> (i32, i32) {
    %c0_i32 = arith.constant 0 : i32
    %c0_i32_0 = arith.constant 0 : i32
    %c0_i32_1 = arith.constant 0 : i32
    return %c0_i32, %c0_i32_0 : i32, i32
  }
  func.func @transform_25(%arg0: i32) -> (i32, i32) {
    %c0_i32 = arith.constant 0 : i32
    %c0_i32_0 = arith.constant 0 : i32
    %c0_i32_1 = arith.constant 0 : i32
    return %c0_i32, %c0_i32_0 : i32, i32
  }
  func.func @transform_26(%arg0: i32) -> (i32, i32) {
    %c0_i32 = arith.constant 0 : i32
    %c0_i32_0 = arith.constant 0 : i32
    %c0_i32_1 = arith.constant 0 : i32
    return %c0_i32, %c0_i32_0 : i32, i32
  }
  func.func @transform_27(%arg0: i32) -> (i32, i32) {
    %c0_i32 = arith.constant 0 : i32
    %c0_i32_0 = arith.constant 0 : i32
    %c0_i32_1 = arith.constant 0 : i32
    return %c0_i32, %c0_i32_0 : i32, i32
  }
  func.func @transform_28(%arg0: i32) -> (i32, i32, i32) {
    %c0_i32 = arith.constant 0 : i32
    %c0_i32_0 = arith.constant 0 : i32
    %c0_i32_1 = arith.constant 0 : i32
    return %arg0, %c0_i32, %c0_i32_0 : i32, i32, i32
  }
  func.func @transform_29(%arg0: i32) -> (i32, i32, i32) {
    %c0_i32 = arith.constant 0 : i32
    %c0_i32_0 = arith.constant 0 : i32
    %c0_i32_1 = arith.constant 0 : i32
    return %arg0, %c0_i32, %c0_i32_0 : i32, i32, i32
  }
}

</mosaic_0001>

<llo_original>
// kernel: forward.1
$region0: #{forward.1}
  #allocation0 [shape = 'u32[]', space=smem, size = 0x4, offset = 0x4, fixed_abs, tag = 'smem constant byte address 0x4 - core index']
  #allocation1 [shape = 'u32[144,128]{1,0:T(1,128)}', space=vmem, size = 0x12000, scoped, tag = 'internal scratch']
  #allocation2 [shape = 'f32[45,32]{1,0:T(8,128)}', space=vmem, size = 0x6000, scoped, tag = 'scratch operand']
  %s0 = inlined_call_operand.smem [shape: u32[30], index: -1, kind: input, shape index: {}]
  %s1 = sld [smem:[%s0]]
  %s2 = scalar_lea.smem %s0, 1
  %s3 = sld [smem:[%s2]]
  %s4 = scalar_lea.smem %s0, 2
  %s5 = sld [smem:[%s4]]
  %s6 = scalar_lea.smem %s0, 3
  %s7 = sld [smem:[%s6]]
  %s8 = scalar_lea.smem %s0, 4
  %s9 = sld [smem:[%s8]]
  %s10 = scalar_lea.smem %s0, 5
  %s11 = sld [smem:[%s10]]
  %s12 = scalar_lea.smem %s0, 6
  %s13 = sld [smem:[%s12]]
  %s14 = scalar_lea.smem %s0, 7
  %s15 = sld [smem:[%s14]]
  %s16 = scalar_lea.smem %s0, 8
  %s17 = sld [smem:[%s16]]
  %s18 = scalar_lea.smem %s0, 9
  %s19 = sld [smem:[%s18]]
  %s20 = scalar_lea.smem %s0, 10
  %s21 = sld [smem:[%s20]]
  %s22 = scalar_lea.smem %s0, 11
  %s23 = sld [smem:[%s22]]
  %s24 = scalar_lea.smem %s0, 12
  %s25 = sld [smem:[%s24]]
  %s26 = scalar_lea.smem %s0, 13
  %s27 = sld [smem:[%s26]]
  %s28 = scalar_lea.smem %s0, 14
  %s29 = sld [smem:[%s28]]
  %s30 = scalar_lea.smem %s0, 15
  %s31 = sld [smem:[%s30]]
  %s32 = scalar_lea.smem %s0, 16
  %s33 = sld [smem:[%s32]]
  %s34 = scalar_lea.smem %s0, 17
  %s35 = sld [smem:[%s34]]
  %s36 = scalar_lea.smem %s0, 18
  %s37 = sld [smem:[%s36]]
  %s38 = scalar_lea.smem %s0, 19
  %s39 = sld [smem:[%s38]]
  %s40 = scalar_lea.smem %s0, 20
  %s41 = sld [smem:[%s40]]
  %s42 = scalar_lea.smem %s0, 21
  %s43 = sld [smem:[%s42]]
  %s44 = scalar_lea.smem %s0, 22
  %s45 = sld [smem:[%s44]]
  %s46 = scalar_lea.smem %s0, 23
  %s47 = sld [smem:[%s46]]
  %s48 = scalar_lea.smem %s0, 24
  %s49 = sld [smem:[%s48]]
  %s50 = scalar_lea.smem %s0, 25
  %s51 = sld [smem:[%s50]]
  %s52 = scalar_lea.smem %s0, 26
  %s53 = sld [smem:[%s52]]
  %s54 = scalar_lea.smem %s0, 27
  %s55 = sld [smem:[%s54]]
  %s56 = scalar_lea.smem %s0, 28
  %s57 = sld [smem:[%s56]]
  %s58 = scalar_lea.smem %s0, 29
  %s59 = sld [smem:[%s58]]
  %60 = xla_tuple %s57, %s59
  %s61 = sld [smem:[#allocation0]]
  $region153: #{forward.1} parent=0
    _
  %s63 = ssub.s32 1, %s61
  %s64 = scalar_select 0, %s63, %s61
  loop: start=0, step=1, limit=4
  $region2: #{forward.1} parent=0 // loop_pre_header
    _
  $region3: #{forward.1} parent=0 // loop_header
    %s66 = sphi 0, %s70
    %p67 = scmp.ge.s32.totalorder %s66, 4
    %s76 = sphi 0, %s78
    %s79 = sphi 0, %s76
    %s80 = sphi 0, %s79
    %s96 = sphi 0, %s80
    %s102 = sphi 0, %s104
    %s105 = sphi 0, %s102
    %s106 = sphi 0, %s105
    %s122 = sphi 0, %s106
    %s128 = sphi 0, %s130
    %s131 = sphi 0, %s128
    %s132 = sphi 0, %s131
    %s148 = sphi 0, %s132
    %s152 = sphi 0, %s152
    %s154 = sphi 0, %s152
    %s155 = sphi 0, %s154
    %s169 = sphi 0, %s155
    %s173 = sphi 0, %s173
    %s175 = sphi 0, %s173
    %s176 = sphi 0, %s175
    %s190 = sphi 0, %s176
    %s194 = sphi 0, %s194
    %s196 = sphi 0, %s194
    %s197 = sphi 0, %s196
    %s211 = sphi 0, %s197
    %s215 = sphi 0, %s215
    %s217 = sphi 0, %s215
    %s218 = sphi 0, %s217
    %s232 = sphi 0, %s218
    %s236 = sphi 0, %s236
    %s238 = sphi 0, %s236
    %s239 = sphi 0, %s238
    %s253 = sphi 0, %s239
    %s257 = sphi 0, %s257
    %s259 = sphi 0, %s257
    %s260 = sphi 0, %s259
    %s274 = sphi 0, %s260
    %s278 = sphi 0, %s278
    %s280 = sphi 0, %s278
    %s281 = sphi 0, %s280
    %s295 = sphi 0, %s281
    %s299 = sphi 0, %s299
    %s301 = sphi 0, %s299
    %s302 = sphi 0, %s301
    %s316 = sphi 0, %s302
    %s320 = sphi 0, %s320
    %s322 = sphi 0, %s320
    %s323 = sphi 0, %s322
    %s337 = sphi 0, %s323
    %s341 = sphi 0, %s341
    %s343 = sphi 0, %s341
    %s344 = sphi 0, %s343
    %s358 = sphi 0, %s344
    %s362 = sphi 0, %s362
    %s364 = sphi 0, %s362
    %s365 = sphi 0, %s364
    %s379 = sphi 0, %s365
    %s383 = sphi 0, %s383
    %s385 = sphi 0, %s383
    %s386 = sphi 0, %s385
    %s400 = sphi 0, %s386
    %s404 = sphi 0, %s404
    %s406 = sphi 0, %s404
    %s407 = sphi 0, %s406
    %s421 = sphi 0, %s407
    %s425 = sphi 0, %s425
    %s427 = sphi 0, %s425
    %s428 = sphi 0, %s427
    %s442 = sphi 0, %s428
    %s446 = sphi 0, %s446
    %s448 = sphi 0, %s446
    %s449 = sphi 0, %s448
    %s463 = sphi 0, %s449
    %s467 = sphi 0, %s467
    %s469 = sphi 0, %s467
    %s470 = sphi 0, %s469
    %s484 = sphi 0, %s470
    %s488 = sphi 0, %s488
    %s490 = sphi 0, %s488
    %s491 = sphi 0, %s490
    %s505 = sphi 0, %s491
    %s509 = sphi 0, %s509
    %s511 = sphi 0, %s509
    %s512 = sphi 0, %s511
    %s526 = sphi 0, %s512
    %s530 = sphi 0, %s530
    %s532 = sphi 0, %s530
    %s533 = sphi 0, %s532
    %s547 = sphi 0, %s533
    %s551 = sphi 0, %s551
    %s553 = sphi 0, %s551
    %s554 = sphi 0, %s553
    %s568 = sphi 0, %s554
    %s572 = sphi 0, %s572
    %s574 = sphi 0, %s572
    %s575 = sphi 0, %s574
    %s589 = sphi 0, %s575
    %s593 = sphi 0, %s593
    %s595 = sphi 0, %s593
    %s596 = sphi 0, %s595
    %s610 = sphi 0, %s596
    %s614 = sphi 0, %s614
    %s616 = sphi 0, %s614
    %s617 = sphi 0, %s616
    %s631 = sphi 0, %s617
    %s635 = sphi 0, %s635
    %s637 = sphi 0, %s635
    %s638 = sphi 0, %s637
    %s652 = sphi 0, %s638
    %s656 = sphi 0, %s656
    %s658 = sphi 0, %s656
    %s659 = sphi 0, %s658
    %s673 = sphi 0, %s659
    %s679 = sphi 0, %s681
    %s682 = sphi 0, %s679
    %s683 = sphi 0, %s682
    %s699 = sphi 0, %s683
    %s705 = sphi 0, %s707
    %s708 = sphi 0, %s705
    %s709 = sphi 0, %s708
    %s725 = sphi 0, %s709
  $region4: #{forward.1} parent=0 // loop_header_branch
    %69 = sbr.rel (%p67) target = $region8
  $region5: #{forward.1} parent=0 // loop_body
    %s71 = ssub.s32 %s66, 1
    %s72 = ssub.s32 %s66, 2
    %s73 = sadd.s32 %s66, 1
    %s74 = ssub.s32 %s66, %s73
    %p75 = scmp.eq.s32.totalorder %s74, 0
    %s77 = sadd.s32 %s76, 1
    %s78 = scalar_select %p75, %s76, %s77
    %p81 = pneg %p75
    %p82 = scmp.eq.s32.totalorder %s66, 1
    %p83 = por %p81, %p82
    %p84 = scmp.ne.s32.totalorder %s76, %s79
    %p85 = scmp.eq.s32.totalorder %s66, 0
    %p86 = por %p84, %p85
    %p87 = scmp.ne.s32.totalorder %s76, %s79
    %p88 = scmp.eq.s32.totalorder %s71, 1
    %p89 = por %p87, %p88
    %p90 = scmp.ne.s32.totalorder %s79, %s80
    %p91 = scmp.eq.s32.totalorder %s71, 0
    %p92 = por %p90, %p91
    %p93 = scmp.ne.s32.totalorder %s79, %s80
    %p94 = scmp.eq.s32.totalorder %s72, 1
    %p95 = por %p93, %p94
    %p97 = scmp.ne.s32.totalorder %s80, %s96
    %p98 = scmp.eq.s32.totalorder %s72, 0
    %p99 = por %p97, %p98
    %s100 = ssub.s32 %s66, %s73
    %p101 = scmp.eq.s32.totalorder %s100, 0
    %s103 = sadd.s32 %s102, 1
    %s104 = scalar_select %p101, %s102, %s103
    %p107 = pneg %p101
    %p108 = scmp.eq.s32.totalorder %s66, 1
    %p109 = por %p107, %p108
    %p110 = scmp.ne.s32.totalorder %s102, %s105
    %p111 = scmp.eq.s32.totalorder %s66, 0
    %p112 = por %p110, %p111
    %p113 = scmp.ne.s32.totalorder %s102, %s105
    %p114 = scmp.eq.s32.totalorder %s71, 1
    %p115 = por %p113, %p114
    %p116 = scmp.ne.s32.totalorder %s105, %s106
    %p117 = scmp.eq.s32.totalorder %s71, 0
    %p118 = por %p116, %p117
    %p119 = scmp.ne.s32.totalorder %s105, %s106
    %p120 = scmp.eq.s32.totalorder %s72, 1
    %p121 = por %p119, %p120
    %p123 = scmp.ne.s32.totalorder %s106, %s122
    %p124 = scmp.eq.s32.totalorder %s72, 0
    %p125 = por %p123, %p124
    %s126 = ssub.s32 %s66, %s73
    %p127 = scmp.eq.s32.totalorder %s126, 0
    %s129 = sadd.s32 %s128, 1
    %s130 = scalar_select %p127, %s128, %s129
    %p133 = pneg %p127
    %p134 = scmp.eq.s32.totalorder %s66, 1
    %p135 = por %p133, %p134
    %p136 = scmp.ne.s32.totalorder %s128, %s131
    %p137 = scmp.eq.s32.totalorder %s66, 0
    %p138 = por %p136, %p137
    %p139 = scmp.ne.s32.totalorder %s128, %s131
    %p140 = scmp.eq.s32.totalorder %s71, 1
    %p141 = por %p139, %p140
    %p142 = scmp.ne.s32.totalorder %s131, %s132
    %p143 = scmp.eq.s32.totalorder %s71, 0
    %p144 = por %p142, %p143
    %p145 = scmp.ne.s32.totalorder %s131, %s132
    %p146 = scmp.eq.s32.totalorder %s72, 1
    %p147 = por %p145, %p146
    %p149 = scmp.ne.s32.totalorder %s132, %s148
    %p150 = scmp.eq.s32.totalorder %s72, 0
    %p151 = por %p149, %p150
    %s153 = sadd.s32 %s152, 1
    %p156 = scmp.eq.s32.totalorder %s66, 1
    %p157 = scmp.ne.s32.totalorder %s152, %s154
    %p158 = scmp.eq.s32.totalorder %s66, 0
    %p159 = por %p157, %p158
    %p160 = scmp.ne.s32.totalorder %s152, %s154
    %p161 = scmp.eq.s32.totalorder %s71, 1
    %p162 = por %p160, %p161
    %p163 = scmp.ne.s32.totalorder %s154, %s155
    %p164 = scmp.eq.s32.totalorder %s71, 0
    %p165 = por %p163, %p164
    %p166 = scmp.ne.s32.totalorder %s154, %s155
    %p167 = scmp.eq.s32.totalorder %s72, 1
    %p168 = por %p166, %p167
    %p170 = scmp.ne.s32.totalorder %s155, %s169
    %p171 = scmp.eq.s32.totalorder %s72, 0
    %p172 = por %p170, %p171
    %s174 = sadd.s32 %s173, 1
    %p177 = scmp.eq.s32.totalorder %s66, 1
    %p178 = scmp.ne.s32.totalorder %s173, %s175
    %p179 = scmp.eq.s32.totalorder %s66, 0
    %p180 = por %p178, %p179
    %p181 = scmp.ne.s32.totalorder %s173, %s175
    %p182 = scmp.eq.s32.totalorder %s71, 1
    %p183 = por %p181, %p182
    %p184 = scmp.ne.s32.totalorder %s175, %s176
    %p185 = scmp.eq.s32.totalorder %s71, 0
    %p186 = por %p184, %p185
    %p187 = scmp.ne.s32.totalorder %s175, %s176
    %p188 = scmp.eq.s32.totalorder %s72, 1
    %p189 = por %p187, %p188
    %p191 = scmp.ne.s32.totalorder %s176, %s190
    %p192 = scmp.eq.s32.totalorder %s72, 0
    %p193 = por %p191, %p192
    %s195 = sadd.s32 %s194, 1
    %p198 = scmp.eq.s32.totalorder %s66, 1
    %p199 = scmp.ne.s32.totalorder %s194, %s196
    %p200 = scmp.eq.s32.totalorder %s66, 0
    %p201 = por %p199, %p200
    %p202 = scmp.ne.s32.totalorder %s194, %s196
    %p203 = scmp.eq.s32.totalorder %s71, 1
    %p204 = por %p202, %p203
    %p205 = scmp.ne.s32.totalorder %s196, %s197
    %p206 = scmp.eq.s32.totalorder %s71, 0
    %p207 = por %p205, %p206
    %p208 = scmp.ne.s32.totalorder %s196, %s197
    %p209 = scmp.eq.s32.totalorder %s72, 1
    %p210 = por %p208, %p209
    %p212 = scmp.ne.s32.totalorder %s197, %s211
    %p213 = scmp.eq.s32.totalorder %s72, 0
    %p214 = por %p212, %p213
    %s216 = sadd.s32 %s215, 1
    %p219 = scmp.eq.s32.totalorder %s66, 1
    %p220 = scmp.ne.s32.totalorder %s215, %s217
    %p221 = scmp.eq.s32.totalorder %s66, 0
    %p222 = por %p220, %p221
    %p223 = scmp.ne.s32.totalorder %s215, %s217
    %p224 = scmp.eq.s32.totalorder %s71, 1
    %p225 = por %p223, %p224
    %p226 = scmp.ne.s32.totalorder %s217, %s218
    %p227 = scmp.eq.s32.totalorder %s71, 0
    %p228 = por %p226, %p227
    %p229 = scmp.ne.s32.totalorder %s217, %s218
    %p230 = scmp.eq.s32.totalorder %s72, 1
    %p231 = por %p229, %p230
    %p233 = scmp.ne.s32.totalorder %s218, %s232
    %p234 = scmp.eq.s32.totalorder %s72, 0
    %p235 = por %p233, %p234
    %s237 = sadd.s32 %s236, 1
    %p240 = scmp.eq.s32.totalorder %s66, 1
    %p241 = scmp.ne.s32.totalorder %s236, %s238
    %p242 = scmp.eq.s32.totalorder %s66, 0
    %p243 = por %p241, %p242
    %p244 = scmp.ne.s32.totalorder %s236, %s238
    %p245 = scmp.eq.s32.totalorder %s71, 1
    %p246 = por %p244, %p245
    %p247 = scmp.ne.s32.totalorder %s238, %s239
    %p248 = scmp.eq.s32.totalorder %s71, 0
    %p249 = por %p247, %p248
    %p250 = scmp.ne.s32.totalorder %s238, %s239
    %p251 = scmp.eq.s32.totalorder %s72, 1
    %p252 = por %p250, %p251
    %p254 = scmp.ne.s32.totalorder %s239, %s253
    %p255 = scmp.eq.s32.totalorder %s72, 0
    %p256 = por %p254, %p255
    %s258 = sadd.s32 %s257, 1
    %p261 = scmp.eq.s32.totalorder %s66, 1
    %p262 = scmp.ne.s32.totalorder %s257, %s259
    %p263 = scmp.eq.s32.totalorder %s66, 0
    %p264 = por %p262, %p263
    %p265 = scmp.ne.s32.totalorder %s257, %s259
    %p266 = scmp.eq.s32.totalorder %s71, 1
    %p267 = por %p265, %p266
    %p268 = scmp.ne.s32.totalorder %s259, %s260
    %p269 = scmp.eq.s32.totalorder %s71, 0
    %p270 = por %p268, %p269
    %p271 = scmp.ne.s32.totalorder %s259, %s260
    %p272 = scmp.eq.s32.totalorder %s72, 1
    %p273 = por %p271, %p272
    %p275 = scmp.ne.s32.totalorder %s260, %s274
    %p276 = scmp.eq.s32.totalorder %s72, 0
    %p277 = por %p275, %p276
    %s279 = sadd.s32 %s278, 1
    %p282 = scmp.eq.s32.totalorder %s66, 1
    %p283 = scmp.ne.s32.totalorder %s278, %s280
    %p284 = scmp.eq.s32.totalorder %s66, 0
    %p285 = por %p283, %p284
    %p286 = scmp.ne.s32.totalorder %s278, %s280
    %p287 = scmp.eq.s32.totalorder %s71, 1
    %p288 = por %p286, %p287
    %p289 = scmp.ne.s32.totalorder %s280, %s281
    %p290 = scmp.eq.s32.totalorder %s71, 0
    %p291 = por %p289, %p290
    %p292 = scmp.ne.s32.totalorder %s280, %s281
    %p293 = scmp.eq.s32.totalorder %s72, 1
    %p294 = por %p292, %p293
    %p296 = scmp.ne.s32.totalorder %s281, %s295
    %p297 = scmp.eq.s32.totalorder %s72, 0
    %p298 = por %p296, %p297
    %s300 = sadd.s32 %s299, 1
    %p303 = scmp.eq.s32.totalorder %s66, 1
    %p304 = scmp.ne.s32.totalorder %s299, %s301
    %p305 = scmp.eq.s32.totalorder %s66, 0
    %p306 = por %p304, %p305
    %p307 = scmp.ne.s32.totalorder %s299, %s301
    %p308 = scmp.eq.s32.totalorder %s71, 1
    %p309 = por %p307, %p308
    %p310 = scmp.ne.s32.totalorder %s301, %s302
    %p311 = scmp.eq.s32.totalorder %s71, 0
    %p312 = por %p310, %p311
    %p313 = scmp.ne.s32.totalorder %s301, %s302
    %p314 = scmp.eq.s32.totalorder %s72, 1
    %p315 = por %p313, %p314
    %p317 = scmp.ne.s32.totalorder %s302, %s316
    %p318 = scmp.eq.s32.totalorder %s72, 0
    %p319 = por %p317, %p318
    %s321 = sadd.s32 %s320, 1
    %p324 = scmp.eq.s32.totalorder %s66, 1
    %p325 = scmp.ne.s32.totalorder %s320, %s322
    %p326 = scmp.eq.s32.totalorder %s66, 0
    %p327 = por %p325, %p326
    %p328 = scmp.ne.s32.totalorder %s320, %s322
    %p329 = scmp.eq.s32.totalorder %s71, 1
    %p330 = por %p328, %p329
    %p331 = scmp.ne.s32.totalorder %s322, %s323
    %p332 = scmp.eq.s32.totalorder %s71, 0
    %p333 = por %p331, %p332
    %p334 = scmp.ne.s32.totalorder %s322, %s323
    %p335 = scmp.eq.s32.totalorder %s72, 1
    %p336 = por %p334, %p335
    %p338 = scmp.ne.s32.totalorder %s323, %s337
    %p339 = scmp.eq.s32.totalorder %s72, 0
    %p340 = por %p338, %p339
    %s342 = sadd.s32 %s341, 1
    %p345 = scmp.eq.s32.totalorder %s66, 1
    %p346 = scmp.ne.s32.totalorder %s341, %s343
    %p347 = scmp.eq.s32.totalorder %s66, 0
    %p348 = por %p346, %p347
    %p349 = scmp.ne.s32.totalorder %s341, %s343
    %p350 = scmp.eq.s32.totalorder %s71, 1
    %p351 = por %p349, %p350
    %p352 = scmp.ne.s32.totalorder %s343, %s344
    %p353 = scmp.eq.s32.totalorder %s71, 0
    %p354 = por %p352, %p353
    %p355 = scmp.ne.s32.totalorder %s343, %s344
    %p356 = scmp.eq.s32.totalorder %s72, 1
    %p357 = por %p355, %p356
    %p359 = scmp.ne.s32.totalorder %s344, %s358
    %p360 = scmp.eq.s32.totalorder %s72, 0
    %p361 = por %p359, %p360
    %s363 = sadd.s32 %s362, 1
    %p366 = scmp.eq.s32.totalorder %s66, 1
    %p367 = scmp.ne.s32.totalorder %s362, %s364
    %p368 = scmp.eq.s32.totalorder %s66, 0
    %p369 = por %p367, %p368
    %p370 = scmp.ne.s32.totalorder %s362, %s364
    %p371 = scmp.eq.s32.totalorder %s71, 1
    %p372 = por %p370, %p371
    %p373 = scmp.ne.s32.totalorder %s364, %s365
    %p374 = scmp.eq.s32.totalorder %s71, 0
    %p375 = por %p373, %p374
    %p376 = scmp.ne.s32.totalorder %s364, %s365
    %p377 = scmp.eq.s32.totalorder %s72, 1
    %p378 = por %p376, %p377
    %p380 = scmp.ne.s32.totalorder %s365, %s379
    %p381 = scmp.eq.s32.totalorder %s72, 0
    %p382 = por %p380, %p381
    %s384 = sadd.s32 %s383, 1
    %p387 = scmp.eq.s32.totalorder %s66, 1
    %p388 = scmp.ne.s32.totalorder %s383, %s385
    %p389 = scmp.eq.s32.totalorder %s66, 0
    %p390 = por %p388, %p389
    %p391 = scmp.ne.s32.totalorder %s383, %s385
    %p392 = scmp.eq.s32.totalorder %s71, 1
    %p393 = por %p391, %p392
    %p394 = scmp.ne.s32.totalorder %s385, %s386
    %p395 = scmp.eq.s32.totalorder %s71, 0
    %p396 = por %p394, %p395
    %p397 = scmp.ne.s32.totalorder %s385, %s386
    %p398 = scmp.eq.s32.totalorder %s72, 1
    %p399 = por %p397, %p398
    %p401 = scmp.ne.s32.totalorder %s386, %s400
    %p402 = scmp.eq.s32.totalorder %s72, 0
    %p403 = por %p401, %p402
    %s405 = sadd.s32 %s404, 1
    %p408 = scmp.eq.s32.totalorder %s66, 1
    %p409 = scmp.ne.s32.totalorder %s404, %s406
    %p410 = scmp.eq.s32.totalorder %s66, 0
    %p411 = por %p409, %p410
    %p412 = scmp.ne.s32.totalorder %s404, %s406
    %p413 = scmp.eq.s32.totalorder %s71, 1
    %p414 = por %p412, %p413
    %p415 = scmp.ne.s32.totalorder %s406, %s407
    %p416 = scmp.eq.s32.totalorder %s71, 0
    %p417 = por %p415, %p416
    %p418 = scmp.ne.s32.totalorder %s406, %s407
    %p419 = scmp.eq.s32.totalorder %s72, 1
    %p420 = por %p418, %p419
    %p422 = scmp.ne.s32.totalorder %s407, %s421
    %p423 = scmp.eq.s32.totalorder %s72, 0
    %p424 = por %p422, %p423
    %s426 = sadd.s32 %s425, 1
    %p429 = scmp.eq.s32.totalorder %s66, 1
    %p430 = scmp.ne.s32.totalorder %s425, %s427
    %p431 = scmp.eq.s32.totalorder %s66, 0
    %p432 = por %p430, %p431
    %p433 = scmp.ne.s32.totalorder %s425, %s427
    %p434 = scmp.eq.s32.totalorder %s71, 1
    %p435 = por %p433, %p434
    %p436 = scmp.ne.s32.totalorder %s427, %s428
    %p437 = scmp.eq.s32.totalorder %s71, 0
    %p438 = por %p436, %p437
    %p439 = scmp.ne.s32.totalorder %s427, %s428
    %p440 = scmp.eq.s32.totalorder %s72, 1
    %p441 = por %p439, %p440
    %p443 = scmp.ne.s32.totalorder %s428, %s442
    %p444 = scmp.eq.s32.totalorder %s72, 0
    %p445 = por %p443, %p444
    %s447 = sadd.s32 %s446, 1
    %p450 = scmp.eq.s32.totalorder %s66, 1
    %p451 = scmp.ne.s32.totalorder %s446, %s448
    %p452 = scmp.eq.s32.totalorder %s66, 0
    %p453 = por %p451, %p452
    %p454 = scmp.ne.s32.totalorder %s446, %s448
    %p455 = scmp.eq.s32.totalorder %s71, 1
    %p456 = por %p454, %p455
    %p457 = scmp.ne.s32.totalorder %s448, %s449
    %p458 = scmp.eq.s32.totalorder %s71, 0
    %p459 = por %p457, %p458
    %p460 = scmp.ne.s32.totalorder %s448, %s449
    %p461 = scmp.eq.s32.totalorder %s72, 1
    %p462 = por %p460, %p461
    %p464 = scmp.ne.s32.totalorder %s449, %s463
    %p465 = scmp.eq.s32.totalorder %s72, 0
    %p466 = por %p464, %p465
    %s468 = sadd.s32 %s467, 1
    %p471 = scmp.eq.s32.totalorder %s66, 1
    %p472 = scmp.ne.s32.totalorder %s467, %s469
    %p473 = scmp.eq.s32.totalorder %s66, 0
    %p474 = por %p472, %p473
    %p475 = scmp.ne.s32.totalorder %s467, %s469
    %p476 = scmp.eq.s32.totalorder %s71, 1
    %p477 = por %p475, %p476
    %p478 = scmp.ne.s32.totalorder %s469, %s470
    %p479 = scmp.eq.s32.totalorder %s71, 0
    %p480 = por %p478, %p479
    %p481 = scmp.ne.s32.totalorder %s469, %s470
    %p482 = scmp.eq.s32.totalorder %s72, 1
    %p483 = por %p481, %p482
    %p485 = scmp.ne.s32.totalorder %s470, %s484
    %p486 = scmp.eq.s32.totalorder %s72, 0
    %p487 = por %p485, %p486
    %s489 = sadd.s32 %s488, 1
    %p492 = scmp.eq.s32.totalorder %s66, 1
    %p493 = scmp.ne.s32.totalorder %s488, %s490
    %p494 = scmp.eq.s32.totalorder %s66, 0
    %p495 = por %p493, %p494
    %p496 = scmp.ne.s32.totalorder %s488, %s490
    %p497 = scmp.eq.s32.totalorder %s71, 1
    %p498 = por %p496, %p497
    %p499 = scmp.ne.s32.totalorder %s490, %s491
    %p500 = scmp.eq.s32.totalorder %s71, 0
    %p501 = por %p499, %p500
    %p502 = scmp.ne.s32.totalorder %s490, %s491
    %p503 = scmp.eq.s32.totalorder %s72, 1
    %p504 = por %p502, %p503
    %p506 = scmp.ne.s32.totalorder %s491, %s505
    %p507 = scmp.eq.s32.totalorder %s72, 0
    %p508 = por %p506, %p507
    %s510 = sadd.s32 %s509, 1
    %p513 = scmp.eq.s32.totalorder %s66, 1
    %p514 = scmp.ne.s32.totalorder %s509, %s511
    %p515 = scmp.eq.s32.totalorder %s66, 0
    %p516 = por %p514, %p515
    %p517 = scmp.ne.s32.totalorder %s509, %s511
    %p518 = scmp.eq.s32.totalorder %s71, 1
    %p519 = por %p517, %p518
    %p520 = scmp.ne.s32.totalorder %s511, %s512
    %p521 = scmp.eq.s32.totalorder %s71, 0
    %p522 = por %p520, %p521
    %p523 = scmp.ne.s32.totalorder %s511, %s512
    %p524 = scmp.eq.s32.totalorder %s72, 1
    %p525 = por %p523, %p524
    %p527 = scmp.ne.s32.totalorder %s512, %s526
    %p528 = scmp.eq.s32.totalorder %s72, 0
    %p529 = por %p527, %p528
    %s531 = sadd.s32 %s530, 1
    %p534 = scmp.eq.s32.totalorder %s66, 1
    %p535 = scmp.ne.s32.totalorder %s530, %s532
    %p536 = scmp.eq.s32.totalorder %s66, 0
    %p537 = por %p535, %p536
    %p538 = scmp.ne.s32.totalorder %s530, %s532
    %p539 = scmp.eq.s32.totalorder %s71, 1
    %p540 = por %p538, %p539
    %p541 = scmp.ne.s32.totalorder %s532, %s533
    %p542 = scmp.eq.s32.totalorder %s71, 0
    %p543 = por %p541, %p542
    %p544 = scmp.ne.s32.totalorder %s532, %s533
    %p545 = scmp.eq.s32.totalorder %s72, 1
    %p546 = por %p544, %p545
    %p548 = scmp.ne.s32.totalorder %s533, %s547
    %p549 = scmp.eq.s32.totalorder %s72, 0
    %p550 = por %p548, %p549
    %s552 = sadd.s32 %s551, 1
    %p555 = scmp.eq.s32.totalorder %s66, 1
    %p556 = scmp.ne.s32.totalorder %s551, %s553
    %p557 = scmp.eq.s32.totalorder %s66, 0
    %p558 = por %p556, %p557
    %p559 = scmp.ne.s32.totalorder %s551, %s553
    %p560 = scmp.eq.s32.totalorder %s71, 1
    %p561 = por %p559, %p560
    %p562 = scmp.ne.s32.totalorder %s553, %s554
    %p563 = scmp.eq.s32.totalorder %s71, 0
    %p564 = por %p562, %p563
    %p565 = scmp.ne.s32.totalorder %s553, %s554
    %p566 = scmp.eq.s32.totalorder %s72, 1
    %p567 = por %p565, %p566
    %p569 = scmp.ne.s32.totalorder %s554, %s568
    %p570 = scmp.eq.s32.totalorder %s72, 0
    %p571 = por %p569, %p570
    %s573 = sadd.s32 %s572, 1
    %p576 = scmp.eq.s32.totalorder %s66, 1
    %p577 = scmp.ne.s32.totalorder %s572, %s574
    %p578 = scmp.eq.s32.totalorder %s66, 0
    %p579 = por %p577, %p578
    %p580 = scmp.ne.s32.totalorder %s572, %s574
    %p581 = scmp.eq.s32.totalorder %s71, 1
    %p582 = por %p580, %p581
    %p583 = scmp.ne.s32.totalorder %s574, %s575
    %p584 = scmp.eq.s32.totalorder %s71, 0
    %p585 = por %p583, %p584
    %p586 = scmp.ne.s32.totalorder %s574, %s575
    %p587 = scmp.eq.s32.totalorder %s72, 1
    %p588 = por %p586, %p587
    %p590 = scmp.ne.s32.totalorder %s575, %s589
    %p591 = scmp.eq.s32.totalorder %s72, 0
    %p592 = por %p590, %p591
    %s594 = sadd.s32 %s593, 1
    %p597 = scmp.eq.s32.totalorder %s66, 1
    %p598 = scmp.ne.s32.totalorder %s593, %s595
    %p599 = scmp.eq.s32.totalorder %s66, 0
    %p600 = por %p598, %p599
    %p601 = scmp.ne.s32.totalorder %s593, %s595
    %p602 = scmp.eq.s32.totalorder %s71, 1
    %p603 = por %p601, %p602
    %p604 = scmp.ne.s32.totalorder %s595, %s596
    %p605 = scmp.eq.s32.totalorder %s71, 0
    %p606 = por %p604, %p605
    %p607 = scmp.ne.s32.totalorder %s595, %s596
    %p608 = scmp.eq.s32.totalorder %s72, 1
    %p609 = por %p607, %p608
    %p611 = scmp.ne.s32.totalorder %s596, %s610
    %p612 = scmp.eq.s32.totalorder %s72, 0
    %p613 = por %p611, %p612
    %s615 = sadd.s32 %s614, 1
    %p618 = scmp.eq.s32.totalorder %s66, 1
    %p619 = scmp.ne.s32.totalorder %s614, %s616
    %p620 = scmp.eq.s32.totalorder %s66, 0
    %p621 = por %p619, %p620
    %p622 = scmp.ne.s32.totalorder %s614, %s616
    %p623 = scmp.eq.s32.totalorder %s71, 1
    %p624 = por %p622, %p623
    %p625 = scmp.ne.s32.totalorder %s616, %s617
    %p626 = scmp.eq.s32.totalorder %s71, 0
    %p627 = por %p625, %p626
    %p628 = scmp.ne.s32.totalorder %s616, %s617
    %p629 = scmp.eq.s32.totalorder %s72, 1
    %p630 = por %p628, %p629
    %p632 = scmp.ne.s32.totalorder %s617, %s631
    %p633 = scmp.eq.s32.totalorder %s72, 0
    %p634 = por %p632, %p633
    %s636 = sadd.s32 %s635, 1
    %p639 = scmp.eq.s32.totalorder %s66, 1
    %p640 = scmp.ne.s32.totalorder %s635, %s637
    %p641 = scmp.eq.s32.totalorder %s66, 0
    %p642 = por %p640, %p641
    %p643 = scmp.ne.s32.totalorder %s635, %s637
    %p644 = scmp.eq.s32.totalorder %s71, 1
    %p645 = por %p643, %p644
    %p646 = scmp.ne.s32.totalorder %s637, %s638
    %p647 = scmp.eq.s32.totalorder %s71, 0
    %p648 = por %p646, %p647
    %p649 = scmp.ne.s32.totalorder %s637, %s638
    %p650 = scmp.eq.s32.totalorder %s72, 1
    %p651 = por %p649, %p650
    %p653 = scmp.ne.s32.totalorder %s638, %s652
    %p654 = scmp.eq.s32.totalorder %s72, 0
    %p655 = por %p653, %p654
    %s657 = sadd.s32 %s656, 1
    %p660 = scmp.eq.s32.totalorder %s66, 1
    %p661 = scmp.ne.s32.totalorder %s656, %s658
    %p662 = scmp.eq.s32.totalorder %s66, 0
    %p663 = por %p661, %p662
    %p664 = scmp.ne.s32.totalorder %s656, %s658
    %p665 = scmp.eq.s32.totalorder %s71, 1
    %p666 = por %p664, %p665
    %p667 = scmp.ne.s32.totalorder %s658, %s659
    %p668 = scmp.eq.s32.totalorder %s71, 0
    %p669 = por %p667, %p668
    %p670 = scmp.ne.s32.totalorder %s658, %s659
    %p671 = scmp.eq.s32.totalorder %s72, 1
    %p672 = por %p670, %p671
    %p674 = scmp.ne.s32.totalorder %s659, %s673
    %p675 = scmp.eq.s32.totalorder %s72, 0
    %p676 = por %p674, %p675
    %s677 = ssub.s32 %s66, %s73
    %p678 = scmp.eq.s32.totalorder %s677, 0
    %s680 = sadd.s32 %s679, 1
    %s681 = scalar_select %p678, %s679, %s680
    %p684 = pneg %p678
    %p685 = scmp.eq.s32.totalorder %s66, 1
    %p686 = por %p684, %p685
    %p687 = scmp.ne.s32.totalorder %s679, %s682
    %p688 = scmp.eq.s32.totalorder %s66, 0
    %p689 = por %p687, %p688
    %p690 = scmp.ne.s32.totalorder %s679, %s682
    %p691 = scmp.eq.s32.totalorder %s71, 1
    %p692 = por %p690, %p691
    %p693 = scmp.ne.s32.totalorder %s682, %s683
    %p694 = scmp.eq.s32.totalorder %s71, 0
    %p695 = por %p693, %p694
    %p696 = scmp.ne.s32.totalorder %s682, %s683
    %p697 = scmp.eq.s32.totalorder %s72, 1
    %p698 = por %p696, %p697
    %p700 = scmp.ne.s32.totalorder %s683, %s699
    %p701 = scmp.eq.s32.totalorder %s72, 0
    %p702 = por %p700, %p701
    %s703 = ssub.s32 %s66, %s73
    %p704 = scmp.eq.s32.totalorder %s703, 0
    %s706 = sadd.s32 %s705, 1
    %s707 = scalar_select %p704, %s705, %s706
    %p710 = pneg %p704
    %p711 = scmp.eq.s32.totalorder %s66, 1
    %p712 = por %p710, %p711
    %p713 = scmp.ne.s32.totalorder %s705, %s708
    %p714 = scmp.eq.s32.totalorder %s66, 0
    %p715 = por %p713, %p714
    %p716 = scmp.ne.s32.totalorder %s705, %s708
    %p717 = scmp.eq.s32.totalorder %s71, 1
    %p718 = por %p716, %p717
    %p719 = scmp.ne.s32.totalorder %s708, %s709
    %p720 = scmp.eq.s32.totalorder %s71, 0
    %p721 = por %p719, %p720
    %p722 = scmp.ne.s32.totalorder %s708, %s709
    %p723 = scmp.eq.s32.totalorder %s72, 1
    %p724 = por %p722, %p723
    %p726 = scmp.ne.s32.totalorder %s709, %s725
    %p727 = scmp.eq.s32.totalorder %s72, 0
    %p728 = por %p726, %p727
    %p729 = scmp.le.s32.totalorder 1, %s66
    %p730 = scmp.lt.s32.totalorder %s66, 3
    %p731 = pnand %p729, %p730
    %p732 = pneg %p731
    // Predicated region
    $region9: #{forward.1} parent=5 // pred_check
      _
    $region10: #{forward.1} parent=5 // pred_check_branch
      %734 = sbr.rel (%p731) target = $region12
    $region11: #{forward.1} parent=5 // pred_region
      %s735 = ssub.s32 %s66, 1
      // Predicated region
      $region13: #{forward.1} parent=11 // pred_check
        %p736 = pneg %p165
      $region14: #{forward.1} parent=11 // pred_check_branch
        %738 = sbr.rel (%p736) target = $region16
      $region15: #{forward.1} parent=11 // pred_region
        _
      $region16: #{forward.1} parent=11 // pred_fallthru
        _
      // Predicated region
      $region17: #{forward.1} parent=11 // pred_check
        %p739 = pneg %p186
      $region18: #{forward.1} parent=11 // pred_check_branch
        %741 = sbr.rel (%p739) target = $region20
      $region19: #{forward.1} parent=11 // pred_region
        _
      $region20: #{forward.1} parent=11 // pred_fallthru
        _
      // Predicated region
      $region21: #{forward.1} parent=11 // pred_check
        %p742 = pneg %p207
      $region22: #{forward.1} parent=11 // pred_check_branch
        %744 = sbr.rel (%p742) target = $region24
      $region23: #{forward.1} parent=11 // pred_region
        _
      $region24: #{forward.1} parent=11 // pred_fallthru
        _
      // Predicated region
      $region25: #{forward.1} parent=11 // pred_check
        %p745 = pneg %p228
      $region26: #{forward.1} parent=11 // pred_check_branch
        %747 = sbr.rel (%p745) target = $region28
      $region27: #{forward.1} parent=11 // pred_region
        _
      $region28: #{forward.1} parent=11 // pred_fallthru
        _
      // Predicated region
      $region29: #{forward.1} parent=11 // pred_check
        %p748 = pneg %p249
      $region30: #{forward.1} parent=11 // pred_check_branch
        %750 = sbr.rel (%p748) target = $region32
      $region31: #{forward.1} parent=11 // pred_region
        _
      $region32: #{forward.1} parent=11 // pred_fallthru
        _
      // Predicated region
      $region33: #{forward.1} parent=11 // pred_check
        %p751 = pneg %p270
      $region34: #{forward.1} parent=11 // pred_check_branch
        %753 = sbr.rel (%p751) target = $region36
      $region35: #{forward.1} parent=11 // pred_region
        _
      $region36: #{forward.1} parent=11 // pred_fallthru
        _
      // Predicated region
      $region37: #{forward.1} parent=11 // pred_check
        %p754 = pneg %p291
      $region38: #{forward.1} parent=11 // pred_check_branch
        %756 = sbr.rel (%p754) target = $region40
      $region39: #{forward.1} parent=11 // pred_region
        _
      $region40: #{forward.1} parent=11 // pred_fallthru
        _
      // Predicated region
      $region41: #{forward.1} parent=11 // pred_check
        %p757 = pneg %p312
      $region42: #{forward.1} parent=11 // pred_check_branch
        %759 = sbr.rel (%p757) target = $region44
      $region43: #{forward.1} parent=11 // pred_region
        _
      $region44: #{forward.1} parent=11 // pred_fallthru
        _
      // Predicated region
      $region45: #{forward.1} parent=11 // pred_check
        %p760 = pneg %p333
      $region46: #{forward.1} parent=11 // pred_check_branch
        %762 = sbr.rel (%p760) target = $region48
      $region47: #{forward.1} parent=11 // pred_region
        _
      $region48: #{forward.1} parent=11 // pred_fallthru
        _
      // Predicated region
      $region49: #{forward.1} parent=11 // pred_check
        %p763 = pneg %p354
      $region50: #{forward.1} parent=11 // pred_check_branch
        %765 = sbr.rel (%p763) target = $region52
      $region51: #{forward.1} parent=11 // pred_region
        _
      $region52: #{forward.1} parent=11 // pred_fallthru
        _
      // Predicated region
      $region53: #{forward.1} parent=11 // pred_check
        %p766 = pneg %p375
      $region54: #{forward.1} parent=11 // pred_check_branch
        %768 = sbr.rel (%p766) target = $region56
      $region55: #{forward.1} parent=11 // pred_region
        _
      $region56: #{forward.1} parent=11 // pred_fallthru
        _
      // Predicated region
      $region57: #{forward.1} parent=11 // pred_check
        %p769 = pneg %p396
      $region58: #{forward.1} parent=11 // pred_check_branch
        %771 = sbr.rel (%p769) target = $region60
      $region59: #{forward.1} parent=11 // pred_region
        _
      $region60: #{forward.1} parent=11 // pred_fallthru
        _
      // Predicated region
      $region61: #{forward.1} parent=11 // pred_check
        %p772 = pneg %p417
      $region62: #{forward.1} parent=11 // pred_check_branch
        %774 = sbr.rel (%p772) target = $region64
      $region63: #{forward.1} parent=11 // pred_region
        _
      $region64: #{forward.1} parent=11 // pred_fallthru
        _
      // Predicated region
      $region65: #{forward.1} parent=11 // pred_check
        %p775 = pneg %p438
      $region66: #{forward.1} parent=11 // pred_check_branch
        %777 = sbr.rel (%p775) target = $region68
      $region67: #{forward.1} parent=11 // pred_region
        _
      $region68: #{forward.1} parent=11 // pred_fallthru
        _
      // Predicated region
      $region69: #{forward.1} parent=11 // pred_check
        %p778 = pneg %p459
      $region70: #{forward.1} parent=11 // pred_check_branch
        %780 = sbr.rel (%p778) target = $region72
      $region71: #{forward.1} parent=11 // pred_region
        _
      $region72: #{forward.1} parent=11 // pred_fallthru
        _
      // Predicated region
      $region73: #{forward.1} parent=11 // pred_check
        %p781 = pneg %p480
      $region74: #{forward.1} parent=11 // pred_check_branch
        %783 = sbr.rel (%p781) target = $region76
      $region75: #{forward.1} parent=11 // pred_region
        _
      $region76: #{forward.1} parent=11 // pred_fallthru
        _
      // Predicated region
      $region77: #{forward.1} parent=11 // pred_check
        %p784 = pneg %p501
      $region78: #{forward.1} parent=11 // pred_check_branch
        %786 = sbr.rel (%p784) target = $region80
      $region79: #{forward.1} parent=11 // pred_region
        _
      $region80: #{forward.1} parent=11 // pred_fallthru
        _
      // Predicated region
      $region81: #{forward.1} parent=11 // pred_check
        %p787 = pneg %p522
      $region82: #{forward.1} parent=11 // pred_check_branch
        %789 = sbr.rel (%p787) target = $region84
      $region83: #{forward.1} parent=11 // pred_region
        _
      $region84: #{forward.1} parent=11 // pred_fallthru
        _
      // Predicated region
      $region85: #{forward.1} parent=11 // pred_check
        %p790 = pneg %p543
      $region86: #{forward.1} parent=11 // pred_check_branch
        %792 = sbr.rel (%p790) target = $region88
      $region87: #{forward.1} parent=11 // pred_region
        _
      $region88: #{forward.1} parent=11 // pred_fallthru
        _
      // Predicated region
      $region89: #{forward.1} parent=11 // pred_check
        %p793 = pneg %p564
      $region90: #{forward.1} parent=11 // pred_check_branch
        %795 = sbr.rel (%p793) target = $region92
      $region91: #{forward.1} parent=11 // pred_region
        _
      $region92: #{forward.1} parent=11 // pred_fallthru
        _
      // Predicated region
      $region93: #{forward.1} parent=11 // pred_check
        %p796 = pneg %p585
      $region94: #{forward.1} parent=11 // pred_check_branch
        %798 = sbr.rel (%p796) target = $region96
      $region95: #{forward.1} parent=11 // pred_region
        _
      $region96: #{forward.1} parent=11 // pred_fallthru
        _
      // Predicated region
      $region97: #{forward.1} parent=11 // pred_check
        %p799 = pneg %p606
      $region98: #{forward.1} parent=11 // pred_check_branch
        %801 = sbr.rel (%p799) target = $region100
      $region99: #{forward.1} parent=11 // pred_region
        _
      $region100: #{forward.1} parent=11 // pred_fallthru
        _
      // Predicated region
      $region101: #{forward.1} parent=11 // pred_check
        %p802 = pneg %p627
      $region102: #{forward.1} parent=11 // pred_check_branch
        %804 = sbr.rel (%p802) target = $region104
      $region103: #{forward.1} parent=11 // pred_region
        _
      $region104: #{forward.1} parent=11 // pred_fallthru
        _
      // Predicated region
      $region105: #{forward.1} parent=11 // pred_check
        %p805 = pneg %p648
      $region106: #{forward.1} parent=11 // pred_check_branch
        %807 = sbr.rel (%p805) target = $region108
      $region107: #{forward.1} parent=11 // pred_region
        _
      $region108: #{forward.1} parent=11 // pred_fallthru
        _
      // Predicated region
      $region109: #{forward.1} parent=11 // pred_check
        %p808 = pneg %p669
      $region110: #{forward.1} parent=11 // pred_check_branch
        %810 = sbr.rel (%p808) target = $region112
      $region111: #{forward.1} parent=11 // pred_region
        _
      $region112: #{forward.1} parent=11 // pred_fallthru
        _
    $region12: #{forward.1} parent=5 // pred_fallthru
      _
    %p811 = scmp.lt.s32.totalorder %s66, 2
    // Predicated region
    $region113: #{forward.1} parent=5 // pred_check
      %p812 = pneg %p811
    $region114: #{forward.1} parent=5 // pred_check_branch
      %814 = sbr.rel (%p812) target = $region116
    $region115: #{forward.1} parent=5 // pred_region
      // Predicated region
      $region117: #{forward.1} parent=115 // pred_check
        %p815 = pneg %p86
      $region118: #{forward.1} parent=115 // pred_check_branch
        %817 = sbr.rel (%p815) target = $region120
      $region119: #{forward.1} parent=115 // pred_region
        %p818 = scmp.lt.s32.totalorder %s66, 1
        %s819 = scalar_select %p818, %s66, 1
        %s820 = smul.addr %s819, 2
        %s821 = smul.addr %s820, 8
        %s822 = scalar_lea.vmem %s1, %s821
      $region120: #{forward.1} parent=115 // pred_fallthru
        _
      // Predicated region
      $region121: #{forward.1} parent=115 // pred_check
        %p823 = pneg %p112
      $region122: #{forward.1} parent=115 // pred_check_branch
        %825 = sbr.rel (%p823) target = $region124
      $region123: #{forward.1} parent=115 // pred_region
        %p826 = scmp.lt.s32.totalorder %s66, 1
        %s827 = scalar_select %p826, %s66, 1
        %s828 = smul.addr %s827, 2
        %s829 = smul.addr %s828, 8
        %s830 = scalar_lea.vmem %s3, %s829
      $region124: #{forward.1} parent=115 // pred_fallthru
        _
      // Predicated region
      $region125: #{forward.1} parent=115 // pred_check
        %p831 = pneg %p138
      $region126: #{forward.1} parent=115 // pred_check_branch
        %833 = sbr.rel (%p831) target = $region128
      $region127: #{forward.1} parent=115 // pred_region
        %p834 = scmp.lt.s32.totalorder %s66, 1
        %s835 = scalar_select %p834, %s66, 1
        %s836 = smul.addr %s835, 2
        %s837 = smul.addr %s836, 8
        %s838 = scalar_lea.vmem %s5, %s837
      $region128: #{forward.1} parent=115 // pred_fallthru
        _
    $region116: #{forward.1} parent=5 // pred_fallthru
      _
    %p839 = scmp.le.s32.totalorder 1, %s66
    %p840 = scmp.lt.s32.totalorder %s66, 3
    %p841 = pnand %p839, %p840
    %p842 = pneg %p841
    // Predicated region
    $region129: #{forward.1} parent=5 // pred_check
      _
    $region130: #{forward.1} parent=5 // pred_check_branch
      %844 = sbr.rel (%p841) target = $region132
    $region131: #{forward.1} parent=5 // pred_region
      %s845 = ssub.s32 %s66, 1
      %p846 = scmp.lt.s32.totalorder %s71, 1
      %s847 = scalar_select %p846, %s71, 1
      %s848 = smul.addr %s847, 2
      %s849 = smul.addr %s848, 8
      %s850 = scalar_lea.vmem %s1, %s849
      %p851 = pneg %p92
      %p852 = pneg %p89
      %p853 = scmp.lt.s32.totalorder %s71, 1
      %s854 = scalar_select %p853, %s71, 1
      %s855 = smul.addr %s854, 2
      %s856 = smul.addr %s855, 8
      %s857 = scalar_lea.vmem %s3, %s856
      %p858 = pneg %p118
      %p859 = pneg %p115
      %p860 = scmp.lt.s32.totalorder %s71, 1
      %s861 = scalar_select %p860, %s71, 1
      %s862 = smul.addr %s861, 2
      %s863 = smul.addr %s862, 8
      %s864 = scalar_lea.vmem %s5, %s863
      %p865 = pneg %p144
      %p866 = pneg %p141
      %p867 = pneg %p165
      %p868 = pneg %p162
      %p869 = pneg %p186
      %p870 = pneg %p183
      %p871 = pneg %p207
      %p872 = pneg %p204
      %p873 = pneg %p228
      %p874 = pneg %p225
      %p875 = pneg %p249
      %p876 = pneg %p246
      %p877 = pneg %p270
      %p878 = pneg %p267
      %p879 = pneg %p291
      %p880 = pneg %p288
      %p881 = pneg %p312
      %p882 = pneg %p309
      %p883 = pneg %p333
      %p884 = pneg %p330
      %p885 = pneg %p354
      %p886 = pneg %p351
      %p887 = pneg %p375
      %p888 = pneg %p372
      %p889 = pneg %p396
      %p890 = pneg %p393
      %p891 = pneg %p417
      %p892 = pneg %p414
      %p893 = pneg %p438
      %p894 = pneg %p435
      %p895 = pneg %p459
      %p896 = pneg %p456
      %p897 = pneg %p480
      %p898 = pneg %p477
      %p899 = pneg %p501
      %p900 = pneg %p498
      %p901 = pneg %p522
      %p902 = pneg %p519
      %p903 = pneg %p543
      %p904 = pneg %p540
      %p905 = pneg %p564
      %p906 = pneg %p561
      %p907 = pneg %p585
      %p908 = pneg %p582
      %p909 = pneg %p606
      %p910 = pneg %p603
      %p911 = pneg %p627
      %p912 = pneg %p624
      %p913 = pneg %p648
      %p914 = pneg %p645
      %p915 = pneg %p669
      %p916 = pneg %p666
      %p917 = pneg %p695
      %p918 = pneg %p692
      %p919 = scmp.lt.s32.totalorder %s71, 1
      %s920 = scalar_select %p919, %s71, 1
      %s921 = smul.addr %s920, 2
      %s922 = smul.addr %s921, 8
      %s923 = scalar_lea.vmem %s57, %s922
      %p924 = pneg %p721
      %p925 = pneg %p718
      %p926 = scmp.lt.s32.totalorder %s71, 1
      %s927 = scalar_select %p926, %s71, 1
      %s928 = smul.addr %s927, 2
      %s929 = smul.addr %s928, 8
      %s930 = scalar_lea.vmem %s59, %s929
      %p931 = scmp.lt.s32.totalorder %s71, 1
      %s932 = scalar_select %p931, %s71, 1
      %s933 = smul.addr %s932, 2
      %s934 = smul.addr %s933, 8
      %s935 = scalar_lea.vmem %s1, %s934
      %p936 = scmp.lt.s32.totalorder %s71, 1
      %s937 = scalar_select %p936, %s71, 1
      %s938 = smul.addr %s937, 2
      %s939 = smul.addr %s938, 8
      %s940 = scalar_lea.vmem %s3, %s939
      %p941 = scmp.lt.s32.totalorder %s71, 1
      %s942 = scalar_select %p941, %s71, 1
      %s943 = smul.addr %s942, 2
      %s944 = smul.addr %s943, 8
      %s945 = scalar_lea.vmem %s5, %s944
      %p946 = scmp.lt.s32.totalorder %s71, 1
      %s947 = scalar_select %p946, %s71, 1
      %s948 = smul.addr %s947, 2
      %s949 = smul.addr %s948, 8
      %s950 = scalar_lea.vmem %s57, %s949
      %p951 = scmp.lt.s32.totalorder %s71, 1
      %s952 = scalar_select %p951, %s71, 1
      %s953 = smul.addr %s952, 2
      %s954 = smul.addr %s953, 8
      %s955 = scalar_lea.vmem %s59, %s954
      %v956 = vld [vmem:[%s935] sm:$0xff]
      %v957 = vld [vmem:[%s935 + $0x8] sm:$0x7f]
      %v958 = vlaneseq
      %v959 = vand.u32 %v958, 127
      %960 = vset.pattern.permute.xlu0 0
      %961 = vperm.xlu0 %960, %v956
      %v962 = vpop.permute.xlu0 %961
      %963 = vset.pattern.permute.xlu0 0
      %964 = vperm.xlu0 %963, %v957
      %v965 = vpop.permute.xlu0 %964
      %vm966 = vcmp.eq.s32.totalorder %v962, %v959
      %vm967 = vcmp.eq.s32.totalorder %v965, %v959
      %v968 = vsel %vm966, 1.0, 0.0
      %v969 = vsel %vm967, 1.0, 0.0
      %v970 = vld [vmem:[%s7] sm:$0xff]
      %v971 = vld [vmem:[%s7 + $0x8] sm:$0xff]
      %v972 = vld [vmem:[%s7 + $0x10] sm:$0xff]
      %v973 = vld [vmem:[%s7 + $0x18] sm:$0xff]
      %v974 = vld [vmem:[%s7 + $0x20] sm:$0xff]
      %v975 = vld [vmem:[%s7 + $0x28] sm:$0xff]
      %v976 = vld [vmem:[%s940] sm:$0xff]
      %v977 = vld [vmem:[%s940 + $0x8] sm:$0x7f]
      %978 = vset.pattern.permute.xlu0 0
      %979 = vperm.xlu0 %978, %v976
      %v980 = vpop.permute.xlu0 %979
      %981 = vset.pattern.permute.xlu0 0
      %982 = vperm.xlu0 %981, %v977
      %v983 = vpop.permute.xlu0 %982
      %vm984 = vcmp.eq.s32.totalorder %v980, %v959
      %vm985 = vcmp.eq.s32.totalorder %v983, %v959
      %v986 = vsel %vm984, 1.0, 0.0
      %v987 = vsel %vm985, 1.0, 0.0
      %v988 = vld [vmem:[%s9] sm:$0xff]
      %v989 = vld [vmem:[%s9 + $0x8] sm:$0xff]
      %v990 = vld [vmem:[%s9 + $0x10] sm:$0xff]
      %v991 = vld [vmem:[%s9 + $0x18] sm:$0xff]
      %v992 = vld [vmem:[%s9 + $0x20] sm:$0xff]
      %v993 = vld [vmem:[%s945] sm:$0xff]
      %v994 = vld [vmem:[%s945 + $0x8] sm:$0x7f]
      %v995 = vld [vmem:[%s13] sm:$0xff]
      %v996 = vld [vmem:[%s13 + $0x8] sm:$0xff]
      %v997 = vld [vmem:[%s15] sm:$0x1]
      %v999 = vlaneseq
      %v1000 = vshrl.u32 %v999, 7
      %v1001 = vsub.s32 0, %v1000
      %v1002 = vrot.slane %v997, %v1001
      %vm1004 = vcmask 130048
      %v1006 = vsel %vm1004, %v993, 0
      %v1009 = vsel %vm1004, %v994, 0
      %1011 = vmatprep.subr.mxu0 0.0
      %1012 = vmatpush1.msra.mxu0 0.0
      %1013 = vmatprep.subr.mxu0 0.0
      %1014 = vmatpush1.msra.mxu0 0.0
      %1015 = vmatprep.subr.mxu0 0.0
      %1016 = vmatpush1.msra.mxu0 0.0
      %1017 = vmatprep.subr.mxu0 0.0
      %1018 = vmatpush1.msra.mxu0 0.0
      %1019 = vmatprep.subr.mxu0 0.0
      %1020 = vmatpush1.msra.mxu0 0.0
      %1021 = vmatprep.subr.mxu0 0.0
      %1022 = vmatpush1.msra.mxu0 0.0
      %1023 = vmatprep.subr.mxu0 0.0
      %1024 = vmatpush1.msra.mxu0 0.0
      %1025 = vmatprep.subr.mxu0 0.0
      %1026 = vmatpush1.msra.mxu0 0.0
      %1027 = vmatprep.subr.mxu0 0.0
      %1028 = vmatpush1.msra.mxu0 0.0
      %1029 = vmatprep.subr.mxu0 0.0
      %1030 = vmatpush1.msra.mxu0 0.0
      %1031 = vmatprep.subr.mxu0 0.0
      %1032 = vmatpush1.msra.mxu0 0.0
      %1033 = vmatprep.subr.mxu0 0.0
      %1034 = vmatpush1.msra.mxu0 0.0
      %1035 = vmatprep.subr.mxu0 0.0
      %1036 = vmatpush1.msra.mxu0 0.0
      %1037 = vmatprep.subr.mxu0 0.0
      %1038 = vmatpush1.msra.mxu0 0.0
      %1039 = vmatprep.subr.mxu0 0.0
      %1040 = vmatpush1.msra.mxu0 %v996
      %1041 = vmatprep.subr.mxu0 0.0
      %1042 = vmatpush1.msra.mxu0 %v995
      %1043 = vmatprep.subr.mxu0 0.0
      %1044 = vmatpush2.msra.mxu0 0.0
      %1045 = vmatprep.subr.mxu0 0.0
      %1046 = vmatpush2.msra.mxu0 0.0
      %1047 = vmatprep.subr.mxu0 0.0
      %1048 = vmatpush2.msra.mxu0 0.0
      %1049 = vmatprep.subr.mxu0 0.0
      %1050 = vmatpush2.msra.mxu0 0.0
      %1051 = vmatprep.subr.mxu0 0.0
      %1052 = vmatpush2.msra.mxu0 0.0
      %1053 = vmatprep.subr.mxu0 0.0
      %1054 = vmatpush2.msra.mxu0 0.0
      %1055 = vmatprep.subr.mxu0 0.0
      %1056 = vmatpush2.msra.mxu0 0.0
      %1057 = vmatprep.subr.mxu0 0.0
      %1058 = vmatpush2.msra.mxu0 0.0
      %1059 = vmatprep.subr.mxu0 0.0
      %1060 = vmatpush2.msra.mxu0 0.0
      %1061 = vmatprep.subr.mxu0 0.0
      %1062 = vmatpush2.msra.mxu0 0.0
      %1063 = vmatprep.subr.mxu0 0.0
      %1064 = vmatpush2.msra.mxu0 0.0
      %1065 = vmatprep.subr.mxu0 0.0
      %1066 = vmatpush2.msra.mxu0 0.0
      %1067 = vmatprep.subr.mxu0 0.0
      %1068 = vmatpush2.msra.mxu0 0.0
      %1069 = vmatprep.subr.mxu0 0.0
      %1070 = vmatpush2.msra.mxu0 0.0
      %1071 = vmatprep.subr.mxu0 0.0
      %1072 = vmatpush2.msra.mxu0 0.0
      %1073 = vmatprep.subr.mxu0 0.0
      %1074 = vmatpush2.msra.mxu0 0.0
      %1075 = vmatprep.mubr.f32.mxu0 0.0
      %1076 = vmatmul.mubr.f32.gmra.mxu0 %v1006
      %v1077 = vpop.f32.mrf.mxu0
      %v1078 = vadd.f32 %v1002, %v1077
      %v1079 = vpop.f32.mrf.mxu0
      %1080 = vmatprep.mubr.f32.mxu0 0.0
      %1081 = vmatmul.mubr.f32.gmra.mxu0 %v1009
      %v1082 = vpop.f32.mrf.mxu0
      %v1083 = vadd.f32 %v1002, %v1082
      %v1084 = vpop.f32.mrf.mxu0
      %1085 = vdwg.mxu0
      %v1086 = vld [vmem:[%s11] sm:$0xff]
      %v1087 = vld [vmem:[%s11 + $0x8] sm:$0x7f]
      %v1088 = vadd.f32 %v1078, %v1086
      %v1089 = vadd.f32 %v1083, %v1087
      %vm1090 = vcmask 261120
      %1091 = vst.msk [vmem:[#allocation2] sm:$0xff] %vm1090, %v1088
      %vm1092 = vcmask 260096
      %1093 = vst.msk [vmem:[#allocation2 + $0x8] sm:$0x7f] %vm1092, %v1089
      %v1094 = vld [vmem:[%s11 + $0xf] sm:$0xff]
      %v1095 = vld [vmem:[%s11 + $0x17] sm:$0x7f]
      %vm1096 = vcmask 392192
      %v1098 = vsel %vm1096, %v968, 0
      %v1101 = vsel %vm1096, %v969, 0
      %1103 = vmatprep.subr.mxu0 0.0
      %1104 = vmatpush1.msra.mxu0 0.0
      %1105 = vmatprep.subr.mxu0 0.0
      %1106 = vmatpush1.msra.mxu0 0.0
      %1107 = vmatprep.subr.mxu0 0.0
      %1108 = vmatpush1.msra.mxu0 0.0
      %1109 = vmatprep.subr.mxu0 0.0
      %1110 = vmatpush1.msra.mxu0 0.0
      %1111 = vmatprep.subr.mxu0 0.0
      %1112 = vmatpush1.msra.mxu0 0.0
      %1113 = vmatprep.subr.mxu0 0.0
      %1114 = vmatpush1.msra.mxu0 0.0
      %1115 = vmatprep.subr.mxu0 0.0
      %1116 = vmatpush1.msra.mxu0 0.0
      %1117 = vmatprep.subr.mxu0 0.0
      %1118 = vmatpush1.msra.mxu0 0.0
      %1119 = vmatprep.subr.mxu0 0.0
      %1120 = vmatpush1.msra.mxu0 0.0
      %1121 = vmatprep.subr.mxu0 0.0
      %1122 = vmatpush1.msra.mxu0 0.0
      %1123 = vmatprep.subr.mxu0 0.0
      %1124 = vmatpush1.msra.mxu0 %v975
      %1125 = vmatprep.subr.mxu0 0.0
      %1126 = vmatpush1.msra.mxu0 %v974
      %1127 = vmatprep.subr.mxu0 0.0
      %1128 = vmatpush1.msra.mxu0 %v973
      %1129 = vmatprep.subr.mxu0 0.0
      %1130 = vmatpush1.msra.mxu0 %v972
      %1131 = vmatprep.subr.mxu0 0.0
      %1132 = vmatpush1.msra.mxu0 %v971
      %1133 = vmatprep.subr.mxu0 0.0
      %1134 = vmatpush1.msra.mxu0 %v970
      %1135 = vmatprep.subr.mxu0 0.0
      %1136 = vmatpush2.msra.mxu0 0.0
      %1137 = vmatprep.subr.mxu0 0.0
      %1138 = vmatpush2.msra.mxu0 0.0
      %1139 = vmatprep.subr.mxu0 0.0
      %1140 = vmatpush2.msra.mxu0 0.0
      %1141 = vmatprep.subr.mxu0 0.0
      %1142 = vmatpush2.msra.mxu0 0.0
      %1143 = vmatprep.subr.mxu0 0.0
      %1144 = vmatpush2.msra.mxu0 0.0
      %1145 = vmatprep.subr.mxu0 0.0
      %1146 = vmatpush2.msra.mxu0 0.0
      %1147 = vmatprep.subr.mxu0 0.0
      %1148 = vmatpush2.msra.mxu0 0.0
      %1149 = vmatprep.subr.mxu0 0.0
      %1150 = vmatpush2.msra.mxu0 0.0
      %1151 = vmatprep.subr.mxu0 0.0
      %1152 = vmatpush2.msra.mxu0 0.0
      %1153 = vmatprep.subr.mxu0 0.0
      %1154 = vmatpush2.msra.mxu0 0.0
      %1155 = vmatprep.subr.mxu0 0.0
      %1156 = vmatpush2.msra.mxu0 0.0
      %1157 = vmatprep.subr.mxu0 0.0
      %1158 = vmatpush2.msra.mxu0 0.0
      %1159 = vmatprep.subr.mxu0 0.0
      %1160 = vmatpush2.msra.mxu0 0.0
      %1161 = vmatprep.subr.mxu0 0.0
      %1162 = vmatpush2.msra.mxu0 0.0
      %1163 = vmatprep.subr.mxu0 0.0
      %1164 = vmatpush2.msra.mxu0 0.0
      %1165 = vmatprep.subr.mxu0 0.0
      %1166 = vmatpush2.msra.mxu0 0.0
      %1167 = vmatprep.mubr.f32.mxu0 0.0
      %1168 = vmatmul.mubr.f32.gmra.mxu0 %v1098
      %v1169 = vpop.f32.mrf.mxu0
      %v1170 = vadd.f32 %v1094, %v1169
      %v1171 = vpop.f32.mrf.mxu0
      %1172 = vmatprep.mubr.f32.mxu0 0.0
      %1173 = vmatmul.mubr.f32.gmra.mxu0 %v1101
      %v1174 = vpop.f32.mrf.mxu0
      %v1175 = vadd.f32 %v1095, %v1174
      %v1176 = vpop.f32.mrf.mxu0
      %1177 = vdwg.mxu0
      %1178 = vst.msk [vmem:[#allocation2 + $0xf] sm:$0xff] %vm1090, %v1170
      %1179 = vst.msk [vmem:[#allocation2 + $0x17] sm:$0x7f] %vm1092, %v1175
      %v1180 = vld [vmem:[%s11 + $0x1e] sm:$0xff]
      %v1181 = vld [vmem:[%s11 + $0x26] sm:$0x7f]
      %vm1182 = vcmask 326656
      %v1184 = vsel %vm1182, %v986, 0
      %v1187 = vsel %vm1182, %v987, 0
      %1189 = vmatprep.subr.mxu0 0.0
      %1190 = vmatpush1.msra.mxu0 0.0
      %1191 = vmatprep.subr.mxu0 0.0
      %1192 = vmatpush1.msra.mxu0 0.0
      %1193 = vmatprep.subr.mxu0 0.0
      %1194 = vmatpush1.msra.mxu0 0.0
      %1195 = vmatprep.subr.mxu0 0.0
      %1196 = vmatpush1.msra.mxu0 0.0
      %1197 = vmatprep.subr.mxu0 0.0
      %1198 = vmatpush1.msra.mxu0 0.0
      %1199 = vmatprep.subr.mxu0 0.0
      %1200 = vmatpush1.msra.mxu0 0.0
      %1201 = vmatprep.subr.mxu0 0.0
      %1202 = vmatpush1.msra.mxu0 0.0
      %1203 = vmatprep.subr.mxu0 0.0
      %1204 = vmatpush1.msra.mxu0 0.0
      %1205 = vmatprep.subr.mxu0 0.0
      %1206 = vmatpush1.msra.mxu0 0.0
      %1207 = vmatprep.subr.mxu0 0.0
      %1208 = vmatpush1.msra.mxu0 0.0
      %1209 = vmatprep.subr.mxu0 0.0
      %1210 = vmatpush1.msra.mxu0 0.0
      %1211 = vmatprep.subr.mxu0 0.0
      %1212 = vmatpush1.msra.mxu0 %v992
      %1213 = vmatprep.subr.mxu0 0.0
      %1214 = vmatpush1.msra.mxu0 %v991
      %1215 = vmatprep.subr.mxu0 0.0
      %1216 = vmatpush1.msra.mxu0 %v990
      %1217 = vmatprep.subr.mxu0 0.0
      %1218 = vmatpush1.msra.mxu0 %v989
      %1219 = vmatprep.subr.mxu0 0.0
      %1220 = vmatpush1.msra.mxu0 %v988
      %1221 = vmatprep.subr.mxu0 0.0
      %1222 = vmatpush2.msra.mxu0 0.0
      %1223 = vmatprep.subr.mxu0 0.0
      %1224 = vmatpush2.msra.mxu0 0.0
      %1225 = vmatprep.subr.mxu0 0.0
      %1226 = vmatpush2.msra.mxu0 0.0
      %1227 = vmatprep.subr.mxu0 0.0
      %1228 = vmatpush2.msra.mxu0 0.0
      %1229 = vmatprep.subr.mxu0 0.0
      %1230 = vmatpush2.msra.mxu0 0.0
      %1231 = vmatprep.subr.mxu0 0.0
      %1232 = vmatpush2.msra.mxu0 0.0
      %1233 = vmatprep.subr.mxu0 0.0
      %1234 = vmatpush2.msra.mxu0 0.0
      %1235 = vmatprep.subr.mxu0 0.0
      %1236 = vmatpush2.msra.mxu0 0.0
      %1237 = vmatprep.subr.mxu0 0.0
      %1238 = vmatpush2.msra.mxu0 0.0
      %1239 = vmatprep.subr.mxu0 0.0
      %1240 = vmatpush2.msra.mxu0 0.0
      %1241 = vmatprep.subr.mxu0 0.0
      %1242 = vmatpush2.msra.mxu0 0.0
      %1243 = vmatprep.subr.mxu0 0.0
      %1244 = vmatpush2.msra.mxu0 0.0
      %1245 = vmatprep.subr.mxu0 0.0
      %1246 = vmatpush2.msra.mxu0 0.0
      %1247 = vmatprep.subr.mxu0 0.0
      %1248 = vmatpush2.msra.mxu0 0.0
      %1249 = vmatprep.subr.mxu0 0.0
      %1250 = vmatpush2.msra.mxu0 0.0
      %1251 = vmatprep.subr.mxu0 0.0
      %1252 = vmatpush2.msra.mxu0 0.0
      %1253 = vmatprep.mubr.f32.mxu0 0.0
      %1254 = vmatmul.mubr.f32.gmra.mxu0 %v1184
      %v1255 = vpop.f32.mrf.mxu0
      %v1256 = vadd.f32 %v1180, %v1255
      %v1257 = vpop.f32.mrf.mxu0
      %1258 = vmatprep.mubr.f32.mxu0 0.0
      %1259 = vmatmul.mubr.f32.gmra.mxu0 %v1187
      %v1260 = vpop.f32.mrf.mxu0
      %v1261 = vadd.f32 %v1181, %v1260
      %v1262 = vpop.f32.mrf.mxu0
      %1263 = vdwg.mxu0
      %1264 = vst.msk [vmem:[#allocation2 + $0x1e] sm:$0xff] %vm1090, %v1256
      %1265 = vst.msk [vmem:[#allocation2 + $0x26] sm:$0x7f] %vm1092, %v1261
      %v1266 = vld [vmem:[#allocation2] sm:$0xff]
      %v1267 = vld [vmem:[#allocation2 + $0x8] sm:$0xff]
      %v1268 = vld [vmem:[#allocation2 + $0x10] sm:$0xff]
      %v1269 = vld [vmem:[#allocation2 + $0x18] sm:$0xff]
      %v1270 = vld [vmem:[#allocation2 + $0x20] sm:$0xff]
      %v1271 = vld [vmem:[#allocation2 + $0x28] sm:$0x1f]
      %v1272 = vld [vmem:[%s31] sm:$0x1]
      %v1274 = vlaneseq
      %v1275 = vshrl.u32 %v1274, 7
      %v1276 = vsub.s32 0, %v1275
      %v1277 = vrot.slane %v1272, %v1276
      %v1279 = vadd.f32 %v1277, 0.0
      %v1280 = vld [vmem:[%s17] sm:$0xff]
      %v1281 = vld [vmem:[%s17 + $0x8] sm:$0xff]
      %v1282 = vld [vmem:[%s17 + $0x10] sm:$0xff]
      %v1283 = vld [vmem:[%s17 + $0x18] sm:$0xff]
      %v1284 = vld [vmem:[%s23] sm:$0x1]
      %v1286 = vlaneseq
      %v1287 = vshrl.u32 %v1286, 7
      %v1288 = vsub.s32 0, %v1287
      %v1289 = vrot.slane %v1284, %v1288
      %v1292 = vsel %vm1090, %v1266, 0
      %v1295 = vsel %vm1090, %v1267, 0
      %v1298 = vsel %vm1090, %v1268, 0
      %v1301 = vsel %vm1090, %v1269, 0
      %v1304 = vsel %vm1090, %v1270, 0
      %v1307 = vsel %vm1090, %v1271, 0
      %1309 = vmatprep.subr.mxu0 0.0
      %1310 = vmatpush1.msra.mxu0 0.0
      %1311 = vmatprep.subr.mxu0 0.0
      %1312 = vmatpush1.msra.mxu0 0.0
      %1313 = vmatprep.subr.mxu0 0.0
      %1314 = vmatpush1.msra.mxu0 0.0
      %1315 = vmatprep.subr.mxu0 0.0
      %1316 = vmatpush1.msra.mxu0 0.0
      %1317 = vmatprep.subr.mxu0 0.0
      %1318 = vmatpush1.msra.mxu0 0.0
      %1319 = vmatprep.subr.mxu0 0.0
      %1320 = vmatpush1.msra.mxu0 0.0
      %1321 = vmatprep.subr.mxu0 0.0
      %1322 = vmatpush1.msra.mxu0 0.0
      %1323 = vmatprep.subr.mxu0 0.0
      %1324 = vmatpush1.msra.mxu0 0.0
      %1325 = vmatprep.subr.mxu0 0.0
      %1326 = vmatpush1.msra.mxu0 0.0
      %1327 = vmatprep.subr.mxu0 0.0
      %1328 = vmatpush1.msra.mxu0 0.0
      %1329 = vmatprep.subr.mxu0 0.0
      %1330 = vmatpush1.msra.mxu0 0.0
      %1331 = vmatprep.subr.mxu0 0.0
      %1332 = vmatpush1.msra.mxu0 0.0
      %1333 = vmatprep.subr.mxu0 0.0
      %1334 = vmatpush1.msra.mxu0 %v1283
      %1335 = vmatprep.subr.mxu0 0.0
      %1336 = vmatpush1.msra.mxu0 %v1282
      %1337 = vmatprep.subr.mxu0 0.0
      %1338 = vmatpush1.msra.mxu0 %v1281
      %1339 = vmatprep.subr.mxu0 0.0
      %1340 = vmatpush1.msra.mxu0 %v1280
      %1341 = vmatprep.subr.mxu0 0.0
      %1342 = vmatpush2.msra.mxu0 0.0
      %1343 = vmatprep.subr.mxu0 0.0
      %1344 = vmatpush2.msra.mxu0 0.0
      %1345 = vmatprep.subr.mxu0 0.0
      %1346 = vmatpush2.msra.mxu0 0.0
      %1347 = vmatprep.subr.mxu0 0.0
      %1348 = vmatpush2.msra.mxu0 0.0
      %1349 = vmatprep.subr.mxu0 0.0
      %1350 = vmatpush2.msra.mxu0 0.0
      %1351 = vmatprep.subr.mxu0 0.0
      %1352 = vmatpush2.msra.mxu0 0.0
      %1353 = vmatprep.subr.mxu0 0.0
      %1354 = vmatpush2.msra.mxu0 0.0
      %1355 = vmatprep.subr.mxu0 0.0
      %1356 = vmatpush2.msra.mxu0 0.0
      %1357 = vmatprep.subr.mxu0 0.0
      %1358 = vmatpush2.msra.mxu0 0.0
      %1359 = vmatprep.subr.mxu0 0.0
      %1360 = vmatpush2.msra.mxu0 0.0
      %1361 = vmatprep.subr.mxu0 0.0
      %1362 = vmatpush2.msra.mxu0 0.0
      %1363 = vmatprep.subr.mxu0 0.0
      %1364 = vmatpush2.msra.mxu0 0.0
      %1365 = vmatprep.subr.mxu0 0.0
      %1366 = vmatpush2.msra.mxu0 0.0
      %1367 = vmatprep.subr.mxu0 0.0
      %1368 = vmatpush2.msra.mxu0 0.0
      %1369 = vmatprep.subr.mxu0 0.0
      %1370 = vmatpush2.msra.mxu0 0.0
      %1371 = vmatprep.subr.mxu0 0.0
      %1372 = vmatpush2.msra.mxu0 0.0
      %1373 = vmatprep.mubr.f32.mxu0 0.0
      %1374 = vmatmul.mubr.f32.gmra.mxu0 %v1292
      %v1375 = vpop.f32.mrf.mxu0
      %v1376 = vadd.f32 %v1289, %v1375
      %v1377 = vpop.f32.mrf.mxu0
      %1378 = vmatprep.mubr.f32.mxu0 0.0
      %1379 = vmatmul.mubr.f32.gmra.mxu0 %v1295
      %v1380 = vpop.f32.mrf.mxu0
      %v1381 = vadd.f32 %v1289, %v1380
      %v1382 = vpop.f32.mrf.mxu0
      %1383 = vmatprep.mubr.f32.mxu0 0.0
      %1384 = vmatmul.mubr.f32.gmra.mxu0 %v1298
      %v1385 = vpop.f32.mrf.mxu0
      %v1386 = vadd.f32 %v1289, %v1385
      %v1387 = vpop.f32.mrf.mxu0
      %1388 = vmatprep.mubr.f32.mxu0 0.0
      %1389 = vmatmul.mubr.f32.gmra.mxu0 %v1301
      %v1390 = vpop.f32.mrf.mxu0
      %v1391 = vadd.f32 %v1289, %v1390
      %v1392 = vpop.f32.mrf.mxu0
      %1393 = vmatprep.mubr.f32.mxu0 0.0
      %1394 = vmatmul.mubr.f32.gmra.mxu0 %v1304
      %v1395 = vpop.f32.mrf.mxu0
      %v1396 = vadd.f32 %v1289, %v1395
      %v1397 = vpop.f32.mrf.mxu0
      %1398 = vmatprep.mubr.f32.mxu0 0.0
      %1399 = vmatmul.mubr.f32.gmra.mxu0 %v1307
      %v1400 = vpop.f32.mrf.mxu0
      %v1401 = vadd.f32 %v1289, %v1400
      %v1402 = vpop.f32.mrf.mxu0
      %1403 = vdwg.mxu0
      %v1404 = vld [vmem:[%s19] sm:$0xff]
      %v1405 = vld [vmem:[%s19 + $0x8] sm:$0xff]
      %v1406 = vld [vmem:[%s19 + $0x10] sm:$0xff]
      %v1407 = vld [vmem:[%s19 + $0x18] sm:$0xff]
      %v1408 = vld [vmem:[%s25] sm:$0x1]
      %v1410 = vlaneseq
      %v1411 = vshrl.u32 %v1410, 7
      %v1412 = vsub.s32 0, %v1411
      %v1413 = vrot.slane %v1408, %v1412
      %1415 = vmatprep.subr.mxu0 0.0
      %1416 = vmatpush1.msra.mxu0 0.0
      %1417 = vmatprep.subr.mxu0 0.0
      %1418 = vmatpush1.msra.mxu0 0.0
      %1419 = vmatprep.subr.mxu0 0.0
      %1420 = vmatpush1.msra.mxu0 0.0
      %1421 = vmatprep.subr.mxu0 0.0
      %1422 = vmatpush1.msra.mxu0 0.0
      %1423 = vmatprep.subr.mxu0 0.0
      %1424 = vmatpush1.msra.mxu0 0.0
      %1425 = vmatprep.subr.mxu0 0.0
      %1426 = vmatpush1.msra.mxu0 0.0
      %1427 = vmatprep.subr.mxu0 0.0
      %1428 = vmatpush1.msra.mxu0 0.0
      %1429 = vmatprep.subr.mxu0 0.0
      %1430 = vmatpush1.msra.mxu0 0.0
      %1431 = vmatprep.subr.mxu0 0.0
      %1432 = vmatpush1.msra.mxu0 0.0
      %1433 = vmatprep.subr.mxu0 0.0
      %1434 = vmatpush1.msra.mxu0 0.0
      %1435 = vmatprep.subr.mxu0 0.0
      %1436 = vmatpush1.msra.mxu0 0.0
      %1437 = vmatprep.subr.mxu0 0.0
      %1438 = vmatpush1.msra.mxu0 0.0
      %1439 = vmatprep.subr.mxu0 0.0
      %1440 = vmatpush1.msra.mxu0 %v1407
      %1441 = vmatprep.subr.mxu0 0.0
      %1442 = vmatpush1.msra.mxu0 %v1406
      %1443 = vmatprep.subr.mxu0 0.0
      %1444 = vmatpush1.msra.mxu0 %v1405
      %1445 = vmatprep.subr.mxu0 0.0
      %1446 = vmatpush1.msra.mxu0 %v1404
      %1447 = vmatprep.subr.mxu0 0.0
      %1448 = vmatpush2.msra.mxu0 0.0
      %1449 = vmatprep.subr.mxu0 0.0
      %1450 = vmatpush2.msra.mxu0 0.0
      %1451 = vmatprep.subr.mxu0 0.0
      %1452 = vmatpush2.msra.mxu0 0.0
      %1453 = vmatprep.subr.mxu0 0.0
      %1454 = vmatpush2.msra.mxu0 0.0
      %1455 = vmatprep.subr.mxu0 0.0
      %1456 = vmatpush2.msra.mxu0 0.0
      %1457 = vmatprep.subr.mxu0 0.0
      %1458 = vmatpush2.msra.mxu0 0.0
      %1459 = vmatprep.subr.mxu0 0.0
      %1460 = vmatpush2.msra.mxu0 0.0
      %1461 = vmatprep.subr.mxu0 0.0
      %1462 = vmatpush2.msra.mxu0 0.0
      %1463 = vmatprep.subr.mxu0 0.0
      %1464 = vmatpush2.msra.mxu0 0.0
      %1465 = vmatprep.subr.mxu0 0.0
      %1466 = vmatpush2.msra.mxu0 0.0
      %1467 = vmatprep.subr.mxu0 0.0
      %1468 = vmatpush2.msra.mxu0 0.0
      %1469 = vmatprep.subr.mxu0 0.0
      %1470 = vmatpush2.msra.mxu0 0.0
      %1471 = vmatprep.subr.mxu0 0.0
      %1472 = vmatpush2.msra.mxu0 0.0
      %1473 = vmatprep.subr.mxu0 0.0
      %1474 = vmatpush2.msra.mxu0 0.0
      %1475 = vmatprep.subr.mxu0 0.0
      %1476 = vmatpush2.msra.mxu0 0.0
      %1477 = vmatprep.subr.mxu0 0.0
      %1478 = vmatpush2.msra.mxu0 0.0
      %1479 = vmatprep.mubr.f32.mxu0 0.0
      %1480 = vmatmul.mubr.f32.gmra.mxu0 %v1292
      %v1481 = vpop.f32.mrf.mxu0
      %v1482 = vadd.f32 %v1413, %v1481
      %v1483 = vpop.f32.mrf.mxu0
      %1484 = vmatprep.mubr.f32.mxu0 0.0
      %1485 = vmatmul.mubr.f32.gmra.mxu0 %v1295
      %v1486 = vpop.f32.mrf.mxu0
      %v1487 = vadd.f32 %v1413, %v1486
      %v1488 = vpop.f32.mrf.mxu0
      %1489 = vmatprep.mubr.f32.mxu0 0.0
      %1490 = vmatmul.mubr.f32.gmra.mxu0 %v1298
      %v1491 = vpop.f32.mrf.mxu0
      %v1492 = vadd.f32 %v1413, %v1491
      %v1493 = vpop.f32.mrf.mxu0
      %1494 = vmatprep.mubr.f32.mxu0 0.0
      %1495 = vmatmul.mubr.f32.gmra.mxu0 %v1301
      %v1496 = vpop.f32.mrf.mxu0
      %v1497 = vadd.f32 %v1413, %v1496
      %v1498 = vpop.f32.mrf.mxu0
      %1499 = vmatprep.mubr.f32.mxu0 0.0
      %1500 = vmatmul.mubr.f32.gmra.mxu0 %v1304
      %v1501 = vpop.f32.mrf.mxu0
      %v1502 = vadd.f32 %v1413, %v1501
      %v1503 = vpop.f32.mrf.mxu0
      %1504 = vmatprep.mubr.f32.mxu0 0.0
      %1505 = vmatmul.mubr.f32.gmra.mxu0 %v1307
      %v1506 = vpop.f32.mrf.mxu0
      %v1507 = vadd.f32 %v1413, %v1506
      %v1508 = vpop.f32.mrf.mxu0
      %1509 = vdwg.mxu0
      %v1510 = vld [vmem:[%s21] sm:$0xff]
      %v1511 = vld [vmem:[%s21 + $0x8] sm:$0xff]
      %v1512 = vld [vmem:[%s21 + $0x10] sm:$0xff]
      %v1513 = vld [vmem:[%s21 + $0x18] sm:$0xff]
      %v1514 = vld [vmem:[%s27] sm:$0x1]
      %v1516 = vlaneseq
      %v1517 = vshrl.u32 %v1516, 7
      %v1518 = vsub.s32 0, %v1517
      %v1519 = vrot.slane %v1514, %v1518
      %1521 = vmatprep.subr.mxu0 0.0
      %1522 = vmatpush1.msra.mxu0 0.0
      %1523 = vmatprep.subr.mxu0 0.0
      %1524 = vmatpush1.msra.mxu0 0.0
      %1525 = vmatprep.subr.mxu0 0.0
      %1526 = vmatpush1.msra.mxu0 0.0
      %1527 = vmatprep.subr.mxu0 0.0
      %1528 = vmatpush1.msra.mxu0 0.0
      %1529 = vmatprep.subr.mxu0 0.0
      %1530 = vmatpush1.msra.mxu0 0.0
      %1531 = vmatprep.subr.mxu0 0.0
      %1532 = vmatpush1.msra.mxu0 0.0
      %1533 = vmatprep.subr.mxu0 0.0
      %1534 = vmatpush1.msra.mxu0 0.0
      %1535 = vmatprep.subr.mxu0 0.0
      %1536 = vmatpush1.msra.mxu0 0.0
      %1537 = vmatprep.subr.mxu0 0.0
      %1538 = vmatpush1.msra.mxu0 0.0
      %1539 = vmatprep.subr.mxu0 0.0
      %1540 = vmatpush1.msra.mxu0 0.0
      %1541 = vmatprep.subr.mxu0 0.0
      %1542 = vmatpush1.msra.mxu0 0.0
      %1543 = vmatprep.subr.mxu0 0.0
      %1544 = vmatpush1.msra.mxu0 0.0
      %1545 = vmatprep.subr.mxu0 0.0
      %1546 = vmatpush1.msra.mxu0 %v1513
      %1547 = vmatprep.subr.mxu0 0.0
      %1548 = vmatpush1.msra.mxu0 %v1512
      %1549 = vmatprep.subr.mxu0 0.0
      %1550 = vmatpush1.msra.mxu0 %v1511
      %1551 = vmatprep.subr.mxu0 0.0
      %1552 = vmatpush1.msra.mxu0 %v1510
      %1553 = vmatprep.subr.mxu0 0.0
      %1554 = vmatpush2.msra.mxu0 0.0
      %1555 = vmatprep.subr.mxu0 0.0
      %1556 = vmatpush2.msra.mxu0 0.0
      %1557 = vmatprep.subr.mxu0 0.0
      %1558 = vmatpush2.msra.mxu0 0.0
      %1559 = vmatprep.subr.mxu0 0.0
      %1560 = vmatpush2.msra.mxu0 0.0
      %1561 = vmatprep.subr.mxu0 0.0
      %1562 = vmatpush2.msra.mxu0 0.0
      %1563 = vmatprep.subr.mxu0 0.0
      %1564 = vmatpush2.msra.mxu0 0.0
      %1565 = vmatprep.subr.mxu0 0.0
      %1566 = vmatpush2.msra.mxu0 0.0
      %1567 = vmatprep.subr.mxu0 0.0
      %1568 = vmatpush2.msra.mxu0 0.0
      %1569 = vmatprep.subr.mxu0 0.0
      %1570 = vmatpush2.msra.mxu0 0.0
      %1571 = vmatprep.subr.mxu0 0.0
      %1572 = vmatpush2.msra.mxu0 0.0
      %1573 = vmatprep.subr.mxu0 0.0
      %1574 = vmatpush2.msra.mxu0 0.0
      %1575 = vmatprep.subr.mxu0 0.0
      %1576 = vmatpush2.msra.mxu0 0.0
      %1577 = vmatprep.subr.mxu0 0.0
      %1578 = vmatpush2.msra.mxu0 0.0
      %1579 = vmatprep.subr.mxu0 0.0
      %1580 = vmatpush2.msra.mxu0 0.0
      %1581 = vmatprep.subr.mxu0 0.0
      %1582 = vmatpush2.msra.mxu0 0.0
      %1583 = vmatprep.subr.mxu0 0.0
      %1584 = vmatpush2.msra.mxu0 0.0
      %1585 = vmatprep.mubr.f32.mxu0 0.0
      %1586 = vmatmul.mubr.f32.gmra.mxu0 %v1292
      %v1587 = vpop.f32.mrf.mxu0
      %v1588 = vadd.f32 %v1519, %v1587
      %v1589 = vpop.f32.mrf.mxu0
      %1590 = vmatprep.mubr.f32.mxu0 0.0
      %1591 = vmatmul.mubr.f32.gmra.mxu0 %v1295
      %v1592 = vpop.f32.mrf.mxu0
      %v1593 = vadd.f32 %v1519, %v1592
      %v1594 = vpop.f32.mrf.mxu0
      %1595 = vmatprep.mubr.f32.mxu0 0.0
      %1596 = vmatmul.mubr.f32.gmra.mxu0 %v1298
      %v1597 = vpop.f32.mrf.mxu0
      %v1598 = vadd.f32 %v1519, %v1597
      %v1599 = vpop.f32.mrf.mxu0
      %1600 = vmatprep.mubr.f32.mxu0 0.0
      %1601 = vmatmul.mubr.f32.gmra.mxu0 %v1301
      %v1602 = vpop.f32.mrf.mxu0
      %v1603 = vadd.f32 %v1519, %v1602
      %v1604 = vpop.f32.mrf.mxu0
      %1605 = vmatprep.mubr.f32.mxu0 0.0
      %1606 = vmatmul.mubr.f32.gmra.mxu0 %v1304
      %v1607 = vpop.f32.mrf.mxu0
      %v1608 = vadd.f32 %v1519, %v1607
      %v1609 = vpop.f32.mrf.mxu0
      %1610 = vmatprep.mubr.f32.mxu0 0.0
      %1611 = vmatmul.mubr.f32.gmra.mxu0 %v1307
      %v1612 = vpop.f32.mrf.mxu0
      %v1613 = vadd.f32 %v1519, %v1612
      %v1614 = vpop.f32.mrf.mxu0
      %1615 = vdwg.mxu0
      %v1616 = vmul.f32 %v1376, 0.35355338
      %v1617 = vmul.f32 %v1381, 0.35355338
      %v1618 = vmul.f32 %v1386, 0.35355338
      %v1619 = vmul.f32 %v1391, 0.35355338
      %v1620 = vmul.f32 %v1396, 0.35355338
      %v1621 = vmul.f32 %v1401, 0.35355338
      %vm1622 = vcmask 64512
      %v1624 = vsel %vm1622, %v1616, 0
      %v1627 = vsel %vm1622, %v1617, 0
      %v1630 = vsel %vm1622, %v1618, 0
      %v1633 = vsel %vm1622, %v1619, 0
      %v1636 = vsel %vm1622, %v1620, 0
      %v1639 = vsel %vm1622, %v1621, 0
      %v1642 = vsel %vm1622, %v1482, 0
      %v1645 = vsel %vm1622, %v1487, 0
      %v1648 = vsel %vm1622, %v1492, 0
      %v1651 = vsel %vm1622, %v1497, 0
      %v1654 = vsel %vm1622, %v1502, 0
      %v1657 = vsel %vm1622, %v1507, 0
      %1659 = vmatprep.subr.mxu0 0.0
      %1660 = vmatpush1.xpose.msra.mxu0 0.0
      %1661 = vmatprep.subr.mxu0 0.0
      %1662 = vmatpush1.xpose.msra.mxu0 0.0
      %1663 = vmatprep.subr.mxu0 0.0
      %1664 = vmatpush1.xpose.msra.mxu0 0.0
      %1665 = vmatprep.subr.mxu0 0.0
      %1666 = vmatpush1.xpose.msra.mxu0 0.0
      %1667 = vmatprep.subr.mxu0 0.0
      %1668 = vmatpush1.xpose.msra.mxu0 0.0
      %1669 = vmatprep.subr.mxu0 0.0
      %1670 = vmatpush1.xpose.msra.mxu0 0.0
      %1671 = vmatprep.subr.mxu0 0.0
      %1672 = vmatpush1.xpose.msra.mxu0 0.0
      %1673 = vmatprep.subr.mxu0 0.0
      %1674 = vmatpush1.xpose.msra.mxu0 0.0
      %1675 = vmatprep.subr.mxu0 0.0
      %1676 = vmatpush1.xpose.msra.mxu0 0.0
      %1677 = vmatprep.subr.mxu0 0.0
      %1678 = vmatpush1.xpose.msra.mxu0 0.0
      %1679 = vmatprep.subr.mxu0 0.0
      %1680 = vmatpush1.xpose.msra.mxu0 %v1657
      %1681 = vmatprep.subr.mxu0 0.0
      %1682 = vmatpush1.xpose.msra.mxu0 %v1654
      %1683 = vmatprep.subr.mxu0 0.0
      %1684 = vmatpush1.xpose.msra.mxu0 %v1651
      %1685 = vmatprep.subr.mxu0 0.0
      %1686 = vmatpush1.xpose.msra.mxu0 %v1648
      %1687 = vmatprep.subr.mxu0 0.0
      %1688 = vmatpush1.xpose.msra.mxu0 %v1645
      %1689 = vmatprep.subr.mxu0 0.0
      %1690 = vmatpush1.xpose.msra.mxu0 %v1642
      %1691 = vmatprep.subr.mxu0 0.0
      %1692 = vmatpush2.xpose.msra.mxu0 0.0
      %1693 = vmatprep.subr.mxu0 0.0
      %1694 = vmatpush2.xpose.msra.mxu0 0.0
      %1695 = vmatprep.subr.mxu0 0.0
      %1696 = vmatpush2.xpose.msra.mxu0 0.0
      %1697 = vmatprep.subr.mxu0 0.0
      %1698 = vmatpush2.xpose.msra.mxu0 0.0
      %1699 = vmatprep.subr.mxu0 0.0
      %1700 = vmatpush2.xpose.msra.mxu0 0.0
      %1701 = vmatprep.subr.mxu0 0.0
      %1702 = vmatpush2.xpose.msra.mxu0 0.0
      %1703 = vmatprep.subr.mxu0 0.0
      %1704 = vmatpush2.xpose.msra.mxu0 0.0
      %1705 = vmatprep.subr.mxu0 0.0
      %1706 = vmatpush2.xpose.msra.mxu0 0.0
      %1707 = vmatprep.subr.mxu0 0.0
      %1708 = vmatpush2.xpose.msra.mxu0 0.0
      %1709 = vmatprep.subr.mxu0 0.0
      %1710 = vmatpush2.xpose.msra.mxu0 0.0
      %1711 = vmatprep.subr.mxu0 0.0
      %1712 = vmatpush2.xpose.msra.mxu0 0.0
      %1713 = vmatprep.subr.mxu0 0.0
      %1714 = vmatpush2.xpose.msra.mxu0 0.0
      %1715 = vmatprep.subr.mxu0 0.0
      %1716 = vmatpush2.xpose.msra.mxu0 0.0
      %1717 = vmatprep.subr.mxu0 0.0
      %1718 = vmatpush2.xpose.msra.mxu0 0.0
      %1719 = vmatprep.subr.mxu0 0.0
      %1720 = vmatpush2.xpose.msra.mxu0 0.0
      %1721 = vmatprep.subr.mxu0 0.0
      %1722 = vmatpush2.xpose.msra.mxu0 0.0
      %1723 = vmatprep.mubr.f32.mxu0 0.0
      %1724 = vmatmul.mubr.f32.gmra.mxu0 %v1624
      %v1725 = vpop.f32.mrf.mxu0
      %v1726 = vadd.f32 0.0, %v1725
      %v1727 = vpop.f32.mrf.mxu0
      %1728 = vmatprep.mubr.f32.mxu0 0.0
      %1729 = vmatmul.mubr.f32.gmra.mxu0 %v1627
      %v1730 = vpop.f32.mrf.mxu0
      %v1731 = vadd.f32 0.0, %v1730
      %v1732 = vpop.f32.mrf.mxu0
      %1733 = vmatprep.mubr.f32.mxu0 0.0
      %1734 = vmatmul.mubr.f32.gmra.mxu0 %v1630
      %v1735 = vpop.f32.mrf.mxu0
      %v1736 = vadd.f32 0.0, %v1735
      %v1737 = vpop.f32.mrf.mxu0
      %1738 = vmatprep.mubr.f32.mxu0 0.0
      %1739 = vmatmul.mubr.f32.gmra.mxu0 %v1633
      %v1740 = vpop.f32.mrf.mxu0
      %v1741 = vadd.f32 0.0, %v1740
      %v1742 = vpop.f32.mrf.mxu0
      %1743 = vmatprep.mubr.f32.mxu0 0.0
      %1744 = vmatmul.mubr.f32.gmra.mxu0 %v1636
      %v1745 = vpop.f32.mrf.mxu0
      %v1746 = vadd.f32 0.0, %v1745
      %v1747 = vpop.f32.mrf.mxu0
      %1748 = vmatprep.mubr.f32.mxu0 0.0
      %1749 = vmatmul.mubr.f32.gmra.mxu0 %v1639
      %v1750 = vpop.f32.mrf.mxu0
      %v1751 = vadd.f32 0.0, %v1750
      %v1752 = vpop.f32.mrf.mxu0
      %1753 = vdwg.mxu0
      %vm1754 = vcmask 367616
      %v1755 = vsel %vm1754, %v1726, -inf
      %1756 = vmax.xlane.f32.xlu0 %v1755
      %v1757 = vpop.xlane.xlu0 %1756
      %v1758 = vsel %vm1754, %v1731, -inf
      %1759 = vmax.xlane.f32.xlu0 %v1758
      %v1760 = vpop.xlane.xlu0 %1759
      %v1761 = vsel %vm1754, %v1736, -inf
      %1762 = vmax.xlane.f32.xlu0 %v1761
      %v1763 = vpop.xlane.xlu0 %1762
      %v1764 = vsel %vm1754, %v1741, -inf
      %1765 = vmax.xlane.f32.xlu0 %v1764
      %v1766 = vpop.xlane.xlu0 %1765
      %v1767 = vsel %vm1754, %v1746, -inf
      %1768 = vmax.xlane.f32.xlu0 %v1767
      %v1769 = vpop.xlane.xlu0 %1768
      %vm1770 = vcmask 364544
      %v1771 = vsel %vm1770, %v1751, -inf
      %1772 = vmax.xlane.f32.xlu0 %v1771
      %v1773 = vpop.xlane.xlu0 %1772
      %v1774 = vsub.f32 %v1726, %v1757
      %v1775 = vsub.f32 %v1731, %v1760
      %v1776 = vsub.f32 %v1736, %v1763
      %v1777 = vsub.f32 %v1741, %v1766
      %v1778 = vsub.f32 %v1746, %v1769
      %v1779 = vsub.f32 %v1751, %v1773
      %v1780 = vmul.f32 %v1774, 1.442695
      %v1781 = vpow.pop %v1780
      %v1782 = vmul.f32 %v1775, 1.442695
      %v1783 = vpow.pop %v1782
      %v1784 = vmul.f32 %v1776, 1.442695
      %v1785 = vpow.pop %v1784
      %v1786 = vmul.f32 %v1777, 1.442695
      %v1787 = vpow.pop %v1786
      %v1788 = vmul.f32 %v1778, 1.442695
      %v1789 = vpow.pop %v1788
      %v1790 = vmul.f32 %v1779, 1.442695
      %v1791 = vpow.pop %v1790
      %v1792 = vsel %vm1754, %v1781, 0.0
      %1793 = vadd.xlane.f32.xlu0 %v1792
      %v1794 = vpop.xlane.xlu0 %1793
      %v1795 = vsel %vm1754, %v1783, 0.0
      %1796 = vadd.xlane.f32.xlu0 %v1795
      %v1797 = vpop.xlane.xlu0 %1796
      %v1798 = vsel %vm1754, %v1785, 0.0
      %1799 = vadd.xlane.f32.xlu0 %v1798
      %v1800 = vpop.xlane.xlu0 %1799
      %v1801 = vsel %vm1754, %v1787, 0.0
      %1802 = vadd.xlane.f32.xlu0 %v1801
      %v1803 = vpop.xlane.xlu0 %1802
      %v1804 = vsel %vm1754, %v1789, 0.0
      %1805 = vadd.xlane.f32.xlu0 %v1804
      %v1806 = vpop.xlane.xlu0 %1805
      %v1807 = vsel %vm1770, %v1791, 0.0
      %1808 = vadd.xlane.f32.xlu0 %v1807
      %v1809 = vpop.xlane.xlu0 %1808
      %v1810 = vrcp.pop %v1794
      %v1811 = vrcp.pop %v1797
      %v1812 = vrcp.pop %v1800
      %v1813 = vrcp.pop %v1803
      %v1814 = vrcp.pop %v1806
      %v1815 = vrcp.pop %v1809
      %v1816 = vmul.f32 %v1781, %v1810
      %v1817 = vmul.f32 %v1783, %v1811
      %v1818 = vmul.f32 %v1785, %v1812
      %v1819 = vmul.f32 %v1787, %v1813
      %v1820 = vmul.f32 %v1789, %v1814
      %v1821 = vmul.f32 %v1791, %v1815
      %v1823 = vsel %vm1754, %v1816, 0
      %v1826 = vsel %vm1754, %v1817, 0
      %v1829 = vsel %vm1754, %v1818, 0
      %v1832 = vsel %vm1754, %v1819, 0
      %v1835 = vsel %vm1754, %v1820, 0
      %v1838 = vsel %vm1754, %v1821, 0
      %vm1840 = vcmask 1044480
      %v1842 = vsel %vm1840, %v1613, 0
      %1844 = vmatprep.subr.mxu0 0.0
      %1845 = vmatpush1.msra.mxu0 0.0
      %1846 = vmatprep.subr.mxu0 0.0
      %1847 = vmatpush1.msra.mxu0 0.0
      %1848 = vmatprep.subr.mxu0 0.0
      %1849 = vmatpush1.msra.mxu0 0.0
      %1850 = vmatprep.subr.mxu0 0.0
      %1851 = vmatpush1.msra.mxu0 0.0
      %1852 = vmatprep.subr.mxu0 0.0
      %1853 = vmatpush1.msra.mxu0 0.0
      %1854 = vmatprep.subr.mxu0 0.0
      %1855 = vmatpush1.msra.mxu0 0.0
      %1856 = vmatprep.subr.mxu0 0.0
      %1857 = vmatpush1.msra.mxu0 0.0
      %1858 = vmatprep.subr.mxu0 0.0
      %1859 = vmatpush1.msra.mxu0 0.0
      %1860 = vmatprep.subr.mxu0 0.0
      %1861 = vmatpush1.msra.mxu0 0.0
      %1862 = vmatprep.subr.mxu0 0.0
      %1863 = vmatpush1.msra.mxu0 0.0
      %1864 = vmatprep.subr.mxu0 0.0
      %1865 = vmatpush1.msra.mxu0 %v1842
      %1866 = vmatprep.subr.mxu0 0.0
      %1867 = vmatpush1.msra.mxu0 %v1608
      %1868 = vmatprep.subr.mxu0 0.0
      %1869 = vmatpush1.msra.mxu0 %v1603
      %1870 = vmatprep.subr.mxu0 0.0
      %1871 = vmatpush1.msra.mxu0 %v1598
      %1872 = vmatprep.subr.mxu0 0.0
      %1873 = vmatpush1.msra.mxu0 %v1593
      %1874 = vmatprep.subr.mxu0 0.0
      %1875 = vmatpush1.msra.mxu0 %v1588
      %1876 = vmatprep.subr.mxu0 0.0
      %1877 = vmatpush2.msra.mxu0 0.0
      %1878 = vmatprep.subr.mxu0 0.0
      %1879 = vmatpush2.msra.mxu0 0.0
      %1880 = vmatprep.subr.mxu0 0.0
      %1881 = vmatpush2.msra.mxu0 0.0
      %1882 = vmatprep.subr.mxu0 0.0
      %1883 = vmatpush2.msra.mxu0 0.0
      %1884 = vmatprep.subr.mxu0 0.0
      %1885 = vmatpush2.msra.mxu0 0.0
      %1886 = vmatprep.subr.mxu0 0.0
      %1887 = vmatpush2.msra.mxu0 0.0
      %1888 = vmatprep.subr.mxu0 0.0
      %1889 = vmatpush2.msra.mxu0 0.0
      %1890 = vmatprep.subr.mxu0 0.0
      %1891 = vmatpush2.msra.mxu0 0.0
      %1892 = vmatprep.subr.mxu0 0.0
      %1893 = vmatpush2.msra.mxu0 0.0
      %1894 = vmatprep.subr.mxu0 0.0
      %1895 = vmatpush2.msra.mxu0 0.0
      %1896 = vmatprep.subr.mxu0 0.0
      %1897 = vmatpush2.msra.mxu0 0.0
      %1898 = vmatprep.subr.mxu0 0.0
      %1899 = vmatpush2.msra.mxu0 0.0
      %1900 = vmatprep.subr.mxu0 0.0
      %1901 = vmatpush2.msra.mxu0 0.0
      %1902 = vmatprep.subr.mxu0 0.0
      %1903 = vmatpush2.msra.mxu0 0.0
      %1904 = vmatprep.subr.mxu0 0.0
      %1905 = vmatpush2.msra.mxu0 0.0
      %1906 = vmatprep.subr.mxu0 0.0
      %1907 = vmatpush2.msra.mxu0 0.0
      %1908 = vmatprep.mubr.f32.mxu0 0.0
      %1909 = vmatmul.mubr.f32.gmra.mxu0 %v1823
      %v1910 = vpop.f32.mrf.mxu0
      %v1911 = vadd.f32 0.0, %v1910
      %v1912 = vpop.f32.mrf.mxu0
      %1913 = vmatprep.mubr.f32.mxu0 0.0
      %1914 = vmatmul.mubr.f32.gmra.mxu0 %v1826
      %v1915 = vpop.f32.mrf.mxu0
      %v1916 = vadd.f32 0.0, %v1915
      %v1917 = vpop.f32.mrf.mxu0
      %1918 = vmatprep.mubr.f32.mxu0 0.0
      %1919 = vmatmul.mubr.f32.gmra.mxu0 %v1829
      %v1920 = vpop.f32.mrf.mxu0
      %v1921 = vadd.f32 0.0, %v1920
      %v1922 = vpop.f32.mrf.mxu0
      %1923 = vmatprep.mubr.f32.mxu0 0.0
      %1924 = vmatmul.mubr.f32.gmra.mxu0 %v1832
      %v1925 = vpop.f32.mrf.mxu0
      %v1926 = vadd.f32 0.0, %v1925
      %v1927 = vpop.f32.mrf.mxu0
      %1928 = vmatprep.mubr.f32.mxu0 0.0
      %1929 = vmatmul.mubr.f32.gmra.mxu0 %v1835
      %v1930 = vpop.f32.mrf.mxu0
      %v1931 = vadd.f32 0.0, %v1930
      %v1932 = vpop.f32.mrf.mxu0
      %1933 = vmatprep.mubr.f32.mxu0 0.0
      %1934 = vmatmul.mubr.f32.gmra.mxu0 %v1838
      %v1935 = vpop.f32.mrf.mxu0
      %v1936 = vadd.f32 0.0, %v1935
      %v1937 = vpop.f32.mrf.mxu0
      %1938 = vdwg.mxu0
      %v1939 = vld [vmem:[%s29] sm:$0xff]
      %v1941 = vsel %vm1622, %v1911, 0
      %v1944 = vsel %vm1622, %v1916, 0
      %v1947 = vsel %vm1622, %v1921, 0
      %v1950 = vsel %vm1622, %v1926, 0
      %v1953 = vsel %vm1622, %v1931, 0
      %v1956 = vsel %vm1622, %v1936, 0
      %1958 = vmatprep.subr.mxu0 0.0
      %1959 = vmatpush1.msra.mxu0 0.0
      %1960 = vmatprep.subr.mxu0 0.0
      %1961 = vmatpush1.msra.mxu0 0.0
      %1962 = vmatprep.subr.mxu0 0.0
      %1963 = vmatpush1.msra.mxu0 0.0
      %1964 = vmatprep.subr.mxu0 0.0
      %1965 = vmatpush1.msra.mxu0 0.0
      %1966 = vmatprep.subr.mxu0 0.0
      %1967 = vmatpush1.msra.mxu0 0.0
      %1968 = vmatprep.subr.mxu0 0.0
      %1969 = vmatpush1.msra.mxu0 0.0
      %1970 = vmatprep.subr.mxu0 0.0
      %1971 = vmatpush1.msra.mxu0 0.0
      %1972 = vmatprep.subr.mxu0 0.0
      %1973 = vmatpush1.msra.mxu0 0.0
      %1974 = vmatprep.subr.mxu0 0.0
      %1975 = vmatpush1.msra.mxu0 0.0
      %1976 = vmatprep.subr.mxu0 0.0
      %1977 = vmatpush1.msra.mxu0 0.0
      %1978 = vmatprep.subr.mxu0 0.0
      %1979 = vmatpush1.msra.mxu0 0.0
      %1980 = vmatprep.subr.mxu0 0.0
      %1981 = vmatpush1.msra.mxu0 0.0
      %1982 = vmatprep.subr.mxu0 0.0
      %1983 = vmatpush1.msra.mxu0 0.0
      %1984 = vmatprep.subr.mxu0 0.0
      %1985 = vmatpush1.msra.mxu0 0.0
      %1986 = vmatprep.subr.mxu0 0.0
      %1987 = vmatpush1.msra.mxu0 0.0
      %1988 = vmatprep.subr.mxu0 0.0
      %1989 = vmatpush1.msra.mxu0 %v1939
      %1990 = vmatprep.subr.mxu0 0.0
      %1991 = vmatpush2.msra.mxu0 0.0
      %1992 = vmatprep.subr.mxu0 0.0
      %1993 = vmatpush2.msra.mxu0 0.0
      %1994 = vmatprep.subr.mxu0 0.0
      %1995 = vmatpush2.msra.mxu0 0.0
      %1996 = vmatprep.subr.mxu0 0.0
      %1997 = vmatpush2.msra.mxu0 0.0
      %1998 = vmatprep.subr.mxu0 0.0
      %1999 = vmatpush2.msra.mxu0 0.0
      %2000 = vmatprep.subr.mxu0 0.0
      %2001 = vmatpush2.msra.mxu0 0.0
      %2002 = vmatprep.subr.mxu0 0.0
      %2003 = vmatpush2.msra.mxu0 0.0
      %2004 = vmatprep.subr.mxu0 0.0
      %2005 = vmatpush2.msra.mxu0 0.0
      %2006 = vmatprep.subr.mxu0 0.0
      %2007 = vmatpush2.msra.mxu0 0.0
      %2008 = vmatprep.subr.mxu0 0.0
      %2009 = vmatpush2.msra.mxu0 0.0
      %2010 = vmatprep.subr.mxu0 0.0
      %2011 = vmatpush2.msra.mxu0 0.0
      %2012 = vmatprep.subr.mxu0 0.0
      %2013 = vmatpush2.msra.mxu0 0.0
      %2014 = vmatprep.subr.mxu0 0.0
      %2015 = vmatpush2.msra.mxu0 0.0
      %2016 = vmatprep.subr.mxu0 0.0
      %2017 = vmatpush2.msra.mxu0 0.0
      %2018 = vmatprep.subr.mxu0 0.0
      %2019 = vmatpush2.msra.mxu0 0.0
      %2020 = vmatprep.subr.mxu0 0.0
      %2021 = vmatpush2.msra.mxu0 0.0
      %2022 = vmatprep.mubr.f32.mxu0 0.0
      %2023 = vmatmul.mubr.f32.gmra.mxu0 %v1941
      %v2024 = vpop.f32.mrf.mxu0
      %v2025 = vadd.f32 0.0, %v2024
      %v2026 = vpop.f32.mrf.mxu0
      %2027 = vmatprep.mubr.f32.mxu0 0.0
      %2028 = vmatmul.mubr.f32.gmra.mxu0 %v1944
      %v2029 = vpop.f32.mrf.mxu0
      %v2030 = vadd.f32 0.0, %v2029
      %v2031 = vpop.f32.mrf.mxu0
      %2032 = vmatprep.mubr.f32.mxu0 0.0
      %2033 = vmatmul.mubr.f32.gmra.mxu0 %v1947
      %v2034 = vpop.f32.mrf.mxu0
      %v2035 = vadd.f32 0.0, %v2034
      %v2036 = vpop.f32.mrf.mxu0
      %2037 = vmatprep.mubr.f32.mxu0 0.0
      %2038 = vmatmul.mubr.f32.gmra.mxu0 %v1950
      %v2039 = vpop.f32.mrf.mxu0
      %v2040 = vadd.f32 0.0, %v2039
      %v2041 = vpop.f32.mrf.mxu0
      %2042 = vmatprep.mubr.f32.mxu0 0.0
      %2043 = vmatmul.mubr.f32.gmra.mxu0 %v1953
      %v2044 = vpop.f32.mrf.mxu0
      %v2045 = vadd.f32 0.0, %v2044
      %v2046 = vpop.f32.mrf.mxu0
      %2047 = vmatprep.mubr.f32.mxu0 0.0
      %2048 = vmatmul.mubr.f32.gmra.mxu0 %v1956
      %v2049 = vpop.f32.mrf.mxu0
      %v2050 = vadd.f32 0.0, %v2049
      %v2051 = vpop.f32.mrf.mxu0
      %2052 = vdwg.mxu0
      %v2053 = vadd.f32 %v1279, %v2025
      %v2054 = vadd.f32 %v1279, %v2030
      %v2055 = vadd.f32 %v1279, %v2035
      %v2056 = vadd.f32 %v1279, %v2040
      %v2057 = vadd.f32 %v1279, %v2045
      %v2058 = vadd.f32 %v1279, %v2050
      %s2059 = scalar_lea.vmem %s17, 32
      %v2060 = vld [vmem:[%s2059] sm:$0xff]
      %v2061 = vld [vmem:[%s2059 + $0x8] sm:$0xff]
      %v2062 = vld [vmem:[%s2059 + $0x10] sm:$0xff]
      %v2063 = vld [vmem:[%s2059 + $0x18] sm:$0xff]
      %s2064 = scalar_lea.vmem %s23, 1
      %v2065 = vld [vmem:[%s2064] sm:$0x1]
      %v2067 = vlaneseq
      %v2068 = vshrl.u32 %v2067, 7
      %v2069 = vsub.s32 0, %v2068
      %v2070 = vrot.slane %v2065, %v2069
      %2072 = vmatprep.subr.mxu0 0.0
      %2073 = vmatpush1.msra.mxu0 0.0
      %2074 = vmatprep.subr.mxu0 0.0
      %2075 = vmatpush1.msra.mxu0 0.0
      %2076 = vmatprep.subr.mxu0 0.0
      %2077 = vmatpush1.msra.mxu0 0.0
      %2078 = vmatprep.subr.mxu0 0.0
      %2079 = vmatpush1.msra.mxu0 0.0
      %2080 = vmatprep.subr.mxu0 0.0
      %2081 = vmatpush1.msra.mxu0 0.0
      %2082 = vmatprep.subr.mxu0 0.0
      %2083 = vmatpush1.msra.mxu0 0.0
      %2084 = vmatprep.subr.mxu0 0.0
      %2085 = vmatpush1.msra.mxu0 0.0
      %2086 = vmatprep.subr.mxu0 0.0
      %2087 = vmatpush1.msra.mxu0 0.0
      %2088 = vmatprep.subr.mxu0 0.0
      %2089 = vmatpush1.msra.mxu0 0.0
      %2090 = vmatprep.subr.mxu0 0.0
      %2091 = vmatpush1.msra.mxu0 0.0
      %2092 = vmatprep.subr.mxu0 0.0
      %2093 = vmatpush1.msra.mxu0 0.0
      %2094 = vmatprep.subr.mxu0 0.0
      %2095 = vmatpush1.msra.mxu0 0.0
      %2096 = vmatprep.subr.mxu0 0.0
      %2097 = vmatpush1.msra.mxu0 %v2063
      %2098 = vmatprep.subr.mxu0 0.0
      %2099 = vmatpush1.msra.mxu0 %v2062
      %2100 = vmatprep.subr.mxu0 0.0
      %2101 = vmatpush1.msra.mxu0 %v2061
      %2102 = vmatprep.subr.mxu0 0.0
      %2103 = vmatpush1.msra.mxu0 %v2060
      %2104 = vmatprep.subr.mxu0 0.0
      %2105 = vmatpush2.msra.mxu0 0.0
      %2106 = vmatprep.subr.mxu0 0.0
      %2107 = vmatpush2.msra.mxu0 0.0
      %2108 = vmatprep.subr.mxu0 0.0
      %2109 = vmatpush2.msra.mxu0 0.0
      %2110 = vmatprep.subr.mxu0 0.0
      %2111 = vmatpush2.msra.mxu0 0.0
      %2112 = vmatprep.subr.mxu0 0.0
      %2113 = vmatpush2.msra.mxu0 0.0
      %2114 = vmatprep.subr.mxu0 0.0
      %2115 = vmatpush2.msra.mxu0 0.0
      %2116 = vmatprep.subr.mxu0 0.0
      %2117 = vmatpush2.msra.mxu0 0.0
      %2118 = vmatprep.subr.mxu0 0.0
      %2119 = vmatpush2.msra.mxu0 0.0
      %2120 = vmatprep.subr.mxu0 0.0
      %2121 = vmatpush2.msra.mxu0 0.0
      %2122 = vmatprep.subr.mxu0 0.0
      %2123 = vmatpush2.msra.mxu0 0.0
      %2124 = vmatprep.subr.mxu0 0.0
      %2125 = vmatpush2.msra.mxu0 0.0
      %2126 = vmatprep.subr.mxu0 0.0
      %2127 = vmatpush2.msra.mxu0 0.0
      %2128 = vmatprep.subr.mxu0 0.0
      %2129 = vmatpush2.msra.mxu0 0.0
      %2130 = vmatprep.subr.mxu0 0.0
      %2131 = vmatpush2.msra.mxu0 0.0
      %2132 = vmatprep.subr.mxu0 0.0
      %2133 = vmatpush2.msra.mxu0 0.0
      %2134 = vmatprep.subr.mxu0 0.0
      %2135 = vmatpush2.msra.mxu0 0.0
      %2136 = vmatprep.mubr.f32.mxu0 0.0
      %2137 = vmatmul.mubr.f32.gmra.mxu0 %v1292
      %v2138 = vpop.f32.mrf.mxu0
      %v2139 = vadd.f32 %v2070, %v2138
      %v2140 = vpop.f32.mrf.mxu0
      %2141 = vmatprep.mubr.f32.mxu0 0.0
      %2142 = vmatmul.mubr.f32.gmra.mxu0 %v1295
      %v2143 = vpop.f32.mrf.mxu0
      %v2144 = vadd.f32 %v2070, %v2143
      %v2145 = vpop.f32.mrf.mxu0
      %2146 = vmatprep.mubr.f32.mxu0 0.0
      %2147 = vmatmul.mubr.f32.gmra.mxu0 %v1298
      %v2148 = vpop.f32.mrf.mxu0
      %v2149 = vadd.f32 %v2070, %v2148
      %v2150 = vpop.f32.mrf.mxu0
      %2151 = vmatprep.mubr.f32.mxu0 0.0
      %2152 = vmatmul.mubr.f32.gmra.mxu0 %v1301
      %v2153 = vpop.f32.mrf.mxu0
      %v2154 = vadd.f32 %v2070, %v2153
      %v2155 = vpop.f32.mrf.mxu0
      %2156 = vmatprep.mubr.f32.mxu0 0.0
      %2157 = vmatmul.mubr.f32.gmra.mxu0 %v1304
      %v2158 = vpop.f32.mrf.mxu0
      %v2159 = vadd.f32 %v2070, %v2158
      %v2160 = vpop.f32.mrf.mxu0
      %2161 = vmatprep.mubr.f32.mxu0 0.0
      %2162 = vmatmul.mubr.f32.gmra.mxu0 %v1307
      %v2163 = vpop.f32.mrf.mxu0
      %v2164 = vadd.f32 %v2070, %v2163
      %v2165 = vpop.f32.mrf.mxu0
      %2166 = vdwg.mxu0
      %s2167 = scalar_lea.vmem %s19, 32
      %v2168 = vld [vmem:[%s2167] sm:$0xff]
      %v2169 = vld [vmem:[%s2167 + $0x8] sm:$0xff]
      %v2170 = vld [vmem:[%s2167 + $0x10] sm:$0xff]
      %v2171 = vld [vmem:[%s2167 + $0x18] sm:$0xff]
      %s2172 = scalar_lea.vmem %s25, 1
      %v2173 = vld [vmem:[%s2172] sm:$0x1]
      %v2175 = vlaneseq
      %v2176 = vshrl.u32 %v2175, 7
      %v2177 = vsub.s32 0, %v2176
      %v2178 = vrot.slane %v2173, %v2177
      %2180 = vmatprep.subr.mxu0 0.0
      %2181 = vmatpush1.msra.mxu0 0.0
      %2182 = vmatprep.subr.mxu0 0.0
      %2183 = vmatpush1.msra.mxu0 0.0
      %2184 = vmatprep.subr.mxu0 0.0
      %2185 = vmatpush1.msra.mxu0 0.0
      %2186 = vmatprep.subr.mxu0 0.0
      %2187 = vmatpush1.msra.mxu0 0.0
      %2188 = vmatprep.subr.mxu0 0.0
      %2189 = vmatpush1.msra.mxu0 0.0
      %2190 = vmatprep.subr.mxu0 0.0
      %2191 = vmatpush1.msra.mxu0 0.0
      %2192 = vmatprep.subr.mxu0 0.0
      %2193 = vmatpush1.msra.mxu0 0.0
      %2194 = vmatprep.subr.mxu0 0.0
      %2195 = vmatpush1.msra.mxu0 0.0
      %2196 = vmatprep.subr.mxu0 0.0
      %2197 = vmatpush1.msra.mxu0 0.0
      %2198 = vmatprep.subr.mxu0 0.0
      %2199 = vmatpush1.msra.mxu0 0.0
      %2200 = vmatprep.subr.mxu0 0.0
      %2201 = vmatpush1.msra.mxu0 0.0
      %2202 = vmatprep.subr.mxu0 0.0
      %2203 = vmatpush1.msra.mxu0 0.0
      %2204 = vmatprep.subr.mxu0 0.0
      %2205 = vmatpush1.msra.mxu0 %v2171
      %2206 = vmatprep.subr.mxu0 0.0
      %2207 = vmatpush1.msra.mxu0 %v2170
      %2208 = vmatprep.subr.mxu0 0.0
      %2209 = vmatpush1.msra.mxu0 %v2169
      %2210 = vmatprep.subr.mxu0 0.0
      %2211 = vmatpush1.msra.mxu0 %v2168
      %2212 = vmatprep.subr.mxu0 0.0
      %2213 = vmatpush2.msra.mxu0 0.0
      %2214 = vmatprep.subr.mxu0 0.0
      %2215 = vmatpush2.msra.mxu0 0.0
      %2216 = vmatprep.subr.mxu0 0.0
      %2217 = vmatpush2.msra.mxu0 0.0
      %2218 = vmatprep.subr.mxu0 0.0
      %2219 = vmatpush2.msra.mxu0 0.0
      %2220 = vmatprep.subr.mxu0 0.0
      %2221 = vmatpush2.msra.mxu0 0.0
      %2222 = vmatprep.subr.mxu0 0.0
      %2223 = vmatpush2.msra.mxu0 0.0
      %2224 = vmatprep.subr.mxu0 0.0
      %2225 = vmatpush2.msra.mxu0 0.0
      %2226 = vmatprep.subr.mxu0 0.0
      %2227 = vmatpush2.msra.mxu0 0.0
      %2228 = vmatprep.subr.mxu0 0.0
      %2229 = vmatpush2.msra.mxu0 0.0
      %2230 = vmatprep.subr.mxu0 0.0
      %2231 = vmatpush2.msra.mxu0 0.0
      %2232 = vmatprep.subr.mxu0 0.0
      %2233 = vmatpush2.msra.mxu0 0.0
      %2234 = vmatprep.subr.mxu0 0.0
      %2235 = vmatpush2.msra.mxu0 0.0
      %2236 = vmatprep.subr.mxu0 0.0
      %2237 = vmatpush2.msra.mxu0 0.0
      %2238 = vmatprep.subr.mxu0 0.0
      %2239 = vmatpush2.msra.mxu0 0.0
      %2240 = vmatprep.subr.mxu0 0.0
      %2241 = vmatpush2.msra.mxu0 0.0
      %2242 = vmatprep.subr.mxu0 0.0
      %2243 = vmatpush2.msra.mxu0 0.0
      %2244 = vmatprep.mubr.f32.mxu0 0.0
      %2245 = vmatmul.mubr.f32.gmra.mxu0 %v1292
      %v2246 = vpop.f32.mrf.mxu0
      %v2247 = vadd.f32 %v2178, %v2246
      %v2248 = vpop.f32.mrf.mxu0
      %2249 = vmatprep.mubr.f32.mxu0 0.0
      %2250 = vmatmul.mubr.f32.gmra.mxu0 %v1295
      %v2251 = vpop.f32.mrf.mxu0
      %v2252 = vadd.f32 %v2178, %v2251
      %v2253 = vpop.f32.mrf.mxu0
      %2254 = vmatprep.mubr.f32.mxu0 0.0
      %2255 = vmatmul.mubr.f32.gmra.mxu0 %v1298
      %v2256 = vpop.f32.mrf.mxu0
      %v2257 = vadd.f32 %v2178, %v2256
      %v2258 = vpop.f32.mrf.mxu0
      %2259 = vmatprep.mubr.f32.mxu0 0.0
      %2260 = vmatmul.mubr.f32.gmra.mxu0 %v1301
      %v2261 = vpop.f32.mrf.mxu0
      %v2262 = vadd.f32 %v2178, %v2261
      %v2263 = vpop.f32.mrf.mxu0
      %2264 = vmatprep.mubr.f32.mxu0 0.0
      %2265 = vmatmul.mubr.f32.gmra.mxu0 %v1304
      %v2266 = vpop.f32.mrf.mxu0
      %v2267 = vadd.f32 %v2178, %v2266
      %v2268 = vpop.f32.mrf.mxu0
      %2269 = vmatprep.mubr.f32.mxu0 0.0
      %2270 = vmatmul.mubr.f32.gmra.mxu0 %v1307
      %v2271 = vpop.f32.mrf.mxu0
      %v2272 = vadd.f32 %v2178, %v2271
      %v2273 = vpop.f32.mrf.mxu0
      %2274 = vdwg.mxu0
      %s2275 = scalar_lea.vmem %s21, 32
      %v2276 = vld [vmem:[%s2275] sm:$0xff]
      %v2277 = vld [vmem:[%s2275 + $0x8] sm:$0xff]
      %v2278 = vld [vmem:[%s2275 + $0x10] sm:$0xff]
      %v2279 = vld [vmem:[%s2275 + $0x18] sm:$0xff]
      %s2280 = scalar_lea.vmem %s27, 1
      %v2281 = vld [vmem:[%s2280] sm:$0x1]
      %v2283 = vlaneseq
      %v2284 = vshrl.u32 %v2283, 7
      %v2285 = vsub.s32 0, %v2284
      %v2286 = vrot.slane %v2281, %v2285
      %2288 = vmatprep.subr.mxu0 0.0
      %2289 = vmatpush1.msra.mxu0 0.0
      %2290 = vmatprep.subr.mxu0 0.0
      %2291 = vmatpush1.msra.mxu0 0.0
      %2292 = vmatprep.subr.mxu0 0.0
      %2293 = vmatpush1.msra.mxu0 0.0
      %2294 = vmatprep.subr.mxu0 0.0
      %2295 = vmatpush1.msra.mxu0 0.0
      %2296 = vmatprep.subr.mxu0 0.0
      %2297 = vmatpush1.msra.mxu0 0.0
      %2298 = vmatprep.subr.mxu0 0.0
      %2299 = vmatpush1.msra.mxu0 0.0
      %2300 = vmatprep.subr.mxu0 0.0
      %2301 = vmatpush1.msra.mxu0 0.0
      %2302 = vmatprep.subr.mxu0 0.0
      %2303 = vmatpush1.msra.mxu0 0.0
      %2304 = vmatprep.subr.mxu0 0.0
      %2305 = vmatpush1.msra.mxu0 0.0
      %2306 = vmatprep.subr.mxu0 0.0
      %2307 = vmatpush1.msra.mxu0 0.0
      %2308 = vmatprep.subr.mxu0 0.0
      %2309 = vmatpush1.msra.mxu0 0.0
      %2310 = vmatprep.subr.mxu0 0.0
      %2311 = vmatpush1.msra.mxu0 0.0
      %2312 = vmatprep.subr.mxu0 0.0
      %2313 = vmatpush1.msra.mxu0 %v2279
      %2314 = vmatprep.subr.mxu0 0.0
      %2315 = vmatpush1.msra.mxu0 %v2278
      %2316 = vmatprep.subr.mxu0 0.0
      %2317 = vmatpush1.msra.mxu0 %v2277
      %2318 = vmatprep.subr.mxu0 0.0
      %2319 = vmatpush1.msra.mxu0 %v2276
      %2320 = vmatprep.subr.mxu0 0.0
      %2321 = vmatpush2.msra.mxu0 0.0
      %2322 = vmatprep.subr.mxu0 0.0
      %2323 = vmatpush2.msra.mxu0 0.0
      %2324 = vmatprep.subr.mxu0 0.0
      %2325 = vmatpush2.msra.mxu0 0.0
      %2326 = vmatprep.subr.mxu0 0.0
      %2327 = vmatpush2.msra.mxu0 0.0
      %2328 = vmatprep.subr.mxu0 0.0
      %2329 = vmatpush2.msra.mxu0 0.0
      %2330 = vmatprep.subr.mxu0 0.0
      %2331 = vmatpush2.msra.mxu0 0.0
      %2332 = vmatprep.subr.mxu0 0.0
      %2333 = vmatpush2.msra.mxu0 0.0
      %2334 = vmatprep.subr.mxu0 0.0
      %2335 = vmatpush2.msra.mxu0 0.0
      %2336 = vmatprep.subr.mxu0 0.0
      %2337 = vmatpush2.msra.mxu0 0.0
      %2338 = vmatprep.subr.mxu0 0.0
      %2339 = vmatpush2.msra.mxu0 0.0
      %2340 = vmatprep.subr.mxu0 0.0
      %2341 = vmatpush2.msra.mxu0 0.0
      %2342 = vmatprep.subr.mxu0 0.0
      %2343 = vmatpush2.msra.mxu0 0.0
      %2344 = vmatprep.subr.mxu0 0.0
      %2345 = vmatpush2.msra.mxu0 0.0
      %2346 = vmatprep.subr.mxu0 0.0
      %2347 = vmatpush2.msra.mxu0 0.0
      %2348 = vmatprep.subr.mxu0 0.0
      %2349 = vmatpush2.msra.mxu0 0.0
      %2350 = vmatprep.subr.mxu0 0.0
      %2351 = vmatpush2.msra.mxu0 0.0
      %2352 = vmatprep.mubr.f32.mxu0 0.0
      %2353 = vmatmul.mubr.f32.gmra.mxu0 %v1292
      %v2354 = vpop.f32.mrf.mxu0
      %v2355 = vadd.f32 %v2286, %v2354
      %v2356 = vpop.f32.mrf.mxu0
      %2357 = vmatprep.mubr.f32.mxu0 0.0
      %2358 = vmatmul.mubr.f32.gmra.mxu0 %v1295
      %v2359 = vpop.f32.mrf.mxu0
      %v2360 = vadd.f32 %v2286, %v2359
      %v2361 = vpop.f32.mrf.mxu0
      %2362 = vmatprep.mubr.f32.mxu0 0.0
      %2363 = vmatmul.mubr.f32.gmra.mxu0 %v1298
      %v2364 = vpop.f32.mrf.mxu0
      %v2365 = vadd.f32 %v2286, %v2364
      %v2366 = vpop.f32.mrf.mxu0
      %2367 = vmatprep.mubr.f32.mxu0 0.0
      %2368 = vmatmul.mubr.f32.gmra.mxu0 %v1301
      %v2369 = vpop.f32.mrf.mxu0
      %v2370 = vadd.f32 %v2286, %v2369
      %v2371 = vpop.f32.mrf.mxu0
      %2372 = vmatprep.mubr.f32.mxu0 0.0
      %2373 = vmatmul.mubr.f32.gmra.mxu0 %v1304
      %v2374 = vpop.f32.mrf.mxu0
      %v2375 = vadd.f32 %v2286, %v2374
      %v2376 = vpop.f32.mrf.mxu0
      %2377 = vmatprep.mubr.f32.mxu0 0.0
      %2378 = vmatmul.mubr.f32.gmra.mxu0 %v1307
      %v2379 = vpop.f32.mrf.mxu0
      %v2380 = vadd.f32 %v2286, %v2379
      %v2381 = vpop.f32.mrf.mxu0
      %2382 = vdwg.mxu0
      %v2383 = vmul.f32 %v2139, 0.35355338
      %v2384 = vmul.f32 %v2144, 0.35355338
      %v2385 = vmul.f32 %v2149, 0.35355338
      %v2386 = vmul.f32 %v2154, 0.35355338
      %v2387 = vmul.f32 %v2159, 0.35355338
      %v2388 = vmul.f32 %v2164, 0.35355338
      %v2390 = vsel %vm1622, %v2383, 0
      %v2393 = vsel %vm1622, %v2384, 0
      %v2396 = vsel %vm1622, %v2385, 0
      %v2399 = vsel %vm1622, %v2386, 0
      %v2402 = vsel %vm1622, %v2387, 0
      %v2405 = vsel %vm1622, %v2388, 0
      %v2408 = vsel %vm1622, %v2247, 0
      %v2411 = vsel %vm1622, %v2252, 0
      %v2414 = vsel %vm1622, %v2257, 0
      %v2417 = vsel %vm1622, %v2262, 0
      %v2420 = vsel %vm1622, %v2267, 0
      %v2423 = vsel %vm1622, %v2272, 0
      %2425 = vmatprep.subr.mxu0 0.0
      %2426 = vmatpush1.xpose.msra.mxu0 0.0
      %2427 = vmatprep.subr.mxu0 0.0
      %2428 = vmatpush1.xpose.msra.mxu0 0.0
      %2429 = vmatprep.subr.mxu0 0.0
      %2430 = vmatpush1.xpose.msra.mxu0 0.0
      %2431 = vmatprep.subr.mxu0 0.0
      %2432 = vmatpush1.xpose.msra.mxu0 0.0
      %2433 = vmatprep.subr.mxu0 0.0
      %2434 = vmatpush1.xpose.msra.mxu0 0.0
      %2435 = vmatprep.subr.mxu0 0.0
      %2436 = vmatpush1.xpose.msra.mxu0 0.0
      %2437 = vmatprep.subr.mxu0 0.0
      %2438 = vmatpush1.xpose.msra.mxu0 0.0
      %2439 = vmatprep.subr.mxu0 0.0
      %2440 = vmatpush1.xpose.msra.mxu0 0.0
      %2441 = vmatprep.subr.mxu0 0.0
      %2442 = vmatpush1.xpose.msra.mxu0 0.0
      %2443 = vmatprep.subr.mxu0 0.0
      %2444 = vmatpush1.xpose.msra.mxu0 0.0
      %2445 = vmatprep.subr.mxu0 0.0
      %2446 = vmatpush1.xpose.msra.mxu0 %v2423
      %2447 = vmatprep.subr.mxu0 0.0
      %2448 = vmatpush1.xpose.msra.mxu0 %v2420
      %2449 = vmatprep.subr.mxu0 0.0
      %2450 = vmatpush1.xpose.msra.mxu0 %v2417
      %2451 = vmatprep.subr.mxu0 0.0
      %2452 = vmatpush1.xpose.msra.mxu0 %v2414
      %2453 = vmatprep.subr.mxu0 0.0
      %2454 = vmatpush1.xpose.msra.mxu0 %v2411
      %2455 = vmatprep.subr.mxu0 0.0
      %2456 = vmatpush1.xpose.msra.mxu0 %v2408
      %2457 = vmatprep.subr.mxu0 0.0
      %2458 = vmatpush2.xpose.msra.mxu0 0.0
      %2459 = vmatprep.subr.mxu0 0.0
      %2460 = vmatpush2.xpose.msra.mxu0 0.0
      %2461 = vmatprep.subr.mxu0 0.0
      %2462 = vmatpush2.xpose.msra.mxu0 0.0
      %2463 = vmatprep.subr.mxu0 0.0
      %2464 = vmatpush2.xpose.msra.mxu0 0.0
      %2465 = vmatprep.subr.mxu0 0.0
      %2466 = vmatpush2.xpose.msra.mxu0 0.0
      %2467 = vmatprep.subr.mxu0 0.0
      %2468 = vmatpush2.xpose.msra.mxu0 0.0
      %2469 = vmatprep.subr.mxu0 0.0
      %2470 = vmatpush2.xpose.msra.mxu0 0.0
      %2471 = vmatprep.subr.mxu0 0.0
      %2472 = vmatpush2.xpose.msra.mxu0 0.0
      %2473 = vmatprep.subr.mxu0 0.0
      %2474 = vmatpush2.xpose.msra.mxu0 0.0
      %2475 = vmatprep.subr.mxu0 0.0
      %2476 = vmatpush2.xpose.msra.mxu0 0.0
      %2477 = vmatprep.subr.mxu0 0.0
      %2478 = vmatpush2.xpose.msra.mxu0 0.0
      %2479 = vmatprep.subr.mxu0 0.0
      %2480 = vmatpush2.xpose.msra.mxu0 0.0
      %2481 = vmatprep.subr.mxu0 0.0
      %2482 = vmatpush2.xpose.msra.mxu0 0.0
      %2483 = vmatprep.subr.mxu0 0.0
      %2484 = vmatpush2.xpose.msra.mxu0 0.0
      %2485 = vmatprep.subr.mxu0 0.0
      %2486 = vmatpush2.xpose.msra.mxu0 0.0
      %2487 = vmatprep.subr.mxu0 0.0
      %2488 = vmatpush2.xpose.msra.mxu0 0.0
      %2489 = vmatprep.mubr.f32.mxu0 0.0
      %2490 = vmatmul.mubr.f32.gmra.mxu0 %v2390
      %v2491 = vpop.f32.mrf.mxu0
      %v2492 = vadd.f32 0.0, %v2491
      %v2493 = vpop.f32.mrf.mxu0
      %2494 = vmatprep.mubr.f32.mxu0 0.0
      %2495 = vmatmul.mubr.f32.gmra.mxu0 %v2393
      %v2496 = vpop.f32.mrf.mxu0
      %v2497 = vadd.f32 0.0, %v2496
      %v2498 = vpop.f32.mrf.mxu0
      %2499 = vmatprep.mubr.f32.mxu0 0.0
      %2500 = vmatmul.mubr.f32.gmra.mxu0 %v2396
      %v2501 = vpop.f32.mrf.mxu0
      %v2502 = vadd.f32 0.0, %v2501
      %v2503 = vpop.f32.mrf.mxu0
      %2504 = vmatprep.mubr.f32.mxu0 0.0
      %2505 = vmatmul.mubr.f32.gmra.mxu0 %v2399
      %v2506 = vpop.f32.mrf.mxu0
      %v2507 = vadd.f32 0.0, %v2506
      %v2508 = vpop.f32.mrf.mxu0
      %2509 = vmatprep.mubr.f32.mxu0 0.0
      %2510 = vmatmul.mubr.f32.gmra.mxu0 %v2402
      %v2511 = vpop.f32.mrf.mxu0
      %v2512 = vadd.f32 0.0, %v2511
      %v2513 = vpop.f32.mrf.mxu0
      %2514 = vmatprep.mubr.f32.mxu0 0.0
      %2515 = vmatmul.mubr.f32.gmra.mxu0 %v2405
      %v2516 = vpop.f32.mrf.mxu0
      %v2517 = vadd.f32 0.0, %v2516
      %v2518 = vpop.f32.mrf.mxu0
      %2519 = vdwg.mxu0
      %v2520 = vsel %vm1754, %v2492, -inf
      %2521 = vmax.xlane.f32.xlu0 %v2520
      %v2522 = vpop.xlane.xlu0 %2521
      %v2523 = vsel %vm1754, %v2497, -inf
      %2524 = vmax.xlane.f32.xlu0 %v2523
      %v2525 = vpop.xlane.xlu0 %2524
      %v2526 = vsel %vm1754, %v2502, -inf
      %2527 = vmax.xlane.f32.xlu0 %v2526
      %v2528 = vpop.xlane.xlu0 %2527
      %v2529 = vsel %vm1754, %v2507, -inf
      %2530 = vmax.xlane.f32.xlu0 %v2529
      %v2531 = vpop.xlane.xlu0 %2530
      %v2532 = vsel %vm1754, %v2512, -inf
      %2533 = vmax.xlane.f32.xlu0 %v2532
      %v2534 = vpop.xlane.xlu0 %2533
      %v2535 = vsel %vm1770, %v2517, -inf
      %2536 = vmax.xlane.f32.xlu0 %v2535
      %v2537 = vpop.xlane.xlu0 %2536
      %v2538 = vsub.f32 %v2492, %v2522
      %v2539 = vsub.f32 %v2497, %v2525
      %v2540 = vsub.f32 %v2502, %v2528
      %v2541 = vsub.f32 %v2507, %v2531
      %v2542 = vsub.f32 %v2512, %v2534
      %v2543 = vsub.f32 %v2517, %v2537
      %v2544 = vmul.f32 %v2538, 1.442695
      %v2545 = vpow.pop %v2544
      %v2546 = vmul.f32 %v2539, 1.442695
      %v2547 = vpow.pop %v2546
      %v2548 = vmul.f32 %v2540, 1.442695
      %v2549 = vpow.pop %v2548
      %v2550 = vmul.f32 %v2541, 1.442695
      %v2551 = vpow.pop %v2550
      %v2552 = vmul.f32 %v2542, 1.442695
      %v2553 = vpow.pop %v2552
      %v2554 = vmul.f32 %v2543, 1.442695
      %v2555 = vpow.pop %v2554
      %v2556 = vsel %vm1754, %v2545, 0.0
      %2557 = vadd.xlane.f32.xlu0 %v2556
      %v2558 = vpop.xlane.xlu0 %2557
      %v2559 = vsel %vm1754, %v2547, 0.0
      %2560 = vadd.xlane.f32.xlu0 %v2559
      %v2561 = vpop.xlane.xlu0 %2560
      %v2562 = vsel %vm1754, %v2549, 0.0
      %2563 = vadd.xlane.f32.xlu0 %v2562
      %v2564 = vpop.xlane.xlu0 %2563
      %v2565 = vsel %vm1754, %v2551, 0.0
      %2566 = vadd.xlane.f32.xlu0 %v2565
      %v2567 = vpop.xlane.xlu0 %2566
      %v2568 = vsel %vm1754, %v2553, 0.0
      %2569 = vadd.xlane.f32.xlu0 %v2568
      %v2570 = vpop.xlane.xlu0 %2569
      %v2571 = vsel %vm1770, %v2555, 0.0
      %2572 = vadd.xlane.f32.xlu0 %v2571
      %v2573 = vpop.xlane.xlu0 %2572
      %v2574 = vrcp.pop %v2558
      %v2575 = vrcp.pop %v2561
      %v2576 = vrcp.pop %v2564
      %v2577 = vrcp.pop %v2567
      %v2578 = vrcp.pop %v2570
      %v2579 = vrcp.pop %v2573
      %v2580 = vmul.f32 %v2545, %v2574
      %v2581 = vmul.f32 %v2547, %v2575
      %v2582 = vmul.f32 %v2549, %v2576
      %v2583 = vmul.f32 %v2551, %v2577
      %v2584 = vmul.f32 %v2553, %v2578
      %v2585 = vmul.f32 %v2555, %v2579
      %v2587 = vsel %vm1754, %v2580, 0
      %v2590 = vsel %vm1754, %v2581, 0
      %v2593 = vsel %vm1754, %v2582, 0
      %v2596 = vsel %vm1754, %v2583, 0
      %v2599 = vsel %vm1754, %v2584, 0
      %v2602 = vsel %vm1754, %v2585, 0
      %v2605 = vsel %vm1840, %v2380, 0
      %2607 = vmatprep.subr.mxu0 0.0
      %2608 = vmatpush1.msra.mxu0 0.0
      %2609 = vmatprep.subr.mxu0 0.0
      %2610 = vmatpush1.msra.mxu0 0.0
      %2611 = vmatprep.subr.mxu0 0.0
      %2612 = vmatpush1.msra.mxu0 0.0
      %2613 = vmatprep.subr.mxu0 0.0
      %2614 = vmatpush1.msra.mxu0 0.0
      %2615 = vmatprep.subr.mxu0 0.0
      %2616 = vmatpush1.msra.mxu0 0.0
      %2617 = vmatprep.subr.mxu0 0.0
      %2618 = vmatpush1.msra.mxu0 0.0
      %2619 = vmatprep.subr.mxu0 0.0
      %2620 = vmatpush1.msra.mxu0 0.0
      %2621 = vmatprep.subr.mxu0 0.0
      %2622 = vmatpush1.msra.mxu0 0.0
      %2623 = vmatprep.subr.mxu0 0.0
      %2624 = vmatpush1.msra.mxu0 0.0
      %2625 = vmatprep.subr.mxu0 0.0
      %2626 = vmatpush1.msra.mxu0 0.0
      %2627 = vmatprep.subr.mxu0 0.0
      %2628 = vmatpush1.msra.mxu0 %v2605
      %2629 = vmatprep.subr.mxu0 0.0
      %2630 = vmatpush1.msra.mxu0 %v2375
      %2631 = vmatprep.subr.mxu0 0.0
      %2632 = vmatpush1.msra.mxu0 %v2370
      %2633 = vmatprep.subr.mxu0 0.0
      %2634 = vmatpush1.msra.mxu0 %v2365
      %2635 = vmatprep.subr.mxu0 0.0
      %2636 = vmatpush1.msra.mxu0 %v2360
      %2637 = vmatprep.subr.mxu0 0.0
      %2638 = vmatpush1.msra.mxu0 %v2355
      %2639 = vmatprep.subr.mxu0 0.0
      %2640 = vmatpush2.msra.mxu0 0.0
      %2641 = vmatprep.subr.mxu0 0.0
      %2642 = vmatpush2.msra.mxu0 0.0
      %2643 = vmatprep.subr.mxu0 0.0
      %2644 = vmatpush2.msra.mxu0 0.0
      %2645 = vmatprep.subr.mxu0 0.0
      %2646 = vmatpush2.msra.mxu0 0.0
      %2647 = vmatprep.subr.mxu0 0.0
      %2648 = vmatpush2.msra.mxu0 0.0
      %2649 = vmatprep.subr.mxu0 0.0
      %2650 = vmatpush2.msra.mxu0 0.0
      %2651 = vmatprep.subr.mxu0 0.0
      %2652 = vmatpush2.msra.mxu0 0.0
      %2653 = vmatprep.subr.mxu0 0.0
      %2654 = vmatpush2.msra.mxu0 0.0
      %2655 = vmatprep.subr.mxu0 0.0
      %2656 = vmatpush2.msra.mxu0 0.0
      %2657 = vmatprep.subr.mxu0 0.0
      %2658 = vmatpush2.msra.mxu0 0.0
      %2659 = vmatprep.subr.mxu0 0.0
      %2660 = vmatpush2.msra.mxu0 0.0
      %2661 = vmatprep.subr.mxu0 0.0
      %2662 = vmatpush2.msra.mxu0 0.0
      %2663 = vmatprep.subr.mxu0 0.0
      %2664 = vmatpush2.msra.mxu0 0.0
      %2665 = vmatprep.subr.mxu0 0.0
      %2666 = vmatpush2.msra.mxu0 0.0
      %2667 = vmatprep.subr.mxu0 0.0
      %2668 = vmatpush2.msra.mxu0 0.0
      %2669 = vmatprep.subr.mxu0 0.0
      %2670 = vmatpush2.msra.mxu0 0.0
      %2671 = vmatprep.mubr.f32.mxu0 0.0
      %2672 = vmatmul.mubr.f32.gmra.mxu0 %v2587
      %v2673 = vpop.f32.mrf.mxu0
      %v2674 = vadd.f32 0.0, %v2673
      %v2675 = vpop.f32.mrf.mxu0
      %2676 = vmatprep.mubr.f32.mxu0 0.0
      %2677 = vmatmul.mubr.f32.gmra.mxu0 %v2590
      %v2678 = vpop.f32.mrf.mxu0
      %v2679 = vadd.f32 0.0, %v2678
      %v2680 = vpop.f32.mrf.mxu0
      %2681 = vmatprep.mubr.f32.mxu0 0.0
      %2682 = vmatmul.mubr.f32.gmra.mxu0 %v2593
      %v2683 = vpop.f32.mrf.mxu0
      %v2684 = vadd.f32 0.0, %v2683
      %v2685 = vpop.f32.mrf.mxu0
      %2686 = vmatprep.mubr.f32.mxu0 0.0
      %2687 = vmatmul.mubr.f32.gmra.mxu0 %v2596
      %v2688 = vpop.f32.mrf.mxu0
      %v2689 = vadd.f32 0.0, %v2688
      %v2690 = vpop.f32.mrf.mxu0
      %2691 = vmatprep.mubr.f32.mxu0 0.0
      %2692 = vmatmul.mubr.f32.gmra.mxu0 %v2599
      %v2693 = vpop.f32.mrf.mxu0
      %v2694 = vadd.f32 0.0, %v2693
      %v2695 = vpop.f32.mrf.mxu0
      %2696 = vmatprep.mubr.f32.mxu0 0.0
      %2697 = vmatmul.mubr.f32.gmra.mxu0 %v2602
      %v2698 = vpop.f32.mrf.mxu0
      %v2699 = vadd.f32 0.0, %v2698
      %v2700 = vpop.f32.mrf.mxu0
      %2701 = vdwg.mxu0
      %s2702 = scalar_lea.vmem %s29, 8
      %v2703 = vld [vmem:[%s2702] sm:$0xff]
      %v2705 = vsel %vm1622, %v2674, 0
      %v2708 = vsel %vm1622, %v2679, 0
      %v2711 = vsel %vm1622, %v2684, 0
      %v2714 = vsel %vm1622, %v2689, 0
      %v2717 = vsel %vm1622, %v2694, 0
      %v2720 = vsel %vm1622, %v2699, 0
      %2722 = vmatprep.subr.mxu0 0.0
      %2723 = vmatpush1.msra.mxu0 0.0
      %2724 = vmatprep.subr.mxu0 0.0
      %2725 = vmatpush1.msra.mxu0 0.0
      %2726 = vmatprep.subr.mxu0 0.0
      %2727 = vmatpush1.msra.mxu0 0.0
      %2728 = vmatprep.subr.mxu0 0.0
      %2729 = vmatpush1.msra.mxu0 0.0
      %2730 = vmatprep.subr.mxu0 0.0
      %2731 = vmatpush1.msra.mxu0 0.0
      %2732 = vmatprep.subr.mxu0 0.0
      %2733 = vmatpush1.msra.mxu0 0.0
      %2734 = vmatprep.subr.mxu0 0.0
      %2735 = vmatpush1.msra.mxu0 0.0
      %2736 = vmatprep.subr.mxu0 0.0
      %2737 = vmatpush1.msra.mxu0 0.0
      %2738 = vmatprep.subr.mxu0 0.0
      %2739 = vmatpush1.msra.mxu0 0.0
      %2740 = vmatprep.subr.mxu0 0.0
      %2741 = vmatpush1.msra.mxu0 0.0
      %2742 = vmatprep.subr.mxu0 0.0
      %2743 = vmatpush1.msra.mxu0 0.0
      %2744 = vmatprep.subr.mxu0 0.0
      %2745 = vmatpush1.msra.mxu0 0.0
      %2746 = vmatprep.subr.mxu0 0.0
      %2747 = vmatpush1.msra.mxu0 0.0
      %2748 = vmatprep.subr.mxu0 0.0
      %2749 = vmatpush1.msra.mxu0 0.0
      %2750 = vmatprep.subr.mxu0 0.0
      %2751 = vmatpush1.msra.mxu0 0.0
      %2752 = vmatprep.subr.mxu0 0.0
      %2753 = vmatpush1.msra.mxu0 %v2703
      %2754 = vmatprep.subr.mxu0 0.0
      %2755 = vmatpush2.msra.mxu0 0.0
      %2756 = vmatprep.subr.mxu0 0.0
      %2757 = vmatpush2.msra.mxu0 0.0
      %2758 = vmatprep.subr.mxu0 0.0
      %2759 = vmatpush2.msra.mxu0 0.0
      %2760 = vmatprep.subr.mxu0 0.0
      %2761 = vmatpush2.msra.mxu0 0.0
      %2762 = vmatprep.subr.mxu0 0.0
      %2763 = vmatpush2.msra.mxu0 0.0
      %2764 = vmatprep.subr.mxu0 0.0
      %2765 = vmatpush2.msra.mxu0 0.0
      %2766 = vmatprep.subr.mxu0 0.0
      %2767 = vmatpush2.msra.mxu0 0.0
      %2768 = vmatprep.subr.mxu0 0.0
      %2769 = vmatpush2.msra.mxu0 0.0
      %2770 = vmatprep.subr.mxu0 0.0
      %2771 = vmatpush2.msra.mxu0 0.0
      %2772 = vmatprep.subr.mxu0 0.0
      %2773 = vmatpush2.msra.mxu0 0.0
      %2774 = vmatprep.subr.mxu0 0.0
      %2775 = vmatpush2.msra.mxu0 0.0
      %2776 = vmatprep.subr.mxu0 0.0
      %2777 = vmatpush2.msra.mxu0 0.0
      %2778 = vmatprep.subr.mxu0 0.0
      %2779 = vmatpush2.msra.mxu0 0.0
      %2780 = vmatprep.subr.mxu0 0.0
      %2781 = vmatpush2.msra.mxu0 0.0
      %2782 = vmatprep.subr.mxu0 0.0
      %2783 = vmatpush2.msra.mxu0 0.0
      %2784 = vmatprep.subr.mxu0 0.0
      %2785 = vmatpush2.msra.mxu0 0.0
      %2786 = vmatprep.mubr.f32.mxu0 0.0
      %2787 = vmatmul.mubr.f32.gmra.mxu0 %v2705
      %v2788 = vpop.f32.mrf.mxu0
      %v2789 = vadd.f32 0.0, %v2788
      %v2790 = vpop.f32.mrf.mxu0
      %2791 = vmatprep.mubr.f32.mxu0 0.0
      %2792 = vmatmul.mubr.f32.gmra.mxu0 %v2708
      %v2793 = vpop.f32.mrf.mxu0
      %v2794 = vadd.f32 0.0, %v2793
      %v2795 = vpop.f32.mrf.mxu0
      %2796 = vmatprep.mubr.f32.mxu0 0.0
      %2797 = vmatmul.mubr.f32.gmra.mxu0 %v2711
      %v2798 = vpop.f32.mrf.mxu0
      %v2799 = vadd.f32 0.0, %v2798
      %v2800 = vpop.f32.mrf.mxu0
      %2801 = vmatprep.mubr.f32.mxu0 0.0
      %2802 = vmatmul.mubr.f32.gmra.mxu0 %v2714
      %v2803 = vpop.f32.mrf.mxu0
      %v2804 = vadd.f32 0.0, %v2803
      %v2805 = vpop.f32.mrf.mxu0
      %2806 = vmatprep.mubr.f32.mxu0 0.0
      %2807 = vmatmul.mubr.f32.gmra.mxu0 %v2717
      %v2808 = vpop.f32.mrf.mxu0
      %v2809 = vadd.f32 0.0, %v2808
      %v2810 = vpop.f32.mrf.mxu0
      %2811 = vmatprep.mubr.f32.mxu0 0.0
      %2812 = vmatmul.mubr.f32.gmra.mxu0 %v2720
      %v2813 = vpop.f32.mrf.mxu0
      %v2814 = vadd.f32 0.0, %v2813
      %v2815 = vpop.f32.mrf.mxu0
      %2816 = vdwg.mxu0
      %v2817 = vadd.f32 %v2053, %v2789
      %v2818 = vadd.f32 %v2054, %v2794
      %v2819 = vadd.f32 %v2055, %v2799
      %v2820 = vadd.f32 %v2056, %v2804
      %v2821 = vadd.f32 %v2057, %v2809
      %v2822 = vadd.f32 %v2058, %v2814
      %s2823 = scalar_lea.vmem %s17, 64
      %v2824 = vld [vmem:[%s2823] sm:$0xff]
      %v2825 = vld [vmem:[%s2823 + $0x8] sm:$0xff]
      %v2826 = vld [vmem:[%s2823 + $0x10] sm:$0xff]
      %v2827 = vld [vmem:[%s2823 + $0x18] sm:$0xff]
      %s2828 = scalar_lea.vmem %s23, 2
      %v2829 = vld [vmem:[%s2828] sm:$0x1]
      %v2831 = vlaneseq
      %v2832 = vshrl.u32 %v2831, 7
      %v2833 = vsub.s32 0, %v2832
      %v2834 = vrot.slane %v2829, %v2833
      %2836 = vmatprep.subr.mxu0 0.0
      %2837 = vmatpush1.msra.mxu0 0.0
      %2838 = vmatprep.subr.mxu0 0.0
      %2839 = vmatpush1.msra.mxu0 0.0
      %2840 = vmatprep.subr.mxu0 0.0
      %2841 = vmatpush1.msra.mxu0 0.0
      %2842 = vmatprep.subr.mxu0 0.0
      %2843 = vmatpush1.msra.mxu0 0.0
      %2844 = vmatprep.subr.mxu0 0.0
      %2845 = vmatpush1.msra.mxu0 0.0
      %2846 = vmatprep.subr.mxu0 0.0
      %2847 = vmatpush1.msra.mxu0 0.0
      %2848 = vmatprep.subr.mxu0 0.0
      %2849 = vmatpush1.msra.mxu0 0.0
      %2850 = vmatprep.subr.mxu0 0.0
      %2851 = vmatpush1.msra.mxu0 0.0
      %2852 = vmatprep.subr.mxu0 0.0
      %2853 = vmatpush1.msra.mxu0 0.0
      %2854 = vmatprep.subr.mxu0 0.0
      %2855 = vmatpush1.msra.mxu0 0.0
      %2856 = vmatprep.subr.mxu0 0.0
      %2857 = vmatpush1.msra.mxu0 0.0
      %2858 = vmatprep.subr.mxu0 0.0
      %2859 = vmatpush1.msra.mxu0 0.0
      %2860 = vmatprep.subr.mxu0 0.0
      %2861 = vmatpush1.msra.mxu0 %v2827
      %2862 = vmatprep.subr.mxu0 0.0
      %2863 = vmatpush1.msra.mxu0 %v2826
      %2864 = vmatprep.subr.mxu0 0.0
      %2865 = vmatpush1.msra.mxu0 %v2825
      %2866 = vmatprep.subr.mxu0 0.0
      %2867 = vmatpush1.msra.mxu0 %v2824
      %2868 = vmatprep.subr.mxu0 0.0
      %2869 = vmatpush2.msra.mxu0 0.0
      %2870 = vmatprep.subr.mxu0 0.0
      %2871 = vmatpush2.msra.mxu0 0.0
      %2872 = vmatprep.subr.mxu0 0.0
      %2873 = vmatpush2.msra.mxu0 0.0
      %2874 = vmatprep.subr.mxu0 0.0
      %2875 = vmatpush2.msra.mxu0 0.0
      %2876 = vmatprep.subr.mxu0 0.0
      %2877 = vmatpush2.msra.mxu0 0.0
      %2878 = vmatprep.subr.mxu0 0.0
      %2879 = vmatpush2.msra.mxu0 0.0
      %2880 = vmatprep.subr.mxu0 0.0
      %2881 = vmatpush2.msra.mxu0 0.0
      %2882 = vmatprep.subr.mxu0 0.0
      %2883 = vmatpush2.msra.mxu0 0.0
      %2884 = vmatprep.subr.mxu0 0.0
      %2885 = vmatpush2.msra.mxu0 0.0
      %2886 = vmatprep.subr.mxu0 0.0
      %2887 = vmatpush2.msra.mxu0 0.0
      %2888 = vmatprep.subr.mxu0 0.0
      %2889 = vmatpush2.msra.mxu0 0.0
      %2890 = vmatprep.subr.mxu0 0.0
      %2891 = vmatpush2.msra.mxu0 0.0
      %2892 = vmatprep.subr.mxu0 0.0
      %2893 = vmatpush2.msra.mxu0 0.0
      %2894 = vmatprep.subr.mxu0 0.0
      %2895 = vmatpush2.msra.mxu0 0.0
      %2896 = vmatprep.subr.mxu0 0.0
      %2897 = vmatpush2.msra.mxu0 0.0
      %2898 = vmatprep.subr.mxu0 0.0
      %2899 = vmatpush2.msra.mxu0 0.0
      %2900 = vmatprep.mubr.f32.mxu0 0.0
      %2901 = vmatmul.mubr.f32.gmra.mxu0 %v1292
      %v2902 = vpop.f32.mrf.mxu0
      %v2903 = vadd.f32 %v2834, %v2902
      %v2904 = vpop.f32.mrf.mxu0
      %2905 = vmatprep.mubr.f32.mxu0 0.0
      %2906 = vmatmul.mubr.f32.gmra.mxu0 %v1295
      %v2907 = vpop.f32.mrf.mxu0
      %v2908 = vadd.f32 %v2834, %v2907
      %v2909 = vpop.f32.mrf.mxu0
      %2910 = vmatprep.mubr.f32.mxu0 0.0
      %2911 = vmatmul.mubr.f32.gmra.mxu0 %v1298
      %v2912 = vpop.f32.mrf.mxu0
      %v2913 = vadd.f32 %v2834, %v2912
      %v2914 = vpop.f32.mrf.mxu0
      %2915 = vmatprep.mubr.f32.mxu0 0.0
      %2916 = vmatmul.mubr.f32.gmra.mxu0 %v1301
      %v2917 = vpop.f32.mrf.mxu0
      %v2918 = vadd.f32 %v2834, %v2917
      %v2919 = vpop.f32.mrf.mxu0
      %2920 = vmatprep.mubr.f32.mxu0 0.0
      %2921 = vmatmul.mubr.f32.gmra.mxu0 %v1304
      %v2922 = vpop.f32.mrf.mxu0
      %v2923 = vadd.f32 %v2834, %v2922
      %v2924 = vpop.f32.mrf.mxu0
      %2925 = vmatprep.mubr.f32.mxu0 0.0
      %2926 = vmatmul.mubr.f32.gmra.mxu0 %v1307
      %v2927 = vpop.f32.mrf.mxu0
      %v2928 = vadd.f32 %v2834, %v2927
      %v2929 = vpop.f32.mrf.mxu0
      %2930 = vdwg.mxu0
      %s2931 = scalar_lea.vmem %s19, 64
      %v2932 = vld [vmem:[%s2931] sm:$0xff]
      %v2933 = vld [vmem:[%s2931 + $0x8] sm:$0xff]
      %v2934 = vld [vmem:[%s2931 + $0x10] sm:$0xff]
      %v2935 = vld [vmem:[%s2931 + $0x18] sm:$0xff]
      %s2936 = scalar_lea.vmem %s25, 2
      %v2937 = vld [vmem:[%s2936] sm:$0x1]
      %v2939 = vlaneseq
      %v2940 = vshrl.u32 %v2939, 7
      %v2941 = vsub.s32 0, %v2940
      %v2942 = vrot.slane %v2937, %v2941
      %2944 = vmatprep.subr.mxu0 0.0
      %2945 = vmatpush1.msra.mxu0 0.0
      %2946 = vmatprep.subr.mxu0 0.0
      %2947 = vmatpush1.msra.mxu0 0.0
      %2948 = vmatprep.subr.mxu0 0.0
      %2949 = vmatpush1.msra.mxu0 0.0
      %2950 = vmatprep.subr.mxu0 0.0
      %2951 = vmatpush1.msra.mxu0 0.0
      %2952 = vmatprep.subr.mxu0 0.0
      %2953 = vmatpush1.msra.mxu0 0.0
      %2954 = vmatprep.subr.mxu0 0.0
      %2955 = vmatpush1.msra.mxu0 0.0
      %2956 = vmatprep.subr.mxu0 0.0
      %2957 = vmatpush1.msra.mxu0 0.0
      %2958 = vmatprep.subr.mxu0 0.0
      %2959 = vmatpush1.msra.mxu0 0.0
      %2960 = vmatprep.subr.mxu0 0.0
      %2961 = vmatpush1.msra.mxu0 0.0
      %2962 = vmatprep.subr.mxu0 0.0
      %2963 = vmatpush1.msra.mxu0 0.0
      %2964 = vmatprep.subr.mxu0 0.0
      %2965 = vmatpush1.msra.mxu0 0.0
      %2966 = vmatprep.subr.mxu0 0.0
      %2967 = vmatpush1.msra.mxu0 0.0
      %2968 = vmatprep.subr.mxu0 0.0
      %2969 = vmatpush1.msra.mxu0 %v2935
      %2970 = vmatprep.subr.mxu0 0.0
      %2971 = vmatpush1.msra.mxu0 %v2934
      %2972 = vmatprep.subr.mxu0 0.0
      %2973 = vmatpush1.msra.mxu0 %v2933
      %2974 = vmatprep.subr.mxu0 0.0
      %2975 = vmatpush1.msra.mxu0 %v2932
      %2976 = vmatprep.subr.mxu0 0.0
      %2977 = vmatpush2.msra.mxu0 0.0
      %2978 = vmatprep.subr.mxu0 0.0
      %2979 = vmatpush2.msra.mxu0 0.0
      %2980 = vmatprep.subr.mxu0 0.0
      %2981 = vmatpush2.msra.mxu0 0.0
      %2982 = vmatprep.subr.mxu0 0.0
      %2983 = vmatpush2.msra.mxu0 0.0
      %2984 = vmatprep.subr.mxu0 0.0
      %2985 = vmatpush2.msra.mxu0 0.0
      %2986 = vmatprep.subr.mxu0 0.0
      %2987 = vmatpush2.msra.mxu0 0.0
      %2988 = vmatprep.subr.mxu0 0.0
      %2989 = vmatpush2.msra.mxu0 0.0
      %2990 = vmatprep.subr.mxu0 0.0
      %2991 = vmatpush2.msra.mxu0 0.0
      %2992 = vmatprep.subr.mxu0 0.0
      %2993 = vmatpush2.msra.mxu0 0.0
      %2994 = vmatprep.subr.mxu0 0.0
      %2995 = vmatpush2.msra.mxu0 0.0
      %2996 = vmatprep.subr.mxu0 0.0
      %2997 = vmatpush2.msra.mxu0 0.0
      %2998 = vmatprep.subr.mxu0 0.0
      %2999 = vmatpush2.msra.mxu0 0.0
      %3000 = vmatprep.subr.mxu0 0.0
      %3001 = vmatpush2.msra.mxu0 0.0
      %3002 = vmatprep.subr.mxu0 0.0
      %3003 = vmatpush2.msra.mxu0 0.0
      %3004 = vmatprep.subr.mxu0 0.0
      %3005 = vmatpush2.msra.mxu0 0.0
      %3006 = vmatprep.subr.mxu0 0.0
      %3007 = vmatpush2.msra.mxu0 0.0
      %3008 = vmatprep.mubr.f32.mxu0 0.0
      %3009 = vmatmul.mubr.f32.gmra.mxu0 %v1292
      %v3010 = vpop.f32.mrf.mxu0
      %v3011 = vadd.f32 %v2942, %v3010
      %v3012 = vpop.f32.mrf.mxu0
      %3013 = vmatprep.mubr.f32.mxu0 0.0
      %3014 = vmatmul.mubr.f32.gmra.mxu0 %v1295
      %v3015 = vpop.f32.mrf.mxu0
      %v3016 = vadd.f32 %v2942, %v3015
      %v3017 = vpop.f32.mrf.mxu0
      %3018 = vmatprep.mubr.f32.mxu0 0.0
      %3019 = vmatmul.mubr.f32.gmra.mxu0 %v1298
      %v3020 = vpop.f32.mrf.mxu0
      %v3021 = vadd.f32 %v2942, %v3020
      %v3022 = vpop.f32.mrf.mxu0
      %3023 = vmatprep.mubr.f32.mxu0 0.0
      %3024 = vmatmul.mubr.f32.gmra.mxu0 %v1301
      %v3025 = vpop.f32.mrf.mxu0
      %v3026 = vadd.f32 %v2942, %v3025
      %v3027 = vpop.f32.mrf.mxu0
      %3028 = vmatprep.mubr.f32.mxu0 0.0
      %3029 = vmatmul.mubr.f32.gmra.mxu0 %v1304
      %v3030 = vpop.f32.mrf.mxu0
      %v3031 = vadd.f32 %v2942, %v3030
      %v3032 = vpop.f32.mrf.mxu0
      %3033 = vmatprep.mubr.f32.mxu0 0.0
      %3034 = vmatmul.mubr.f32.gmra.mxu0 %v1307
      %v3035 = vpop.f32.mrf.mxu0
      %v3036 = vadd.f32 %v2942, %v3035
      %v3037 = vpop.f32.mrf.mxu0
      %3038 = vdwg.mxu0
      %s3039 = scalar_lea.vmem %s21, 64
      %v3040 = vld [vmem:[%s3039] sm:$0xff]
      %v3041 = vld [vmem:[%s3039 + $0x8] sm:$0xff]
      %v3042 = vld [vmem:[%s3039 + $0x10] sm:$0xff]
      %v3043 = vld [vmem:[%s3039 + $0x18] sm:$0xff]
      %s3044 = scalar_lea.vmem %s27, 2
      %v3045 = vld [vmem:[%s3044] sm:$0x1]
      %v3047 = vlaneseq
      %v3048 = vshrl.u32 %v3047, 7
      %v3049 = vsub.s32 0, %v3048
      %v3050 = vrot.slane %v3045, %v3049
      %3052 = vmatprep.subr.mxu0 0.0
      %3053 = vmatpush1.msra.mxu0 0.0
      %3054 = vmatprep.subr.mxu0 0.0
      %3055 = vmatpush1.msra.mxu0 0.0
      %3056 = vmatprep.subr.mxu0 0.0
      %3057 = vmatpush1.msra.mxu0 0.0
      %3058 = vmatprep.subr.mxu0 0.0
      %3059 = vmatpush1.msra.mxu0 0.0
      %3060 = vmatprep.subr.mxu0 0.0
      %3061 = vmatpush1.msra.mxu0 0.0
      %3062 = vmatprep.subr.mxu0 0.0
      %3063 = vmatpush1.msra.mxu0 0.0
      %3064 = vmatprep.subr.mxu0 0.0
      %3065 = vmatpush1.msra.mxu0 0.0
      %3066 = vmatprep.subr.mxu0 0.0
      %3067 = vmatpush1.msra.mxu0 0.0
      %3068 = vmatprep.subr.mxu0 0.0
      %3069 = vmatpush1.msra.mxu0 0.0
      %3070 = vmatprep.subr.mxu0 0.0
      %3071 = vmatpush1.msra.mxu0 0.0
      %3072 = vmatprep.subr.mxu0 0.0
      %3073 = vmatpush1.msra.mxu0 0.0
      %3074 = vmatprep.subr.mxu0 0.0
      %3075 = vmatpush1.msra.mxu0 0.0
      %3076 = vmatprep.subr.mxu0 0.0
      %3077 = vmatpush1.msra.mxu0 %v3043
      %3078 = vmatprep.subr.mxu0 0.0
      %3079 = vmatpush1.msra.mxu0 %v3042
      %3080 = vmatprep.subr.mxu0 0.0
      %3081 = vmatpush1.msra.mxu0 %v3041
      %3082 = vmatprep.subr.mxu0 0.0
      %3083 = vmatpush1.msra.mxu0 %v3040
      %3084 = vmatprep.subr.mxu0 0.0
      %3085 = vmatpush2.msra.mxu0 0.0
      %3086 = vmatprep.subr.mxu0 0.0
      %3087 = vmatpush2.msra.mxu0 0.0
      %3088 = vmatprep.subr.mxu0 0.0
      %3089 = vmatpush2.msra.mxu0 0.0
      %3090 = vmatprep.subr.mxu0 0.0
      %3091 = vmatpush2.msra.mxu0 0.0
      %3092 = vmatprep.subr.mxu0 0.0
      %3093 = vmatpush2.msra.mxu0 0.0
      %3094 = vmatprep.subr.mxu0 0.0
      %3095 = vmatpush2.msra.mxu0 0.0
      %3096 = vmatprep.subr.mxu0 0.0
      %3097 = vmatpush2.msra.mxu0 0.0
      %3098 = vmatprep.subr.mxu0 0.0
      %3099 = vmatpush2.msra.mxu0 0.0
      %3100 = vmatprep.subr.mxu0 0.0
      %3101 = vmatpush2.msra.mxu0 0.0
      %3102 = vmatprep.subr.mxu0 0.0
      %3103 = vmatpush2.msra.mxu0 0.0
      %3104 = vmatprep.subr.mxu0 0.0
      %3105 = vmatpush2.msra.mxu0 0.0
      %3106 = vmatprep.subr.mxu0 0.0
      %3107 = vmatpush2.msra.mxu0 0.0
      %3108 = vmatprep.subr.mxu0 0.0
      %3109 = vmatpush2.msra.mxu0 0.0
      %3110 = vmatprep.subr.mxu0 0.0
      %3111 = vmatpush2.msra.mxu0 0.0
      %3112 = vmatprep.subr.mxu0 0.0
      %3113 = vmatpush2.msra.mxu0 0.0
      %3114 = vmatprep.subr.mxu0 0.0
      %3115 = vmatpush2.msra.mxu0 0.0
      %3116 = vmatprep.mubr.f32.mxu0 0.0
      %3117 = vmatmul.mubr.f32.gmra.mxu0 %v1292
      %v3118 = vpop.f32.mrf.mxu0
      %v3119 = vadd.f32 %v3050, %v3118
      %v3120 = vpop.f32.mrf.mxu0
      %3121 = vmatprep.mubr.f32.mxu0 0.0
      %3122 = vmatmul.mubr.f32.gmra.mxu0 %v1295
      %v3123 = vpop.f32.mrf.mxu0
      %v3124 = vadd.f32 %v3050, %v3123
      %v3125 = vpop.f32.mrf.mxu0
      %3126 = vmatprep.mubr.f32.mxu0 0.0
      %3127 = vmatmul.mubr.f32.gmra.mxu0 %v1298
      %v3128 = vpop.f32.mrf.mxu0
      %v3129 = vadd.f32 %v3050, %v3128
      %v3130 = vpop.f32.mrf.mxu0
      %3131 = vmatprep.mubr.f32.mxu0 0.0
      %3132 = vmatmul.mubr.f32.gmra.mxu0 %v1301
      %v3133 = vpop.f32.mrf.mxu0
      %v3134 = vadd.f32 %v3050, %v3133
      %v3135 = vpop.f32.mrf.mxu0
      %3136 = vmatprep.mubr.f32.mxu0 0.0
      %3137 = vmatmul.mubr.f32.gmra.mxu0 %v1304
      %v3138 = vpop.f32.mrf.mxu0
      %v3139 = vadd.f32 %v3050, %v3138
      %v3140 = vpop.f32.mrf.mxu0
      %3141 = vmatprep.mubr.f32.mxu0 0.0
      %3142 = vmatmul.mubr.f32.gmra.mxu0 %v1307
      %v3143 = vpop.f32.mrf.mxu0
      %v3144 = vadd.f32 %v3050, %v3143
      %v3145 = vpop.f32.mrf.mxu0
      %3146 = vdwg.mxu0
      %v3147 = vmul.f32 %v2903, 0.35355338
      %v3148 = vmul.f32 %v2908, 0.35355338
      %v3149 = vmul.f32 %v2913, 0.35355338
      %v3150 = vmul.f32 %v2918, 0.35355338
      %v3151 = vmul.f32 %v2923, 0.35355338
      %v3152 = vmul.f32 %v2928, 0.35355338
      %v3154 = vsel %vm1622, %v3147, 0
      %v3157 = vsel %vm1622, %v3148, 0
      %v3160 = vsel %vm1622, %v3149, 0
      %v3163 = vsel %vm1622, %v3150, 0
      %v3166 = vsel %vm1622, %v3151, 0
      %v3169 = vsel %vm1622, %v3152, 0
      %v3172 = vsel %vm1622, %v3011, 0
      %v3175 = vsel %vm1622, %v3016, 0
      %v3178 = vsel %vm1622, %v3021, 0
      %v3181 = vsel %vm1622, %v3026, 0
      %v3184 = vsel %vm1622, %v3031, 0
      %v3187 = vsel %vm1622, %v3036, 0
      %3189 = vmatprep.subr.mxu0 0.0
      %3190 = vmatpush1.xpose.msra.mxu0 0.0
      %3191 = vmatprep.subr.mxu0 0.0
      %3192 = vmatpush1.xpose.msra.mxu0 0.0
      %3193 = vmatprep.subr.mxu0 0.0
      %3194 = vmatpush1.xpose.msra.mxu0 0.0
      %3195 = vmatprep.subr.mxu0 0.0
      %3196 = vmatpush1.xpose.msra.mxu0 0.0
      %3197 = vmatprep.subr.mxu0 0.0
      %3198 = vmatpush1.xpose.msra.mxu0 0.0
      %3199 = vmatprep.subr.mxu0 0.0
      %3200 = vmatpush1.xpose.msra.mxu0 0.0
      %3201 = vmatprep.subr.mxu0 0.0
      %3202 = vmatpush1.xpose.msra.mxu0 0.0
      %3203 = vmatprep.subr.mxu0 0.0
      %3204 = vmatpush1.xpose.msra.mxu0 0.0
      %3205 = vmatprep.subr.mxu0 0.0
      %3206 = vmatpush1.xpose.msra.mxu0 0.0
      %3207 = vmatprep.subr.mxu0 0.0
      %3208 = vmatpush1.xpose.msra.mxu0 0.0
      %3209 = vmatprep.subr.mxu0 0.0
      %3210 = vmatpush1.xpose.msra.mxu0 %v3187
      %3211 = vmatprep.subr.mxu0 0.0
      %3212 = vmatpush1.xpose.msra.mxu0 %v3184
      %3213 = vmatprep.subr.mxu0 0.0
      %3214 = vmatpush1.xpose.msra.mxu0 %v3181
      %3215 = vmatprep.subr.mxu0 0.0
      %3216 = vmatpush1.xpose.msra.mxu0 %v3178
      %3217 = vmatprep.subr.mxu0 0.0
      %3218 = vmatpush1.xpose.msra.mxu0 %v3175
      %3219 = vmatprep.subr.mxu0 0.0
      %3220 = vmatpush1.xpose.msra.mxu0 %v3172
      %3221 = vmatprep.subr.mxu0 0.0
      %3222 = vmatpush2.xpose.msra.mxu0 0.0
      %3223 = vmatprep.subr.mxu0 0.0
      %3224 = vmatpush2.xpose.msra.mxu0 0.0
      %3225 = vmatprep.subr.mxu0 0.0
      %3226 = vmatpush2.xpose.msra.mxu0 0.0
      %3227 = vmatprep.subr.mxu0 0.0
      %3228 = vmatpush2.xpose.msra.mxu0 0.0
      %3229 = vmatprep.subr.mxu0 0.0
      %3230 = vmatpush2.xpose.msra.mxu0 0.0
      %3231 = vmatprep.subr.mxu0 0.0
      %3232 = vmatpush2.xpose.msra.mxu0 0.0
      %3233 = vmatprep.subr.mxu0 0.0
      %3234 = vmatpush2.xpose.msra.mxu0 0.0
      %3235 = vmatprep.subr.mxu0 0.0
      %3236 = vmatpush2.xpose.msra.mxu0 0.0
      %3237 = vmatprep.subr.mxu0 0.0
      %3238 = vmatpush2.xpose.msra.mxu0 0.0
      %3239 = vmatprep.subr.mxu0 0.0
      %3240 = vmatpush2.xpose.msra.mxu0 0.0
      %3241 = vmatprep.subr.mxu0 0.0
      %3242 = vmatpush2.xpose.msra.mxu0 0.0
      %3243 = vmatprep.subr.mxu0 0.0
      %3244 = vmatpush2.xpose.msra.mxu0 0.0
      %3245 = vmatprep.subr.mxu0 0.0
      %3246 = vmatpush2.xpose.msra.mxu0 0.0
      %3247 = vmatprep.subr.mxu0 0.0
      %3248 = vmatpush2.xpose.msra.mxu0 0.0
      %3249 = vmatprep.subr.mxu0 0.0
      %3250 = vmatpush2.xpose.msra.mxu0 0.0
      %3251 = vmatprep.subr.mxu0 0.0
      %3252 = vmatpush2.xpose.msra.mxu0 0.0
      %3253 = vmatprep.mubr.f32.mxu0 0.0
      %3254 = vmatmul.mubr.f32.gmra.mxu0 %v3154
      %v3255 = vpop.f32.mrf.mxu0
      %v3256 = vadd.f32 0.0, %v3255
      %v3257 = vpop.f32.mrf.mxu0
      %3258 = vmatprep.mubr.f32.mxu0 0.0
      %3259 = vmatmul.mubr.f32.gmra.mxu0 %v3157
      %v3260 = vpop.f32.mrf.mxu0
      %v3261 = vadd.f32 0.0, %v3260
      %v3262 = vpop.f32.mrf.mxu0
      %3263 = vmatprep.mubr.f32.mxu0 0.0
      %3264 = vmatmul.mubr.f32.gmra.mxu0 %v3160
      %v3265 = vpop.f32.mrf.mxu0
      %v3266 = vadd.f32 0.0, %v3265
      %v3267 = vpop.f32.mrf.mxu0
      %3268 = vmatprep.mubr.f32.mxu0 0.0
      %3269 = vmatmul.mubr.f32.gmra.mxu0 %v3163
      %v3270 = vpop.f32.mrf.mxu0
      %v3271 = vadd.f32 0.0, %v3270
      %v3272 = vpop.f32.mrf.mxu0
      %3273 = vmatprep.mubr.f32.mxu0 0.0
      %3274 = vmatmul.mubr.f32.gmra.mxu0 %v3166
      %v3275 = vpop.f32.mrf.mxu0
      %v3276 = vadd.f32 0.0, %v3275
      %v3277 = vpop.f32.mrf.mxu0
      %3278 = vmatprep.mubr.f32.mxu0 0.0
      %3279 = vmatmul.mubr.f32.gmra.mxu0 %v3169
      %v3280 = vpop.f32.mrf.mxu0
      %v3281 = vadd.f32 0.0, %v3280
      %v3282 = vpop.f32.mrf.mxu0
      %3283 = vdwg.mxu0
      %v3284 = vsel %vm1754, %v3256, -inf
      %3285 = vmax.xlane.f32.xlu0 %v3284
      %v3286 = vpop.xlane.xlu0 %3285
      %v3287 = vsel %vm1754, %v3261, -inf
      %3288 = vmax.xlane.f32.xlu0 %v3287
      %v3289 = vpop.xlane.xlu0 %3288
      %v3290 = vsel %vm1754, %v3266, -inf
      %3291 = vmax.xlane.f32.xlu0 %v3290
      %v3292 = vpop.xlane.xlu0 %3291
      %v3293 = vsel %vm1754, %v3271, -inf
      %3294 = vmax.xlane.f32.xlu0 %v3293
      %v3295 = vpop.xlane.xlu0 %3294
      %v3296 = vsel %vm1754, %v3276, -inf
      %3297 = vmax.xlane.f32.xlu0 %v3296
      %v3298 = vpop.xlane.xlu0 %3297
      %v3299 = vsel %vm1770, %v3281, -inf
      %3300 = vmax.xlane.f32.xlu0 %v3299
      %v3301 = vpop.xlane.xlu0 %3300
      %v3302 = vsub.f32 %v3256, %v3286
      %v3303 = vsub.f32 %v3261, %v3289
      %v3304 = vsub.f32 %v3266, %v3292
      %v3305 = vsub.f32 %v3271, %v3295
      %v3306 = vsub.f32 %v3276, %v3298
      %v3307 = vsub.f32 %v3281, %v3301
      %v3308 = vmul.f32 %v3302, 1.442695
      %v3309 = vpow.pop %v3308
      %v3310 = vmul.f32 %v3303, 1.442695
      %v3311 = vpow.pop %v3310
      %v3312 = vmul.f32 %v3304, 1.442695
      %v3313 = vpow.pop %v3312
      %v3314 = vmul.f32 %v3305, 1.442695
      %v3315 = vpow.pop %v3314
      %v3316 = vmul.f32 %v3306, 1.442695
      %v3317 = vpow.pop %v3316
      %v3318 = vmul.f32 %v3307, 1.442695
      %v3319 = vpow.pop %v3318
      %v3320 = vsel %vm1754, %v3309, 0.0
      %3321 = vadd.xlane.f32.xlu0 %v3320
      %v3322 = vpop.xlane.xlu0 %3321
      %v3323 = vsel %vm1754, %v3311, 0.0
      %3324 = vadd.xlane.f32.xlu0 %v3323
      %v3325 = vpop.xlane.xlu0 %3324
      %v3326 = vsel %vm1754, %v3313, 0.0
      %3327 = vadd.xlane.f32.xlu0 %v3326
      %v3328 = vpop.xlane.xlu0 %3327
      %v3329 = vsel %vm1754, %v3315, 0.0
      %3330 = vadd.xlane.f32.xlu0 %v3329
      %v3331 = vpop.xlane.xlu0 %3330
      %v3332 = vsel %vm1754, %v3317, 0.0
      %3333 = vadd.xlane.f32.xlu0 %v3332
      %v3334 = vpop.xlane.xlu0 %3333
      %v3335 = vsel %vm1770, %v3319, 0.0
      %3336 = vadd.xlane.f32.xlu0 %v3335
      %v3337 = vpop.xlane.xlu0 %3336
      %v3338 = vrcp.pop %v3322
      %v3339 = vrcp.pop %v3325
      %v3340 = vrcp.pop %v3328
      %v3341 = vrcp.pop %v3331
      %v3342 = vrcp.pop %v3334
      %v3343 = vrcp.pop %v3337
      %v3344 = vmul.f32 %v3309, %v3338
      %v3345 = vmul.f32 %v3311, %v3339
      %v3346 = vmul.f32 %v3313, %v3340
      %v3347 = vmul.f32 %v3315, %v3341
      %v3348 = vmul.f32 %v3317, %v3342
      %v3349 = vmul.f32 %v3319, %v3343
      %v3351 = vsel %vm1754, %v3344, 0
      %v3354 = vsel %vm1754, %v3345, 0
      %v3357 = vsel %vm1754, %v3346, 0
      %v3360 = vsel %vm1754, %v3347, 0
      %v3363 = vsel %vm1754, %v3348, 0
      %v3366 = vsel %vm1754, %v3349, 0
      %v3369 = vsel %vm1840, %v3144, 0
      %3371 = vmatprep.subr.mxu0 0.0
      %3372 = vmatpush1.msra.mxu0 0.0
      %3373 = vmatprep.subr.mxu0 0.0
      %3374 = vmatpush1.msra.mxu0 0.0
      %3375 = vmatprep.subr.mxu0 0.0
      %3376 = vmatpush1.msra.mxu0 0.0
      %3377 = vmatprep.subr.mxu0 0.0
      %3378 = vmatpush1.msra.mxu0 0.0
      %3379 = vmatprep.subr.mxu0 0.0
      %3380 = vmatpush1.msra.mxu0 0.0
      %3381 = vmatprep.subr.mxu0 0.0
      %3382 = vmatpush1.msra.mxu0 0.0
      %3383 = vmatprep.subr.mxu0 0.0
      %3384 = vmatpush1.msra.mxu0 0.0
      %3385 = vmatprep.subr.mxu0 0.0
      %3386 = vmatpush1.msra.mxu0 0.0
      %3387 = vmatprep.subr.mxu0 0.0
      %3388 = vmatpush1.msra.mxu0 0.0
      %3389 = vmatprep.subr.mxu0 0.0
      %3390 = vmatpush1.msra.mxu0 0.0
      %3391 = vmatprep.subr.mxu0 0.0
      %3392 = vmatpush1.msra.mxu0 %v3369
      %3393 = vmatprep.subr.mxu0 0.0
      %3394 = vmatpush1.msra.mxu0 %v3139
      %3395 = vmatprep.subr.mxu0 0.0
      %3396 = vmatpush1.msra.mxu0 %v3134
      %3397 = vmatprep.subr.mxu0 0.0
      %3398 = vmatpush1.msra.mxu0 %v3129
      %3399 = vmatprep.subr.mxu0 0.0
      %3400 = vmatpush1.msra.mxu0 %v3124
      %3401 = vmatprep.subr.mxu0 0.0
      %3402 = vmatpush1.msra.mxu0 %v3119
      %3403 = vmatprep.subr.mxu0 0.0
      %3404 = vmatpush2.msra.mxu0 0.0
      %3405 = vmatprep.subr.mxu0 0.0
      %3406 = vmatpush2.msra.mxu0 0.0
      %3407 = vmatprep.subr.mxu0 0.0
      %3408 = vmatpush2.msra.mxu0 0.0
      %3409 = vmatprep.subr.mxu0 0.0
      %3410 = vmatpush2.msra.mxu0 0.0
      %3411 = vmatprep.subr.mxu0 0.0
      %3412 = vmatpush2.msra.mxu0 0.0
      %3413 = vmatprep.subr.mxu0 0.0
      %3414 = vmatpush2.msra.mxu0 0.0
      %3415 = vmatprep.subr.mxu0 0.0
      %3416 = vmatpush2.msra.mxu0 0.0
      %3417 = vmatprep.subr.mxu0 0.0
      %3418 = vmatpush2.msra.mxu0 0.0
      %3419 = vmatprep.subr.mxu0 0.0
      %3420 = vmatpush2.msra.mxu0 0.0
      %3421 = vmatprep.subr.mxu0 0.0
      %3422 = vmatpush2.msra.mxu0 0.0
      %3423 = vmatprep.subr.mxu0 0.0
      %3424 = vmatpush2.msra.mxu0 0.0
      %3425 = vmatprep.subr.mxu0 0.0
      %3426 = vmatpush2.msra.mxu0 0.0
      %3427 = vmatprep.subr.mxu0 0.0
      %3428 = vmatpush2.msra.mxu0 0.0
      %3429 = vmatprep.subr.mxu0 0.0
      %3430 = vmatpush2.msra.mxu0 0.0
      %3431 = vmatprep.subr.mxu0 0.0
      %3432 = vmatpush2.msra.mxu0 0.0
      %3433 = vmatprep.subr.mxu0 0.0
      %3434 = vmatpush2.msra.mxu0 0.0
      %3435 = vmatprep.mubr.f32.mxu0 0.0
      %3436 = vmatmul.mubr.f32.gmra.mxu0 %v3351
      %v3437 = vpop.f32.mrf.mxu0
      %v3438 = vadd.f32 0.0, %v3437
      %v3439 = vpop.f32.mrf.mxu0
      %3440 = vmatprep.mubr.f32.mxu0 0.0
      %3441 = vmatmul.mubr.f32.gmra.mxu0 %v3354
      %v3442 = vpop.f32.mrf.mxu0
      %v3443 = vadd.f32 0.0, %v3442
      %v3444 = vpop.f32.mrf.mxu0
      %3445 = vmatprep.mubr.f32.mxu0 0.0
      %3446 = vmatmul.mubr.f32.gmra.mxu0 %v3357
      %v3447 = vpop.f32.mrf.mxu0
      %v3448 = vadd.f32 0.0, %v3447
      %v3449 = vpop.f32.mrf.mxu0
      %3450 = vmatprep.mubr.f32.mxu0 0.0
      %3451 = vmatmul.mubr.f32.gmra.mxu0 %v3360
      %v3452 = vpop.f32.mrf.mxu0
      %v3453 = vadd.f32 0.0, %v3452
      %v3454 = vpop.f32.mrf.mxu0
      %3455 = vmatprep.mubr.f32.mxu0 0.0
      %3456 = vmatmul.mubr.f32.gmra.mxu0 %v3363
      %v3457 = vpop.f32.mrf.mxu0
      %v3458 = vadd.f32 0.0, %v3457
      %v3459 = vpop.f32.mrf.mxu0
      %3460 = vmatprep.mubr.f32.mxu0 0.0
      %3461 = vmatmul.mubr.f32.gmra.mxu0 %v3366
      %v3462 = vpop.f32.mrf.mxu0
      %v3463 = vadd.f32 0.0, %v3462
      %v3464 = vpop.f32.mrf.mxu0
      %3465 = vdwg.mxu0
      %s3466 = scalar_lea.vmem %s29, 16
      %v3467 = vld [vmem:[%s3466] sm:$0xff]
      %v3469 = vsel %vm1622, %v3438, 0
      %v3472 = vsel %vm1622, %v3443, 0
      %v3475 = vsel %vm1622, %v3448, 0
      %v3478 = vsel %vm1622, %v3453, 0
      %v3481 = vsel %vm1622, %v3458, 0
      %v3484 = vsel %vm1622, %v3463, 0
      %3486 = vmatprep.subr.mxu0 0.0
      %3487 = vmatpush1.msra.mxu0 0.0
      %3488 = vmatprep.subr.mxu0 0.0
      %3489 = vmatpush1.msra.mxu0 0.0
      %3490 = vmatprep.subr.mxu0 0.0
      %3491 = vmatpush1.msra.mxu0 0.0
      %3492 = vmatprep.subr.mxu0 0.0
      %3493 = vmatpush1.msra.mxu0 0.0
      %3494 = vmatprep.subr.mxu0 0.0
      %3495 = vmatpush1.msra.mxu0 0.0
      %3496 = vmatprep.subr.mxu0 0.0
      %3497 = vmatpush1.msra.mxu0 0.0
      %3498 = vmatprep.subr.mxu0 0.0
      %3499 = vmatpush1.msra.mxu0 0.0
      %3500 = vmatprep.subr.mxu0 0.0
      %3501 = vmatpush1.msra.mxu0 0.0
      %3502 = vmatprep.subr.mxu0 0.0
      %3503 = vmatpush1.msra.mxu0 0.0
      %3504 = vmatprep.subr.mxu0 0.0
      %3505 = vmatpush1.msra.mxu0 0.0
      %3506 = vmatprep.subr.mxu0 0.0
      %3507 = vmatpush1.msra.mxu0 0.0
      %3508 = vmatprep.subr.mxu0 0.0
      %3509 = vmatpush1.msra.mxu0 0.0
      %3510 = vmatprep.subr.mxu0 0.0
      %3511 = vmatpush1.msra.mxu0 0.0
      %3512 = vmatprep.subr.mxu0 0.0
      %3513 = vmatpush1.msra.mxu0 0.0
      %3514 = vmatprep.subr.mxu0 0.0
      %3515 = vmatpush1.msra.mxu0 0.0
      %3516 = vmatprep.subr.mxu0 0.0
      %3517 = vmatpush1.msra.mxu0 %v3467
      %3518 = vmatprep.subr.mxu0 0.0
      %3519 = vmatpush2.msra.mxu0 0.0
      %3520 = vmatprep.subr.mxu0 0.0
      %3521 = vmatpush2.msra.mxu0 0.0
      %3522 = vmatprep.subr.mxu0 0.0
      %3523 = vmatpush2.msra.mxu0 0.0
      %3524 = vmatprep.subr.mxu0 0.0
      %3525 = vmatpush2.msra.mxu0 0.0
      %3526 = vmatprep.subr.mxu0 0.0
      %3527 = vmatpush2.msra.mxu0 0.0
      %3528 = vmatprep.subr.mxu0 0.0
      %3529 = vmatpush2.msra.mxu0 0.0
      %3530 = vmatprep.subr.mxu0 0.0
      %3531 = vmatpush2.msra.mxu0 0.0
      %3532 = vmatprep.subr.mxu0 0.0
      %3533 = vmatpush2.msra.mxu0 0.0
      %3534 = vmatprep.subr.mxu0 0.0
      %3535 = vmatpush2.msra.mxu0 0.0
      %3536 = vmatprep.subr.mxu0 0.0
      %3537 = vmatpush2.msra.mxu0 0.0
      %3538 = vmatprep.subr.mxu0 0.0
      %3539 = vmatpush2.msra.mxu0 0.0
      %3540 = vmatprep.subr.mxu0 0.0
      %3541 = vmatpush2.msra.mxu0 0.0
      %3542 = vmatprep.subr.mxu0 0.0
      %3543 = vmatpush2.msra.mxu0 0.0
      %3544 = vmatprep.subr.mxu0 0.0
      %3545 = vmatpush2.msra.mxu0 0.0
      %3546 = vmatprep.subr.mxu0 0.0
      %3547 = vmatpush2.msra.mxu0 0.0
      %3548 = vmatprep.subr.mxu0 0.0
      %3549 = vmatpush2.msra.mxu0 0.0
      %3550 = vmatprep.mubr.f32.mxu0 0.0
      %3551 = vmatmul.mubr.f32.gmra.mxu0 %v3469
      %v3552 = vpop.f32.mrf.mxu0
      %v3553 = vadd.f32 0.0, %v3552
      %v3554 = vpop.f32.mrf.mxu0
      %3555 = vmatprep.mubr.f32.mxu0 0.0
      %3556 = vmatmul.mubr.f32.gmra.mxu0 %v3472
      %v3557 = vpop.f32.mrf.mxu0
      %v3558 = vadd.f32 0.0, %v3557
      %v3559 = vpop.f32.mrf.mxu0
      %3560 = vmatprep.mubr.f32.mxu0 0.0
      %3561 = vmatmul.mubr.f32.gmra.mxu0 %v3475
      %v3562 = vpop.f32.mrf.mxu0
      %v3563 = vadd.f32 0.0, %v3562
      %v3564 = vpop.f32.mrf.mxu0
      %3565 = vmatprep.mubr.f32.mxu0 0.0
      %3566 = vmatmul.mubr.f32.gmra.mxu0 %v3478
      %v3567 = vpop.f32.mrf.mxu0
      %v3568 = vadd.f32 0.0, %v3567
      %v3569 = vpop.f32.mrf.mxu0
      %3570 = vmatprep.mubr.f32.mxu0 0.0
      %3571 = vmatmul.mubr.f32.gmra.mxu0 %v3481
      %v3572 = vpop.f32.mrf.mxu0
      %v3573 = vadd.f32 0.0, %v3572
      %v3574 = vpop.f32.mrf.mxu0
      %3575 = vmatprep.mubr.f32.mxu0 0.0
      %3576 = vmatmul.mubr.f32.gmra.mxu0 %v3484
      %v3577 = vpop.f32.mrf.mxu0
      %v3578 = vadd.f32 0.0, %v3577
      %v3579 = vpop.f32.mrf.mxu0
      %3580 = vdwg.mxu0
      %v3581 = vadd.f32 %v2817, %v3553
      %v3582 = vadd.f32 %v2818, %v3558
      %v3583 = vadd.f32 %v2819, %v3563
      %v3584 = vadd.f32 %v2820, %v3568
      %v3585 = vadd.f32 %v2821, %v3573
      %v3586 = vadd.f32 %v2822, %v3578
      %s3587 = scalar_lea.vmem %s17, 96
      %v3588 = vld [vmem:[%s3587] sm:$0xff]
      %v3589 = vld [vmem:[%s3587 + $0x8] sm:$0xff]
      %v3590 = vld [vmem:[%s3587 + $0x10] sm:$0xff]
      %v3591 = vld [vmem:[%s3587 + $0x18] sm:$0xff]
      %s3592 = scalar_lea.vmem %s23, 3
      %v3593 = vld [vmem:[%s3592] sm:$0x1]
      %v3595 = vlaneseq
      %v3596 = vshrl.u32 %v3595, 7
      %v3597 = vsub.s32 0, %v3596
      %v3598 = vrot.slane %v3593, %v3597
      %3600 = vmatprep.subr.mxu0 0.0
      %3601 = vmatpush1.msra.mxu0 0.0
      %3602 = vmatprep.subr.mxu0 0.0
      %3603 = vmatpush1.msra.mxu0 0.0
      %3604 = vmatprep.subr.mxu0 0.0
      %3605 = vmatpush1.msra.mxu0 0.0
      %3606 = vmatprep.subr.mxu0 0.0
      %3607 = vmatpush1.msra.mxu0 0.0
      %3608 = vmatprep.subr.mxu0 0.0
      %3609 = vmatpush1.msra.mxu0 0.0
      %3610 = vmatprep.subr.mxu0 0.0
      %3611 = vmatpush1.msra.mxu0 0.0
      %3612 = vmatprep.subr.mxu0 0.0
      %3613 = vmatpush1.msra.mxu0 0.0
      %3614 = vmatprep.subr.mxu0 0.0
      %3615 = vmatpush1.msra.mxu0 0.0
      %3616 = vmatprep.subr.mxu0 0.0
      %3617 = vmatpush1.msra.mxu0 0.0
      %3618 = vmatprep.subr.mxu0 0.0
      %3619 = vmatpush1.msra.mxu0 0.0
      %3620 = vmatprep.subr.mxu0 0.0
      %3621 = vmatpush1.msra.mxu0 0.0
      %3622 = vmatprep.subr.mxu0 0.0
      %3623 = vmatpush1.msra.mxu0 0.0
      %3624 = vmatprep.subr.mxu0 0.0
      %3625 = vmatpush1.msra.mxu0 %v3591
      %3626 = vmatprep.subr.mxu0 0.0
      %3627 = vmatpush1.msra.mxu0 %v3590
      %3628 = vmatprep.subr.mxu0 0.0
      %3629 = vmatpush1.msra.mxu0 %v3589
      %3630 = vmatprep.subr.mxu0 0.0
      %3631 = vmatpush1.msra.mxu0 %v3588
      %3632 = vmatprep.subr.mxu0 0.0
      %3633 = vmatpush2.msra.mxu0 0.0
      %3634 = vmatprep.subr.mxu0 0.0
      %3635 = vmatpush2.msra.mxu0 0.0
      %3636 = vmatprep.subr.mxu0 0.0
      %3637 = vmatpush2.msra.mxu0 0.0
      %3638 = vmatprep.subr.mxu0 0.0
      %3639 = vmatpush2.msra.mxu0 0.0
      %3640 = vmatprep.subr.mxu0 0.0
      %3641 = vmatpush2.msra.mxu0 0.0
      %3642 = vmatprep.subr.mxu0 0.0
      %3643 = vmatpush2.msra.mxu0 0.0
      %3644 = vmatprep.subr.mxu0 0.0
      %3645 = vmatpush2.msra.mxu0 0.0
      %3646 = vmatprep.subr.mxu0 0.0
      %3647 = vmatpush2.msra.mxu0 0.0
      %3648 = vmatprep.subr.mxu0 0.0
      %3649 = vmatpush2.msra.mxu0 0.0
      %3650 = vmatprep.subr.mxu0 0.0
      %3651 = vmatpush2.msra.mxu0 0.0
      %3652 = vmatprep.subr.mxu0 0.0
      %3653 = vmatpush2.msra.mxu0 0.0
      %3654 = vmatprep.subr.mxu0 0.0
      %3655 = vmatpush2.msra.mxu0 0.0
      %3656 = vmatprep.subr.mxu0 0.0
      %3657 = vmatpush2.msra.mxu0 0.0
      %3658 = vmatprep.subr.mxu0 0.0
      %3659 = vmatpush2.msra.mxu0 0.0
      %3660 = vmatprep.subr.mxu0 0.0
      %3661 = vmatpush2.msra.mxu0 0.0
      %3662 = vmatprep.subr.mxu0 0.0
      %3663 = vmatpush2.msra.mxu0 0.0
      %3664 = vmatprep.mubr.f32.mxu0 0.0
      %3665 = vmatmul.mubr.f32.gmra.mxu0 %v1292
      %v3666 = vpop.f32.mrf.mxu0
      %v3667 = vadd.f32 %v3598, %v3666
      %v3668 = vpop.f32.mrf.mxu0
      %3669 = vmatprep.mubr.f32.mxu0 0.0
      %3670 = vmatmul.mubr.f32.gmra.mxu0 %v1295
      %v3671 = vpop.f32.mrf.mxu0
      %v3672 = vadd.f32 %v3598, %v3671
      %v3673 = vpop.f32.mrf.mxu0
      %3674 = vmatprep.mubr.f32.mxu0 0.0
      %3675 = vmatmul.mubr.f32.gmra.mxu0 %v1298
      %v3676 = vpop.f32.mrf.mxu0
      %v3677 = vadd.f32 %v3598, %v3676
      %v3678 = vpop.f32.mrf.mxu0
      %3679 = vmatprep.mubr.f32.mxu0 0.0
      %3680 = vmatmul.mubr.f32.gmra.mxu0 %v1301
      %v3681 = vpop.f32.mrf.mxu0
      %v3682 = vadd.f32 %v3598, %v3681
      %v3683 = vpop.f32.mrf.mxu0
      %3684 = vmatprep.mubr.f32.mxu0 0.0
      %3685 = vmatmul.mubr.f32.gmra.mxu0 %v1304
      %v3686 = vpop.f32.mrf.mxu0
      %v3687 = vadd.f32 %v3598, %v3686
      %v3688 = vpop.f32.mrf.mxu0
      %3689 = vmatprep.mubr.f32.mxu0 0.0
      %3690 = vmatmul.mubr.f32.gmra.mxu0 %v1307
      %v3691 = vpop.f32.mrf.mxu0
      %v3692 = vadd.f32 %v3598, %v3691
      %v3693 = vpop.f32.mrf.mxu0
      %3694 = vdwg.mxu0
      %s3695 = scalar_lea.vmem %s19, 96
      %v3696 = vld [vmem:[%s3695] sm:$0xff]
      %v3697 = vld [vmem:[%s3695 + $0x8] sm:$0xff]
      %v3698 = vld [vmem:[%s3695 + $0x10] sm:$0xff]
      %v3699 = vld [vmem:[%s3695 + $0x18] sm:$0xff]
      %s3700 = scalar_lea.vmem %s25, 3
      %v3701 = vld [vmem:[%s3700] sm:$0x1]
      %v3703 = vlaneseq
      %v3704 = vshrl.u32 %v3703, 7
      %v3705 = vsub.s32 0, %v3704
      %v3706 = vrot.slane %v3701, %v3705
      %3708 = vmatprep.subr.mxu0 0.0
      %3709 = vmatpush1.msra.mxu0 0.0
      %3710 = vmatprep.subr.mxu0 0.0
      %3711 = vmatpush1.msra.mxu0 0.0
      %3712 = vmatprep.subr.mxu0 0.0
      %3713 = vmatpush1.msra.mxu0 0.0
      %3714 = vmatprep.subr.mxu0 0.0
      %3715 = vmatpush1.msra.mxu0 0.0
      %3716 = vmatprep.subr.mxu0 0.0
      %3717 = vmatpush1.msra.mxu0 0.0
      %3718 = vmatprep.subr.mxu0 0.0
      %3719 = vmatpush1.msra.mxu0 0.0
      %3720 = vmatprep.subr.mxu0 0.0
      %3721 = vmatpush1.msra.mxu0 0.0
      %3722 = vmatprep.subr.mxu0 0.0
      %3723 = vmatpush1.msra.mxu0 0.0
      %3724 = vmatprep.subr.mxu0 0.0
      %3725 = vmatpush1.msra.mxu0 0.0
      %3726 = vmatprep.subr.mxu0 0.0
      %3727 = vmatpush1.msra.mxu0 0.0
      %3728 = vmatprep.subr.mxu0 0.0
      %3729 = vmatpush1.msra.mxu0 0.0
      %3730 = vmatprep.subr.mxu0 0.0
      %3731 = vmatpush1.msra.mxu0 0.0
      %3732 = vmatprep.subr.mxu0 0.0
      %3733 = vmatpush1.msra.mxu0 %v3699
      %3734 = vmatprep.subr.mxu0 0.0
      %3735 = vmatpush1.msra.mxu0 %v3698
      %3736 = vmatprep.subr.mxu0 0.0
      %3737 = vmatpush1.msra.mxu0 %v3697
      %3738 = vmatprep.subr.mxu0 0.0
      %3739 = vmatpush1.msra.mxu0 %v3696
      %3740 = vmatprep.subr.mxu0 0.0
      %3741 = vmatpush2.msra.mxu0 0.0
      %3742 = vmatprep.subr.mxu0 0.0
      %3743 = vmatpush2.msra.mxu0 0.0
      %3744 = vmatprep.subr.mxu0 0.0
      %3745 = vmatpush2.msra.mxu0 0.0
      %3746 = vmatprep.subr.mxu0 0.0
      %3747 = vmatpush2.msra.mxu0 0.0
      %3748 = vmatprep.subr.mxu0 0.0
      %3749 = vmatpush2.msra.mxu0 0.0
      %3750 = vmatprep.subr.mxu0 0.0
      %3751 = vmatpush2.msra.mxu0 0.0
      %3752 = vmatprep.subr.mxu0 0.0
      %3753 = vmatpush2.msra.mxu0 0.0
      %3754 = vmatprep.subr.mxu0 0.0
      %3755 = vmatpush2.msra.mxu0 0.0
      %3756 = vmatprep.subr.mxu0 0.0
      %3757 = vmatpush2.msra.mxu0 0.0
      %3758 = vmatprep.subr.mxu0 0.0
      %3759 = vmatpush2.msra.mxu0 0.0
      %3760 = vmatprep.subr.mxu0 0.0
      %3761 = vmatpush2.msra.mxu0 0.0
      %3762 = vmatprep.subr.mxu0 0.0
      %3763 = vmatpush2.msra.mxu0 0.0
      %3764 = vmatprep.subr.mxu0 0.0
      %3765 = vmatpush2.msra.mxu0 0.0
      %3766 = vmatprep.subr.mxu0 0.0
      %3767 = vmatpush2.msra.mxu0 0.0
      %3768 = vmatprep.subr.mxu0 0.0
      %3769 = vmatpush2.msra.mxu0 0.0
      %3770 = vmatprep.subr.mxu0 0.0
      %3771 = vmatpush2.msra.mxu0 0.0
      %3772 = vmatprep.mubr.f32.mxu0 0.0
      %3773 = vmatmul.mubr.f32.gmra.mxu0 %v1292
      %v3774 = vpop.f32.mrf.mxu0
      %v3775 = vadd.f32 %v3706, %v3774
      %v3776 = vpop.f32.mrf.mxu0
      %3777 = vmatprep.mubr.f32.mxu0 0.0
      %3778 = vmatmul.mubr.f32.gmra.mxu0 %v1295
      %v3779 = vpop.f32.mrf.mxu0
      %v3780 = vadd.f32 %v3706, %v3779
      %v3781 = vpop.f32.mrf.mxu0
      %3782 = vmatprep.mubr.f32.mxu0 0.0
      %3783 = vmatmul.mubr.f32.gmra.mxu0 %v1298
      %v3784 = vpop.f32.mrf.mxu0
      %v3785 = vadd.f32 %v3706, %v3784
      %v3786 = vpop.f32.mrf.mxu0
      %3787 = vmatprep.mubr.f32.mxu0 0.0
      %3788 = vmatmul.mubr.f32.gmra.mxu0 %v1301
      %v3789 = vpop.f32.mrf.mxu0
      %v3790 = vadd.f32 %v3706, %v3789
      %v3791 = vpop.f32.mrf.mxu0
      %3792 = vmatprep.mubr.f32.mxu0 0.0
      %3793 = vmatmul.mubr.f32.gmra.mxu0 %v1304
      %v3794 = vpop.f32.mrf.mxu0
      %v3795 = vadd.f32 %v3706, %v3794
      %v3796 = vpop.f32.mrf.mxu0
      %3797 = vmatprep.mubr.f32.mxu0 0.0
      %3798 = vmatmul.mubr.f32.gmra.mxu0 %v1307
      %v3799 = vpop.f32.mrf.mxu0
      %v3800 = vadd.f32 %v3706, %v3799
      %v3801 = vpop.f32.mrf.mxu0
      %3802 = vdwg.mxu0
      %s3803 = scalar_lea.vmem %s21, 96
      %v3804 = vld [vmem:[%s3803] sm:$0xff]
      %v3805 = vld [vmem:[%s3803 + $0x8] sm:$0xff]
      %v3806 = vld [vmem:[%s3803 + $0x10] sm:$0xff]
      %v3807 = vld [vmem:[%s3803 + $0x18] sm:$0xff]
      %s3808 = scalar_lea.vmem %s27, 3
      %v3809 = vld [vmem:[%s3808] sm:$0x1]
      %v3811 = vlaneseq
      %v3812 = vshrl.u32 %v3811, 7
      %v3813 = vsub.s32 0, %v3812
      %v3814 = vrot.slane %v3809, %v3813
      %3816 = vmatprep.subr.mxu0 0.0
      %3817 = vmatpush1.msra.mxu0 0.0
      %3818 = vmatprep.subr.mxu0 0.0
      %3819 = vmatpush1.msra.mxu0 0.0
      %3820 = vmatprep.subr.mxu0 0.0
      %3821 = vmatpush1.msra.mxu0 0.0
      %3822 = vmatprep.subr.mxu0 0.0
      %3823 = vmatpush1.msra.mxu0 0.0
      %3824 = vmatprep.subr.mxu0 0.0
      %3825 = vmatpush1.msra.mxu0 0.0
      %3826 = vmatprep.subr.mxu0 0.0
      %3827 = vmatpush1.msra.mxu0 0.0
      %3828 = vmatprep.subr.mxu0 0.0
      %3829 = vmatpush1.msra.mxu0 0.0
      %3830 = vmatprep.subr.mxu0 0.0
      %3831 = vmatpush1.msra.mxu0 0.0
      %3832 = vmatprep.subr.mxu0 0.0
      %3833 = vmatpush1.msra.mxu0 0.0
      %3834 = vmatprep.subr.mxu0 0.0
      %3835 = vmatpush1.msra.mxu0 0.0
      %3836 = vmatprep.subr.mxu0 0.0
      %3837 = vmatpush1.msra.mxu0 0.0
      %3838 = vmatprep.subr.mxu0 0.0
      %3839 = vmatpush1.msra.mxu0 0.0
      %3840 = vmatprep.subr.mxu0 0.0
      %3841 = vmatpush1.msra.mxu0 %v3807
      %3842 = vmatprep.subr.mxu0 0.0
      %3843 = vmatpush1.msra.mxu0 %v3806
      %3844 = vmatprep.subr.mxu0 0.0
      %3845 = vmatpush1.msra.mxu0 %v3805
      %3846 = vmatprep.subr.mxu0 0.0
      %3847 = vmatpush1.msra.mxu0 %v3804
      %3848 = vmatprep.subr.mxu0 0.0
      %3849 = vmatpush2.msra.mxu0 0.0
      %3850 = vmatprep.subr.mxu0 0.0
      %3851 = vmatpush2.msra.mxu0 0.0
      %3852 = vmatprep.subr.mxu0 0.0
      %3853 = vmatpush2.msra.mxu0 0.0
      %3854 = vmatprep.subr.mxu0 0.0
      %3855 = vmatpush2.msra.mxu0 0.0
      %3856 = vmatprep.subr.mxu0 0.0
      %3857 = vmatpush2.msra.mxu0 0.0
      %3858 = vmatprep.subr.mxu0 0.0
      %3859 = vmatpush2.msra.mxu0 0.0
      %3860 = vmatprep.subr.mxu0 0.0
      %3861 = vmatpush2.msra.mxu0 0.0
      %3862 = vmatprep.subr.mxu0 0.0
      %3863 = vmatpush2.msra.mxu0 0.0
      %3864 = vmatprep.subr.mxu0 0.0
      %3865 = vmatpush2.msra.mxu0 0.0
      %3866 = vmatprep.subr.mxu0 0.0
      %3867 = vmatpush2.msra.mxu0 0.0
      %3868 = vmatprep.subr.mxu0 0.0
      %3869 = vmatpush2.msra.mxu0 0.0
      %3870 = vmatprep.subr.mxu0 0.0
      %3871 = vmatpush2.msra.mxu0 0.0
      %3872 = vmatprep.subr.mxu0 0.0
      %3873 = vmatpush2.msra.mxu0 0.0
      %3874 = vmatprep.subr.mxu0 0.0
      %3875 = vmatpush2.msra.mxu0 0.0
      %3876 = vmatprep.subr.mxu0 0.0
      %3877 = vmatpush2.msra.mxu0 0.0
      %3878 = vmatprep.subr.mxu0 0.0
      %3879 = vmatpush2.msra.mxu0 0.0
      %3880 = vmatprep.mubr.f32.mxu0 0.0
      %3881 = vmatmul.mubr.f32.gmra.mxu0 %v1292
      %v3882 = vpop.f32.mrf.mxu0
      %v3883 = vadd.f32 %v3814, %v3882
      %v3884 = vpop.f32.mrf.mxu0
      %3885 = vmatprep.mubr.f32.mxu0 0.0
      %3886 = vmatmul.mubr.f32.gmra.mxu0 %v1295
      %v3887 = vpop.f32.mrf.mxu0
      %v3888 = vadd.f32 %v3814, %v3887
      %v3889 = vpop.f32.mrf.mxu0
      %3890 = vmatprep.mubr.f32.mxu0 0.0
      %3891 = vmatmul.mubr.f32.gmra.mxu0 %v1298
      %v3892 = vpop.f32.mrf.mxu0
      %v3893 = vadd.f32 %v3814, %v3892
      %v3894 = vpop.f32.mrf.mxu0
      %3895 = vmatprep.mubr.f32.mxu0 0.0
      %3896 = vmatmul.mubr.f32.gmra.mxu0 %v1301
      %v3897 = vpop.f32.mrf.mxu0
      %v3898 = vadd.f32 %v3814, %v3897
      %v3899 = vpop.f32.mrf.mxu0
      %3900 = vmatprep.mubr.f32.mxu0 0.0
      %3901 = vmatmul.mubr.f32.gmra.mxu0 %v1304
      %v3902 = vpop.f32.mrf.mxu0
      %v3903 = vadd.f32 %v3814, %v3902
      %v3904 = vpop.f32.mrf.mxu0
      %3905 = vmatprep.mubr.f32.mxu0 0.0
      %3906 = vmatmul.mubr.f32.gmra.mxu0 %v1307
      %v3907 = vpop.f32.mrf.mxu0
      %v3908 = vadd.f32 %v3814, %v3907
      %v3909 = vpop.f32.mrf.mxu0
      %3910 = vdwg.mxu0
      %v3911 = vmul.f32 %v3667, 0.35355338
      %v3912 = vmul.f32 %v3672, 0.35355338
      %v3913 = vmul.f32 %v3677, 0.35355338
      %v3914 = vmul.f32 %v3682, 0.35355338
      %v3915 = vmul.f32 %v3687, 0.35355338
      %v3916 = vmul.f32 %v3692, 0.35355338
      %v3918 = vsel %vm1622, %v3911, 0
      %v3921 = vsel %vm1622, %v3912, 0
      %v3924 = vsel %vm1622, %v3913, 0
      %v3927 = vsel %vm1622, %v3914, 0
      %v3930 = vsel %vm1622, %v3915, 0
      %v3933 = vsel %vm1622, %v3916, 0
      %v3936 = vsel %vm1622, %v3775, 0
      %v3939 = vsel %vm1622, %v3780, 0
      %v3942 = vsel %vm1622, %v3785, 0
      %v3945 = vsel %vm1622, %v3790, 0
      %v3948 = vsel %vm1622, %v3795, 0
      %v3951 = vsel %vm1622, %v3800, 0
      %3953 = vmatprep.subr.mxu0 0.0
      %3954 = vmatpush1.xpose.msra.mxu0 0.0
      %3955 = vmatprep.subr.mxu0 0.0
      %3956 = vmatpush1.xpose.msra.mxu0 0.0
      %3957 = vmatprep.subr.mxu0 0.0
      %3958 = vmatpush1.xpose.msra.mxu0 0.0
      %3959 = vmatprep.subr.mxu0 0.0
      %3960 = vmatpush1.xpose.msra.mxu0 0.0
      %3961 = vmatprep.subr.mxu0 0.0
      %3962 = vmatpush1.xpose.msra.mxu0 0.0
      %3963 = vmatprep.subr.mxu0 0.0
      %3964 = vmatpush1.xpose.msra.mxu0 0.0
      %3965 = vmatprep.subr.mxu0 0.0
      %3966 = vmatpush1.xpose.msra.mxu0 0.0
      %3967 = vmatprep.subr.mxu0 0.0
      %3968 = vmatpush1.xpose.msra.mxu0 0.0
      %3969 = vmatprep.subr.mxu0 0.0
      %3970 = vmatpush1.xpose.msra.mxu0 0.0
      %3971 = vmatprep.subr.mxu0 0.0
      %3972 = vmatpush1.xpose.msra.mxu0 0.0
      %3973 = vmatprep.subr.mxu0 0.0
      %3974 = vmatpush1.xpose.msra.mxu0 %v3951
      %3975 = vmatprep.subr.mxu0 0.0
      %3976 = vmatpush1.xpose.msra.mxu0 %v3948
      %3977 = vmatprep.subr.mxu0 0.0
      %3978 = vmatpush1.xpose.msra.mxu0 %v3945
      %3979 = vmatprep.subr.mxu0 0.0
      %3980 = vmatpush1.xpose.msra.mxu0 %v3942
      %3981 = vmatprep.subr.mxu0 0.0
      %3982 = vmatpush1.xpose.msra.mxu0 %v3939
      %3983 = vmatprep.subr.mxu0 0.0
      %3984 = vmatpush1.xpose.msra.mxu0 %v3936
      %3985 = vmatprep.subr.mxu0 0.0
      %3986 = vmatpush2.xpose.msra.mxu0 0.0
      %3987 = vmatprep.subr.mxu0 0.0
      %3988 = vmatpush2.xpose.msra.mxu0 0.0
      %3989 = vmatprep.subr.mxu0 0.0
      %3990 = vmatpush2.xpose.msra.mxu0 0.0
      %3991 = vmatprep.subr.mxu0 0.0
      %3992 = vmatpush2.xpose.msra.mxu0 0.0
      %3993 = vmatprep.subr.mxu0 0.0
      %3994 = vmatpush2.xpose.msra.mxu0 0.0
      %3995 = vmatprep.subr.mxu0 0.0
      %3996 = vmatpush2.xpose.msra.mxu0 0.0
      %3997 = vmatprep.subr.mxu0 0.0
      %3998 = vmatpush2.xpose.msra.mxu0 0.0
      %3999 = vmatprep.subr.mxu0 0.0
      %4000 = vmatpush2.xpose.msra.mxu0 0.0
      %4001 = vmatprep.subr.mxu0 0.0
      %4002 = vmatpush2.xpose.msra.mxu0 0.0
      %4003 = vmatprep.subr.mxu0 0.0
      %4004 = vmatpush2.xpose.msra.mxu0 0.0
      %4005 = vmatprep.subr.mxu0 0.0
      %4006 = vmatpush2.xpose.msra.mxu0 0.0
      %4007 = vmatprep.subr.mxu0 0.0
      %4008 = vmatpush2.xpose.msra.mxu0 0.0
      %4009 = vmatprep.subr.mxu0 0.0
      %4010 = vmatpush2.xpose.msra.mxu0 0.0
      %4011 = vmatprep.subr.mxu0 0.0
      %4012 = vmatpush2.xpose.msra.mxu0 0.0
      %4013 = vmatprep.subr.mxu0 0.0
      %4014 = vmatpush2.xpose.msra.mxu0 0.0
      %4015 = vmatprep.subr.mxu0 0.0
      %4016 = vmatpush2.xpose.msra.mxu0 0.0
      %4017 = vmatprep.mubr.f32.mxu0 0.0
      %4018 = vmatmul.mubr.f32.gmra.mxu0 %v3918
      %v4019 = vpop.f32.mrf.mxu0
      %v4020 = vadd.f32 0.0, %v4019
      %v4021 = vpop.f32.mrf.mxu0
      %4022 = vmatprep.mubr.f32.mxu0 0.0
      %4023 = vmatmul.mubr.f32.gmra.mxu0 %v3921
      %v4024 = vpop.f32.mrf.mxu0
      %v4025 = vadd.f32 0.0, %v4024
      %v4026 = vpop.f32.mrf.mxu0
      %4027 = vmatprep.mubr.f32.mxu0 0.0
      %4028 = vmatmul.mubr.f32.gmra.mxu0 %v3924
      %v4029 = vpop.f32.mrf.mxu0
      %v4030 = vadd.f32 0.0, %v4029
      %v4031 = vpop.f32.mrf.mxu0
      %4032 = vmatprep.mubr.f32.mxu0 0.0
      %4033 = vmatmul.mubr.f32.gmra.mxu0 %v3927
      %v4034 = vpop.f32.mrf.mxu0
      %v4035 = vadd.f32 0.0, %v4034
      %v4036 = vpop.f32.mrf.mxu0
      %4037 = vmatprep.mubr.f32.mxu0 0.0
      %4038 = vmatmul.mubr.f32.gmra.mxu0 %v3930
      %v4039 = vpop.f32.mrf.mxu0
      %v4040 = vadd.f32 0.0, %v4039
      %v4041 = vpop.f32.mrf.mxu0
      %4042 = vmatprep.mubr.f32.mxu0 0.0
      %4043 = vmatmul.mubr.f32.gmra.mxu0 %v3933
      %v4044 = vpop.f32.mrf.mxu0
      %v4045 = vadd.f32 0.0, %v4044
      %v4046 = vpop.f32.mrf.mxu0
      %4047 = vdwg.mxu0
      %v4048 = vsel %vm1754, %v4020, -inf
      %4049 = vmax.xlane.f32.xlu0 %v4048
      %v4050 = vpop.xlane.xlu0 %4049
      %v4051 = vsel %vm1754, %v4025, -inf
      %4052 = vmax.xlane.f32.xlu0 %v4051
      %v4053 = vpop.xlane.xlu0 %4052
      %v4054 = vsel %vm1754, %v4030, -inf
      %4055 = vmax.xlane.f32.xlu0 %v4054
      %v4056 = vpop.xlane.xlu0 %4055
      %v4057 = vsel %vm1754, %v4035, -inf
      %4058 = vmax.xlane.f32.xlu0 %v4057
      %v4059 = vpop.xlane.xlu0 %4058
      %v4060 = vsel %vm1754, %v4040, -inf
      %4061 = vmax.xlane.f32.xlu0 %v4060
      %v4062 = vpop.xlane.xlu0 %4061
      %v4063 = vsel %vm1770, %v4045, -inf
      %4064 = vmax.xlane.f32.xlu0 %v4063
      %v4065 = vpop.xlane.xlu0 %4064
      %v4066 = vsub.f32 %v4020, %v4050
      %v4067 = vsub.f32 %v4025, %v4053
      %v4068 = vsub.f32 %v4030, %v4056
      %v4069 = vsub.f32 %v4035, %v4059
      %v4070 = vsub.f32 %v4040, %v4062
      %v4071 = vsub.f32 %v4045, %v4065
      %v4072 = vmul.f32 %v4066, 1.442695
      %v4073 = vpow.pop %v4072
      %v4074 = vmul.f32 %v4067, 1.442695
      %v4075 = vpow.pop %v4074
      %v4076 = vmul.f32 %v4068, 1.442695
      %v4077 = vpow.pop %v4076
      %v4078 = vmul.f32 %v4069, 1.442695
      %v4079 = vpow.pop %v4078
      %v4080 = vmul.f32 %v4070, 1.442695
      %v4081 = vpow.pop %v4080
      %v4082 = vmul.f32 %v4071, 1.442695
      %v4083 = vpow.pop %v4082
      %v4084 = vsel %vm1754, %v4073, 0.0
      %4085 = vadd.xlane.f32.xlu0 %v4084
      %v4086 = vpop.xlane.xlu0 %4085
      %v4087 = vsel %vm1754, %v4075, 0.0
      %4088 = vadd.xlane.f32.xlu0 %v4087
      %v4089 = vpop.xlane.xlu0 %4088
      %v4090 = vsel %vm1754, %v4077, 0.0
      %4091 = vadd.xlane.f32.xlu0 %v4090
      %v4092 = vpop.xlane.xlu0 %4091
      %v4093 = vsel %vm1754, %v4079, 0.0
      %4094 = vadd.xlane.f32.xlu0 %v4093
      %v4095 = vpop.xlane.xlu0 %4094
      %v4096 = vsel %vm1754, %v4081, 0.0
      %4097 = vadd.xlane.f32.xlu0 %v4096
      %v4098 = vpop.xlane.xlu0 %4097
      %v4099 = vsel %vm1770, %v4083, 0.0
      %4100 = vadd.xlane.f32.xlu0 %v4099
      %v4101 = vpop.xlane.xlu0 %4100
      %v4102 = vrcp.pop %v4086
      %v4103 = vrcp.pop %v4089
      %v4104 = vrcp.pop %v4092
      %v4105 = vrcp.pop %v4095
      %v4106 = vrcp.pop %v4098
      %v4107 = vrcp.pop %v4101
      %v4108 = vmul.f32 %v4073, %v4102
      %v4109 = vmul.f32 %v4075, %v4103
      %v4110 = vmul.f32 %v4077, %v4104
      %v4111 = vmul.f32 %v4079, %v4105
      %v4112 = vmul.f32 %v4081, %v4106
      %v4113 = vmul.f32 %v4083, %v4107
      %v4115 = vsel %vm1754, %v4108, 0
      %v4118 = vsel %vm1754, %v4109, 0
      %v4121 = vsel %vm1754, %v4110, 0
      %v4124 = vsel %vm1754, %v4111, 0
      %v4127 = vsel %vm1754, %v4112, 0
      %v4130 = vsel %vm1754, %v4113, 0
      %v4133 = vsel %vm1840, %v3908, 0
      %4135 = vmatprep.subr.mxu0 0.0
      %4136 = vmatpush1.msra.mxu0 0.0
      %4137 = vmatprep.subr.mxu0 0.0
      %4138 = vmatpush1.msra.mxu0 0.0
      %4139 = vmatprep.subr.mxu0 0.0
      %4140 = vmatpush1.msra.mxu0 0.0
      %4141 = vmatprep.subr.mxu0 0.0
      %4142 = vmatpush1.msra.mxu0 0.0
      %4143 = vmatprep.subr.mxu0 0.0
      %4144 = vmatpush1.msra.mxu0 0.0
      %4145 = vmatprep.subr.mxu0 0.0
      %4146 = vmatpush1.msra.mxu0 0.0
      %4147 = vmatprep.subr.mxu0 0.0
      %4148 = vmatpush1.msra.mxu0 0.0
      %4149 = vmatprep.subr.mxu0 0.0
      %4150 = vmatpush1.msra.mxu0 0.0
      %4151 = vmatprep.subr.mxu0 0.0
      %4152 = vmatpush1.msra.mxu0 0.0
      %4153 = vmatprep.subr.mxu0 0.0
      %4154 = vmatpush1.msra.mxu0 0.0
      %4155 = vmatprep.subr.mxu0 0.0
      %4156 = vmatpush1.msra.mxu0 %v4133
      %4157 = vmatprep.subr.mxu0 0.0
      %4158 = vmatpush1.msra.mxu0 %v3903
      %4159 = vmatprep.subr.mxu0 0.0
      %4160 = vmatpush1.msra.mxu0 %v3898
      %4161 = vmatprep.subr.mxu0 0.0
      %4162 = vmatpush1.msra.mxu0 %v3893
      %4163 = vmatprep.subr.mxu0 0.0
      %4164 = vmatpush1.msra.mxu0 %v3888
      %4165 = vmatprep.subr.mxu0 0.0
      %4166 = vmatpush1.msra.mxu0 %v3883
      %4167 = vmatprep.subr.mxu0 0.0
      %4168 = vmatpush2.msra.mxu0 0.0
      %4169 = vmatprep.subr.mxu0 0.0
      %4170 = vmatpush2.msra.mxu0 0.0
      %4171 = vmatprep.subr.mxu0 0.0
      %4172 = vmatpush2.msra.mxu0 0.0
      %4173 = vmatprep.subr.mxu0 0.0
      %4174 = vmatpush2.msra.mxu0 0.0
      %4175 = vmatprep.subr.mxu0 0.0
      %4176 = vmatpush2.msra.mxu0 0.0
      %4177 = vmatprep.subr.mxu0 0.0
      %4178 = vmatpush2.msra.mxu0 0.0
      %4179 = vmatprep.subr.mxu0 0.0
      %4180 = vmatpush2.msra.mxu0 0.0
      %4181 = vmatprep.subr.mxu0 0.0
      %4182 = vmatpush2.msra.mxu0 0.0
      %4183 = vmatprep.subr.mxu0 0.0
      %4184 = vmatpush2.msra.mxu0 0.0
      %4185 = vmatprep.subr.mxu0 0.0
      %4186 = vmatpush2.msra.mxu0 0.0
      %4187 = vmatprep.subr.mxu0 0.0
      %4188 = vmatpush2.msra.mxu0 0.0
      %4189 = vmatprep.subr.mxu0 0.0
      %4190 = vmatpush2.msra.mxu0 0.0
      %4191 = vmatprep.subr.mxu0 0.0
      %4192 = vmatpush2.msra.mxu0 0.0
      %4193 = vmatprep.subr.mxu0 0.0
      %4194 = vmatpush2.msra.mxu0 0.0
      %4195 = vmatprep.subr.mxu0 0.0
      %4196 = vmatpush2.msra.mxu0 0.0
      %4197 = vmatprep.subr.mxu0 0.0
      %4198 = vmatpush2.msra.mxu0 0.0
      %4199 = vmatprep.mubr.f32.mxu0 0.0
      %4200 = vmatmul.mubr.f32.gmra.mxu0 %v4115
      %v4201 = vpop.f32.mrf.mxu0
      %v4202 = vadd.f32 0.0, %v4201
      %v4203 = vpop.f32.mrf.mxu0
      %4204 = vmatprep.mubr.f32.mxu0 0.0
      %4205 = vmatmul.mubr.f32.gmra.mxu0 %v4118
      %v4206 = vpop.f32.mrf.mxu0
      %v4207 = vadd.f32 0.0, %v4206
      %v4208 = vpop.f32.mrf.mxu0
      %4209 = vmatprep.mubr.f32.mxu0 0.0
      %4210 = vmatmul.mubr.f32.gmra.mxu0 %v4121
      %v4211 = vpop.f32.mrf.mxu0
      %v4212 = vadd.f32 0.0, %v4211
      %v4213 = vpop.f32.mrf.mxu0
      %4214 = vmatprep.mubr.f32.mxu0 0.0
      %4215 = vmatmul.mubr.f32.gmra.mxu0 %v4124
      %v4216 = vpop.f32.mrf.mxu0
      %v4217 = vadd.f32 0.0, %v4216
      %v4218 = vpop.f32.mrf.mxu0
      %4219 = vmatprep.mubr.f32.mxu0 0.0
      %4220 = vmatmul.mubr.f32.gmra.mxu0 %v4127
      %v4221 = vpop.f32.mrf.mxu0
      %v4222 = vadd.f32 0.0, %v4221
      %v4223 = vpop.f32.mrf.mxu0
      %4224 = vmatprep.mubr.f32.mxu0 0.0
      %4225 = vmatmul.mubr.f32.gmra.mxu0 %v4130
      %v4226 = vpop.f32.mrf.mxu0
      %v4227 = vadd.f32 0.0, %v4226
      %v4228 = vpop.f32.mrf.mxu0
      %4229 = vdwg.mxu0
      %s4230 = scalar_lea.vmem %s29, 24
      %v4231 = vld [vmem:[%s4230] sm:$0xff]
      %v4233 = vsel %vm1622, %v4202, 0
      %v4236 = vsel %vm1622, %v4207, 0
      %v4239 = vsel %vm1622, %v4212, 0
      %v4242 = vsel %vm1622, %v4217, 0
      %v4245 = vsel %vm1622, %v4222, 0
      %v4248 = vsel %vm1622, %v4227, 0
      %4250 = vmatprep.subr.mxu0 0.0
      %4251 = vmatpush1.msra.mxu0 0.0
      %4252 = vmatprep.subr.mxu0 0.0
      %4253 = vmatpush1.msra.mxu0 0.0
      %4254 = vmatprep.subr.mxu0 0.0
      %4255 = vmatpush1.msra.mxu0 0.0
      %4256 = vmatprep.subr.mxu0 0.0
      %4257 = vmatpush1.msra.mxu0 0.0
      %4258 = vmatprep.subr.mxu0 0.0
      %4259 = vmatpush1.msra.mxu0 0.0
      %4260 = vmatprep.subr.mxu0 0.0
      %4261 = vmatpush1.msra.mxu0 0.0
      %4262 = vmatprep.subr.mxu0 0.0
      %4263 = vmatpush1.msra.mxu0 0.0
      %4264 = vmatprep.subr.mxu0 0.0
      %4265 = vmatpush1.msra.mxu0 0.0
      %4266 = vmatprep.subr.mxu0 0.0
      %4267 = vmatpush1.msra.mxu0 0.0
      %4268 = vmatprep.subr.mxu0 0.0
      %4269 = vmatpush1.msra.mxu0 0.0
      %4270 = vmatprep.subr.mxu0 0.0
      %4271 = vmatpush1.msra.mxu0 0.0
      %4272 = vmatprep.subr.mxu0 0.0
      %4273 = vmatpush1.msra.mxu0 0.0
      %4274 = vmatprep.subr.mxu0 0.0
      %4275 = vmatpush1.msra.mxu0 0.0
      %4276 = vmatprep.subr.mxu0 0.0
      %4277 = vmatpush1.msra.mxu0 0.0
      %4278 = vmatprep.subr.mxu0 0.0
      %4279 = vmatpush1.msra.mxu0 0.0
      %4280 = vmatprep.subr.mxu0 0.0
      %4281 = vmatpush1.msra.mxu0 %v4231
      %4282 = vmatprep.subr.mxu0 0.0
      %4283 = vmatpush2.msra.mxu0 0.0
      %4284 = vmatprep.subr.mxu0 0.0
      %4285 = vmatpush2.msra.mxu0 0.0
      %4286 = vmatprep.subr.mxu0 0.0
      %4287 = vmatpush2.msra.mxu0 0.0
      %4288 = vmatprep.subr.mxu0 0.0
      %4289 = vmatpush2.msra.mxu0 0.0
      %4290 = vmatprep.subr.mxu0 0.0
      %4291 = vmatpush2.msra.mxu0 0.0
      %4292 = vmatprep.subr.mxu0 0.0
      %4293 = vmatpush2.msra.mxu0 0.0
      %4294 = vmatprep.subr.mxu0 0.0
      %4295 = vmatpush2.msra.mxu0 0.0
      %4296 = vmatprep.subr.mxu0 0.0
      %4297 = vmatpush2.msra.mxu0 0.0
      %4298 = vmatprep.subr.mxu0 0.0
      %4299 = vmatpush2.msra.mxu0 0.0
      %4300 = vmatprep.subr.mxu0 0.0
      %4301 = vmatpush2.msra.mxu0 0.0
      %4302 = vmatprep.subr.mxu0 0.0
      %4303 = vmatpush2.msra.mxu0 0.0
      %4304 = vmatprep.subr.mxu0 0.0
      %4305 = vmatpush2.msra.mxu0 0.0
      %4306 = vmatprep.subr.mxu0 0.0
      %4307 = vmatpush2.msra.mxu0 0.0
      %4308 = vmatprep.subr.mxu0 0.0
      %4309 = vmatpush2.msra.mxu0 0.0
      %4310 = vmatprep.subr.mxu0 0.0
      %4311 = vmatpush2.msra.mxu0 0.0
      %4312 = vmatprep.subr.mxu0 0.0
      %4313 = vmatpush2.msra.mxu0 0.0
      %4314 = vmatprep.mubr.f32.mxu0 0.0
      %4315 = vmatmul.mubr.f32.gmra.mxu0 %v4233
      %v4316 = vpop.f32.mrf.mxu0
      %v4317 = vadd.f32 0.0, %v4316
      %v4318 = vpop.f32.mrf.mxu0
      %4319 = vmatprep.mubr.f32.mxu0 0.0
      %4320 = vmatmul.mubr.f32.gmra.mxu0 %v4236
      %v4321 = vpop.f32.mrf.mxu0
      %v4322 = vadd.f32 0.0, %v4321
      %v4323 = vpop.f32.mrf.mxu0
      %4324 = vmatprep.mubr.f32.mxu0 0.0
      %4325 = vmatmul.mubr.f32.gmra.mxu0 %v4239
      %v4326 = vpop.f32.mrf.mxu0
      %v4327 = vadd.f32 0.0, %v4326
      %v4328 = vpop.f32.mrf.mxu0
      %4329 = vmatprep.mubr.f32.mxu0 0.0
      %4330 = vmatmul.mubr.f32.gmra.mxu0 %v4242
      %v4331 = vpop.f32.mrf.mxu0
      %v4332 = vadd.f32 0.0, %v4331
      %v4333 = vpop.f32.mrf.mxu0
      %4334 = vmatprep.mubr.f32.mxu0 0.0
      %4335 = vmatmul.mubr.f32.gmra.mxu0 %v4245
      %v4336 = vpop.f32.mrf.mxu0
      %v4337 = vadd.f32 0.0, %v4336
      %v4338 = vpop.f32.mrf.mxu0
      %4339 = vmatprep.mubr.f32.mxu0 0.0
      %4340 = vmatmul.mubr.f32.gmra.mxu0 %v4248
      %v4341 = vpop.f32.mrf.mxu0
      %v4342 = vadd.f32 0.0, %v4341
      %v4343 = vpop.f32.mrf.mxu0
      %4344 = vdwg.mxu0
      %v4345 = vadd.f32 %v3581, %v4317
      %v4346 = vadd.f32 %v3582, %v4322
      %v4347 = vadd.f32 %v3583, %v4327
      %v4348 = vadd.f32 %v3584, %v4332
      %v4349 = vadd.f32 %v3585, %v4337
      %v4350 = vadd.f32 %v3586, %v4342
      %v4351 = vadd.f32 %v1266, %v4345
      %v4352 = vadd.f32 %v1267, %v4346
      %v4353 = vadd.f32 %v1268, %v4347
      %v4354 = vadd.f32 %v1269, %v4348
      %v4355 = vadd.f32 %v1270, %v4349
      %v4356 = vadd.f32 %v1271, %v4350
      %v4357 = vld [vmem:[%s33] sm:$0x1]
      %v4358 = vld [vmem:[%s35] sm:$0x1]
      %v4359 = vsel %vm1090, %v4351, 0.0
      %4360 = vadd.xlane.f32.xlu0 %v4359
      %v4361 = vpop.xlane.xlu0 %4360
      %v4362 = vsel %vm1090, %v4352, 0.0
      %4363 = vadd.xlane.f32.xlu0 %v4362
      %v4364 = vpop.xlane.xlu0 %4363
      %v4365 = vsel %vm1090, %v4353, 0.0
      %4366 = vadd.xlane.f32.xlu0 %v4365
      %v4367 = vpop.xlane.xlu0 %4366
      %v4368 = vsel %vm1090, %v4354, 0.0
      %4369 = vadd.xlane.f32.xlu0 %v4368
      %v4370 = vpop.xlane.xlu0 %4369
      %v4371 = vsel %vm1090, %v4355, 0.0
      %4372 = vadd.xlane.f32.xlu0 %v4371
      %v4373 = vpop.xlane.xlu0 %4372
      %vm4374 = vcmask 258048
      %v4375 = vsel %vm4374, %v4356, 0.0
      %4376 = vadd.xlane.f32.xlu0 %v4375
      %v4377 = vpop.xlane.xlu0 %4376
      %v4378 = vrcp.pop 32.0
      %v4379 = vmul.f32 %v4361, %v4378
      %v4380 = vmul.f32 %v4364, %v4378
      %v4381 = vmul.f32 %v4367, %v4378
      %v4382 = vmul.f32 %v4370, %v4378
      %v4383 = vmul.f32 %v4373, %v4378
      %v4384 = vmul.f32 %v4377, %v4378
      %v4385 = vsub.f32 %v4351, %v4379
      %v4386 = vsub.f32 %v4352, %v4380
      %v4387 = vsub.f32 %v4353, %v4381
      %v4388 = vsub.f32 %v4354, %v4382
      %v4389 = vsub.f32 %v4355, %v4383
      %v4390 = vsub.f32 %v4356, %v4384
      %v4391 = vmul.f32 %v4385, %v4385
      %v4392 = vmul.f32 %v4386, %v4386
      %v4393 = vmul.f32 %v4387, %v4387
      %v4394 = vmul.f32 %v4388, %v4388
      %v4395 = vmul.f32 %v4389, %v4389
      %v4396 = vmul.f32 %v4390, %v4390
      %v4397 = vsel %vm1090, %v4391, 0.0
      %4398 = vadd.xlane.f32.xlu0 %v4397
      %v4399 = vpop.xlane.xlu0 %4398
      %v4400 = vsel %vm1090, %v4392, 0.0
      %4401 = vadd.xlane.f32.xlu0 %v4400
      %v4402 = vpop.xlane.xlu0 %4401
      %v4403 = vsel %vm1090, %v4393, 0.0
      %4404 = vadd.xlane.f32.xlu0 %v4403
      %v4405 = vpop.xlane.xlu0 %4404
      %v4406 = vsel %vm1090, %v4394, 0.0
      %4407 = vadd.xlane.f32.xlu0 %v4406
      %v4408 = vpop.xlane.xlu0 %4407
      %v4409 = vsel %vm1090, %v4395, 0.0
      %4410 = vadd.xlane.f32.xlu0 %v4409
      %v4411 = vpop.xlane.xlu0 %4410
      %v4412 = vsel %vm4374, %v4396, 0.0
      %4413 = vadd.xlane.f32.xlu0 %v4412
      %v4414 = vpop.xlane.xlu0 %4413
      %v4415 = vmul.f32 %v4399, %v4378
      %v4416 = vmul.f32 %v4402, %v4378
      %v4417 = vmul.f32 %v4405, %v4378
      %v4418 = vmul.f32 %v4408, %v4378
      %v4419 = vmul.f32 %v4411, %v4378
      %v4420 = vmul.f32 %v4414, %v4378
      %v4421 = vadd.f32 %v4415, 1e-05
      %v4422 = vadd.f32 %v4416, 1e-05
      %v4423 = vadd.f32 %v4417, 1e-05
      %v4424 = vadd.f32 %v4418, 1e-05
      %v4425 = vadd.f32 %v4419, 1e-05
      %v4426 = vadd.f32 %v4420, 1e-05
      %v4427 = vrsqrt.pop %v4421
      %v4428 = vrsqrt.pop %v4422
      %v4429 = vrsqrt.pop %v4423
      %v4430 = vrsqrt.pop %v4424
      %v4431 = vrsqrt.pop %v4425
      %v4432 = vrsqrt.pop %v4426
      %v4433 = vmul.f32 %v4385, %v4427
      %v4434 = vmul.f32 %v4386, %v4428
      %v4435 = vmul.f32 %v4387, %v4429
      %v4436 = vmul.f32 %v4388, %v4430
      %v4437 = vmul.f32 %v4389, %v4431
      %v4438 = vmul.f32 %v4390, %v4432
      %v4440 = vlaneseq
      %v4441 = vshrl.u32 %v4440, 7
      %v4442 = vsub.s32 0, %v4441
      %v4443 = vrot.slane %v4357, %v4442
      %v4445 = vmul.f32 %v4433, %v4443
      %v4446 = vmul.f32 %v4434, %v4443
      %v4447 = vmul.f32 %v4435, %v4443
      %v4448 = vmul.f32 %v4436, %v4443
      %v4449 = vmul.f32 %v4437, %v4443
      %v4450 = vmul.f32 %v4438, %v4443
      %v4452 = vlaneseq
      %v4453 = vshrl.u32 %v4452, 7
      %v4454 = vsub.s32 0, %v4453
      %v4455 = vrot.slane %v4358, %v4454
      %v4457 = vadd.f32 %v4445, %v4455
      %v4458 = vadd.f32 %v4446, %v4455
      %v4459 = vadd.f32 %v4447, %v4455
      %v4460 = vadd.f32 %v4448, %v4455
      %v4461 = vadd.f32 %v4449, %v4455
      %v4462 = vadd.f32 %v4450, %v4455
      %v4463 = vld [vmem:[%s41] sm:$0xff]
      %v4464 = vld [vmem:[%s41 + $0x8] sm:$0xff]
      %v4465 = vld [vmem:[%s41 + $0x10] sm:$0xff]
      %v4466 = vld [vmem:[%s41 + $0x18] sm:$0xff]
      %v4467 = vld [vmem:[%s43] sm:$0x1]
      %v4469 = vlaneseq
      %v4470 = vshrl.u32 %v4469, 7
      %v4471 = vsub.s32 0, %v4470
      %v4472 = vrot.slane %v4467, %v4471
      %v4475 = vsel %vm1090, %v4457, 0
      %v4478 = vsel %vm1090, %v4458, 0
      %v4481 = vsel %vm1090, %v4459, 0
      %v4484 = vsel %vm1090, %v4460, 0
      %v4487 = vsel %vm1090, %v4461, 0
      %v4490 = vsel %vm1090, %v4462, 0
      %4492 = vmatprep.subr.mxu0 0.0
      %4493 = vmatpush1.msra.mxu0 0.0
      %4494 = vmatprep.subr.mxu0 0.0
      %4495 = vmatpush1.msra.mxu0 0.0
      %4496 = vmatprep.subr.mxu0 0.0
      %4497 = vmatpush1.msra.mxu0 0.0
      %4498 = vmatprep.subr.mxu0 0.0
      %4499 = vmatpush1.msra.mxu0 0.0
      %4500 = vmatprep.subr.mxu0 0.0
      %4501 = vmatpush1.msra.mxu0 0.0
      %4502 = vmatprep.subr.mxu0 0.0
      %4503 = vmatpush1.msra.mxu0 0.0
      %4504 = vmatprep.subr.mxu0 0.0
      %4505 = vmatpush1.msra.mxu0 0.0
      %4506 = vmatprep.subr.mxu0 0.0
      %4507 = vmatpush1.msra.mxu0 0.0
      %4508 = vmatprep.subr.mxu0 0.0
      %4509 = vmatpush1.msra.mxu0 0.0
      %4510 = vmatprep.subr.mxu0 0.0
      %4511 = vmatpush1.msra.mxu0 0.0
      %4512 = vmatprep.subr.mxu0 0.0
      %4513 = vmatpush1.msra.mxu0 0.0
      %4514 = vmatprep.subr.mxu0 0.0
      %4515 = vmatpush1.msra.mxu0 0.0
      %4516 = vmatprep.subr.mxu0 0.0
      %4517 = vmatpush1.msra.mxu0 %v4466
      %4518 = vmatprep.subr.mxu0 0.0
      %4519 = vmatpush1.msra.mxu0 %v4465
      %4520 = vmatprep.subr.mxu0 0.0
      %4521 = vmatpush1.msra.mxu0 %v4464
      %4522 = vmatprep.subr.mxu0 0.0
      %4523 = vmatpush1.msra.mxu0 %v4463
      %4524 = vmatprep.subr.mxu0 0.0
      %4525 = vmatpush2.msra.mxu0 0.0
      %4526 = vmatprep.subr.mxu0 0.0
      %4527 = vmatpush2.msra.mxu0 0.0
      %4528 = vmatprep.subr.mxu0 0.0
      %4529 = vmatpush2.msra.mxu0 0.0
      %4530 = vmatprep.subr.mxu0 0.0
      %4531 = vmatpush2.msra.mxu0 0.0
      %4532 = vmatprep.subr.mxu0 0.0
      %4533 = vmatpush2.msra.mxu0 0.0
      %4534 = vmatprep.subr.mxu0 0.0
      %4535 = vmatpush2.msra.mxu0 0.0
      %4536 = vmatprep.subr.mxu0 0.0
      %4537 = vmatpush2.msra.mxu0 0.0
      %4538 = vmatprep.subr.mxu0 0.0
      %4539 = vmatpush2.msra.mxu0 0.0
      %4540 = vmatprep.subr.mxu0 0.0
      %4541 = vmatpush2.msra.mxu0 0.0
      %4542 = vmatprep.subr.mxu0 0.0
      %4543 = vmatpush2.msra.mxu0 0.0
      %4544 = vmatprep.subr.mxu0 0.0
      %4545 = vmatpush2.msra.mxu0 0.0
      %4546 = vmatprep.subr.mxu0 0.0
      %4547 = vmatpush2.msra.mxu0 0.0
      %4548 = vmatprep.subr.mxu0 0.0
      %4549 = vmatpush2.msra.mxu0 0.0
      %4550 = vmatprep.subr.mxu0 0.0
      %4551 = vmatpush2.msra.mxu0 0.0
      %4552 = vmatprep.subr.mxu0 0.0
      %4553 = vmatpush2.msra.mxu0 0.0
      %4554 = vmatprep.subr.mxu0 0.0
      %4555 = vmatpush2.msra.mxu0 0.0
      %4556 = vmatprep.mubr.f32.mxu0 0.0
      %4557 = vmatmul.mubr.f32.gmra.mxu0 %v4475
      %v4558 = vpop.f32.mrf.mxu0
      %v4559 = vadd.f32 %v4472, %v4558
      %v4560 = vpop.f32.mrf.mxu0
      %4561 = vmatprep.mubr.f32.mxu0 0.0
      %4562 = vmatmul.mubr.f32.gmra.mxu0 %v4478
      %v4563 = vpop.f32.mrf.mxu0
      %v4564 = vadd.f32 %v4472, %v4563
      %v4565 = vpop.f32.mrf.mxu0
      %4566 = vmatprep.mubr.f32.mxu0 0.0
      %4567 = vmatmul.mubr.f32.gmra.mxu0 %v4481
      %v4568 = vpop.f32.mrf.mxu0
      %v4569 = vadd.f32 %v4472, %v4568
      %v4570 = vpop.f32.mrf.mxu0
      %4571 = vmatprep.mubr.f32.mxu0 0.0
      %4572 = vmatmul.mubr.f32.gmra.mxu0 %v4484
      %v4573 = vpop.f32.mrf.mxu0
      %v4574 = vadd.f32 %v4472, %v4573
      %v4575 = vpop.f32.mrf.mxu0
      %4576 = vmatprep.mubr.f32.mxu0 0.0
      %4577 = vmatmul.mubr.f32.gmra.mxu0 %v4487
      %v4578 = vpop.f32.mrf.mxu0
      %v4579 = vadd.f32 %v4472, %v4578
      %v4580 = vpop.f32.mrf.mxu0
      %4581 = vmatprep.mubr.f32.mxu0 0.0
      %4582 = vmatmul.mubr.f32.gmra.mxu0 %v4490
      %v4583 = vpop.f32.mrf.mxu0
      %v4584 = vadd.f32 %v4472, %v4583
      %v4585 = vpop.f32.mrf.mxu0
      %4586 = vdwg.mxu0
      %v4587 = vmul.f32 %v4559, 0.70710677
      %v4588 = vmul.f32 %v4564, 0.70710677
      %v4589 = vmul.f32 %v4569, 0.70710677
      %v4590 = vmul.f32 %v4574, 0.70710677
      %v4591 = vmul.f32 %v4579, 0.70710677
      %v4592 = vmul.f32 %v4584, 0.70710677
      %v4593 = vand.u32 2147483647, %v4587
      %v4594 = vand.u32 2147483647, %v4588
      %v4595 = vand.u32 2147483647, %v4589
      %v4596 = vand.u32 2147483647, %v4590
      %v4597 = vand.u32 2147483647, %v4591
      %v4598 = vand.u32 2147483647, %v4592
      %v4599 = vmul.f32 %v4593, 0.3275911
      %v4600 = vmul.f32 %v4594, 0.3275911
      %v4601 = vmul.f32 %v4595, 0.3275911
      %v4602 = vmul.f32 %v4596, 0.3275911
      %v4603 = vmul.f32 %v4597, 0.3275911
      %v4604 = vmul.f32 %v4598, 0.3275911
      %v4605 = vadd.f32 %v4599, 1.0
      %v4606 = vadd.f32 %v4600, 1.0
      %v4607 = vadd.f32 %v4601, 1.0
      %v4608 = vadd.f32 %v4602, 1.0
      %v4609 = vadd.f32 %v4603, 1.0
      %v4610 = vadd.f32 %v4604, 1.0
      %v4611 = vrcp.pop %v4605
      %v4612 = vmul.f32 1.0, %v4611
      %v4613 = vrcp.pop %v4606
      %v4614 = vmul.f32 1.0, %v4613
      %v4615 = vrcp.pop %v4607
      %v4616 = vmul.f32 1.0, %v4615
      %v4617 = vrcp.pop %v4608
      %v4618 = vmul.f32 1.0, %v4617
      %v4619 = vrcp.pop %v4609
      %v4620 = vmul.f32 1.0, %v4619
      %v4621 = vrcp.pop %v4610
      %v4622 = vmul.f32 1.0, %v4621
      %v4623 = vmul.f32 %v4612, 1.0614054
      %v4624 = vmul.f32 %v4614, 1.0614054
      %v4625 = vmul.f32 %v4616, 1.0614054
      %v4626 = vmul.f32 %v4618, 1.0614054
      %v4627 = vmul.f32 %v4620, 1.0614054
      %v4628 = vmul.f32 %v4622, 1.0614054
      %v4629 = vsub.f32 %v4623, 1.4531521
      %v4630 = vsub.f32 %v4624, 1.4531521
      %v4631 = vsub.f32 %v4625, 1.4531521
      %v4632 = vsub.f32 %v4626, 1.4531521
      %v4633 = vsub.f32 %v4627, 1.4531521
      %v4634 = vsub.f32 %v4628, 1.4531521
      %v4635 = vmul.f32 %v4629, %v4612
      %v4636 = vmul.f32 %v4630, %v4614
      %v4637 = vmul.f32 %v4631, %v4616
      %v4638 = vmul.f32 %v4632, %v4618
      %v4639 = vmul.f32 %v4633, %v4620
      %v4640 = vmul.f32 %v4634, %v4622
      %v4641 = vadd.f32 %v4635, 1.4214138
      %v4642 = vadd.f32 %v4636, 1.4214138
      %v4643 = vadd.f32 %v4637, 1.4214138
      %v4644 = vadd.f32 %v4638, 1.4214138
      %v4645 = vadd.f32 %v4639, 1.4214138
      %v4646 = vadd.f32 %v4640, 1.4214138
      %v4647 = vmul.f32 %v4641, %v4612
      %v4648 = vmul.f32 %v4642, %v4614
      %v4649 = vmul.f32 %v4643, %v4616
      %v4650 = vmul.f32 %v4644, %v4618
      %v4651 = vmul.f32 %v4645, %v4620
      %v4652 = vmul.f32 %v4646, %v4622
      %v4653 = vsub.f32 %v4647, 0.28449672
      %v4654 = vsub.f32 %v4648, 0.28449672
      %v4655 = vsub.f32 %v4649, 0.28449672
      %v4656 = vsub.f32 %v4650, 0.28449672
      %v4657 = vsub.f32 %v4651, 0.28449672
      %v4658 = vsub.f32 %v4652, 0.28449672
      %v4659 = vmul.f32 %v4653, %v4612
      %v4660 = vmul.f32 %v4654, %v4614
      %v4661 = vmul.f32 %v4655, %v4616
      %v4662 = vmul.f32 %v4656, %v4618
      %v4663 = vmul.f32 %v4657, %v4620
      %v4664 = vmul.f32 %v4658, %v4622
      %v4665 = vadd.f32 %v4659, 0.2548296
      %v4666 = vadd.f32 %v4660, 0.2548296
      %v4667 = vadd.f32 %v4661, 0.2548296
      %v4668 = vadd.f32 %v4662, 0.2548296
      %v4669 = vadd.f32 %v4663, 0.2548296
      %v4670 = vadd.f32 %v4664, 0.2548296
      %v4671 = vmul.f32 %v4665, %v4612
      %v4672 = vmul.f32 %v4666, %v4614
      %v4673 = vmul.f32 %v4667, %v4616
      %v4674 = vmul.f32 %v4668, %v4618
      %v4675 = vmul.f32 %v4669, %v4620
      %v4676 = vmul.f32 %v4670, %v4622
      %v4677 = vsub.f32 0.0, %v4593
      %v4678 = vsub.f32 0.0, %v4594
      %v4679 = vsub.f32 0.0, %v4595
      %v4680 = vsub.f32 0.0, %v4596
      %v4681 = vsub.f32 0.0, %v4597
      %v4682 = vsub.f32 0.0, %v4598
      %v4683 = vmul.f32 %v4677, %v4593
      %v4684 = vmul.f32 %v4678, %v4594
      %v4685 = vmul.f32 %v4679, %v4595
      %v4686 = vmul.f32 %v4680, %v4596
      %v4687 = vmul.f32 %v4681, %v4597
      %v4688 = vmul.f32 %v4682, %v4598
      %v4689 = vmul.f32 %v4683, 1.442695
      %v4690 = vpow.pop %v4689
      %v4691 = vmul.f32 %v4684, 1.442695
      %v4692 = vpow.pop %v4691
      %v4693 = vmul.f32 %v4685, 1.442695
      %v4694 = vpow.pop %v4693
      %v4695 = vmul.f32 %v4686, 1.442695
      %v4696 = vpow.pop %v4695
      %v4697 = vmul.f32 %v4687, 1.442695
      %v4698 = vpow.pop %v4697
      %v4699 = vmul.f32 %v4688, 1.442695
      %v4700 = vpow.pop %v4699
      %v4701 = vmul.f32 %v4671, %v4690
      %v4702 = vmul.f32 %v4672, %v4692
      %v4703 = vmul.f32 %v4673, %v4694
      %v4704 = vmul.f32 %v4674, %v4696
      %v4705 = vmul.f32 %v4675, %v4698
      %v4706 = vmul.f32 %v4676, %v4700
      %v4707 = vsub.f32 1.0, %v4701
      %v4708 = vsub.f32 1.0, %v4702
      %v4709 = vsub.f32 1.0, %v4703
      %v4710 = vsub.f32 1.0, %v4704
      %v4711 = vsub.f32 1.0, %v4705
      %v4712 = vsub.f32 1.0, %v4706
      %vm4713 = vcmp.ge.f32.partialorder %v4587, 0.0
      %vm4714 = vcmp.ge.f32.partialorder %v4588, 0.0
      %vm4715 = vcmp.ge.f32.partialorder %v4589, 0.0
      %vm4716 = vcmp.ge.f32.partialorder %v4590, 0.0
      %vm4717 = vcmp.ge.f32.partialorder %v4591, 0.0
      %vm4718 = vcmp.ge.f32.partialorder %v4592, 0.0
      %v4719 = vsub.f32 0.0, %v4707
      %v4720 = vsub.f32 0.0, %v4708
      %v4721 = vsub.f32 0.0, %v4709
      %v4722 = vsub.f32 0.0, %v4710
      %v4723 = vsub.f32 0.0, %v4711
      %v4724 = vsub.f32 0.0, %v4712
      %v4725 = vsel %vm4713, %v4707, %v4719
      %v4726 = vsel %vm4714, %v4708, %v4720
      %v4727 = vsel %vm4715, %v4709, %v4721
      %v4728 = vsel %vm4716, %v4710, %v4722
      %v4729 = vsel %vm4717, %v4711, %v4723
      %v4730 = vsel %vm4718, %v4712, %v4724
      %v4731 = vmul.f32 %v4559, 0.5
      %v4732 = vmul.f32 %v4564, 0.5
      %v4733 = vmul.f32 %v4569, 0.5
      %v4734 = vmul.f32 %v4574, 0.5
      %v4735 = vmul.f32 %v4579, 0.5
      %v4736 = vmul.f32 %v4584, 0.5
      %v4737 = vadd.f32 %v4725, 1.0
      %v4738 = vadd.f32 %v4726, 1.0
      %v4739 = vadd.f32 %v4727, 1.0
      %v4740 = vadd.f32 %v4728, 1.0
      %v4741 = vadd.f32 %v4729, 1.0
      %v4742 = vadd.f32 %v4730, 1.0
      %v4743 = vmul.f32 %v4731, %v4737
      %v4744 = vmul.f32 %v4732, %v4738
      %v4745 = vmul.f32 %v4733, %v4739
      %v4746 = vmul.f32 %v4734, %v4740
      %v4747 = vmul.f32 %v4735, %v4741
      %v4748 = vmul.f32 %v4736, %v4742
      %v4749 = vld [vmem:[%s45] sm:$0xff]
      %v4750 = vld [vmem:[%s45 + $0x8] sm:$0xff]
      %v4751 = vld [vmem:[%s45 + $0x10] sm:$0xff]
      %v4752 = vld [vmem:[%s45 + $0x18] sm:$0xff]
      %v4753 = vld [vmem:[%s45 + $0x20] sm:$0xff]
      %v4754 = vld [vmem:[%s45 + $0x28] sm:$0xff]
      %v4755 = vld [vmem:[%s45 + $0x30] sm:$0xff]
      %v4756 = vld [vmem:[%s45 + $0x38] sm:$0xff]
      %v4757 = vld [vmem:[%s45 + $0x40] sm:$0xff]
      %v4758 = vld [vmem:[%s45 + $0x48] sm:$0xff]
      %v4759 = vld [vmem:[%s45 + $0x50] sm:$0xff]
      %v4760 = vld [vmem:[%s45 + $0x58] sm:$0xff]
      %v4761 = vld [vmem:[%s45 + $0x60] sm:$0xff]
      %v4762 = vld [vmem:[%s45 + $0x68] sm:$0xff]
      %v4763 = vld [vmem:[%s45 + $0x70] sm:$0xff]
      %v4764 = vld [vmem:[%s45 + $0x78] sm:$0xff]
      %v4765 = vld [vmem:[%s47] sm:$0x1]
      %v4767 = vlaneseq
      %v4768 = vshrl.u32 %v4767, 7
      %v4769 = vsub.s32 0, %v4768
      %v4770 = vrot.slane %v4765, %v4769
      %4772 = vmatprep.subr.mxu0 0.0
      %4773 = vmatpush1.msra.mxu0 %v4764
      %4774 = vmatprep.subr.mxu0 0.0
      %4775 = vmatpush1.msra.mxu0 %v4763
      %4776 = vmatprep.subr.mxu0 0.0
      %4777 = vmatpush1.msra.mxu0 %v4762
      %4778 = vmatprep.subr.mxu0 0.0
      %4779 = vmatpush1.msra.mxu0 %v4761
      %4780 = vmatprep.subr.mxu0 0.0
      %4781 = vmatpush1.msra.mxu0 %v4760
      %4782 = vmatprep.subr.mxu0 0.0
      %4783 = vmatpush1.msra.mxu0 %v4759
      %4784 = vmatprep.subr.mxu0 0.0
      %4785 = vmatpush1.msra.mxu0 %v4758
      %4786 = vmatprep.subr.mxu0 0.0
      %4787 = vmatpush1.msra.mxu0 %v4757
      %4788 = vmatprep.subr.mxu0 0.0
      %4789 = vmatpush1.msra.mxu0 %v4756
      %4790 = vmatprep.subr.mxu0 0.0
      %4791 = vmatpush1.msra.mxu0 %v4755
      %4792 = vmatprep.subr.mxu0 0.0
      %4793 = vmatpush1.msra.mxu0 %v4754
      %4794 = vmatprep.subr.mxu0 0.0
      %4795 = vmatpush1.msra.mxu0 %v4753
      %4796 = vmatprep.subr.mxu0 0.0
      %4797 = vmatpush1.msra.mxu0 %v4752
      %4798 = vmatprep.subr.mxu0 0.0
      %4799 = vmatpush1.msra.mxu0 %v4751
      %4800 = vmatprep.subr.mxu0 0.0
      %4801 = vmatpush1.msra.mxu0 %v4750
      %4802 = vmatprep.subr.mxu0 0.0
      %4803 = vmatpush1.msra.mxu0 %v4749
      %4804 = vmatprep.subr.mxu0 0.0
      %4805 = vmatpush2.msra.mxu0 0.0
      %4806 = vmatprep.subr.mxu0 0.0
      %4807 = vmatpush2.msra.mxu0 0.0
      %4808 = vmatprep.subr.mxu0 0.0
      %4809 = vmatpush2.msra.mxu0 0.0
      %4810 = vmatprep.subr.mxu0 0.0
      %4811 = vmatpush2.msra.mxu0 0.0
      %4812 = vmatprep.subr.mxu0 0.0
      %4813 = vmatpush2.msra.mxu0 0.0
      %4814 = vmatprep.subr.mxu0 0.0
      %4815 = vmatpush2.msra.mxu0 0.0
      %4816 = vmatprep.subr.mxu0 0.0
      %4817 = vmatpush2.msra.mxu0 0.0
      %4818 = vmatprep.subr.mxu0 0.0
      %4819 = vmatpush2.msra.mxu0 0.0
      %4820 = vmatprep.subr.mxu0 0.0
      %4821 = vmatpush2.msra.mxu0 0.0
      %4822 = vmatprep.subr.mxu0 0.0
      %4823 = vmatpush2.msra.mxu0 0.0
      %4824 = vmatprep.subr.mxu0 0.0
      %4825 = vmatpush2.msra.mxu0 0.0
      %4826 = vmatprep.subr.mxu0 0.0
      %4827 = vmatpush2.msra.mxu0 0.0
      %4828 = vmatprep.subr.mxu0 0.0
      %4829 = vmatpush2.msra.mxu0 0.0
      %4830 = vmatprep.subr.mxu0 0.0
      %4831 = vmatpush2.msra.mxu0 0.0
      %4832 = vmatprep.subr.mxu0 0.0
      %4833 = vmatpush2.msra.mxu0 0.0
      %4834 = vmatprep.subr.mxu0 0.0
      %4835 = vmatpush2.msra.mxu0 0.0
      %4836 = vmatprep.mubr.f32.mxu0 0.0
      %4837 = vmatmul.mubr.f32.gmra.mxu0 %v4743
      %v4838 = vpop.f32.mrf.mxu0
      %v4839 = vadd.f32 %v4770, %v4838
      %v4840 = vpop.f32.mrf.mxu0
      %4841 = vmatprep.mubr.f32.mxu0 0.0
      %4842 = vmatmul.mubr.f32.gmra.mxu0 %v4744
      %v4843 = vpop.f32.mrf.mxu0
      %v4844 = vadd.f32 %v4770, %v4843
      %v4845 = vpop.f32.mrf.mxu0
      %4846 = vmatprep.mubr.f32.mxu0 0.0
      %4847 = vmatmul.mubr.f32.gmra.mxu0 %v4745
      %v4848 = vpop.f32.mrf.mxu0
      %v4849 = vadd.f32 %v4770, %v4848
      %v4850 = vpop.f32.mrf.mxu0
      %4851 = vmatprep.mubr.f32.mxu0 0.0
      %4852 = vmatmul.mubr.f32.gmra.mxu0 %v4746
      %v4853 = vpop.f32.mrf.mxu0
      %v4854 = vadd.f32 %v4770, %v4853
      %v4855 = vpop.f32.mrf.mxu0
      %4856 = vmatprep.mubr.f32.mxu0 0.0
      %4857 = vmatmul.mubr.f32.gmra.mxu0 %v4747
      %v4858 = vpop.f32.mrf.mxu0
      %v4859 = vadd.f32 %v4770, %v4858
      %v4860 = vpop.f32.mrf.mxu0
      %4861 = vmatprep.mubr.f32.mxu0 0.0
      %4862 = vmatmul.mubr.f32.gmra.mxu0 %v4748
      %v4863 = vpop.f32.mrf.mxu0
      %v4864 = vadd.f32 %v4770, %v4863
      %v4865 = vpop.f32.mrf.mxu0
      %4866 = vdwg.mxu0
      %v4867 = vadd.f32 %v4457, %v4839
      %v4868 = vadd.f32 %v4458, %v4844
      %v4869 = vadd.f32 %v4459, %v4849
      %v4870 = vadd.f32 %v4460, %v4854
      %v4871 = vadd.f32 %v4461, %v4859
      %v4872 = vadd.f32 %v4462, %v4864
      %v4873 = vld [vmem:[%s37] sm:$0x1]
      %v4874 = vld [vmem:[%s39] sm:$0x1]
      %v4875 = vsel %vm1090, %v4867, 0.0
      %4876 = vadd.xlane.f32.xlu0 %v4875
      %v4877 = vpop.xlane.xlu0 %4876
      %v4878 = vsel %vm1090, %v4868, 0.0
      %4879 = vadd.xlane.f32.xlu0 %v4878
      %v4880 = vpop.xlane.xlu0 %4879
      %v4881 = vsel %vm1090, %v4869, 0.0
      %4882 = vadd.xlane.f32.xlu0 %v4881
      %v4883 = vpop.xlane.xlu0 %4882
      %v4884 = vsel %vm1090, %v4870, 0.0
      %4885 = vadd.xlane.f32.xlu0 %v4884
      %v4886 = vpop.xlane.xlu0 %4885
      %v4887 = vsel %vm1090, %v4871, 0.0
      %4888 = vadd.xlane.f32.xlu0 %v4887
      %v4889 = vpop.xlane.xlu0 %4888
      %v4890 = vsel %vm4374, %v4872, 0.0
      %4891 = vadd.xlane.f32.xlu0 %v4890
      %v4892 = vpop.xlane.xlu0 %4891
      %v4893 = vmul.f32 %v4877, %v4378
      %v4894 = vmul.f32 %v4880, %v4378
      %v4895 = vmul.f32 %v4883, %v4378
      %v4896 = vmul.f32 %v4886, %v4378
      %v4897 = vmul.f32 %v4889, %v4378
      %v4898 = vmul.f32 %v4892, %v4378
      %v4899 = vsub.f32 %v4867, %v4893
      %v4900 = vsub.f32 %v4868, %v4894
      %v4901 = vsub.f32 %v4869, %v4895
      %v4902 = vsub.f32 %v4870, %v4896
      %v4903 = vsub.f32 %v4871, %v4897
      %v4904 = vsub.f32 %v4872, %v4898
      %v4905 = vmul.f32 %v4899, %v4899
      %v4906 = vmul.f32 %v4900, %v4900
      %v4907 = vmul.f32 %v4901, %v4901
      %v4908 = vmul.f32 %v4902, %v4902
      %v4909 = vmul.f32 %v4903, %v4903
      %v4910 = vmul.f32 %v4904, %v4904
      %v4911 = vsel %vm1090, %v4905, 0.0
      %4912 = vadd.xlane.f32.xlu0 %v4911
      %v4913 = vpop.xlane.xlu0 %4912
      %v4914 = vsel %vm1090, %v4906, 0.0
      %4915 = vadd.xlane.f32.xlu0 %v4914
      %v4916 = vpop.xlane.xlu0 %4915
      %v4917 = vsel %vm1090, %v4907, 0.0
      %4918 = vadd.xlane.f32.xlu0 %v4917
      %v4919 = vpop.xlane.xlu0 %4918
      %v4920 = vsel %vm1090, %v4908, 0.0
      %4921 = vadd.xlane.f32.xlu0 %v4920
      %v4922 = vpop.xlane.xlu0 %4921
      %v4923 = vsel %vm1090, %v4909, 0.0
      %4924 = vadd.xlane.f32.xlu0 %v4923
      %v4925 = vpop.xlane.xlu0 %4924
      %v4926 = vsel %vm4374, %v4910, 0.0
      %4927 = vadd.xlane.f32.xlu0 %v4926
      %v4928 = vpop.xlane.xlu0 %4927
      %v4929 = vmul.f32 %v4913, %v4378
      %v4930 = vmul.f32 %v4916, %v4378
      %v4931 = vmul.f32 %v4919, %v4378
      %v4932 = vmul.f32 %v4922, %v4378
      %v4933 = vmul.f32 %v4925, %v4378
      %v4934 = vmul.f32 %v4928, %v4378
      %v4935 = vadd.f32 %v4929, 1e-05
      %v4936 = vadd.f32 %v4930, 1e-05
      %v4937 = vadd.f32 %v4931, 1e-05
      %v4938 = vadd.f32 %v4932, 1e-05
      %v4939 = vadd.f32 %v4933, 1e-05
      %v4940 = vadd.f32 %v4934, 1e-05
      %v4941 = vrsqrt.pop %v4935
      %v4942 = vrsqrt.pop %v4936
      %v4943 = vrsqrt.pop %v4937
      %v4944 = vrsqrt.pop %v4938
      %v4945 = vrsqrt.pop %v4939
      %v4946 = vrsqrt.pop %v4940
      %v4947 = vmul.f32 %v4899, %v4941
      %v4948 = vmul.f32 %v4900, %v4942
      %v4949 = vmul.f32 %v4901, %v4943
      %v4950 = vmul.f32 %v4902, %v4944
      %v4951 = vmul.f32 %v4903, %v4945
      %v4952 = vmul.f32 %v4904, %v4946
      %v4954 = vlaneseq
      %v4955 = vshrl.u32 %v4954, 7
      %v4956 = vsub.s32 0, %v4955
      %v4957 = vrot.slane %v4873, %v4956
      %v4959 = vmul.f32 %v4947, %v4957
      %v4960 = vmul.f32 %v4948, %v4957
      %v4961 = vmul.f32 %v4949, %v4957
      %v4962 = vmul.f32 %v4950, %v4957
      %v4963 = vmul.f32 %v4951, %v4957
      %v4964 = vmul.f32 %v4952, %v4957
      %v4966 = vlaneseq
      %v4967 = vshrl.u32 %v4966, 7
      %v4968 = vsub.s32 0, %v4967
      %v4969 = vrot.slane %v4874, %v4968
      %v4971 = vadd.f32 %v4959, %v4969
      %v4972 = vadd.f32 %v4960, %v4969
      %v4973 = vadd.f32 %v4961, %v4969
      %v4974 = vadd.f32 %v4962, %v4969
      %v4975 = vadd.f32 %v4963, %v4969
      %v4976 = vadd.f32 %v4964, %v4969
      %s4977 = scalar_lea.vmem %s31, 1
      %v4978 = vld [vmem:[%s4977] sm:$0x1]
      %v4980 = vlaneseq
      %v4981 = vshrl.u32 %v4980, 7
      %v4982 = vsub.s32 0, %v4981
      %v4983 = vrot.slane %v4978, %v4982
      %v4985 = vadd.f32 %v4983, 0.0
      %s4986 = scalar_lea.vmem %s17, 128
      %v4987 = vld [vmem:[%s4986] sm:$0xff]
      %v4988 = vld [vmem:[%s4986 + $0x8] sm:$0xff]
      %v4989 = vld [vmem:[%s4986 + $0x10] sm:$0xff]
      %v4990 = vld [vmem:[%s4986 + $0x18] sm:$0xff]
      %s4991 = scalar_lea.vmem %s23, 4
      %v4992 = vld [vmem:[%s4991] sm:$0x1]
      %v4994 = vlaneseq
      %v4995 = vshrl.u32 %v4994, 7
      %v4996 = vsub.s32 0, %v4995
      %v4997 = vrot.slane %v4992, %v4996
      %v5000 = vsel %vm1090, %v4971, 0
      %v5003 = vsel %vm1090, %v4972, 0
      %v5006 = vsel %vm1090, %v4973, 0
      %v5009 = vsel %vm1090, %v4974, 0
      %v5012 = vsel %vm1090, %v4975, 0
      %v5015 = vsel %vm1090, %v4976, 0
      %5017 = vmatprep.subr.mxu0 0.0
      %5018 = vmatpush1.msra.mxu0 0.0
      %5019 = vmatprep.subr.mxu0 0.0
      %5020 = vmatpush1.msra.mxu0 0.0
      %5021 = vmatprep.subr.mxu0 0.0
      %5022 = vmatpush1.msra.mxu0 0.0
      %5023 = vmatprep.subr.mxu0 0.0
      %5024 = vmatpush1.msra.mxu0 0.0
      %5025 = vmatprep.subr.mxu0 0.0
      %5026 = vmatpush1.msra.mxu0 0.0
      %5027 = vmatprep.subr.mxu0 0.0
      %5028 = vmatpush1.msra.mxu0 0.0
      %5029 = vmatprep.subr.mxu0 0.0
      %5030 = vmatpush1.msra.mxu0 0.0
      %5031 = vmatprep.subr.mxu0 0.0
      %5032 = vmatpush1.msra.mxu0 0.0
      %5033 = vmatprep.subr.mxu0 0.0
      %5034 = vmatpush1.msra.mxu0 0.0
      %5035 = vmatprep.subr.mxu0 0.0
      %5036 = vmatpush1.msra.mxu0 0.0
      %5037 = vmatprep.subr.mxu0 0.0
      %5038 = vmatpush1.msra.mxu0 0.0
      %5039 = vmatprep.subr.mxu0 0.0
      %5040 = vmatpush1.msra.mxu0 0.0
      %5041 = vmatprep.subr.mxu0 0.0
      %5042 = vmatpush1.msra.mxu0 %v4990
      %5043 = vmatprep.subr.mxu0 0.0
      %5044 = vmatpush1.msra.mxu0 %v4989
      %5045 = vmatprep.subr.mxu0 0.0
      %5046 = vmatpush1.msra.mxu0 %v4988
      %5047 = vmatprep.subr.mxu0 0.0
      %5048 = vmatpush1.msra.mxu0 %v4987
      %5049 = vmatprep.subr.mxu0 0.0
      %5050 = vmatpush2.msra.mxu0 0.0
      %5051 = vmatprep.subr.mxu0 0.0
      %5052 = vmatpush2.msra.mxu0 0.0
      %5053 = vmatprep.subr.mxu0 0.0
      %5054 = vmatpush2.msra.mxu0 0.0
      %5055 = vmatprep.subr.mxu0 0.0
      %5056 = vmatpush2.msra.mxu0 0.0
      %5057 = vmatprep.subr.mxu0 0.0
      %5058 = vmatpush2.msra.mxu0 0.0
      %5059 = vmatprep.subr.mxu0 0.0
      %5060 = vmatpush2.msra.mxu0 0.0
      %5061 = vmatprep.subr.mxu0 0.0
      %5062 = vmatpush2.msra.mxu0 0.0
      %5063 = vmatprep.subr.mxu0 0.0
      %5064 = vmatpush2.msra.mxu0 0.0
      %5065 = vmatprep.subr.mxu0 0.0
      %5066 = vmatpush2.msra.mxu0 0.0
      %5067 = vmatprep.subr.mxu0 0.0
      %5068 = vmatpush2.msra.mxu0 0.0
      %5069 = vmatprep.subr.mxu0 0.0
      %5070 = vmatpush2.msra.mxu0 0.0
      %5071 = vmatprep.subr.mxu0 0.0
      %5072 = vmatpush2.msra.mxu0 0.0
      %5073 = vmatprep.subr.mxu0 0.0
      %5074 = vmatpush2.msra.mxu0 0.0
      %5075 = vmatprep.subr.mxu0 0.0
      %5076 = vmatpush2.msra.mxu0 0.0
      %5077 = vmatprep.subr.mxu0 0.0
      %5078 = vmatpush2.msra.mxu0 0.0
      %5079 = vmatprep.subr.mxu0 0.0
      %5080 = vmatpush2.msra.mxu0 0.0
      %5081 = vmatprep.mubr.f32.mxu0 0.0
      %5082 = vmatmul.mubr.f32.gmra.mxu0 %v5000
      %v5083 = vpop.f32.mrf.mxu0
      %v5084 = vadd.f32 %v4997, %v5083
      %v5085 = vpop.f32.mrf.mxu0
      %5086 = vmatprep.mubr.f32.mxu0 0.0
      %5087 = vmatmul.mubr.f32.gmra.mxu0 %v5003
      %v5088 = vpop.f32.mrf.mxu0
      %v5089 = vadd.f32 %v4997, %v5088
      %v5090 = vpop.f32.mrf.mxu0
      %5091 = vmatprep.mubr.f32.mxu0 0.0
      %5092 = vmatmul.mubr.f32.gmra.mxu0 %v5006
      %v5093 = vpop.f32.mrf.mxu0
      %v5094 = vadd.f32 %v4997, %v5093
      %v5095 = vpop.f32.mrf.mxu0
      %5096 = vmatprep.mubr.f32.mxu0 0.0
      %5097 = vmatmul.mubr.f32.gmra.mxu0 %v5009
      %v5098 = vpop.f32.mrf.mxu0
      %v5099 = vadd.f32 %v4997, %v5098
      %v5100 = vpop.f32.mrf.mxu0
      %5101 = vmatprep.mubr.f32.mxu0 0.0
      %5102 = vmatmul.mubr.f32.gmra.mxu0 %v5012
      %v5103 = vpop.f32.mrf.mxu0
      %v5104 = vadd.f32 %v4997, %v5103
      %v5105 = vpop.f32.mrf.mxu0
      %5106 = vmatprep.mubr.f32.mxu0 0.0
      %5107 = vmatmul.mubr.f32.gmra.mxu0 %v5015
      %v5108 = vpop.f32.mrf.mxu0
      %v5109 = vadd.f32 %v4997, %v5108
      %v5110 = vpop.f32.mrf.mxu0
      %5111 = vdwg.mxu0
      %s5112 = scalar_lea.vmem %s19, 128
      %v5113 = vld [vmem:[%s5112] sm:$0xff]
      %v5114 = vld [vmem:[%s5112 + $0x8] sm:$0xff]
      %v5115 = vld [vmem:[%s5112 + $0x10] sm:$0xff]
      %v5116 = vld [vmem:[%s5112 + $0x18] sm:$0xff]
      %s5117 = scalar_lea.vmem %s25, 4
      %v5118 = vld [vmem:[%s5117] sm:$0x1]
      %v5120 = vlaneseq
      %v5121 = vshrl.u32 %v5120, 7
      %v5122 = vsub.s32 0, %v5121
      %v5123 = vrot.slane %v5118, %v5122
      %5125 = vmatprep.subr.mxu0 0.0
      %5126 = vmatpush1.msra.mxu0 0.0
      %5127 = vmatprep.subr.mxu0 0.0
      %5128 = vmatpush1.msra.mxu0 0.0
      %5129 = vmatprep.subr.mxu0 0.0
      %5130 = vmatpush1.msra.mxu0 0.0
      %5131 = vmatprep.subr.mxu0 0.0
      %5132 = vmatpush1.msra.mxu0 0.0
      %5133 = vmatprep.subr.mxu0 0.0
      %5134 = vmatpush1.msra.mxu0 0.0
      %5135 = vmatprep.subr.mxu0 0.0
      %5136 = vmatpush1.msra.mxu0 0.0
      %5137 = vmatprep.subr.mxu0 0.0
      %5138 = vmatpush1.msra.mxu0 0.0
      %5139 = vmatprep.subr.mxu0 0.0
      %5140 = vmatpush1.msra.mxu0 0.0
      %5141 = vmatprep.subr.mxu0 0.0
      %5142 = vmatpush1.msra.mxu0 0.0
      %5143 = vmatprep.subr.mxu0 0.0
      %5144 = vmatpush1.msra.mxu0 0.0
      %5145 = vmatprep.subr.mxu0 0.0
      %5146 = vmatpush1.msra.mxu0 0.0
      %5147 = vmatprep.subr.mxu0 0.0
      %5148 = vmatpush1.msra.mxu0 0.0
      %5149 = vmatprep.subr.mxu0 0.0
      %5150 = vmatpush1.msra.mxu0 %v5116
      %5151 = vmatprep.subr.mxu0 0.0
      %5152 = vmatpush1.msra.mxu0 %v5115
      %5153 = vmatprep.subr.mxu0 0.0
      %5154 = vmatpush1.msra.mxu0 %v5114
      %5155 = vmatprep.subr.mxu0 0.0
      %5156 = vmatpush1.msra.mxu0 %v5113
      %5157 = vmatprep.subr.mxu0 0.0
      %5158 = vmatpush2.msra.mxu0 0.0
      %5159 = vmatprep.subr.mxu0 0.0
      %5160 = vmatpush2.msra.mxu0 0.0
      %5161 = vmatprep.subr.mxu0 0.0
      %5162 = vmatpush2.msra.mxu0 0.0
      %5163 = vmatprep.subr.mxu0 0.0
      %5164 = vmatpush2.msra.mxu0 0.0
      %5165 = vmatprep.subr.mxu0 0.0
      %5166 = vmatpush2.msra.mxu0 0.0
      %5167 = vmatprep.subr.mxu0 0.0
      %5168 = vmatpush2.msra.mxu0 0.0
      %5169 = vmatprep.subr.mxu0 0.0
      %5170 = vmatpush2.msra.mxu0 0.0
      %5171 = vmatprep.subr.mxu0 0.0
      %5172 = vmatpush2.msra.mxu0 0.0
      %5173 = vmatprep.subr.mxu0 0.0
      %5174 = vmatpush2.msra.mxu0 0.0
      %5175 = vmatprep.subr.mxu0 0.0
      %5176 = vmatpush2.msra.mxu0 0.0
      %5177 = vmatprep.subr.mxu0 0.0
      %5178 = vmatpush2.msra.mxu0 0.0
      %5179 = vmatprep.subr.mxu0 0.0
      %5180 = vmatpush2.msra.mxu0 0.0
      %5181 = vmatprep.subr.mxu0 0.0
      %5182 = vmatpush2.msra.mxu0 0.0
      %5183 = vmatprep.subr.mxu0 0.0
      %5184 = vmatpush2.msra.mxu0 0.0
      %5185 = vmatprep.subr.mxu0 0.0
      %5186 = vmatpush2.msra.mxu0 0.0
      %5187 = vmatprep.subr.mxu0 0.0
      %5188 = vmatpush2.msra.mxu0 0.0
      %5189 = vmatprep.mubr.f32.mxu0 0.0
      %5190 = vmatmul.mubr.f32.gmra.mxu0 %v5000
      %v5191 = vpop.f32.mrf.mxu0
      %v5192 = vadd.f32 %v5123, %v5191
      %v5193 = vpop.f32.mrf.mxu0
      %5194 = vmatprep.mubr.f32.mxu0 0.0
      %5195 = vmatmul.mubr.f32.gmra.mxu0 %v5003
      %v5196 = vpop.f32.mrf.mxu0
      %v5197 = vadd.f32 %v5123, %v5196
      %v5198 = vpop.f32.mrf.mxu0
      %5199 = vmatprep.mubr.f32.mxu0 0.0
      %5200 = vmatmul.mubr.f32.gmra.mxu0 %v5006
      %v5201 = vpop.f32.mrf.mxu0
      %v5202 = vadd.f32 %v5123, %v5201
      %v5203 = vpop.f32.mrf.mxu0
      %5204 = vmatprep.mubr.f32.mxu0 0.0
      %5205 = vmatmul.mubr.f32.gmra.mxu0 %v5009
      %v5206 = vpop.f32.mrf.mxu0
      %v5207 = vadd.f32 %v5123, %v5206
      %v5208 = vpop.f32.mrf.mxu0
      %5209 = vmatprep.mubr.f32.mxu0 0.0
      %5210 = vmatmul.mubr.f32.gmra.mxu0 %v5012
      %v5211 = vpop.f32.mrf.mxu0
      %v5212 = vadd.f32 %v5123, %v5211
      %v5213 = vpop.f32.mrf.mxu0
      %5214 = vmatprep.mubr.f32.mxu0 0.0
      %5215 = vmatmul.mubr.f32.gmra.mxu0 %v5015
      %v5216 = vpop.f32.mrf.mxu0
      %v5217 = vadd.f32 %v5123, %v5216
      %v5218 = vpop.f32.mrf.mxu0
      %5219 = vdwg.mxu0
      %s5220 = scalar_lea.vmem %s21, 128
      %v5221 = vld [vmem:[%s5220] sm:$0xff]
      %v5222 = vld [vmem:[%s5220 + $0x8] sm:$0xff]
      %v5223 = vld [vmem:[%s5220 + $0x10] sm:$0xff]
      %v5224 = vld [vmem:[%s5220 + $0x18] sm:$0xff]
      %s5225 = scalar_lea.vmem %s27, 4
      %v5226 = vld [vmem:[%s5225] sm:$0x1]
      %v5228 = vlaneseq
      %v5229 = vshrl.u32 %v5228, 7
      %v5230 = vsub.s32 0, %v5229
      %v5231 = vrot.slane %v5226, %v5230
      %5233 = vmatprep.subr.mxu0 0.0
      %5234 = vmatpush1.msra.mxu0 0.0
      %5235 = vmatprep.subr.mxu0 0.0
      %5236 = vmatpush1.msra.mxu0 0.0
      %5237 = vmatprep.subr.mxu0 0.0
      %5238 = vmatpush1.msra.mxu0 0.0
      %5239 = vmatprep.subr.mxu0 0.0
      %5240 = vmatpush1.msra.mxu0 0.0
      %5241 = vmatprep.subr.mxu0 0.0
      %5242 = vmatpush1.msra.mxu0 0.0
      %5243 = vmatprep.subr.mxu0 0.0
      %5244 = vmatpush1.msra.mxu0 0.0
      %5245 = vmatprep.subr.mxu0 0.0
      %5246 = vmatpush1.msra.mxu0 0.0
      %5247 = vmatprep.subr.mxu0 0.0
      %5248 = vmatpush1.msra.mxu0 0.0
      %5249 = vmatprep.subr.mxu0 0.0
      %5250 = vmatpush1.msra.mxu0 0.0
      %5251 = vmatprep.subr.mxu0 0.0
      %5252 = vmatpush1.msra.mxu0 0.0
      %5253 = vmatprep.subr.mxu0 0.0
      %5254 = vmatpush1.msra.mxu0 0.0
      %5255 = vmatprep.subr.mxu0 0.0
      %5256 = vmatpush1.msra.mxu0 0.0
      %5257 = vmatprep.subr.mxu0 0.0
      %5258 = vmatpush1.msra.mxu0 %v5224
      %5259 = vmatprep.subr.mxu0 0.0
      %5260 = vmatpush1.msra.mxu0 %v5223
      %5261 = vmatprep.subr.mxu0 0.0
      %5262 = vmatpush1.msra.mxu0 %v5222
      %5263 = vmatprep.subr.mxu0 0.0
      %5264 = vmatpush1.msra.mxu0 %v5221
      %5265 = vmatprep.subr.mxu0 0.0
      %5266 = vmatpush2.msra.mxu0 0.0
      %5267 = vmatprep.subr.mxu0 0.0
      %5268 = vmatpush2.msra.mxu0 0.0
      %5269 = vmatprep.subr.mxu0 0.0
      %5270 = vmatpush2.msra.mxu0 0.0
      %5271 = vmatprep.subr.mxu0 0.0
      %5272 = vmatpush2.msra.mxu0 0.0
      %5273 = vmatprep.subr.mxu0 0.0
      %5274 = vmatpush2.msra.mxu0 0.0
      %5275 = vmatprep.subr.mxu0 0.0
      %5276 = vmatpush2.msra.mxu0 0.0
      %5277 = vmatprep.subr.mxu0 0.0
      %5278 = vmatpush2.msra.mxu0 0.0
      %5279 = vmatprep.subr.mxu0 0.0
      %5280 = vmatpush2.msra.mxu0 0.0
      %5281 = vmatprep.subr.mxu0 0.0
      %5282 = vmatpush2.msra.mxu0 0.0
      %5283 = vmatprep.subr.mxu0 0.0
      %5284 = vmatpush2.msra.mxu0 0.0
      %5285 = vmatprep.subr.mxu0 0.0
      %5286 = vmatpush2.msra.mxu0 0.0
      %5287 = vmatprep.subr.mxu0 0.0
      %5288 = vmatpush2.msra.mxu0 0.0
      %5289 = vmatprep.subr.mxu0 0.0
      %5290 = vmatpush2.msra.mxu0 0.0
      %5291 = vmatprep.subr.mxu0 0.0
      %5292 = vmatpush2.msra.mxu0 0.0
      %5293 = vmatprep.subr.mxu0 0.0
      %5294 = vmatpush2.msra.mxu0 0.0
      %5295 = vmatprep.subr.mxu0 0.0
      %5296 = vmatpush2.msra.mxu0 0.0
      %5297 = vmatprep.mubr.f32.mxu0 0.0
      %5298 = vmatmul.mubr.f32.gmra.mxu0 %v5000
      %v5299 = vpop.f32.mrf.mxu0
      %v5300 = vadd.f32 %v5231, %v5299
      %v5301 = vpop.f32.mrf.mxu0
      %5302 = vmatprep.mubr.f32.mxu0 0.0
      %5303 = vmatmul.mubr.f32.gmra.mxu0 %v5003
      %v5304 = vpop.f32.mrf.mxu0
      %v5305 = vadd.f32 %v5231, %v5304
      %v5306 = vpop.f32.mrf.mxu0
      %5307 = vmatprep.mubr.f32.mxu0 0.0
      %5308 = vmatmul.mubr.f32.gmra.mxu0 %v5006
      %v5309 = vpop.f32.mrf.mxu0
      %v5310 = vadd.f32 %v5231, %v5309
      %v5311 = vpop.f32.mrf.mxu0
      %5312 = vmatprep.mubr.f32.mxu0 0.0
      %5313 = vmatmul.mubr.f32.gmra.mxu0 %v5009
      %v5314 = vpop.f32.mrf.mxu0
      %v5315 = vadd.f32 %v5231, %v5314
      %v5316 = vpop.f32.mrf.mxu0
      %5317 = vmatprep.mubr.f32.mxu0 0.0
      %5318 = vmatmul.mubr.f32.gmra.mxu0 %v5012
      %v5319 = vpop.f32.mrf.mxu0
      %v5320 = vadd.f32 %v5231, %v5319
      %v5321 = vpop.f32.mrf.mxu0
      %5322 = vmatprep.mubr.f32.mxu0 0.0
      %5323 = vmatmul.mubr.f32.gmra.mxu0 %v5015
      %v5324 = vpop.f32.mrf.mxu0
      %v5325 = vadd.f32 %v5231, %v5324
      %v5326 = vpop.f32.mrf.mxu0
      %5327 = vdwg.mxu0
      %v5328 = vmul.f32 %v5084, 0.35355338
      %v5329 = vmul.f32 %v5089, 0.35355338
      %v5330 = vmul.f32 %v5094, 0.35355338
      %v5331 = vmul.f32 %v5099, 0.35355338
      %v5332 = vmul.f32 %v5104, 0.35355338
      %v5333 = vmul.f32 %v5109, 0.35355338
      %v5335 = vsel %vm1622, %v5328, 0
      %v5338 = vsel %vm1622, %v5329, 0
      %v5341 = vsel %vm1622, %v5330, 0
      %v5344 = vsel %vm1622, %v5331, 0
      %v5347 = vsel %vm1622, %v5332, 0
      %v5350 = vsel %vm1622, %v5333, 0
      %v5353 = vsel %vm1622, %v5192, 0
      %v5356 = vsel %vm1622, %v5197, 0
      %v5359 = vsel %vm1622, %v5202, 0
      %v5362 = vsel %vm1622, %v5207, 0
      %v5365 = vsel %vm1622, %v5212, 0
      %v5368 = vsel %vm1622, %v5217, 0
      %5370 = vmatprep.subr.mxu0 0.0
      %5371 = vmatpush1.xpose.msra.mxu0 0.0
      %5372 = vmatprep.subr.mxu0 0.0
      %5373 = vmatpush1.xpose.msra.mxu0 0.0
      %5374 = vmatprep.subr.mxu0 0.0
      %5375 = vmatpush1.xpose.msra.mxu0 0.0
      %5376 = vmatprep.subr.mxu0 0.0
      %5377 = vmatpush1.xpose.msra.mxu0 0.0
      %5378 = vmatprep.subr.mxu0 0.0
      %5379 = vmatpush1.xpose.msra.mxu0 0.0
      %5380 = vmatprep.subr.mxu0 0.0
      %5381 = vmatpush1.xpose.msra.mxu0 0.0
      %5382 = vmatprep.subr.mxu0 0.0
      %5383 = vmatpush1.xpose.msra.mxu0 0.0
      %5384 = vmatprep.subr.mxu0 0.0
      %5385 = vmatpush1.xpose.msra.mxu0 0.0
      %5386 = vmatprep.subr.mxu0 0.0
      %5387 = vmatpush1.xpose.msra.mxu0 0.0
      %5388 = vmatprep.subr.mxu0 0.0
      %5389 = vmatpush1.xpose.msra.mxu0 0.0
      %5390 = vmatprep.subr.mxu0 0.0
      %5391 = vmatpush1.xpose.msra.mxu0 %v5368
      %5392 = vmatprep.subr.mxu0 0.0
      %5393 = vmatpush1.xpose.msra.mxu0 %v5365
      %5394 = vmatprep.subr.mxu0 0.0
      %5395 = vmatpush1.xpose.msra.mxu0 %v5362
      %5396 = vmatprep.subr.mxu0 0.0
      %5397 = vmatpush1.xpose.msra.mxu0 %v5359
      %5398 = vmatprep.subr.mxu0 0.0
      %5399 = vmatpush1.xpose.msra.mxu0 %v5356
      %5400 = vmatprep.subr.mxu0 0.0
      %5401 = vmatpush1.xpose.msra.mxu0 %v5353
      %5402 = vmatprep.subr.mxu0 0.0
      %5403 = vmatpush2.xpose.msra.mxu0 0.0
      %5404 = vmatprep.subr.mxu0 0.0
      %5405 = vmatpush2.xpose.msra.mxu0 0.0
      %5406 = vmatprep.subr.mxu0 0.0
      %5407 = vmatpush2.xpose.msra.mxu0 0.0
      %5408 = vmatprep.subr.mxu0 0.0
      %5409 = vmatpush2.xpose.msra.mxu0 0.0
      %5410 = vmatprep.subr.mxu0 0.0
      %5411 = vmatpush2.xpose.msra.mxu0 0.0
      %5412 = vmatprep.subr.mxu0 0.0
      %5413 = vmatpush2.xpose.msra.mxu0 0.0
      %5414 = vmatprep.subr.mxu0 0.0
      %5415 = vmatpush2.xpose.msra.mxu0 0.0
      %5416 = vmatprep.subr.mxu0 0.0
      %5417 = vmatpush2.xpose.msra.mxu0 0.0
      %5418 = vmatprep.subr.mxu0 0.0
      %5419 = vmatpush2.xpose.msra.mxu0 0.0
      %5420 = vmatprep.subr.mxu0 0.0
      %5421 = vmatpush2.xpose.msra.mxu0 0.0
      %5422 = vmatprep.subr.mxu0 0.0
      %5423 = vmatpush2.xpose.msra.mxu0 0.0
      %5424 = vmatprep.subr.mxu0 0.0
      %5425 = vmatpush2.xpose.msra.mxu0 0.0
      %5426 = vmatprep.subr.mxu0 0.0
      %5427 = vmatpush2.xpose.msra.mxu0 0.0
      %5428 = vmatprep.subr.mxu0 0.0
      %5429 = vmatpush2.xpose.msra.mxu0 0.0
      %5430 = vmatprep.subr.mxu0 0.0
      %5431 = vmatpush2.xpose.msra.mxu0 0.0
      %5432 = vmatprep.subr.mxu0 0.0
      %5433 = vmatpush2.xpose.msra.mxu0 0.0
      %5434 = vmatprep.mubr.f32.mxu0 0.0
      %5435 = vmatmul.mubr.f32.gmra.mxu0 %v5335
      %v5436 = vpop.f32.mrf.mxu0
      %v5437 = vadd.f32 0.0, %v5436
      %v5438 = vpop.f32.mrf.mxu0
      %5439 = vmatprep.mubr.f32.mxu0 0.0
      %5440 = vmatmul.mubr.f32.gmra.mxu0 %v5338
      %v5441 = vpop.f32.mrf.mxu0
      %v5442 = vadd.f32 0.0, %v5441
      %v5443 = vpop.f32.mrf.mxu0
      %5444 = vmatprep.mubr.f32.mxu0 0.0
      %5445 = vmatmul.mubr.f32.gmra.mxu0 %v5341
      %v5446 = vpop.f32.mrf.mxu0
      %v5447 = vadd.f32 0.0, %v5446
      %v5448 = vpop.f32.mrf.mxu0
      %5449 = vmatprep.mubr.f32.mxu0 0.0
      %5450 = vmatmul.mubr.f32.gmra.mxu0 %v5344
      %v5451 = vpop.f32.mrf.mxu0
      %v5452 = vadd.f32 0.0, %v5451
      %v5453 = vpop.f32.mrf.mxu0
      %5454 = vmatprep.mubr.f32.mxu0 0.0
      %5455 = vmatmul.mubr.f32.gmra.mxu0 %v5347
      %v5456 = vpop.f32.mrf.mxu0
      %v5457 = vadd.f32 0.0, %v5456
      %v5458 = vpop.f32.mrf.mxu0
      %5459 = vmatprep.mubr.f32.mxu0 0.0
      %5460 = vmatmul.mubr.f32.gmra.mxu0 %v5350
      %v5461 = vpop.f32.mrf.mxu0
      %v5462 = vadd.f32 0.0, %v5461
      %v5463 = vpop.f32.mrf.mxu0
      %5464 = vdwg.mxu0
      %v5465 = vsel %vm1754, %v5437, -inf
      %5466 = vmax.xlane.f32.xlu0 %v5465
      %v5467 = vpop.xlane.xlu0 %5466
      %v5468 = vsel %vm1754, %v5442, -inf
      %5469 = vmax.xlane.f32.xlu0 %v5468
      %v5470 = vpop.xlane.xlu0 %5469
      %v5471 = vsel %vm1754, %v5447, -inf
      %5472 = vmax.xlane.f32.xlu0 %v5471
      %v5473 = vpop.xlane.xlu0 %5472
      %v5474 = vsel %vm1754, %v5452, -inf
      %5475 = vmax.xlane.f32.xlu0 %v5474
      %v5476 = vpop.xlane.xlu0 %5475
      %v5477 = vsel %vm1754, %v5457, -inf
      %5478 = vmax.xlane.f32.xlu0 %v5477
      %v5479 = vpop.xlane.xlu0 %5478
      %v5480 = vsel %vm1770, %v5462, -inf
      %5481 = vmax.xlane.f32.xlu0 %v5480
      %v5482 = vpop.xlane.xlu0 %5481
      %v5483 = vsub.f32 %v5437, %v5467
      %v5484 = vsub.f32 %v5442, %v5470
      %v5485 = vsub.f32 %v5447, %v5473
      %v5486 = vsub.f32 %v5452, %v5476
      %v5487 = vsub.f32 %v5457, %v5479
      %v5488 = vsub.f32 %v5462, %v5482
      %v5489 = vmul.f32 %v5483, 1.442695
      %v5490 = vpow.pop %v5489
      %v5491 = vmul.f32 %v5484, 1.442695
      %v5492 = vpow.pop %v5491
      %v5493 = vmul.f32 %v5485, 1.442695
      %v5494 = vpow.pop %v5493
      %v5495 = vmul.f32 %v5486, 1.442695
      %v5496 = vpow.pop %v5495
      %v5497 = vmul.f32 %v5487, 1.442695
      %v5498 = vpow.pop %v5497
      %v5499 = vmul.f32 %v5488, 1.442695
      %v5500 = vpow.pop %v5499
      %v5501 = vsel %vm1754, %v5490, 0.0
      %5502 = vadd.xlane.f32.xlu0 %v5501
      %v5503 = vpop.xlane.xlu0 %5502
      %v5504 = vsel %vm1754, %v5492, 0.0
      %5505 = vadd.xlane.f32.xlu0 %v5504
      %v5506 = vpop.xlane.xlu0 %5505
      %v5507 = vsel %vm1754, %v5494, 0.0
      %5508 = vadd.xlane.f32.xlu0 %v5507
      %v5509 = vpop.xlane.xlu0 %5508
      %v5510 = vsel %vm1754, %v5496, 0.0
      %5511 = vadd.xlane.f32.xlu0 %v5510
      %v5512 = vpop.xlane.xlu0 %5511
      %v5513 = vsel %vm1754, %v5498, 0.0
      %5514 = vadd.xlane.f32.xlu0 %v5513
      %v5515 = vpop.xlane.xlu0 %5514
      %v5516 = vsel %vm1770, %v5500, 0.0
      %5517 = vadd.xlane.f32.xlu0 %v5516
      %v5518 = vpop.xlane.xlu0 %5517
      %v5519 = vrcp.pop %v5503
      %v5520 = vrcp.pop %v5506
      %v5521 = vrcp.pop %v5509
      %v5522 = vrcp.pop %v5512
      %v5523 = vrcp.pop %v5515
      %v5524 = vrcp.pop %v5518
      %v5525 = vmul.f32 %v5490, %v5519
      %v5526 = vmul.f32 %v5492, %v5520
      %v5527 = vmul.f32 %v5494, %v5521
      %v5528 = vmul.f32 %v5496, %v5522
      %v5529 = vmul.f32 %v5498, %v5523
      %v5530 = vmul.f32 %v5500, %v5524
      %v5532 = vsel %vm1754, %v5525, 0
      %v5535 = vsel %vm1754, %v5526, 0
      %v5538 = vsel %vm1754, %v5527, 0
      %v5541 = vsel %vm1754, %v5528, 0
      %v5544 = vsel %vm1754, %v5529, 0
      %v5547 = vsel %vm1754, %v5530, 0
      %v5550 = vsel %vm1840, %v5325, 0
      %5552 = vmatprep.subr.mxu0 0.0
      %5553 = vmatpush1.msra.mxu0 0.0
      %5554 = vmatprep.subr.mxu0 0.0
      %5555 = vmatpush1.msra.mxu0 0.0
      %5556 = vmatprep.subr.mxu0 0.0
      %5557 = vmatpush1.msra.mxu0 0.0
      %5558 = vmatprep.subr.mxu0 0.0
      %5559 = vmatpush1.msra.mxu0 0.0
      %5560 = vmatprep.subr.mxu0 0.0
      %5561 = vmatpush1.msra.mxu0 0.0
      %5562 = vmatprep.subr.mxu0 0.0
      %5563 = vmatpush1.msra.mxu0 0.0
      %5564 = vmatprep.subr.mxu0 0.0
      %5565 = vmatpush1.msra.mxu0 0.0
      %5566 = vmatprep.subr.mxu0 0.0
      %5567 = vmatpush1.msra.mxu0 0.0
      %5568 = vmatprep.subr.mxu0 0.0
      %5569 = vmatpush1.msra.mxu0 0.0
      %5570 = vmatprep.subr.mxu0 0.0
      %5571 = vmatpush1.msra.mxu0 0.0
      %5572 = vmatprep.subr.mxu0 0.0
      %5573 = vmatpush1.msra.mxu0 %v5550
      %5574 = vmatprep.subr.mxu0 0.0
      %5575 = vmatpush1.msra.mxu0 %v5320
      %5576 = vmatprep.subr.mxu0 0.0
      %5577 = vmatpush1.msra.mxu0 %v5315
      %5578 = vmatprep.subr.mxu0 0.0
      %5579 = vmatpush1.msra.mxu0 %v5310
      %5580 = vmatprep.subr.mxu0 0.0
      %5581 = vmatpush1.msra.mxu0 %v5305
      %5582 = vmatprep.subr.mxu0 0.0
      %5583 = vmatpush1.msra.mxu0 %v5300
      %5584 = vmatprep.subr.mxu0 0.0
      %5585 = vmatpush2.msra.mxu0 0.0
      %5586 = vmatprep.subr.mxu0 0.0
      %5587 = vmatpush2.msra.mxu0 0.0
      %5588 = vmatprep.subr.mxu0 0.0
      %5589 = vmatpush2.msra.mxu0 0.0
      %5590 = vmatprep.subr.mxu0 0.0
      %5591 = vmatpush2.msra.mxu0 0.0
      %5592 = vmatprep.subr.mxu0 0.0
      %5593 = vmatpush2.msra.mxu0 0.0
      %5594 = vmatprep.subr.mxu0 0.0
      %5595 = vmatpush2.msra.mxu0 0.0
      %5596 = vmatprep.subr.mxu0 0.0
      %5597 = vmatpush2.msra.mxu0 0.0
      %5598 = vmatprep.subr.mxu0 0.0
      %5599 = vmatpush2.msra.mxu0 0.0
      %5600 = vmatprep.subr.mxu0 0.0
      %5601 = vmatpush2.msra.mxu0 0.0
      %5602 = vmatprep.subr.mxu0 0.0
      %5603 = vmatpush2.msra.mxu0 0.0
      %5604 = vmatprep.subr.mxu0 0.0
      %5605 = vmatpush2.msra.mxu0 0.0
      %5606 = vmatprep.subr.mxu0 0.0
      %5607 = vmatpush2.msra.mxu0 0.0
      %5608 = vmatprep.subr.mxu0 0.0
      %5609 = vmatpush2.msra.mxu0 0.0
      %5610 = vmatprep.subr.mxu0 0.0
      %5611 = vmatpush2.msra.mxu0 0.0
      %5612 = vmatprep.subr.mxu0 0.0
      %5613 = vmatpush2.msra.mxu0 0.0
      %5614 = vmatprep.subr.mxu0 0.0
      %5615 = vmatpush2.msra.mxu0 0.0
      %5616 = vmatprep.mubr.f32.mxu0 0.0
      %5617 = vmatmul.mubr.f32.gmra.mxu0 %v5532
      %v5618 = vpop.f32.mrf.mxu0
      %v5619 = vadd.f32 0.0, %v5618
      %v5620 = vpop.f32.mrf.mxu0
      %5621 = vmatprep.mubr.f32.mxu0 0.0
      %5622 = vmatmul.mubr.f32.gmra.mxu0 %v5535
      %v5623 = vpop.f32.mrf.mxu0
      %v5624 = vadd.f32 0.0, %v5623
      %v5625 = vpop.f32.mrf.mxu0
      %5626 = vmatprep.mubr.f32.mxu0 0.0
      %5627 = vmatmul.mubr.f32.gmra.mxu0 %v5538
      %v5628 = vpop.f32.mrf.mxu0
      %v5629 = vadd.f32 0.0, %v5628
      %v5630 = vpop.f32.mrf.mxu0
      %5631 = vmatprep.mubr.f32.mxu0 0.0
      %5632 = vmatmul.mubr.f32.gmra.mxu0 %v5541
      %v5633 = vpop.f32.mrf.mxu0
      %v5634 = vadd.f32 0.0, %v5633
      %v5635 = vpop.f32.mrf.mxu0
      %5636 = vmatprep.mubr.f32.mxu0 0.0
      %5637 = vmatmul.mubr.f32.gmra.mxu0 %v5544
      %v5638 = vpop.f32.mrf.mxu0
      %v5639 = vadd.f32 0.0, %v5638
      %v5640 = vpop.f32.mrf.mxu0
      %5641 = vmatprep.mubr.f32.mxu0 0.0
      %5642 = vmatmul.mubr.f32.gmra.mxu0 %v5547
      %v5643 = vpop.f32.mrf.mxu0
      %v5644 = vadd.f32 0.0, %v5643
      %v5645 = vpop.f32.mrf.mxu0
      %5646 = vdwg.mxu0
      %s5647 = scalar_lea.vmem %s29, 32
      %v5648 = vld [vmem:[%s5647] sm:$0xff]
      %v5650 = vsel %vm1622, %v5619, 0
      %v5653 = vsel %vm1622, %v5624, 0
      %v5656 = vsel %vm1622, %v5629, 0
      %v5659 = vsel %vm1622, %v5634, 0
      %v5662 = vsel %vm1622, %v5639, 0
      %v5665 = vsel %vm1622, %v5644, 0
      %5667 = vmatprep.subr.mxu0 0.0
      %5668 = vmatpush1.msra.mxu0 0.0
      %5669 = vmatprep.subr.mxu0 0.0
      %5670 = vmatpush1.msra.mxu0 0.0
      %5671 = vmatprep.subr.mxu0 0.0
      %5672 = vmatpush1.msra.mxu0 0.0
      %5673 = vmatprep.subr.mxu0 0.0
      %5674 = vmatpush1.msra.mxu0 0.0
      %5675 = vmatprep.subr.mxu0 0.0
      %5676 = vmatpush1.msra.mxu0 0.0
      %5677 = vmatprep.subr.mxu0 0.0
      %5678 = vmatpush1.msra.mxu0 0.0
      %5679 = vmatprep.subr.mxu0 0.0
      %5680 = vmatpush1.msra.mxu0 0.0
      %5681 = vmatprep.subr.mxu0 0.0
      %5682 = vmatpush1.msra.mxu0 0.0
      %5683 = vmatprep.subr.mxu0 0.0
      %5684 = vmatpush1.msra.mxu0 0.0
      %5685 = vmatprep.subr.mxu0 0.0
      %5686 = vmatpush1.msra.mxu0 0.0
      %5687 = vmatprep.subr.mxu0 0.0
      %5688 = vmatpush1.msra.mxu0 0.0
      %5689 = vmatprep.subr.mxu0 0.0
      %5690 = vmatpush1.msra.mxu0 0.0
      %5691 = vmatprep.subr.mxu0 0.0
      %5692 = vmatpush1.msra.mxu0 0.0
      %5693 = vmatprep.subr.mxu0 0.0
      %5694 = vmatpush1.msra.mxu0 0.0
      %5695 = vmatprep.subr.mxu0 0.0
      %5696 = vmatpush1.msra.mxu0 0.0
      %5697 = vmatprep.subr.mxu0 0.0
      %5698 = vmatpush1.msra.mxu0 %v5648
      %5699 = vmatprep.subr.mxu0 0.0
      %5700 = vmatpush2.msra.mxu0 0.0
      %5701 = vmatprep.subr.mxu0 0.0
      %5702 = vmatpush2.msra.mxu0 0.0
      %5703 = vmatprep.subr.mxu0 0.0
      %5704 = vmatpush2.msra.mxu0 0.0
      %5705 = vmatprep.subr.mxu0 0.0
      %5706 = vmatpush2.msra.mxu0 0.0
      %5707 = vmatprep.subr.mxu0 0.0
      %5708 = vmatpush2.msra.mxu0 0.0
      %5709 = vmatprep.subr.mxu0 0.0
      %5710 = vmatpush2.msra.mxu0 0.0
      %5711 = vmatprep.subr.mxu0 0.0
      %5712 = vmatpush2.msra.mxu0 0.0
      %5713 = vmatprep.subr.mxu0 0.0
      %5714 = vmatpush2.msra.mxu0 0.0
      %5715 = vmatprep.subr.mxu0 0.0
      %5716 = vmatpush2.msra.mxu0 0.0
      %5717 = vmatprep.subr.mxu0 0.0
      %5718 = vmatpush2.msra.mxu0 0.0
      %5719 = vmatprep.subr.mxu0 0.0
      %5720 = vmatpush2.msra.mxu0 0.0
      %5721 = vmatprep.subr.mxu0 0.0
      %5722 = vmatpush2.msra.mxu0 0.0
      %5723 = vmatprep.subr.mxu0 0.0
      %5724 = vmatpush2.msra.mxu0 0.0
      %5725 = vmatprep.subr.mxu0 0.0
      %5726 = vmatpush2.msra.mxu0 0.0
      %5727 = vmatprep.subr.mxu0 0.0
      %5728 = vmatpush2.msra.mxu0 0.0
      %5729 = vmatprep.subr.mxu0 0.0
      %5730 = vmatpush2.msra.mxu0 0.0
      %5731 = vmatprep.mubr.f32.mxu0 0.0
      %5732 = vmatmul.mubr.f32.gmra.mxu0 %v5650
      %v5733 = vpop.f32.mrf.mxu0
      %v5734 = vadd.f32 0.0, %v5733
      %v5735 = vpop.f32.mrf.mxu0
      %5736 = vmatprep.mubr.f32.mxu0 0.0
      %5737 = vmatmul.mubr.f32.gmra.mxu0 %v5653
      %v5738 = vpop.f32.mrf.mxu0
      %v5739 = vadd.f32 0.0, %v5738
      %v5740 = vpop.f32.mrf.mxu0
      %5741 = vmatprep.mubr.f32.mxu0 0.0
      %5742 = vmatmul.mubr.f32.gmra.mxu0 %v5656
      %v5743 = vpop.f32.mrf.mxu0
      %v5744 = vadd.f32 0.0, %v5743
      %v5745 = vpop.f32.mrf.mxu0
      %5746 = vmatprep.mubr.f32.mxu0 0.0
      %5747 = vmatmul.mubr.f32.gmra.mxu0 %v5659
      %v5748 = vpop.f32.mrf.mxu0
      %v5749 = vadd.f32 0.0, %v5748
      %v5750 = vpop.f32.mrf.mxu0
      %5751 = vmatprep.mubr.f32.mxu0 0.0
      %5752 = vmatmul.mubr.f32.gmra.mxu0 %v5662
      %v5753 = vpop.f32.mrf.mxu0
      %v5754 = vadd.f32 0.0, %v5753
      %v5755 = vpop.f32.mrf.mxu0
      %5756 = vmatprep.mubr.f32.mxu0 0.0
      %5757 = vmatmul.mubr.f32.gmra.mxu0 %v5665
      %v5758 = vpop.f32.mrf.mxu0
      %v5759 = vadd.f32 0.0, %v5758
      %v5760 = vpop.f32.mrf.mxu0
      %5761 = vdwg.mxu0
      %v5762 = vadd.f32 %v4985, %v5734
      %v5763 = vadd.f32 %v4985, %v5739
      %v5764 = vadd.f32 %v4985, %v5744
      %v5765 = vadd.f32 %v4985, %v5749
      %v5766 = vadd.f32 %v4985, %v5754
      %v5767 = vadd.f32 %v4985, %v5759
      %s5768 = scalar_lea.vmem %s17, 160
      %v5769 = vld [vmem:[%s5768] sm:$0xff]
      %v5770 = vld [vmem:[%s5768 + $0x8] sm:$0xff]
      %v5771 = vld [vmem:[%s5768 + $0x10] sm:$0xff]
      %v5772 = vld [vmem:[%s5768 + $0x18] sm:$0xff]
      %s5773 = scalar_lea.vmem %s23, 5
      %v5774 = vld [vmem:[%s5773] sm:$0x1]
      %v5776 = vlaneseq
      %v5777 = vshrl.u32 %v5776, 7
      %v5778 = vsub.s32 0, %v5777
      %v5779 = vrot.slane %v5774, %v5778
      %5781 = vmatprep.subr.mxu0 0.0
      %5782 = vmatpush1.msra.mxu0 0.0
      %5783 = vmatprep.subr.mxu0 0.0
      %5784 = vmatpush1.msra.mxu0 0.0
      %5785 = vmatprep.subr.mxu0 0.0
      %5786 = vmatpush1.msra.mxu0 0.0
      %5787 = vmatprep.subr.mxu0 0.0
      %5788 = vmatpush1.msra.mxu0 0.0
      %5789 = vmatprep.subr.mxu0 0.0
      %5790 = vmatpush1.msra.mxu0 0.0
      %5791 = vmatprep.subr.mxu0 0.0
      %5792 = vmatpush1.msra.mxu0 0.0
      %5793 = vmatprep.subr.mxu0 0.0
      %5794 = vmatpush1.msra.mxu0 0.0
      %5795 = vmatprep.subr.mxu0 0.0
      %5796 = vmatpush1.msra.mxu0 0.0
      %5797 = vmatprep.subr.mxu0 0.0
      %5798 = vmatpush1.msra.mxu0 0.0
      %5799 = vmatprep.subr.mxu0 0.0
      %5800 = vmatpush1.msra.mxu0 0.0
      %5801 = vmatprep.subr.mxu0 0.0
      %5802 = vmatpush1.msra.mxu0 0.0
      %5803 = vmatprep.subr.mxu0 0.0
      %5804 = vmatpush1.msra.mxu0 0.0
      %5805 = vmatprep.subr.mxu0 0.0
      %5806 = vmatpush1.msra.mxu0 %v5772
      %5807 = vmatprep.subr.mxu0 0.0
      %5808 = vmatpush1.msra.mxu0 %v5771
      %5809 = vmatprep.subr.mxu0 0.0
      %5810 = vmatpush1.msra.mxu0 %v5770
      %5811 = vmatprep.subr.mxu0 0.0
      %5812 = vmatpush1.msra.mxu0 %v5769
      %5813 = vmatprep.subr.mxu0 0.0
      %5814 = vmatpush2.msra.mxu0 0.0
      %5815 = vmatprep.subr.mxu0 0.0
      %5816 = vmatpush2.msra.mxu0 0.0
      %5817 = vmatprep.subr.mxu0 0.0
      %5818 = vmatpush2.msra.mxu0 0.0
      %5819 = vmatprep.subr.mxu0 0.0
      %5820 = vmatpush2.msra.mxu0 0.0
      %5821 = vmatprep.subr.mxu0 0.0
      %5822 = vmatpush2.msra.mxu0 0.0
      %5823 = vmatprep.subr.mxu0 0.0
      %5824 = vmatpush2.msra.mxu0 0.0
      %5825 = vmatprep.subr.mxu0 0.0
      %5826 = vmatpush2.msra.mxu0 0.0
      %5827 = vmatprep.subr.mxu0 0.0
      %5828 = vmatpush2.msra.mxu0 0.0
      %5829 = vmatprep.subr.mxu0 0.0
      %5830 = vmatpush2.msra.mxu0 0.0
      %5831 = vmatprep.subr.mxu0 0.0
      %5832 = vmatpush2.msra.mxu0 0.0
      %5833 = vmatprep.subr.mxu0 0.0
      %5834 = vmatpush2.msra.mxu0 0.0
      %5835 = vmatprep.subr.mxu0 0.0
      %5836 = vmatpush2.msra.mxu0 0.0
      %5837 = vmatprep.subr.mxu0 0.0
      %5838 = vmatpush2.msra.mxu0 0.0
      %5839 = vmatprep.subr.mxu0 0.0
      %5840 = vmatpush2.msra.mxu0 0.0
      %5841 = vmatprep.subr.mxu0 0.0
      %5842 = vmatpush2.msra.mxu0 0.0
      %5843 = vmatprep.subr.mxu0 0.0
      %5844 = vmatpush2.msra.mxu0 0.0
      %5845 = vmatprep.mubr.f32.mxu0 0.0
      %5846 = vmatmul.mubr.f32.gmra.mxu0 %v5000
      %v5847 = vpop.f32.mrf.mxu0
      %v5848 = vadd.f32 %v5779, %v5847
      %v5849 = vpop.f32.mrf.mxu0
      %5850 = vmatprep.mubr.f32.mxu0 0.0
      %5851 = vmatmul.mubr.f32.gmra.mxu0 %v5003
      %v5852 = vpop.f32.mrf.mxu0
      %v5853 = vadd.f32 %v5779, %v5852
      %v5854 = vpop.f32.mrf.mxu0
      %5855 = vmatprep.mubr.f32.mxu0 0.0
      %5856 = vmatmul.mubr.f32.gmra.mxu0 %v5006
      %v5857 = vpop.f32.mrf.mxu0
      %v5858 = vadd.f32 %v5779, %v5857
      %v5859 = vpop.f32.mrf.mxu0
      %5860 = vmatprep.mubr.f32.mxu0 0.0
      %5861 = vmatmul.mubr.f32.gmra.mxu0 %v5009
      %v5862 = vpop.f32.mrf.mxu0
      %v5863 = vadd.f32 %v5779, %v5862
      %v5864 = vpop.f32.mrf.mxu0
      %5865 = vmatprep.mubr.f32.mxu0 0.0
      %5866 = vmatmul.mubr.f32.gmra.mxu0 %v5012
      %v5867 = vpop.f32.mrf.mxu0
      %v5868 = vadd.f32 %v5779, %v5867
      %v5869 = vpop.f32.mrf.mxu0
      %5870 = vmatprep.mubr.f32.mxu0 0.0
      %5871 = vmatmul.mubr.f32.gmra.mxu0 %v5015
      %v5872 = vpop.f32.mrf.mxu0
      %v5873 = vadd.f32 %v5779, %v5872
      %v5874 = vpop.f32.mrf.mxu0
      %5875 = vdwg.mxu0
      %s5876 = scalar_lea.vmem %s19, 160
      %v5877 = vld [vmem:[%s5876] sm:$0xff]
      %v5878 = vld [vmem:[%s5876 + $0x8] sm:$0xff]
      %v5879 = vld [vmem:[%s5876 + $0x10] sm:$0xff]
      %v5880 = vld [vmem:[%s5876 + $0x18] sm:$0xff]
      %s5881 = scalar_lea.vmem %s25, 5
      %v5882 = vld [vmem:[%s5881] sm:$0x1]
      %v5884 = vlaneseq
      %v5885 = vshrl.u32 %v5884, 7
      %v5886 = vsub.s32 0, %v5885
      %v5887 = vrot.slane %v5882, %v5886
      %5889 = vmatprep.subr.mxu0 0.0
      %5890 = vmatpush1.msra.mxu0 0.0
      %5891 = vmatprep.subr.mxu0 0.0
      %5892 = vmatpush1.msra.mxu0 0.0
      %5893 = vmatprep.subr.mxu0 0.0
      %5894 = vmatpush1.msra.mxu0 0.0
      %5895 = vmatprep.subr.mxu0 0.0
      %5896 = vmatpush1.msra.mxu0 0.0
      %5897 = vmatprep.subr.mxu0 0.0
      %5898 = vmatpush1.msra.mxu0 0.0
      %5899 = vmatprep.subr.mxu0 0.0
      %5900 = vmatpush1.msra.mxu0 0.0
      %5901 = vmatprep.subr.mxu0 0.0
      %5902 = vmatpush1.msra.mxu0 0.0
      %5903 = vmatprep.subr.mxu0 0.0
      %5904 = vmatpush1.msra.mxu0 0.0
      %5905 = vmatprep.subr.mxu0 0.0
      %5906 = vmatpush1.msra.mxu0 0.0
      %5907 = vmatprep.subr.mxu0 0.0
      %5908 = vmatpush1.msra.mxu0 0.0
      %5909 = vmatprep.subr.mxu0 0.0
      %5910 = vmatpush1.msra.mxu0 0.0
      %5911 = vmatprep.subr.mxu0 0.0
      %5912 = vmatpush1.msra.mxu0 0.0
      %5913 = vmatprep.subr.mxu0 0.0
      %5914 = vmatpush1.msra.mxu0 %v5880
      %5915 = vmatprep.subr.mxu0 0.0
      %5916 = vmatpush1.msra.mxu0 %v5879
      %5917 = vmatprep.subr.mxu0 0.0
      %5918 = vmatpush1.msra.mxu0 %v5878
      %5919 = vmatprep.subr.mxu0 0.0
      %5920 = vmatpush1.msra.mxu0 %v5877
      %5921 = vmatprep.subr.mxu0 0.0
      %5922 = vmatpush2.msra.mxu0 0.0
      %5923 = vmatprep.subr.mxu0 0.0
      %5924 = vmatpush2.msra.mxu0 0.0
      %5925 = vmatprep.subr.mxu0 0.0
      %5926 = vmatpush2.msra.mxu0 0.0
      %5927 = vmatprep.subr.mxu0 0.0
      %5928 = vmatpush2.msra.mxu0 0.0
      %5929 = vmatprep.subr.mxu0 0.0
      %5930 = vmatpush2.msra.mxu0 0.0
      %5931 = vmatprep.subr.mxu0 0.0
      %5932 = vmatpush2.msra.mxu0 0.0
      %5933 = vmatprep.subr.mxu0 0.0
      %5934 = vmatpush2.msra.mxu0 0.0
      %5935 = vmatprep.subr.mxu0 0.0
      %5936 = vmatpush2.msra.mxu0 0.0
      %5937 = vmatprep.subr.mxu0 0.0
      %5938 = vmatpush2.msra.mxu0 0.0
      %5939 = vmatprep.subr.mxu0 0.0
      %5940 = vmatpush2.msra.mxu0 0.0
      %5941 = vmatprep.subr.mxu0 0.0
      %5942 = vmatpush2.msra.mxu0 0.0
      %5943 = vmatprep.subr.mxu0 0.0
      %5944 = vmatpush2.msra.mxu0 0.0
      %5945 = vmatprep.subr.mxu0 0.0
      %5946 = vmatpush2.msra.mxu0 0.0
      %5947 = vmatprep.subr.mxu0 0.0
      %5948 = vmatpush2.msra.mxu0 0.0
      %5949 = vmatprep.subr.mxu0 0.0
      %5950 = vmatpush2.msra.mxu0 0.0
      %5951 = vmatprep.subr.mxu0 0.0
      %5952 = vmatpush2.msra.mxu0 0.0
      %5953 = vmatprep.mubr.f32.mxu0 0.0
      %5954 = vmatmul.mubr.f32.gmra.mxu0 %v5000
      %v5955 = vpop.f32.mrf.mxu0
      %v5956 = vadd.f32 %v5887, %v5955
      %v5957 = vpop.f32.mrf.mxu0
      %5958 = vmatprep.mubr.f32.mxu0 0.0
      %5959 = vmatmul.mubr.f32.gmra.mxu0 %v5003
      %v5960 = vpop.f32.mrf.mxu0
      %v5961 = vadd.f32 %v5887, %v5960
      %v5962 = vpop.f32.mrf.mxu0
      %5963 = vmatprep.mubr.f32.mxu0 0.0
      %5964 = vmatmul.mubr.f32.gmra.mxu0 %v5006
      %v5965 = vpop.f32.mrf.mxu0
      %v5966 = vadd.f32 %v5887, %v5965
      %v5967 = vpop.f32.mrf.mxu0
      %5968 = vmatprep.mubr.f32.mxu0 0.0
      %5969 = vmatmul.mubr.f32.gmra.mxu0 %v5009
      %v5970 = vpop.f32.mrf.mxu0
      %v5971 = vadd.f32 %v5887, %v5970
      %v5972 = vpop.f32.mrf.mxu0
      %5973 = vmatprep.mubr.f32.mxu0 0.0
      %5974 = vmatmul.mubr.f32.gmra.mxu0 %v5012
      %v5975 = vpop.f32.mrf.mxu0
      %v5976 = vadd.f32 %v5887, %v5975
      %v5977 = vpop.f32.mrf.mxu0
      %5978 = vmatprep.mubr.f32.mxu0 0.0
      %5979 = vmatmul.mubr.f32.gmra.mxu0 %v5015
      %v5980 = vpop.f32.mrf.mxu0
      %v5981 = vadd.f32 %v5887, %v5980
      %v5982 = vpop.f32.mrf.mxu0
      %5983 = vdwg.mxu0
      %s5984 = scalar_lea.vmem %s21, 160
      %v5985 = vld [vmem:[%s5984] sm:$0xff]
      %v5986 = vld [vmem:[%s5984 + $0x8] sm:$0xff]
      %v5987 = vld [vmem:[%s5984 + $0x10] sm:$0xff]
      %v5988 = vld [vmem:[%s5984 + $0x18] sm:$0xff]
      %s5989 = scalar_lea.vmem %s27, 5
      %v5990 = vld [vmem:[%s5989] sm:$0x1]
      %v5992 = vlaneseq
      %v5993 = vshrl.u32 %v5992, 7
      %v5994 = vsub.s32 0, %v5993
      %v5995 = vrot.slane %v5990, %v5994
      %5997 = vmatprep.subr.mxu0 0.0
      %5998 = vmatpush1.msra.mxu0 0.0
      %5999 = vmatprep.subr.mxu0 0.0
      %6000 = vmatpush1.msra.mxu0 0.0
      %6001 = vmatprep.subr.mxu0 0.0
      %6002 = vmatpush1.msra.mxu0 0.0
      %6003 = vmatprep.subr.mxu0 0.0
      %6004 = vmatpush1.msra.mxu0 0.0
      %6005 = vmatprep.subr.mxu0 0.0
      %6006 = vmatpush1.msra.mxu0 0.0
      %6007 = vmatprep.subr.mxu0 0.0
      %6008 = vmatpush1.msra.mxu0 0.0
      %6009 = vmatprep.subr.mxu0 0.0
      %6010 = vmatpush1.msra.mxu0 0.0
      %6011 = vmatprep.subr.mxu0 0.0
      %6012 = vmatpush1.msra.mxu0 0.0
      %6013 = vmatprep.subr.mxu0 0.0
      %6014 = vmatpush1.msra.mxu0 0.0
      %6015 = vmatprep.subr.mxu0 0.0
      %6016 = vmatpush1.msra.mxu0 0.0
      %6017 = vmatprep.subr.mxu0 0.0
      %6018 = vmatpush1.msra.mxu0 0.0
      %6019 = vmatprep.subr.mxu0 0.0
      %6020 = vmatpush1.msra.mxu0 0.0
      %6021 = vmatprep.subr.mxu0 0.0
      %6022 = vmatpush1.msra.mxu0 %v5988
      %6023 = vmatprep.subr.mxu0 0.0
      %6024 = vmatpush1.msra.mxu0 %v5987
      %6025 = vmatprep.subr.mxu0 0.0
      %6026 = vmatpush1.msra.mxu0 %v5986
      %6027 = vmatprep.subr.mxu0 0.0
      %6028 = vmatpush1.msra.mxu0 %v5985
      %6029 = vmatprep.subr.mxu0 0.0
      %6030 = vmatpush2.msra.mxu0 0.0
      %6031 = vmatprep.subr.mxu0 0.0
      %6032 = vmatpush2.msra.mxu0 0.0
      %6033 = vmatprep.subr.mxu0 0.0
      %6034 = vmatpush2.msra.mxu0 0.0
      %6035 = vmatprep.subr.mxu0 0.0
      %6036 = vmatpush2.msra.mxu0 0.0
      %6037 = vmatprep.subr.mxu0 0.0
      %6038 = vmatpush2.msra.mxu0 0.0
      %6039 = vmatprep.subr.mxu0 0.0
      %6040 = vmatpush2.msra.mxu0 0.0
      %6041 = vmatprep.subr.mxu0 0.0
      %6042 = vmatpush2.msra.mxu0 0.0
      %6043 = vmatprep.subr.mxu0 0.0
      %6044 = vmatpush2.msra.mxu0 0.0
      %6045 = vmatprep.subr.mxu0 0.0
      %6046 = vmatpush2.msra.mxu0 0.0
      %6047 = vmatprep.subr.mxu0 0.0
      %6048 = vmatpush2.msra.mxu0 0.0
      %6049 = vmatprep.subr.mxu0 0.0
      %6050 = vmatpush2.msra.mxu0 0.0
      %6051 = vmatprep.subr.mxu0 0.0
      %6052 = vmatpush2.msra.mxu0 0.0
      %6053 = vmatprep.subr.mxu0 0.0
      %6054 = vmatpush2.msra.mxu0 0.0
      %6055 = vmatprep.subr.mxu0 0.0
      %6056 = vmatpush2.msra.mxu0 0.0
      %6057 = vmatprep.subr.mxu0 0.0
      %6058 = vmatpush2.msra.mxu0 0.0
      %6059 = vmatprep.subr.mxu0 0.0
      %6060 = vmatpush2.msra.mxu0 0.0
      %6061 = vmatprep.mubr.f32.mxu0 0.0
      %6062 = vmatmul.mubr.f32.gmra.mxu0 %v5000
      %v6063 = vpop.f32.mrf.mxu0
      %v6064 = vadd.f32 %v5995, %v6063
      %v6065 = vpop.f32.mrf.mxu0
      %6066 = vmatprep.mubr.f32.mxu0 0.0
      %6067 = vmatmul.mubr.f32.gmra.mxu0 %v5003
      %v6068 = vpop.f32.mrf.mxu0
      %v6069 = vadd.f32 %v5995, %v6068
      %v6070 = vpop.f32.mrf.mxu0
      %6071 = vmatprep.mubr.f32.mxu0 0.0
      %6072 = vmatmul.mubr.f32.gmra.mxu0 %v5006
      %v6073 = vpop.f32.mrf.mxu0
      %v6074 = vadd.f32 %v5995, %v6073
      %v6075 = vpop.f32.mrf.mxu0
      %6076 = vmatprep.mubr.f32.mxu0 0.0
      %6077 = vmatmul.mubr.f32.gmra.mxu0 %v5009
      %v6078 = vpop.f32.mrf.mxu0
      %v6079 = vadd.f32 %v5995, %v6078
      %v6080 = vpop.f32.mrf.mxu0
      %6081 = vmatprep.mubr.f32.mxu0 0.0
      %6082 = vmatmul.mubr.f32.gmra.mxu0 %v5012
      %v6083 = vpop.f32.mrf.mxu0
      %v6084 = vadd.f32 %v5995, %v6083
      %v6085 = vpop.f32.mrf.mxu0
      %6086 = vmatprep.mubr.f32.mxu0 0.0
      %6087 = vmatmul.mubr.f32.gmra.mxu0 %v5015
      %v6088 = vpop.f32.mrf.mxu0
      %v6089 = vadd.f32 %v5995, %v6088
      %v6090 = vpop.f32.mrf.mxu0
      %6091 = vdwg.mxu0
      %v6092 = vmul.f32 %v5848, 0.35355338
      %v6093 = vmul.f32 %v5853, 0.35355338
      %v6094 = vmul.f32 %v5858, 0.35355338
      %v6095 = vmul.f32 %v5863, 0.35355338
      %v6096 = vmul.f32 %v5868, 0.35355338
      %v6097 = vmul.f32 %v5873, 0.35355338
      %v6099 = vsel %vm1622, %v6092, 0
      %v6102 = vsel %vm1622, %v6093, 0
      %v6105 = vsel %vm1622, %v6094, 0
      %v6108 = vsel %vm1622, %v6095, 0
      %v6111 = vsel %vm1622, %v6096, 0
      %v6114 = vsel %vm1622, %v6097, 0
      %v6117 = vsel %vm1622, %v5956, 0
      %v6120 = vsel %vm1622, %v5961, 0
      %v6123 = vsel %vm1622, %v5966, 0
      %v6126 = vsel %vm1622, %v5971, 0
      %v6129 = vsel %vm1622, %v5976, 0
      %v6132 = vsel %vm1622, %v5981, 0
      %6134 = vmatprep.subr.mxu0 0.0
      %6135 = vmatpush1.xpose.msra.mxu0 0.0
      %6136 = vmatprep.subr.mxu0 0.0
      %6137 = vmatpush1.xpose.msra.mxu0 0.0
      %6138 = vmatprep.subr.mxu0 0.0
      %6139 = vmatpush1.xpose.msra.mxu0 0.0
      %6140 = vmatprep.subr.mxu0 0.0
      %6141 = vmatpush1.xpose.msra.mxu0 0.0
      %6142 = vmatprep.subr.mxu0 0.0
      %6143 = vmatpush1.xpose.msra.mxu0 0.0
      %6144 = vmatprep.subr.mxu0 0.0
      %6145 = vmatpush1.xpose.msra.mxu0 0.0
      %6146 = vmatprep.subr.mxu0 0.0
      %6147 = vmatpush1.xpose.msra.mxu0 0.0
      %6148 = vmatprep.subr.mxu0 0.0
      %6149 = vmatpush1.xpose.msra.mxu0 0.0
      %6150 = vmatprep.subr.mxu0 0.0
      %6151 = vmatpush1.xpose.msra.mxu0 0.0
      %6152 = vmatprep.subr.mxu0 0.0
      %6153 = vmatpush1.xpose.msra.mxu0 0.0
      %6154 = vmatprep.subr.mxu0 0.0
      %6155 = vmatpush1.xpose.msra.mxu0 %v6132
      %6156 = vmatprep.subr.mxu0 0.0
      %6157 = vmatpush1.xpose.msra.mxu0 %v6129
      %6158 = vmatprep.subr.mxu0 0.0
      %6159 = vmatpush1.xpose.msra.mxu0 %v6126
      %6160 = vmatprep.subr.mxu0 0.0
      %6161 = vmatpush1.xpose.msra.mxu0 %v6123
      %6162 = vmatprep.subr.mxu0 0.0
      %6163 = vmatpush1.xpose.msra.mxu0 %v6120
      %6164 = vmatprep.subr.mxu0 0.0
      %6165 = vmatpush1.xpose.msra.mxu0 %v6117
      %6166 = vmatprep.subr.mxu0 0.0
      %6167 = vmatpush2.xpose.msra.mxu0 0.0
      %6168 = vmatprep.subr.mxu0 0.0
      %6169 = vmatpush2.xpose.msra.mxu0 0.0
      %6170 = vmatprep.subr.mxu0 0.0
      %6171 = vmatpush2.xpose.msra.mxu0 0.0
      %6172 = vmatprep.subr.mxu0 0.0
      %6173 = vmatpush2.xpose.msra.mxu0 0.0
      %6174 = vmatprep.subr.mxu0 0.0
      %6175 = vmatpush2.xpose.msra.mxu0 0.0
      %6176 = vmatprep.subr.mxu0 0.0
      %6177 = vmatpush2.xpose.msra.mxu0 0.0
      %6178 = vmatprep.subr.mxu0 0.0
      %6179 = vmatpush2.xpose.msra.mxu0 0.0
      %6180 = vmatprep.subr.mxu0 0.0
      %6181 = vmatpush2.xpose.msra.mxu0 0.0
      %6182 = vmatprep.subr.mxu0 0.0
      %6183 = vmatpush2.xpose.msra.mxu0 0.0
      %6184 = vmatprep.subr.mxu0 0.0
      %6185 = vmatpush2.xpose.msra.mxu0 0.0
      %6186 = vmatprep.subr.mxu0 0.0
      %6187 = vmatpush2.xpose.msra.mxu0 0.0
      %6188 = vmatprep.subr.mxu0 0.0
      %6189 = vmatpush2.xpose.msra.mxu0 0.0
      %6190 = vmatprep.subr.mxu0 0.0
      %6191 = vmatpush2.xpose.msra.mxu0 0.0
      %6192 = vmatprep.subr.mxu0 0.0
      %6193 = vmatpush2.xpose.msra.mxu0 0.0
      %6194 = vmatprep.subr.mxu0 0.0
      %6195 = vmatpush2.xpose.msra.mxu0 0.0
      %6196 = vmatprep.subr.mxu0 0.0
      %6197 = vmatpush2.xpose.msra.mxu0 0.0
      %6198 = vmatprep.mubr.f32.mxu0 0.0
      %6199 = vmatmul.mubr.f32.gmra.mxu0 %v6099
      %v6200 = vpop.f32.mrf.mxu0
      %v6201 = vadd.f32 0.0, %v6200
      %v6202 = vpop.f32.mrf.mxu0
      %6203 = vmatprep.mubr.f32.mxu0 0.0
      %6204 = vmatmul.mubr.f32.gmra.mxu0 %v6102
      %v6205 = vpop.f32.mrf.mxu0
      %v6206 = vadd.f32 0.0, %v6205
      %v6207 = vpop.f32.mrf.mxu0
      %6208 = vmatprep.mubr.f32.mxu0 0.0
      %6209 = vmatmul.mubr.f32.gmra.mxu0 %v6105
      %v6210 = vpop.f32.mrf.mxu0
      %v6211 = vadd.f32 0.0, %v6210
      %v6212 = vpop.f32.mrf.mxu0
      %6213 = vmatprep.mubr.f32.mxu0 0.0
      %6214 = vmatmul.mubr.f32.gmra.mxu0 %v6108
      %v6215 = vpop.f32.mrf.mxu0
      %v6216 = vadd.f32 0.0, %v6215
      %v6217 = vpop.f32.mrf.mxu0
      %6218 = vmatprep.mubr.f32.mxu0 0.0
      %6219 = vmatmul.mubr.f32.gmra.mxu0 %v6111
      %v6220 = vpop.f32.mrf.mxu0
      %v6221 = vadd.f32 0.0, %v6220
      %v6222 = vpop.f32.mrf.mxu0
      %6223 = vmatprep.mubr.f32.mxu0 0.0
      %6224 = vmatmul.mubr.f32.gmra.mxu0 %v6114
      %v6225 = vpop.f32.mrf.mxu0
      %v6226 = vadd.f32 0.0, %v6225
      %v6227 = vpop.f32.mrf.mxu0
      %6228 = vdwg.mxu0
      %v6229 = vsel %vm1754, %v6201, -inf
      %6230 = vmax.xlane.f32.xlu0 %v6229
      %v6231 = vpop.xlane.xlu0 %6230
      %v6232 = vsel %vm1754, %v6206, -inf
      %6233 = vmax.xlane.f32.xlu0 %v6232
      %v6234 = vpop.xlane.xlu0 %6233
      %v6235 = vsel %vm1754, %v6211, -inf
      %6236 = vmax.xlane.f32.xlu0 %v6235
      %v6237 = vpop.xlane.xlu0 %6236
      %v6238 = vsel %vm1754, %v6216, -inf
      %6239 = vmax.xlane.f32.xlu0 %v6238
      %v6240 = vpop.xlane.xlu0 %6239
      %v6241 = vsel %vm1754, %v6221, -inf
      %6242 = vmax.xlane.f32.xlu0 %v6241
      %v6243 = vpop.xlane.xlu0 %6242
      %v6244 = vsel %vm1770, %v6226, -inf
      %6245 = vmax.xlane.f32.xlu0 %v6244
      %v6246 = vpop.xlane.xlu0 %6245
      %v6247 = vsub.f32 %v6201, %v6231
      %v6248 = vsub.f32 %v6206, %v6234
      %v6249 = vsub.f32 %v6211, %v6237
      %v6250 = vsub.f32 %v6216, %v6240
      %v6251 = vsub.f32 %v6221, %v6243
      %v6252 = vsub.f32 %v6226, %v6246
      %v6253 = vmul.f32 %v6247, 1.442695
      %v6254 = vpow.pop %v6253
      %v6255 = vmul.f32 %v6248, 1.442695
      %v6256 = vpow.pop %v6255
      %v6257 = vmul.f32 %v6249, 1.442695
      %v6258 = vpow.pop %v6257
      %v6259 = vmul.f32 %v6250, 1.442695
      %v6260 = vpow.pop %v6259
      %v6261 = vmul.f32 %v6251, 1.442695
      %v6262 = vpow.pop %v6261
      %v6263 = vmul.f32 %v6252, 1.442695
      %v6264 = vpow.pop %v6263
      %v6265 = vsel %vm1754, %v6254, 0.0
      %6266 = vadd.xlane.f32.xlu0 %v6265
      %v6267 = vpop.xlane.xlu0 %6266
      %v6268 = vsel %vm1754, %v6256, 0.0
      %6269 = vadd.xlane.f32.xlu0 %v6268
      %v6270 = vpop.xlane.xlu0 %6269
      %v6271 = vsel %vm1754, %v6258, 0.0
      %6272 = vadd.xlane.f32.xlu0 %v6271
      %v6273 = vpop.xlane.xlu0 %6272
      %v6274 = vsel %vm1754, %v6260, 0.0
      %6275 = vadd.xlane.f32.xlu0 %v6274
      %v6276 = vpop.xlane.xlu0 %6275
      %v6277 = vsel %vm1754, %v6262, 0.0
      %6278 = vadd.xlane.f32.xlu0 %v6277
      %v6279 = vpop.xlane.xlu0 %6278
      %v6280 = vsel %vm1770, %v6264, 0.0
      %6281 = vadd.xlane.f32.xlu0 %v6280
      %v6282 = vpop.xlane.xlu0 %6281
      %v6283 = vrcp.pop %v6267
      %v6284 = vrcp.pop %v6270
      %v6285 = vrcp.pop %v6273
      %v6286 = vrcp.pop %v6276
      %v6287 = vrcp.pop %v6279
      %v6288 = vrcp.pop %v6282
      %v6289 = vmul.f32 %v6254, %v6283
      %v6290 = vmul.f32 %v6256, %v6284
      %v6291 = vmul.f32 %v6258, %v6285
      %v6292 = vmul.f32 %v6260, %v6286
      %v6293 = vmul.f32 %v6262, %v6287
      %v6294 = vmul.f32 %v6264, %v6288
      %v6296 = vsel %vm1754, %v6289, 0
      %v6299 = vsel %vm1754, %v6290, 0
      %v6302 = vsel %vm1754, %v6291, 0
      %v6305 = vsel %vm1754, %v6292, 0
      %v6308 = vsel %vm1754, %v6293, 0
      %v6311 = vsel %vm1754, %v6294, 0
      %v6314 = vsel %vm1840, %v6089, 0
      %6316 = vmatprep.subr.mxu0 0.0
      %6317 = vmatpush1.msra.mxu0 0.0
      %6318 = vmatprep.subr.mxu0 0.0
      %6319 = vmatpush1.msra.mxu0 0.0
      %6320 = vmatprep.subr.mxu0 0.0
      %6321 = vmatpush1.msra.mxu0 0.0
      %6322 = vmatprep.subr.mxu0 0.0
      %6323 = vmatpush1.msra.mxu0 0.0
      %6324 = vmatprep.subr.mxu0 0.0
      %6325 = vmatpush1.msra.mxu0 0.0
      %6326 = vmatprep.subr.mxu0 0.0
      %6327 = vmatpush1.msra.mxu0 0.0
      %6328 = vmatprep.subr.mxu0 0.0
      %6329 = vmatpush1.msra.mxu0 0.0
      %6330 = vmatprep.subr.mxu0 0.0
      %6331 = vmatpush1.msra.mxu0 0.0
      %6332 = vmatprep.subr.mxu0 0.0
      %6333 = vmatpush1.msra.mxu0 0.0
      %6334 = vmatprep.subr.mxu0 0.0
      %6335 = vmatpush1.msra.mxu0 0.0
      %6336 = vmatprep.subr.mxu0 0.0
      %6337 = vmatpush1.msra.mxu0 %v6314
      %6338 = vmatprep.subr.mxu0 0.0
      %6339 = vmatpush1.msra.mxu0 %v6084
      %6340 = vmatprep.subr.mxu0 0.0
      %6341 = vmatpush1.msra.mxu0 %v6079
      %6342 = vmatprep.subr.mxu0 0.0
      %6343 = vmatpush1.msra.mxu0 %v6074
      %6344 = vmatprep.subr.mxu0 0.0
      %6345 = vmatpush1.msra.mxu0 %v6069
      %6346 = vmatprep.subr.mxu0 0.0
      %6347 = vmatpush1.msra.mxu0 %v6064
      %6348 = vmatprep.subr.mxu0 0.0
      %6349 = vmatpush2.msra.mxu0 0.0
      %6350 = vmatprep.subr.mxu0 0.0
      %6351 = vmatpush2.msra.mxu0 0.0
      %6352 = vmatprep.subr.mxu0 0.0
      %6353 = vmatpush2.msra.mxu0 0.0
      %6354 = vmatprep.subr.mxu0 0.0
      %6355 = vmatpush2.msra.mxu0 0.0
      %6356 = vmatprep.subr.mxu0 0.0
      %6357 = vmatpush2.msra.mxu0 0.0
      %6358 = vmatprep.subr.mxu0 0.0
      %6359 = vmatpush2.msra.mxu0 0.0
      %6360 = vmatprep.subr.mxu0 0.0
      %6361 = vmatpush2.msra.mxu0 0.0
      %6362 = vmatprep.subr.mxu0 0.0
      %6363 = vmatpush2.msra.mxu0 0.0
      %6364 = vmatprep.subr.mxu0 0.0
      %6365 = vmatpush2.msra.mxu0 0.0
      %6366 = vmatprep.subr.mxu0 0.0
      %6367 = vmatpush2.msra.mxu0 0.0
      %6368 = vmatprep.subr.mxu0 0.0
      %6369 = vmatpush2.msra.mxu0 0.0
      %6370 = vmatprep.subr.mxu0 0.0
      %6371 = vmatpush2.msra.mxu0 0.0
      %6372 = vmatprep.subr.mxu0 0.0
      %6373 = vmatpush2.msra.mxu0 0.0
      %6374 = vmatprep.subr.mxu0 0.0
      %6375 = vmatpush2.msra.mxu0 0.0
      %6376 = vmatprep.subr.mxu0 0.0
      %6377 = vmatpush2.msra.mxu0 0.0
      %6378 = vmatprep.subr.mxu0 0.0
      %6379 = vmatpush2.msra.mxu0 0.0
      %6380 = vmatprep.mubr.f32.mxu0 0.0
      %6381 = vmatmul.mubr.f32.gmra.mxu0 %v6296
      %v6382 = vpop.f32.mrf.mxu0
      %v6383 = vadd.f32 0.0, %v6382
      %v6384 = vpop.f32.mrf.mxu0
      %6385 = vmatprep.mubr.f32.mxu0 0.0
      %6386 = vmatmul.mubr.f32.gmra.mxu0 %v6299
      %v6387 = vpop.f32.mrf.mxu0
      %v6388 = vadd.f32 0.0, %v6387
      %v6389 = vpop.f32.mrf.mxu0
      %6390 = vmatprep.mubr.f32.mxu0 0.0
      %6391 = vmatmul.mubr.f32.gmra.mxu0 %v6302
      %v6392 = vpop.f32.mrf.mxu0
      %v6393 = vadd.f32 0.0, %v6392
      %v6394 = vpop.f32.mrf.mxu0
      %6395 = vmatprep.mubr.f32.mxu0 0.0
      %6396 = vmatmul.mubr.f32.gmra.mxu0 %v6305
      %v6397 = vpop.f32.mrf.mxu0
      %v6398 = vadd.f32 0.0, %v6397
      %v6399 = vpop.f32.mrf.mxu0
      %6400 = vmatprep.mubr.f32.mxu0 0.0
      %6401 = vmatmul.mubr.f32.gmra.mxu0 %v6308
      %v6402 = vpop.f32.mrf.mxu0
      %v6403 = vadd.f32 0.0, %v6402
      %v6404 = vpop.f32.mrf.mxu0
      %6405 = vmatprep.mubr.f32.mxu0 0.0
      %6406 = vmatmul.mubr.f32.gmra.mxu0 %v6311
      %v6407 = vpop.f32.mrf.mxu0
      %v6408 = vadd.f32 0.0, %v6407
      %v6409 = vpop.f32.mrf.mxu0
      %6410 = vdwg.mxu0
      %s6411 = scalar_lea.vmem %s29, 40
      %v6412 = vld [vmem:[%s6411] sm:$0xff]
      %v6414 = vsel %vm1622, %v6383, 0
      %v6417 = vsel %vm1622, %v6388, 0
      %v6420 = vsel %vm1622, %v6393, 0
      %v6423 = vsel %vm1622, %v6398, 0
      %v6426 = vsel %vm1622, %v6403, 0
      %v6429 = vsel %vm1622, %v6408, 0
      %6431 = vmatprep.subr.mxu0 0.0
      %6432 = vmatpush1.msra.mxu0 0.0
      %6433 = vmatprep.subr.mxu0 0.0
      %6434 = vmatpush1.msra.mxu0 0.0
      %6435 = vmatprep.subr.mxu0 0.0
      %6436 = vmatpush1.msra.mxu0 0.0
      %6437 = vmatprep.subr.mxu0 0.0
      %6438 = vmatpush1.msra.mxu0 0.0
      %6439 = vmatprep.subr.mxu0 0.0
      %6440 = vmatpush1.msra.mxu0 0.0
      %6441 = vmatprep.subr.mxu0 0.0
      %6442 = vmatpush1.msra.mxu0 0.0
      %6443 = vmatprep.subr.mxu0 0.0
      %6444 = vmatpush1.msra.mxu0 0.0
      %6445 = vmatprep.subr.mxu0 0.0
      %6446 = vmatpush1.msra.mxu0 0.0
      %6447 = vmatprep.subr.mxu0 0.0
      %6448 = vmatpush1.msra.mxu0 0.0
      %6449 = vmatprep.subr.mxu0 0.0
      %6450 = vmatpush1.msra.mxu0 0.0
      %6451 = vmatprep.subr.mxu0 0.0
      %6452 = vmatpush1.msra.mxu0 0.0
      %6453 = vmatprep.subr.mxu0 0.0
      %6454 = vmatpush1.msra.mxu0 0.0
      %6455 = vmatprep.subr.mxu0 0.0
      %6456 = vmatpush1.msra.mxu0 0.0
      %6457 = vmatprep.subr.mxu0 0.0
      %6458 = vmatpush1.msra.mxu0 0.0
      %6459 = vmatprep.subr.mxu0 0.0
      %6460 = vmatpush1.msra.mxu0 0.0
      %6461 = vmatprep.subr.mxu0 0.0
      %6462 = vmatpush1.msra.mxu0 %v6412
      %6463 = vmatprep.subr.mxu0 0.0
      %6464 = vmatpush2.msra.mxu0 0.0
      %6465 = vmatprep.subr.mxu0 0.0
      %6466 = vmatpush2.msra.mxu0 0.0
      %6467 = vmatprep.subr.mxu0 0.0
      %6468 = vmatpush2.msra.mxu0 0.0
      %6469 = vmatprep.subr.mxu0 0.0
      %6470 = vmatpush2.msra.mxu0 0.0
      %6471 = vmatprep.subr.mxu0 0.0
      %6472 = vmatpush2.msra.mxu0 0.0
      %6473 = vmatprep.subr.mxu0 0.0
      %6474 = vmatpush2.msra.mxu0 0.0
      %6475 = vmatprep.subr.mxu0 0.0
      %6476 = vmatpush2.msra.mxu0 0.0
      %6477 = vmatprep.subr.mxu0 0.0
      %6478 = vmatpush2.msra.mxu0 0.0
      %6479 = vmatprep.subr.mxu0 0.0
      %6480 = vmatpush2.msra.mxu0 0.0
      %6481 = vmatprep.subr.mxu0 0.0
      %6482 = vmatpush2.msra.mxu0 0.0
      %6483 = vmatprep.subr.mxu0 0.0
      %6484 = vmatpush2.msra.mxu0 0.0
      %6485 = vmatprep.subr.mxu0 0.0
      %6486 = vmatpush2.msra.mxu0 0.0
      %6487 = vmatprep.subr.mxu0 0.0
      %6488 = vmatpush2.msra.mxu0 0.0
      %6489 = vmatprep.subr.mxu0 0.0
      %6490 = vmatpush2.msra.mxu0 0.0
      %6491 = vmatprep.subr.mxu0 0.0
      %6492 = vmatpush2.msra.mxu0 0.0
      %6493 = vmatprep.subr.mxu0 0.0
      %6494 = vmatpush2.msra.mxu0 0.0
      %6495 = vmatprep.mubr.f32.mxu0 0.0
      %6496 = vmatmul.mubr.f32.gmra.mxu0 %v6414
      %v6497 = vpop.f32.mrf.mxu0
      %v6498 = vadd.f32 0.0, %v6497
      %v6499 = vpop.f32.mrf.mxu0
      %6500 = vmatprep.mubr.f32.mxu0 0.0
      %6501 = vmatmul.mubr.f32.gmra.mxu0 %v6417
      %v6502 = vpop.f32.mrf.mxu0
      %v6503 = vadd.f32 0.0, %v6502
      %v6504 = vpop.f32.mrf.mxu0
      %6505 = vmatprep.mubr.f32.mxu0 0.0
      %6506 = vmatmul.mubr.f32.gmra.mxu0 %v6420
      %v6507 = vpop.f32.mrf.mxu0
      %v6508 = vadd.f32 0.0, %v6507
      %v6509 = vpop.f32.mrf.mxu0
      %6510 = vmatprep.mubr.f32.mxu0 0.0
      %6511 = vmatmul.mubr.f32.gmra.mxu0 %v6423
      %v6512 = vpop.f32.mrf.mxu0
      %v6513 = vadd.f32 0.0, %v6512
      %v6514 = vpop.f32.mrf.mxu0
      %6515 = vmatprep.mubr.f32.mxu0 0.0
      %6516 = vmatmul.mubr.f32.gmra.mxu0 %v6426
      %v6517 = vpop.f32.mrf.mxu0
      %v6518 = vadd.f32 0.0, %v6517
      %v6519 = vpop.f32.mrf.mxu0
      %6520 = vmatprep.mubr.f32.mxu0 0.0
      %6521 = vmatmul.mubr.f32.gmra.mxu0 %v6429
      %v6522 = vpop.f32.mrf.mxu0
      %v6523 = vadd.f32 0.0, %v6522
      %v6524 = vpop.f32.mrf.mxu0
      %6525 = vdwg.mxu0
      %v6526 = vadd.f32 %v5762, %v6498
      %v6527 = vadd.f32 %v5763, %v6503
      %v6528 = vadd.f32 %v5764, %v6508
      %v6529 = vadd.f32 %v5765, %v6513
      %v6530 = vadd.f32 %v5766, %v6518
      %v6531 = vadd.f32 %v5767, %v6523
      %s6532 = scalar_lea.vmem %s17, 192
      %v6533 = vld [vmem:[%s6532] sm:$0xff]
      %v6534 = vld [vmem:[%s6532 + $0x8] sm:$0xff]
      %v6535 = vld [vmem:[%s6532 + $0x10] sm:$0xff]
      %v6536 = vld [vmem:[%s6532 + $0x18] sm:$0xff]
      %s6537 = scalar_lea.vmem %s23, 6
      %v6538 = vld [vmem:[%s6537] sm:$0x1]
      %v6540 = vlaneseq
      %v6541 = vshrl.u32 %v6540, 7
      %v6542 = vsub.s32 0, %v6541
      %v6543 = vrot.slane %v6538, %v6542
      %6545 = vmatprep.subr.mxu0 0.0
      %6546 = vmatpush1.msra.mxu0 0.0
      %6547 = vmatprep.subr.mxu0 0.0
      %6548 = vmatpush1.msra.mxu0 0.0
      %6549 = vmatprep.subr.mxu0 0.0
      %6550 = vmatpush1.msra.mxu0 0.0
      %6551 = vmatprep.subr.mxu0 0.0
      %6552 = vmatpush1.msra.mxu0 0.0
      %6553 = vmatprep.subr.mxu0 0.0
      %6554 = vmatpush1.msra.mxu0 0.0
      %6555 = vmatprep.subr.mxu0 0.0
      %6556 = vmatpush1.msra.mxu0 0.0
      %6557 = vmatprep.subr.mxu0 0.0
      %6558 = vmatpush1.msra.mxu0 0.0
      %6559 = vmatprep.subr.mxu0 0.0
      %6560 = vmatpush1.msra.mxu0 0.0
      %6561 = vmatprep.subr.mxu0 0.0
      %6562 = vmatpush1.msra.mxu0 0.0
      %6563 = vmatprep.subr.mxu0 0.0
      %6564 = vmatpush1.msra.mxu0 0.0
      %6565 = vmatprep.subr.mxu0 0.0
      %6566 = vmatpush1.msra.mxu0 0.0
      %6567 = vmatprep.subr.mxu0 0.0
      %6568 = vmatpush1.msra.mxu0 0.0
      %6569 = vmatprep.subr.mxu0 0.0
      %6570 = vmatpush1.msra.mxu0 %v6536
      %6571 = vmatprep.subr.mxu0 0.0
      %6572 = vmatpush1.msra.mxu0 %v6535
      %6573 = vmatprep.subr.mxu0 0.0
      %6574 = vmatpush1.msra.mxu0 %v6534
      %6575 = vmatprep.subr.mxu0 0.0
      %6576 = vmatpush1.msra.mxu0 %v6533
      %6577 = vmatprep.subr.mxu0 0.0
      %6578 = vmatpush2.msra.mxu0 0.0
      %6579 = vmatprep.subr.mxu0 0.0
      %6580 = vmatpush2.msra.mxu0 0.0
      %6581 = vmatprep.subr.mxu0 0.0
      %6582 = vmatpush2.msra.mxu0 0.0
      %6583 = vmatprep.subr.mxu0 0.0
      %6584 = vmatpush2.msra.mxu0 0.0
      %6585 = vmatprep.subr.mxu0 0.0
      %6586 = vmatpush2.msra.mxu0 0.0
      %6587 = vmatprep.subr.mxu0 0.0
      %6588 = vmatpush2.msra.mxu0 0.0
      %6589 = vmatprep.subr.mxu0 0.0
      %6590 = vmatpush2.msra.mxu0 0.0
      %6591 = vmatprep.subr.mxu0 0.0
      %6592 = vmatpush2.msra.mxu0 0.0
      %6593 = vmatprep.subr.mxu0 0.0
      %6594 = vmatpush2.msra.mxu0 0.0
      %6595 = vmatprep.subr.mxu0 0.0
      %6596 = vmatpush2.msra.mxu0 0.0
      %6597 = vmatprep.subr.mxu0 0.0
      %6598 = vmatpush2.msra.mxu0 0.0
      %6599 = vmatprep.subr.mxu0 0.0
      %6600 = vmatpush2.msra.mxu0 0.0
      %6601 = vmatprep.subr.mxu0 0.0
      %6602 = vmatpush2.msra.mxu0 0.0
      %6603 = vmatprep.subr.mxu0 0.0
      %6604 = vmatpush2.msra.mxu0 0.0
      %6605 = vmatprep.subr.mxu0 0.0
      %6606 = vmatpush2.msra.mxu0 0.0
      %6607 = vmatprep.subr.mxu0 0.0
      %6608 = vmatpush2.msra.mxu0 0.0
      %6609 = vmatprep.mubr.f32.mxu0 0.0
      %6610 = vmatmul.mubr.f32.gmra.mxu0 %v5000
      %v6611 = vpop.f32.mrf.mxu0
      %v6612 = vadd.f32 %v6543, %v6611
      %v6613 = vpop.f32.mrf.mxu0
      %6614 = vmatprep.mubr.f32.mxu0 0.0
      %6615 = vmatmul.mubr.f32.gmra.mxu0 %v5003
      %v6616 = vpop.f32.mrf.mxu0
      %v6617 = vadd.f32 %v6543, %v6616
      %v6618 = vpop.f32.mrf.mxu0
      %6619 = vmatprep.mubr.f32.mxu0 0.0
      %6620 = vmatmul.mubr.f32.gmra.mxu0 %v5006
      %v6621 = vpop.f32.mrf.mxu0
      %v6622 = vadd.f32 %v6543, %v6621
      %v6623 = vpop.f32.mrf.mxu0
      %6624 = vmatprep.mubr.f32.mxu0 0.0
      %6625 = vmatmul.mubr.f32.gmra.mxu0 %v5009
      %v6626 = vpop.f32.mrf.mxu0
      %v6627 = vadd.f32 %v6543, %v6626
      %v6628 = vpop.f32.mrf.mxu0
      %6629 = vmatprep.mubr.f32.mxu0 0.0
      %6630 = vmatmul.mubr.f32.gmra.mxu0 %v5012
      %v6631 = vpop.f32.mrf.mxu0
      %v6632 = vadd.f32 %v6543, %v6631
      %v6633 = vpop.f32.mrf.mxu0
      %6634 = vmatprep.mubr.f32.mxu0 0.0
      %6635 = vmatmul.mubr.f32.gmra.mxu0 %v5015
      %v6636 = vpop.f32.mrf.mxu0
      %v6637 = vadd.f32 %v6543, %v6636
      %v6638 = vpop.f32.mrf.mxu0
      %6639 = vdwg.mxu0
      %s6640 = scalar_lea.vmem %s19, 192
      %v6641 = vld [vmem:[%s6640] sm:$0xff]
      %v6642 = vld [vmem:[%s6640 + $0x8] sm:$0xff]
      %v6643 = vld [vmem:[%s6640 + $0x10] sm:$0xff]
      %v6644 = vld [vmem:[%s6640 + $0x18] sm:$0xff]
      %s6645 = scalar_lea.vmem %s25, 6
      %v6646 = vld [vmem:[%s6645] sm:$0x1]
      %v6648 = vlaneseq
      %v6649 = vshrl.u32 %v6648, 7
      %v6650 = vsub.s32 0, %v6649
      %v6651 = vrot.slane %v6646, %v6650
      %6653 = vmatprep.subr.mxu0 0.0
      %6654 = vmatpush1.msra.mxu0 0.0
      %6655 = vmatprep.subr.mxu0 0.0
      %6656 = vmatpush1.msra.mxu0 0.0
      %6657 = vmatprep.subr.mxu0 0.0
      %6658 = vmatpush1.msra.mxu0 0.0
      %6659 = vmatprep.subr.mxu0 0.0
      %6660 = vmatpush1.msra.mxu0 0.0
      %6661 = vmatprep.subr.mxu0 0.0
      %6662 = vmatpush1.msra.mxu0 0.0
      %6663 = vmatprep.subr.mxu0 0.0
      %6664 = vmatpush1.msra.mxu0 0.0
      %6665 = vmatprep.subr.mxu0 0.0
      %6666 = vmatpush1.msra.mxu0 0.0
      %6667 = vmatprep.subr.mxu0 0.0
      %6668 = vmatpush1.msra.mxu0 0.0
      %6669 = vmatprep.subr.mxu0 0.0
      %6670 = vmatpush1.msra.mxu0 0.0
      %6671 = vmatprep.subr.mxu0 0.0
      %6672 = vmatpush1.msra.mxu0 0.0
      %6673 = vmatprep.subr.mxu0 0.0
      %6674 = vmatpush1.msra.mxu0 0.0
      %6675 = vmatprep.subr.mxu0 0.0
      %6676 = vmatpush1.msra.mxu0 0.0
      %6677 = vmatprep.subr.mxu0 0.0
      %6678 = vmatpush1.msra.mxu0 %v6644
      %6679 = vmatprep.subr.mxu0 0.0
      %6680 = vmatpush1.msra.mxu0 %v6643
      %6681 = vmatprep.subr.mxu0 0.0
      %6682 = vmatpush1.msra.mxu0 %v6642
      %6683 = vmatprep.subr.mxu0 0.0
      %6684 = vmatpush1.msra.mxu0 %v6641
      %6685 = vmatprep.subr.mxu0 0.0
      %6686 = vmatpush2.msra.mxu0 0.0
      %6687 = vmatprep.subr.mxu0 0.0
      %6688 = vmatpush2.msra.mxu0 0.0
      %6689 = vmatprep.subr.mxu0 0.0
      %6690 = vmatpush2.msra.mxu0 0.0
      %6691 = vmatprep.subr.mxu0 0.0
      %6692 = vmatpush2.msra.mxu0 0.0
      %6693 = vmatprep.subr.mxu0 0.0
      %6694 = vmatpush2.msra.mxu0 0.0
      %6695 = vmatprep.subr.mxu0 0.0
      %6696 = vmatpush2.msra.mxu0 0.0
      %6697 = vmatprep.subr.mxu0 0.0
      %6698 = vmatpush2.msra.mxu0 0.0
      %6699 = vmatprep.subr.mxu0 0.0
      %6700 = vmatpush2.msra.mxu0 0.0
      %6701 = vmatprep.subr.mxu0 0.0
      %6702 = vmatpush2.msra.mxu0 0.0
      %6703 = vmatprep.subr.mxu0 0.0
      %6704 = vmatpush2.msra.mxu0 0.0
      %6705 = vmatprep.subr.mxu0 0.0
      %6706 = vmatpush2.msra.mxu0 0.0
      %6707 = vmatprep.subr.mxu0 0.0
      %6708 = vmatpush2.msra.mxu0 0.0
      %6709 = vmatprep.subr.mxu0 0.0
      %6710 = vmatpush2.msra.mxu0 0.0
      %6711 = vmatprep.subr.mxu0 0.0
      %6712 = vmatpush2.msra.mxu0 0.0
      %6713 = vmatprep.subr.mxu0 0.0
      %6714 = vmatpush2.msra.mxu0 0.0
      %6715 = vmatprep.subr.mxu0 0.0
      %6716 = vmatpush2.msra.mxu0 0.0
      %6717 = vmatprep.mubr.f32.mxu0 0.0
      %6718 = vmatmul.mubr.f32.gmra.mxu0 %v5000
      %v6719 = vpop.f32.mrf.mxu0
      %v6720 = vadd.f32 %v6651, %v6719
      %v6721 = vpop.f32.mrf.mxu0
      %6722 = vmatprep.mubr.f32.mxu0 0.0
      %6723 = vmatmul.mubr.f32.gmra.mxu0 %v5003
      %v6724 = vpop.f32.mrf.mxu0
      %v6725 = vadd.f32 %v6651, %v6724
      %v6726 = vpop.f32.mrf.mxu0
      %6727 = vmatprep.mubr.f32.mxu0 0.0
      %6728 = vmatmul.mubr.f32.gmra.mxu0 %v5006
      %v6729 = vpop.f32.mrf.mxu0
      %v6730 = vadd.f32 %v6651, %v6729
      %v6731 = vpop.f32.mrf.mxu0
      %6732 = vmatprep.mubr.f32.mxu0 0.0
      %6733 = vmatmul.mubr.f32.gmra.mxu0 %v5009
      %v6734 = vpop.f32.mrf.mxu0
      %v6735 = vadd.f32 %v6651, %v6734
      %v6736 = vpop.f32.mrf.mxu0
      %6737 = vmatprep.mubr.f32.mxu0 0.0
      %6738 = vmatmul.mubr.f32.gmra.mxu0 %v5012
      %v6739 = vpop.f32.mrf.mxu0
      %v6740 = vadd.f32 %v6651, %v6739
      %v6741 = vpop.f32.mrf.mxu0
      %6742 = vmatprep.mubr.f32.mxu0 0.0
      %6743 = vmatmul.mubr.f32.gmra.mxu0 %v5015
      %v6744 = vpop.f32.mrf.mxu0
      %v6745 = vadd.f32 %v6651, %v6744
      %v6746 = vpop.f32.mrf.mxu0
      %6747 = vdwg.mxu0
      %s6748 = scalar_lea.vmem %s21, 192
      %v6749 = vld [vmem:[%s6748] sm:$0xff]
      %v6750 = vld [vmem:[%s6748 + $0x8] sm:$0xff]
      %v6751 = vld [vmem:[%s6748 + $0x10] sm:$0xff]
      %v6752 = vld [vmem:[%s6748 + $0x18] sm:$0xff]
      %s6753 = scalar_lea.vmem %s27, 6
      %v6754 = vld [vmem:[%s6753] sm:$0x1]
      %v6756 = vlaneseq
      %v6757 = vshrl.u32 %v6756, 7
      %v6758 = vsub.s32 0, %v6757
      %v6759 = vrot.slane %v6754, %v6758
      %6761 = vmatprep.subr.mxu0 0.0
      %6762 = vmatpush1.msra.mxu0 0.0
      %6763 = vmatprep.subr.mxu0 0.0
      %6764 = vmatpush1.msra.mxu0 0.0
      %6765 = vmatprep.subr.mxu0 0.0
      %6766 = vmatpush1.msra.mxu0 0.0
      %6767 = vmatprep.subr.mxu0 0.0
      %6768 = vmatpush1.msra.mxu0 0.0
      %6769 = vmatprep.subr.mxu0 0.0
      %6770 = vmatpush1.msra.mxu0 0.0
      %6771 = vmatprep.subr.mxu0 0.0
      %6772 = vmatpush1.msra.mxu0 0.0
      %6773 = vmatprep.subr.mxu0 0.0
      %6774 = vmatpush1.msra.mxu0 0.0
      %6775 = vmatprep.subr.mxu0 0.0
      %6776 = vmatpush1.msra.mxu0 0.0
      %6777 = vmatprep.subr.mxu0 0.0
      %6778 = vmatpush1.msra.mxu0 0.0
      %6779 = vmatprep.subr.mxu0 0.0
      %6780 = vmatpush1.msra.mxu0 0.0
      %6781 = vmatprep.subr.mxu0 0.0
      %6782 = vmatpush1.msra.mxu0 0.0
      %6783 = vmatprep.subr.mxu0 0.0
      %6784 = vmatpush1.msra.mxu0 0.0
      %6785 = vmatprep.subr.mxu0 0.0
      %6786 = vmatpush1.msra.mxu0 %v6752
      %6787 = vmatprep.subr.mxu0 0.0
      %6788 = vmatpush1.msra.mxu0 %v6751
      %6789 = vmatprep.subr.mxu0 0.0
      %6790 = vmatpush1.msra.mxu0 %v6750
      %6791 = vmatprep.subr.mxu0 0.0
      %6792 = vmatpush1.msra.mxu0 %v6749
      %6793 = vmatprep.subr.mxu0 0.0
      %6794 = vmatpush2.msra.mxu0 0.0
      %6795 = vmatprep.subr.mxu0 0.0
      %6796 = vmatpush2.msra.mxu0 0.0
      %6797 = vmatprep.subr.mxu0 0.0
      %6798 = vmatpush2.msra.mxu0 0.0
      %6799 = vmatprep.subr.mxu0 0.0
      %6800 = vmatpush2.msra.mxu0 0.0
      %6801 = vmatprep.subr.mxu0 0.0
      %6802 = vmatpush2.msra.mxu0 0.0
      %6803 = vmatprep.subr.mxu0 0.0
      %6804 = vmatpush2.msra.mxu0 0.0
      %6805 = vmatprep.subr.mxu0 0.0
      %6806 = vmatpush2.msra.mxu0 0.0
      %6807 = vmatprep.subr.mxu0 0.0
      %6808 = vmatpush2.msra.mxu0 0.0
      %6809 = vmatprep.subr.mxu0 0.0
      %6810 = vmatpush2.msra.mxu0 0.0
      %6811 = vmatprep.subr.mxu0 0.0
      %6812 = vmatpush2.msra.mxu0 0.0
      %6813 = vmatprep.subr.mxu0 0.0
      %6814 = vmatpush2.msra.mxu0 0.0
      %6815 = vmatprep.subr.mxu0 0.0
      %6816 = vmatpush2.msra.mxu0 0.0
      %6817 = vmatprep.subr.mxu0 0.0
      %6818 = vmatpush2.msra.mxu0 0.0
      %6819 = vmatprep.subr.mxu0 0.0
      %6820 = vmatpush2.msra.mxu0 0.0
      %6821 = vmatprep.subr.mxu0 0.0
      %6822 = vmatpush2.msra.mxu0 0.0
      %6823 = vmatprep.subr.mxu0 0.0
      %6824 = vmatpush2.msra.mxu0 0.0
      %6825 = vmatprep.mubr.f32.mxu0 0.0
      %6826 = vmatmul.mubr.f32.gmra.mxu0 %v5000
      %v6827 = vpop.f32.mrf.mxu0
      %v6828 = vadd.f32 %v6759, %v6827
      %v6829 = vpop.f32.mrf.mxu0
      %6830 = vmatprep.mubr.f32.mxu0 0.0
      %6831 = vmatmul.mubr.f32.gmra.mxu0 %v5003
      %v6832 = vpop.f32.mrf.mxu0
      %v6833 = vadd.f32 %v6759, %v6832
      %v6834 = vpop.f32.mrf.mxu0
      %6835 = vmatprep.mubr.f32.mxu0 0.0
      %6836 = vmatmul.mubr.f32.gmra.mxu0 %v5006
      %v6837 = vpop.f32.mrf.mxu0
      %v6838 = vadd.f32 %v6759, %v6837
      %v6839 = vpop.f32.mrf.mxu0
      %6840 = vmatprep.mubr.f32.mxu0 0.0
      %6841 = vmatmul.mubr.f32.gmra.mxu0 %v5009
      %v6842 = vpop.f32.mrf.mxu0
      %v6843 = vadd.f32 %v6759, %v6842
      %v6844 = vpop.f32.mrf.mxu0
      %6845 = vmatprep.mubr.f32.mxu0 0.0
      %6846 = vmatmul.mubr.f32.gmra.mxu0 %v5012
      %v6847 = vpop.f32.mrf.mxu0
      %v6848 = vadd.f32 %v6759, %v6847
      %v6849 = vpop.f32.mrf.mxu0
      %6850 = vmatprep.mubr.f32.mxu0 0.0
      %6851 = vmatmul.mubr.f32.gmra.mxu0 %v5015
      %v6852 = vpop.f32.mrf.mxu0
      %v6853 = vadd.f32 %v6759, %v6852
      %v6854 = vpop.f32.mrf.mxu0
      %6855 = vdwg.mxu0
      %v6856 = vmul.f32 %v6612, 0.35355338
      %v6857 = vmul.f32 %v6617, 0.35355338
      %v6858 = vmul.f32 %v6622, 0.35355338
      %v6859 = vmul.f32 %v6627, 0.35355338
      %v6860 = vmul.f32 %v6632, 0.35355338
      %v6861 = vmul.f32 %v6637, 0.35355338
      %v6863 = vsel %vm1622, %v6856, 0
      %v6866 = vsel %vm1622, %v6857, 0
      %v6869 = vsel %vm1622, %v6858, 0
      %v6872 = vsel %vm1622, %v6859, 0
      %v6875 = vsel %vm1622, %v6860, 0
      %v6878 = vsel %vm1622, %v6861, 0
      %v6881 = vsel %vm1622, %v6720, 0
      %v6884 = vsel %vm1622, %v6725, 0
      %v6887 = vsel %vm1622, %v6730, 0
      %v6890 = vsel %vm1622, %v6735, 0
      %v6893 = vsel %vm1622, %v6740, 0
      %v6896 = vsel %vm1622, %v6745, 0
      %6898 = vmatprep.subr.mxu0 0.0
      %6899 = vmatpush1.xpose.msra.mxu0 0.0
      %6900 = vmatprep.subr.mxu0 0.0
      %6901 = vmatpush1.xpose.msra.mxu0 0.0
      %6902 = vmatprep.subr.mxu0 0.0
      %6903 = vmatpush1.xpose.msra.mxu0 0.0
      %6904 = vmatprep.subr.mxu0 0.0
      %6905 = vmatpush1.xpose.msra.mxu0 0.0
      %6906 = vmatprep.subr.mxu0 0.0
      %6907 = vmatpush1.xpose.msra.mxu0 0.0
      %6908 = vmatprep.subr.mxu0 0.0
      %6909 = vmatpush1.xpose.msra.mxu0 0.0
      %6910 = vmatprep.subr.mxu0 0.0
      %6911 = vmatpush1.xpose.msra.mxu0 0.0
      %6912 = vmatprep.subr.mxu0 0.0
      %6913 = vmatpush1.xpose.msra.mxu0 0.0
      %6914 = vmatprep.subr.mxu0 0.0
      %6915 = vmatpush1.xpose.msra.mxu0 0.0
      %6916 = vmatprep.subr.mxu0 0.0
      %6917 = vmatpush1.xpose.msra.mxu0 0.0
      %6918 = vmatprep.subr.mxu0 0.0
      %6919 = vmatpush1.xpose.msra.mxu0 %v6896
      %6920 = vmatprep.subr.mxu0 0.0
      %6921 = vmatpush1.xpose.msra.mxu0 %v6893
      %6922 = vmatprep.subr.mxu0 0.0
      %6923 = vmatpush1.xpose.msra.mxu0 %v6890
      %6924 = vmatprep.subr.mxu0 0.0
      %6925 = vmatpush1.xpose.msra.mxu0 %v6887
      %6926 = vmatprep.subr.mxu0 0.0
      %6927 = vmatpush1.xpose.msra.mxu0 %v6884
      %6928 = vmatprep.subr.mxu0 0.0
      %6929 = vmatpush1.xpose.msra.mxu0 %v6881
      %6930 = vmatprep.subr.mxu0 0.0
      %6931 = vmatpush2.xpose.msra.mxu0 0.0
      %6932 = vmatprep.subr.mxu0 0.0
      %6933 = vmatpush2.xpose.msra.mxu0 0.0
      %6934 = vmatprep.subr.mxu0 0.0
      %6935 = vmatpush2.xpose.msra.mxu0 0.0
      %6936 = vmatprep.subr.mxu0 0.0
      %6937 = vmatpush2.xpose.msra.mxu0 0.0
      %6938 = vmatprep.subr.mxu0 0.0
      %6939 = vmatpush2.xpose.msra.mxu0 0.0
      %6940 = vmatprep.subr.mxu0 0.0
      %6941 = vmatpush2.xpose.msra.mxu0 0.0
      %6942 = vmatprep.subr.mxu0 0.0
      %6943 = vmatpush2.xpose.msra.mxu0 0.0
      %6944 = vmatprep.subr.mxu0 0.0
      %6945 = vmatpush2.xpose.msra.mxu0 0.0
      %6946 = vmatprep.subr.mxu0 0.0
      %6947 = vmatpush2.xpose.msra.mxu0 0.0
      %6948 = vmatprep.subr.mxu0 0.0
      %6949 = vmatpush2.xpose.msra.mxu0 0.0
      %6950 = vmatprep.subr.mxu0 0.0
      %6951 = vmatpush2.xpose.msra.mxu0 0.0
      %6952 = vmatprep.subr.mxu0 0.0
      %6953 = vmatpush2.xpose.msra.mxu0 0.0
      %6954 = vmatprep.subr.mxu0 0.0
      %6955 = vmatpush2.xpose.msra.mxu0 0.0
      %6956 = vmatprep.subr.mxu0 0.0
      %6957 = vmatpush2.xpose.msra.mxu0 0.0
      %6958 = vmatprep.subr.mxu0 0.0
      %6959 = vmatpush2.xpose.msra.mxu0 0.0
      %6960 = vmatprep.subr.mxu0 0.0
      %6961 = vmatpush2.xpose.msra.mxu0 0.0
      %6962 = vmatprep.mubr.f32.mxu0 0.0
      %6963 = vmatmul.mubr.f32.gmra.mxu0 %v6863
      %v6964 = vpop.f32.mrf.mxu0
      %v6965 = vadd.f32 0.0, %v6964
      %v6966 = vpop.f32.mrf.mxu0
      %6967 = vmatprep.mubr.f32.mxu0 0.0
      %6968 = vmatmul.mubr.f32.gmra.mxu0 %v6866
      %v6969 = vpop.f32.mrf.mxu0
      %v6970 = vadd.f32 0.0, %v6969
      %v6971 = vpop.f32.mrf.mxu0
      %6972 = vmatprep.mubr.f32.mxu0 0.0
      %6973 = vmatmul.mubr.f32.gmra.mxu0 %v6869
      %v6974 = vpop.f32.mrf.mxu0
      %v6975 = vadd.f32 0.0, %v6974
      %v6976 = vpop.f32.mrf.mxu0
      %6977 = vmatprep.mubr.f32.mxu0 0.0
      %6978 = vmatmul.mubr.f32.gmra.mxu0 %v6872
      %v6979 = vpop.f32.mrf.mxu0
      %v6980 = vadd.f32 0.0, %v6979
      %v6981 = vpop.f32.mrf.mxu0
      %6982 = vmatprep.mubr.f32.mxu0 0.0
      %6983 = vmatmul.mubr.f32.gmra.mxu0 %v6875
      %v6984 = vpop.f32.mrf.mxu0
      %v6985 = vadd.f32 0.0, %v6984
      %v6986 = vpop.f32.mrf.mxu0
      %6987 = vmatprep.mubr.f32.mxu0 0.0
      %6988 = vmatmul.mubr.f32.gmra.mxu0 %v6878
      %v6989 = vpop.f32.mrf.mxu0
      %v6990 = vadd.f32 0.0, %v6989
      %v6991 = vpop.f32.mrf.mxu0
      %6992 = vdwg.mxu0
      %v6993 = vsel %vm1754, %v6965, -inf
      %6994 = vmax.xlane.f32.xlu0 %v6993
      %v6995 = vpop.xlane.xlu0 %6994
      %v6996 = vsel %vm1754, %v6970, -inf
      %6997 = vmax.xlane.f32.xlu0 %v6996
      %v6998 = vpop.xlane.xlu0 %6997
      %v6999 = vsel %vm1754, %v6975, -inf
      %7000 = vmax.xlane.f32.xlu0 %v6999
      %v7001 = vpop.xlane.xlu0 %7000
      %v7002 = vsel %vm1754, %v6980, -inf
      %7003 = vmax.xlane.f32.xlu0 %v7002
      %v7004 = vpop.xlane.xlu0 %7003
      %v7005 = vsel %vm1754, %v6985, -inf
      %7006 = vmax.xlane.f32.xlu0 %v7005
      %v7007 = vpop.xlane.xlu0 %7006
      %v7008 = vsel %vm1770, %v6990, -inf
      %7009 = vmax.xlane.f32.xlu0 %v7008
      %v7010 = vpop.xlane.xlu0 %7009
      %v7011 = vsub.f32 %v6965, %v6995
      %v7012 = vsub.f32 %v6970, %v6998
      %v7013 = vsub.f32 %v6975, %v7001
      %v7014 = vsub.f32 %v6980, %v7004
      %v7015 = vsub.f32 %v6985, %v7007
      %v7016 = vsub.f32 %v6990, %v7010
      %v7017 = vmul.f32 %v7011, 1.442695
      %v7018 = vpow.pop %v7017
      %v7019 = vmul.f32 %v7012, 1.442695
      %v7020 = vpow.pop %v7019
      %v7021 = vmul.f32 %v7013, 1.442695
      %v7022 = vpow.pop %v7021
      %v7023 = vmul.f32 %v7014, 1.442695
      %v7024 = vpow.pop %v7023
      %v7025 = vmul.f32 %v7015, 1.442695
      %v7026 = vpow.pop %v7025
      %v7027 = vmul.f32 %v7016, 1.442695
      %v7028 = vpow.pop %v7027
      %v7029 = vsel %vm1754, %v7018, 0.0
      %7030 = vadd.xlane.f32.xlu0 %v7029
      %v7031 = vpop.xlane.xlu0 %7030
      %v7032 = vsel %vm1754, %v7020, 0.0
      %7033 = vadd.xlane.f32.xlu0 %v7032
      %v7034 = vpop.xlane.xlu0 %7033
      %v7035 = vsel %vm1754, %v7022, 0.0
      %7036 = vadd.xlane.f32.xlu0 %v7035
      %v7037 = vpop.xlane.xlu0 %7036
      %v7038 = vsel %vm1754, %v7024, 0.0
      %7039 = vadd.xlane.f32.xlu0 %v7038
      %v7040 = vpop.xlane.xlu0 %7039
      %v7041 = vsel %vm1754, %v7026, 0.0
      %7042 = vadd.xlane.f32.xlu0 %v7041
      %v7043 = vpop.xlane.xlu0 %7042
      %v7044 = vsel %vm1770, %v7028, 0.0
      %7045 = vadd.xlane.f32.xlu0 %v7044
      %v7046 = vpop.xlane.xlu0 %7045
      %v7047 = vrcp.pop %v7031
      %v7048 = vrcp.pop %v7034
      %v7049 = vrcp.pop %v7037
      %v7050 = vrcp.pop %v7040
      %v7051 = vrcp.pop %v7043
      %v7052 = vrcp.pop %v7046
      %v7053 = vmul.f32 %v7018, %v7047
      %v7054 = vmul.f32 %v7020, %v7048
      %v7055 = vmul.f32 %v7022, %v7049
      %v7056 = vmul.f32 %v7024, %v7050
      %v7057 = vmul.f32 %v7026, %v7051
      %v7058 = vmul.f32 %v7028, %v7052
      %v7060 = vsel %vm1754, %v7053, 0
      %v7063 = vsel %vm1754, %v7054, 0
      %v7066 = vsel %vm1754, %v7055, 0
      %v7069 = vsel %vm1754, %v7056, 0
      %v7072 = vsel %vm1754, %v7057, 0
      %v7075 = vsel %vm1754, %v7058, 0
      %v7078 = vsel %vm1840, %v6853, 0
      %7080 = vmatprep.subr.mxu0 0.0
      %7081 = vmatpush1.msra.mxu0 0.0
      %7082 = vmatprep.subr.mxu0 0.0
      %7083 = vmatpush1.msra.mxu0 0.0
      %7084 = vmatprep.subr.mxu0 0.0
      %7085 = vmatpush1.msra.mxu0 0.0
      %7086 = vmatprep.subr.mxu0 0.0
      %7087 = vmatpush1.msra.mxu0 0.0
      %7088 = vmatprep.subr.mxu0 0.0
      %7089 = vmatpush1.msra.mxu0 0.0
      %7090 = vmatprep.subr.mxu0 0.0
      %7091 = vmatpush1.msra.mxu0 0.0
      %7092 = vmatprep.subr.mxu0 0.0
      %7093 = vmatpush1.msra.mxu0 0.0
      %7094 = vmatprep.subr.mxu0 0.0
      %7095 = vmatpush1.msra.mxu0 0.0
      %7096 = vmatprep.subr.mxu0 0.0
      %7097 = vmatpush1.msra.mxu0 0.0
      %7098 = vmatprep.subr.mxu0 0.0
      %7099 = vmatpush1.msra.mxu0 0.0
      %7100 = vmatprep.subr.mxu0 0.0
      %7101 = vmatpush1.msra.mxu0 %v7078
      %7102 = vmatprep.subr.mxu0 0.0
      %7103 = vmatpush1.msra.mxu0 %v6848
      %7104 = vmatprep.subr.mxu0 0.0
      %7105 = vmatpush1.msra.mxu0 %v6843
      %7106 = vmatprep.subr.mxu0 0.0
      %7107 = vmatpush1.msra.mxu0 %v6838
      %7108 = vmatprep.subr.mxu0 0.0
      %7109 = vmatpush1.msra.mxu0 %v6833
      %7110 = vmatprep.subr.mxu0 0.0
      %7111 = vmatpush1.msra.mxu0 %v6828
      %7112 = vmatprep.subr.mxu0 0.0
      %7113 = vmatpush2.msra.mxu0 0.0
      %7114 = vmatprep.subr.mxu0 0.0
      %7115 = vmatpush2.msra.mxu0 0.0
      %7116 = vmatprep.subr.mxu0 0.0
      %7117 = vmatpush2.msra.mxu0 0.0
      %7118 = vmatprep.subr.mxu0 0.0
      %7119 = vmatpush2.msra.mxu0 0.0
      %7120 = vmatprep.subr.mxu0 0.0
      %7121 = vmatpush2.msra.mxu0 0.0
      %7122 = vmatprep.subr.mxu0 0.0
      %7123 = vmatpush2.msra.mxu0 0.0
      %7124 = vmatprep.subr.mxu0 0.0
      %7125 = vmatpush2.msra.mxu0 0.0
      %7126 = vmatprep.subr.mxu0 0.0
      %7127 = vmatpush2.msra.mxu0 0.0
      %7128 = vmatprep.subr.mxu0 0.0
      %7129 = vmatpush2.msra.mxu0 0.0
      %7130 = vmatprep.subr.mxu0 0.0
      %7131 = vmatpush2.msra.mxu0 0.0
      %7132 = vmatprep.subr.mxu0 0.0
      %7133 = vmatpush2.msra.mxu0 0.0
      %7134 = vmatprep.subr.mxu0 0.0
      %7135 = vmatpush2.msra.mxu0 0.0
      %7136 = vmatprep.subr.mxu0 0.0
      %7137 = vmatpush2.msra.mxu0 0.0
      %7138 = vmatprep.subr.mxu0 0.0
      %7139 = vmatpush2.msra.mxu0 0.0
      %7140 = vmatprep.subr.mxu0 0.0
      %7141 = vmatpush2.msra.mxu0 0.0
      %7142 = vmatprep.subr.mxu0 0.0
      %7143 = vmatpush2.msra.mxu0 0.0
      %7144 = vmatprep.mubr.f32.mxu0 0.0
      %7145 = vmatmul.mubr.f32.gmra.mxu0 %v7060
      %v7146 = vpop.f32.mrf.mxu0
      %v7147 = vadd.f32 0.0, %v7146
      %v7148 = vpop.f32.mrf.mxu0
      %7149 = vmatprep.mubr.f32.mxu0 0.0
      %7150 = vmatmul.mubr.f32.gmra.mxu0 %v7063
      %v7151 = vpop.f32.mrf.mxu0
      %v7152 = vadd.f32 0.0, %v7151
      %v7153 = vpop.f32.mrf.mxu0
      %7154 = vmatprep.mubr.f32.mxu0 0.0
      %7155 = vmatmul.mubr.f32.gmra.mxu0 %v7066
      %v7156 = vpop.f32.mrf.mxu0
      %v7157 = vadd.f32 0.0, %v7156
      %v7158 = vpop.f32.mrf.mxu0
      %7159 = vmatprep.mubr.f32.mxu0 0.0
      %7160 = vmatmul.mubr.f32.gmra.mxu0 %v7069
      %v7161 = vpop.f32.mrf.mxu0
      %v7162 = vadd.f32 0.0, %v7161
      %v7163 = vpop.f32.mrf.mxu0
      %7164 = vmatprep.mubr.f32.mxu0 0.0
      %7165 = vmatmul.mubr.f32.gmra.mxu0 %v7072
      %v7166 = vpop.f32.mrf.mxu0
      %v7167 = vadd.f32 0.0, %v7166
      %v7168 = vpop.f32.mrf.mxu0
      %7169 = vmatprep.mubr.f32.mxu0 0.0
      %7170 = vmatmul.mubr.f32.gmra.mxu0 %v7075
      %v7171 = vpop.f32.mrf.mxu0
      %v7172 = vadd.f32 0.0, %v7171
      %v7173 = vpop.f32.mrf.mxu0
      %7174 = vdwg.mxu0
      %s7175 = scalar_lea.vmem %s29, 48
      %v7176 = vld [vmem:[%s7175] sm:$0xff]
      %v7178 = vsel %vm1622, %v7147, 0
      %v7181 = vsel %vm1622, %v7152, 0
      %v7184 = vsel %vm1622, %v7157, 0
      %v7187 = vsel %vm1622, %v7162, 0
      %v7190 = vsel %vm1622, %v7167, 0
      %v7193 = vsel %vm1622, %v7172, 0
      %7195 = vmatprep.subr.mxu0 0.0
      %7196 = vmatpush1.msra.mxu0 0.0
      %7197 = vmatprep.subr.mxu0 0.0
      %7198 = vmatpush1.msra.mxu0 0.0
      %7199 = vmatprep.subr.mxu0 0.0
      %7200 = vmatpush1.msra.mxu0 0.0
      %7201 = vmatprep.subr.mxu0 0.0
      %7202 = vmatpush1.msra.mxu0 0.0
      %7203 = vmatprep.subr.mxu0 0.0
      %7204 = vmatpush1.msra.mxu0 0.0
      %7205 = vmatprep.subr.mxu0 0.0
      %7206 = vmatpush1.msra.mxu0 0.0
      %7207 = vmatprep.subr.mxu0 0.0
      %7208 = vmatpush1.msra.mxu0 0.0
      %7209 = vmatprep.subr.mxu0 0.0
      %7210 = vmatpush1.msra.mxu0 0.0
      %7211 = vmatprep.subr.mxu0 0.0
      %7212 = vmatpush1.msra.mxu0 0.0
      %7213 = vmatprep.subr.mxu0 0.0
      %7214 = vmatpush1.msra.mxu0 0.0
      %7215 = vmatprep.subr.mxu0 0.0
      %7216 = vmatpush1.msra.mxu0 0.0
      %7217 = vmatprep.subr.mxu0 0.0
      %7218 = vmatpush1.msra.mxu0 0.0
      %7219 = vmatprep.subr.mxu0 0.0
      %7220 = vmatpush1.msra.mxu0 0.0
      %7221 = vmatprep.subr.mxu0 0.0
      %7222 = vmatpush1.msra.mxu0 0.0
      %7223 = vmatprep.subr.mxu0 0.0
      %7224 = vmatpush1.msra.mxu0 0.0
      %7225 = vmatprep.subr.mxu0 0.0
      %7226 = vmatpush1.msra.mxu0 %v7176
      %7227 = vmatprep.subr.mxu0 0.0
      %7228 = vmatpush2.msra.mxu0 0.0
      %7229 = vmatprep.subr.mxu0 0.0
      %7230 = vmatpush2.msra.mxu0 0.0
      %7231 = vmatprep.subr.mxu0 0.0
      %7232 = vmatpush2.msra.mxu0 0.0
      %7233 = vmatprep.subr.mxu0 0.0
      %7234 = vmatpush2.msra.mxu0 0.0
      %7235 = vmatprep.subr.mxu0 0.0
      %7236 = vmatpush2.msra.mxu0 0.0
      %7237 = vmatprep.subr.mxu0 0.0
      %7238 = vmatpush2.msra.mxu0 0.0
      %7239 = vmatprep.subr.mxu0 0.0
      %7240 = vmatpush2.msra.mxu0 0.0
      %7241 = vmatprep.subr.mxu0 0.0
      %7242 = vmatpush2.msra.mxu0 0.0
      %7243 = vmatprep.subr.mxu0 0.0
      %7244 = vmatpush2.msra.mxu0 0.0
      %7245 = vmatprep.subr.mxu0 0.0
      %7246 = vmatpush2.msra.mxu0 0.0
      %7247 = vmatprep.subr.mxu0 0.0
      %7248 = vmatpush2.msra.mxu0 0.0
      %7249 = vmatprep.subr.mxu0 0.0
      %7250 = vmatpush2.msra.mxu0 0.0
      %7251 = vmatprep.subr.mxu0 0.0
      %7252 = vmatpush2.msra.mxu0 0.0
      %7253 = vmatprep.subr.mxu0 0.0
      %7254 = vmatpush2.msra.mxu0 0.0
      %7255 = vmatprep.subr.mxu0 0.0
      %7256 = vmatpush2.msra.mxu0 0.0
      %7257 = vmatprep.subr.mxu0 0.0
      %7258 = vmatpush2.msra.mxu0 0.0
      %7259 = vmatprep.mubr.f32.mxu0 0.0
      %7260 = vmatmul.mubr.f32.gmra.mxu0 %v7178
      %v7261 = vpop.f32.mrf.mxu0
      %v7262 = vadd.f32 0.0, %v7261
      %v7263 = vpop.f32.mrf.mxu0
      %7264 = vmatprep.mubr.f32.mxu0 0.0
      %7265 = vmatmul.mubr.f32.gmra.mxu0 %v7181
      %v7266 = vpop.f32.mrf.mxu0
      %v7267 = vadd.f32 0.0, %v7266
      %v7268 = vpop.f32.mrf.mxu0
      %7269 = vmatprep.mubr.f32.mxu0 0.0
      %7270 = vmatmul.mubr.f32.gmra.mxu0 %v7184
      %v7271 = vpop.f32.mrf.mxu0
      %v7272 = vadd.f32 0.0, %v7271
      %v7273 = vpop.f32.mrf.mxu0
      %7274 = vmatprep.mubr.f32.mxu0 0.0
      %7275 = vmatmul.mubr.f32.gmra.mxu0 %v7187
      %v7276 = vpop.f32.mrf.mxu0
      %v7277 = vadd.f32 0.0, %v7276
      %v7278 = vpop.f32.mrf.mxu0
      %7279 = vmatprep.mubr.f32.mxu0 0.0
      %7280 = vmatmul.mubr.f32.gmra.mxu0 %v7190
      %v7281 = vpop.f32.mrf.mxu0
      %v7282 = vadd.f32 0.0, %v7281
      %v7283 = vpop.f32.mrf.mxu0
      %7284 = vmatprep.mubr.f32.mxu0 0.0
      %7285 = vmatmul.mubr.f32.gmra.mxu0 %v7193
      %v7286 = vpop.f32.mrf.mxu0
      %v7287 = vadd.f32 0.0, %v7286
      %v7288 = vpop.f32.mrf.mxu0
      %7289 = vdwg.mxu0
      %v7290 = vadd.f32 %v6526, %v7262
      %v7291 = vadd.f32 %v6527, %v7267
      %v7292 = vadd.f32 %v6528, %v7272
      %v7293 = vadd.f32 %v6529, %v7277
      %v7294 = vadd.f32 %v6530, %v7282
      %v7295 = vadd.f32 %v6531, %v7287
      %s7296 = scalar_lea.vmem %s17, 224
      %v7297 = vld [vmem:[%s7296] sm:$0xff]
      %v7298 = vld [vmem:[%s7296 + $0x8] sm:$0xff]
      %v7299 = vld [vmem:[%s7296 + $0x10] sm:$0xff]
      %v7300 = vld [vmem:[%s7296 + $0x18] sm:$0xff]
      %s7301 = scalar_lea.vmem %s23, 7
      %v7302 = vld [vmem:[%s7301] sm:$0x1]
      %v7304 = vlaneseq
      %v7305 = vshrl.u32 %v7304, 7
      %v7306 = vsub.s32 0, %v7305
      %v7307 = vrot.slane %v7302, %v7306
      %7309 = vmatprep.subr.mxu0 0.0
      %7310 = vmatpush1.msra.mxu0 0.0
      %7311 = vmatprep.subr.mxu0 0.0
      %7312 = vmatpush1.msra.mxu0 0.0
      %7313 = vmatprep.subr.mxu0 0.0
      %7314 = vmatpush1.msra.mxu0 0.0
      %7315 = vmatprep.subr.mxu0 0.0
      %7316 = vmatpush1.msra.mxu0 0.0
      %7317 = vmatprep.subr.mxu0 0.0
      %7318 = vmatpush1.msra.mxu0 0.0
      %7319 = vmatprep.subr.mxu0 0.0
      %7320 = vmatpush1.msra.mxu0 0.0
      %7321 = vmatprep.subr.mxu0 0.0
      %7322 = vmatpush1.msra.mxu0 0.0
      %7323 = vmatprep.subr.mxu0 0.0
      %7324 = vmatpush1.msra.mxu0 0.0
      %7325 = vmatprep.subr.mxu0 0.0
      %7326 = vmatpush1.msra.mxu0 0.0
      %7327 = vmatprep.subr.mxu0 0.0
      %7328 = vmatpush1.msra.mxu0 0.0
      %7329 = vmatprep.subr.mxu0 0.0
      %7330 = vmatpush1.msra.mxu0 0.0
      %7331 = vmatprep.subr.mxu0 0.0
      %7332 = vmatpush1.msra.mxu0 0.0
      %7333 = vmatprep.subr.mxu0 0.0
      %7334 = vmatpush1.msra.mxu0 %v7300
      %7335 = vmatprep.subr.mxu0 0.0
      %7336 = vmatpush1.msra.mxu0 %v7299
      %7337 = vmatprep.subr.mxu0 0.0
      %7338 = vmatpush1.msra.mxu0 %v7298
      %7339 = vmatprep.subr.mxu0 0.0
      %7340 = vmatpush1.msra.mxu0 %v7297
      %7341 = vmatprep.subr.mxu0 0.0
      %7342 = vmatpush2.msra.mxu0 0.0
      %7343 = vmatprep.subr.mxu0 0.0
      %7344 = vmatpush2.msra.mxu0 0.0
      %7345 = vmatprep.subr.mxu0 0.0
      %7346 = vmatpush2.msra.mxu0 0.0
      %7347 = vmatprep.subr.mxu0 0.0
      %7348 = vmatpush2.msra.mxu0 0.0
      %7349 = vmatprep.subr.mxu0 0.0
      %7350 = vmatpush2.msra.mxu0 0.0
      %7351 = vmatprep.subr.mxu0 0.0
      %7352 = vmatpush2.msra.mxu0 0.0
      %7353 = vmatprep.subr.mxu0 0.0
      %7354 = vmatpush2.msra.mxu0 0.0
      %7355 = vmatprep.subr.mxu0 0.0
      %7356 = vmatpush2.msra.mxu0 0.0
      %7357 = vmatprep.subr.mxu0 0.0
      %7358 = vmatpush2.msra.mxu0 0.0
      %7359 = vmatprep.subr.mxu0 0.0
      %7360 = vmatpush2.msra.mxu0 0.0
      %7361 = vmatprep.subr.mxu0 0.0
      %7362 = vmatpush2.msra.mxu0 0.0
      %7363 = vmatprep.subr.mxu0 0.0
      %7364 = vmatpush2.msra.mxu0 0.0
      %7365 = vmatprep.subr.mxu0 0.0
      %7366 = vmatpush2.msra.mxu0 0.0
      %7367 = vmatprep.subr.mxu0 0.0
      %7368 = vmatpush2.msra.mxu0 0.0
      %7369 = vmatprep.subr.mxu0 0.0
      %7370 = vmatpush2.msra.mxu0 0.0
      %7371 = vmatprep.subr.mxu0 0.0
      %7372 = vmatpush2.msra.mxu0 0.0
      %7373 = vmatprep.mubr.f32.mxu0 0.0
      %7374 = vmatmul.mubr.f32.gmra.mxu0 %v5000
      %v7375 = vpop.f32.mrf.mxu0
      %v7376 = vadd.f32 %v7307, %v7375
      %v7377 = vpop.f32.mrf.mxu0
      %7378 = vmatprep.mubr.f32.mxu0 0.0
      %7379 = vmatmul.mubr.f32.gmra.mxu0 %v5003
      %v7380 = vpop.f32.mrf.mxu0
      %v7381 = vadd.f32 %v7307, %v7380
      %v7382 = vpop.f32.mrf.mxu0
      %7383 = vmatprep.mubr.f32.mxu0 0.0
      %7384 = vmatmul.mubr.f32.gmra.mxu0 %v5006
      %v7385 = vpop.f32.mrf.mxu0
      %v7386 = vadd.f32 %v7307, %v7385
      %v7387 = vpop.f32.mrf.mxu0
      %7388 = vmatprep.mubr.f32.mxu0 0.0
      %7389 = vmatmul.mubr.f32.gmra.mxu0 %v5009
      %v7390 = vpop.f32.mrf.mxu0
      %v7391 = vadd.f32 %v7307, %v7390
      %v7392 = vpop.f32.mrf.mxu0
      %7393 = vmatprep.mubr.f32.mxu0 0.0
      %7394 = vmatmul.mubr.f32.gmra.mxu0 %v5012
      %v7395 = vpop.f32.mrf.mxu0
      %v7396 = vadd.f32 %v7307, %v7395
      %v7397 = vpop.f32.mrf.mxu0
      %7398 = vmatprep.mubr.f32.mxu0 0.0
      %7399 = vmatmul.mubr.f32.gmra.mxu0 %v5015
      %v7400 = vpop.f32.mrf.mxu0
      %v7401 = vadd.f32 %v7307, %v7400
      %v7402 = vpop.f32.mrf.mxu0
      %7403 = vdwg.mxu0
      %s7404 = scalar_lea.vmem %s19, 224
      %v7405 = vld [vmem:[%s7404] sm:$0xff]
      %v7406 = vld [vmem:[%s7404 + $0x8] sm:$0xff]
      %v7407 = vld [vmem:[%s7404 + $0x10] sm:$0xff]
      %v7408 = vld [vmem:[%s7404 + $0x18] sm:$0xff]
      %s7409 = scalar_lea.vmem %s25, 7
      %v7410 = vld [vmem:[%s7409] sm:$0x1]
      %v7412 = vlaneseq
      %v7413 = vshrl.u32 %v7412, 7
      %v7414 = vsub.s32 0, %v7413
      %v7415 = vrot.slane %v7410, %v7414
      %7417 = vmatprep.subr.mxu0 0.0
      %7418 = vmatpush1.msra.mxu0 0.0
      %7419 = vmatprep.subr.mxu0 0.0
      %7420 = vmatpush1.msra.mxu0 0.0
      %7421 = vmatprep.subr.mxu0 0.0
      %7422 = vmatpush1.msra.mxu0 0.0
      %7423 = vmatprep.subr.mxu0 0.0
      %7424 = vmatpush1.msra.mxu0 0.0
      %7425 = vmatprep.subr.mxu0 0.0
      %7426 = vmatpush1.msra.mxu0 0.0
      %7427 = vmatprep.subr.mxu0 0.0
      %7428 = vmatpush1.msra.mxu0 0.0
      %7429 = vmatprep.subr.mxu0 0.0
      %7430 = vmatpush1.msra.mxu0 0.0
      %7431 = vmatprep.subr.mxu0 0.0
      %7432 = vmatpush1.msra.mxu0 0.0
      %7433 = vmatprep.subr.mxu0 0.0
      %7434 = vmatpush1.msra.mxu0 0.0
      %7435 = vmatprep.subr.mxu0 0.0
      %7436 = vmatpush1.msra.mxu0 0.0
      %7437 = vmatprep.subr.mxu0 0.0
      %7438 = vmatpush1.msra.mxu0 0.0
      %7439 = vmatprep.subr.mxu0 0.0
      %7440 = vmatpush1.msra.mxu0 0.0
      %7441 = vmatprep.subr.mxu0 0.0
      %7442 = vmatpush1.msra.mxu0 %v7408
      %7443 = vmatprep.subr.mxu0 0.0
      %7444 = vmatpush1.msra.mxu0 %v7407
      %7445 = vmatprep.subr.mxu0 0.0
      %7446 = vmatpush1.msra.mxu0 %v7406
      %7447 = vmatprep.subr.mxu0 0.0
      %7448 = vmatpush1.msra.mxu0 %v7405
      %7449 = vmatprep.subr.mxu0 0.0
      %7450 = vmatpush2.msra.mxu0 0.0
      %7451 = vmatprep.subr.mxu0 0.0
      %7452 = vmatpush2.msra.mxu0 0.0
      %7453 = vmatprep.subr.mxu0 0.0
      %7454 = vmatpush2.msra.mxu0 0.0
      %7455 = vmatprep.subr.mxu0 0.0
      %7456 = vmatpush2.msra.mxu0 0.0
      %7457 = vmatprep.subr.mxu0 0.0
      %7458 = vmatpush2.msra.mxu0 0.0
      %7459 = vmatprep.subr.mxu0 0.0
      %7460 = vmatpush2.msra.mxu0 0.0
      %7461 = vmatprep.subr.mxu0 0.0
      %7462 = vmatpush2.msra.mxu0 0.0
      %7463 = vmatprep.subr.mxu0 0.0
      %7464 = vmatpush2.msra.mxu0 0.0
      %7465 = vmatprep.subr.mxu0 0.0
      %7466 = vmatpush2.msra.mxu0 0.0
      %7467 = vmatprep.subr.mxu0 0.0
      %7468 = vmatpush2.msra.mxu0 0.0
      %7469 = vmatprep.subr.mxu0 0.0
      %7470 = vmatpush2.msra.mxu0 0.0
      %7471 = vmatprep.subr.mxu0 0.0
      %7472 = vmatpush2.msra.mxu0 0.0
      %7473 = vmatprep.subr.mxu0 0.0
      %7474 = vmatpush2.msra.mxu0 0.0
      %7475 = vmatprep.subr.mxu0 0.0
      %7476 = vmatpush2.msra.mxu0 0.0
      %7477 = vmatprep.subr.mxu0 0.0
      %7478 = vmatpush2.msra.mxu0 0.0
      %7479 = vmatprep.subr.mxu0 0.0
      %7480 = vmatpush2.msra.mxu0 0.0
      %7481 = vmatprep.mubr.f32.mxu0 0.0
      %7482 = vmatmul.mubr.f32.gmra.mxu0 %v5000
      %v7483 = vpop.f32.mrf.mxu0
      %v7484 = vadd.f32 %v7415, %v7483
      %v7485 = vpop.f32.mrf.mxu0
      %7486 = vmatprep.mubr.f32.mxu0 0.0
      %7487 = vmatmul.mubr.f32.gmra.mxu0 %v5003
      %v7488 = vpop.f32.mrf.mxu0
      %v7489 = vadd.f32 %v7415, %v7488
      %v7490 = vpop.f32.mrf.mxu0
      %7491 = vmatprep.mubr.f32.mxu0 0.0
      %7492 = vmatmul.mubr.f32.gmra.mxu0 %v5006
      %v7493 = vpop.f32.mrf.mxu0
      %v7494 = vadd.f32 %v7415, %v7493
      %v7495 = vpop.f32.mrf.mxu0
      %7496 = vmatprep.mubr.f32.mxu0 0.0
      %7497 = vmatmul.mubr.f32.gmra.mxu0 %v5009
      %v7498 = vpop.f32.mrf.mxu0
      %v7499 = vadd.f32 %v7415, %v7498
      %v7500 = vpop.f32.mrf.mxu0
      %7501 = vmatprep.mubr.f32.mxu0 0.0
      %7502 = vmatmul.mubr.f32.gmra.mxu0 %v5012
      %v7503 = vpop.f32.mrf.mxu0
      %v7504 = vadd.f32 %v7415, %v7503
      %v7505 = vpop.f32.mrf.mxu0
      %7506 = vmatprep.mubr.f32.mxu0 0.0
      %7507 = vmatmul.mubr.f32.gmra.mxu0 %v5015
      %v7508 = vpop.f32.mrf.mxu0
      %v7509 = vadd.f32 %v7415, %v7508
      %v7510 = vpop.f32.mrf.mxu0
      %7511 = vdwg.mxu0
      %s7512 = scalar_lea.vmem %s21, 224
      %v7513 = vld [vmem:[%s7512] sm:$0xff]
      %v7514 = vld [vmem:[%s7512 + $0x8] sm:$0xff]
      %v7515 = vld [vmem:[%s7512 + $0x10] sm:$0xff]
      %v7516 = vld [vmem:[%s7512 + $0x18] sm:$0xff]
      %s7517 = scalar_lea.vmem %s27, 7
      %v7518 = vld [vmem:[%s7517] sm:$0x1]
      %v7520 = vlaneseq
      %v7521 = vshrl.u32 %v7520, 7
      %v7522 = vsub.s32 0, %v7521
      %v7523 = vrot.slane %v7518, %v7522
      %7525 = vmatprep.subr.mxu0 0.0
      %7526 = vmatpush1.msra.mxu0 0.0
      %7527 = vmatprep.subr.mxu0 0.0
      %7528 = vmatpush1.msra.mxu0 0.0
      %7529 = vmatprep.subr.mxu0 0.0
      %7530 = vmatpush1.msra.mxu0 0.0
      %7531 = vmatprep.subr.mxu0 0.0
      %7532 = vmatpush1.msra.mxu0 0.0
      %7533 = vmatprep.subr.mxu0 0.0
      %7534 = vmatpush1.msra.mxu0 0.0
      %7535 = vmatprep.subr.mxu0 0.0
      %7536 = vmatpush1.msra.mxu0 0.0
      %7537 = vmatprep.subr.mxu0 0.0
      %7538 = vmatpush1.msra.mxu0 0.0
      %7539 = vmatprep.subr.mxu0 0.0
      %7540 = vmatpush1.msra.mxu0 0.0
      %7541 = vmatprep.subr.mxu0 0.0
      %7542 = vmatpush1.msra.mxu0 0.0
      %7543 = vmatprep.subr.mxu0 0.0
      %7544 = vmatpush1.msra.mxu0 0.0
      %7545 = vmatprep.subr.mxu0 0.0
      %7546 = vmatpush1.msra.mxu0 0.0
      %7547 = vmatprep.subr.mxu0 0.0
      %7548 = vmatpush1.msra.mxu0 0.0
      %7549 = vmatprep.subr.mxu0 0.0
      %7550 = vmatpush1.msra.mxu0 %v7516
      %7551 = vmatprep.subr.mxu0 0.0
      %7552 = vmatpush1.msra.mxu0 %v7515
      %7553 = vmatprep.subr.mxu0 0.0
      %7554 = vmatpush1.msra.mxu0 %v7514
      %7555 = vmatprep.subr.mxu0 0.0
      %7556 = vmatpush1.msra.mxu0 %v7513
      %7557 = vmatprep.subr.mxu0 0.0
      %7558 = vmatpush2.msra.mxu0 0.0
      %7559 = vmatprep.subr.mxu0 0.0
      %7560 = vmatpush2.msra.mxu0 0.0
      %7561 = vmatprep.subr.mxu0 0.0
      %7562 = vmatpush2.msra.mxu0 0.0
      %7563 = vmatprep.subr.mxu0 0.0
      %7564 = vmatpush2.msra.mxu0 0.0
      %7565 = vmatprep.subr.mxu0 0.0
      %7566 = vmatpush2.msra.mxu0 0.0
      %7567 = vmatprep.subr.mxu0 0.0
      %7568 = vmatpush2.msra.mxu0 0.0
      %7569 = vmatprep.subr.mxu0 0.0
      %7570 = vmatpush2.msra.mxu0 0.0
      %7571 = vmatprep.subr.mxu0 0.0
      %7572 = vmatpush2.msra.mxu0 0.0
      %7573 = vmatprep.subr.mxu0 0.0
      %7574 = vmatpush2.msra.mxu0 0.0
      %7575 = vmatprep.subr.mxu0 0.0
      %7576 = vmatpush2.msra.mxu0 0.0
      %7577 = vmatprep.subr.mxu0 0.0
      %7578 = vmatpush2.msra.mxu0 0.0
      %7579 = vmatprep.subr.mxu0 0.0
      %7580 = vmatpush2.msra.mxu0 0.0
      %7581 = vmatprep.subr.mxu0 0.0
      %7582 = vmatpush2.msra.mxu0 0.0
      %7583 = vmatprep.subr.mxu0 0.0
      %7584 = vmatpush2.msra.mxu0 0.0
      %7585 = vmatprep.subr.mxu0 0.0
      %7586 = vmatpush2.msra.mxu0 0.0
      %7587 = vmatprep.subr.mxu0 0.0
      %7588 = vmatpush2.msra.mxu0 0.0
      %7589 = vmatprep.mubr.f32.mxu0 0.0
      %7590 = vmatmul.mubr.f32.gmra.mxu0 %v5000
      %v7591 = vpop.f32.mrf.mxu0
      %v7592 = vadd.f32 %v7523, %v7591
      %v7593 = vpop.f32.mrf.mxu0
      %7594 = vmatprep.mubr.f32.mxu0 0.0
      %7595 = vmatmul.mubr.f32.gmra.mxu0 %v5003
      %v7596 = vpop.f32.mrf.mxu0
      %v7597 = vadd.f32 %v7523, %v7596
      %v7598 = vpop.f32.mrf.mxu0
      %7599 = vmatprep.mubr.f32.mxu0 0.0
      %7600 = vmatmul.mubr.f32.gmra.mxu0 %v5006
      %v7601 = vpop.f32.mrf.mxu0
      %v7602 = vadd.f32 %v7523, %v7601
      %v7603 = vpop.f32.mrf.mxu0
      %7604 = vmatprep.mubr.f32.mxu0 0.0
      %7605 = vmatmul.mubr.f32.gmra.mxu0 %v5009
      %v7606 = vpop.f32.mrf.mxu0
      %v7607 = vadd.f32 %v7523, %v7606
      %v7608 = vpop.f32.mrf.mxu0
      %7609 = vmatprep.mubr.f32.mxu0 0.0
      %7610 = vmatmul.mubr.f32.gmra.mxu0 %v5012
      %v7611 = vpop.f32.mrf.mxu0
      %v7612 = vadd.f32 %v7523, %v7611
      %v7613 = vpop.f32.mrf.mxu0
      %7614 = vmatprep.mubr.f32.mxu0 0.0
      %7615 = vmatmul.mubr.f32.gmra.mxu0 %v5015
      %v7616 = vpop.f32.mrf.mxu0
      %v7617 = vadd.f32 %v7523, %v7616
      %v7618 = vpop.f32.mrf.mxu0
      %7619 = vdwg.mxu0
      %v7620 = vmul.f32 %v7376, 0.35355338
      %v7621 = vmul.f32 %v7381, 0.35355338
      %v7622 = vmul.f32 %v7386, 0.35355338
      %v7623 = vmul.f32 %v7391, 0.35355338
      %v7624 = vmul.f32 %v7396, 0.35355338
      %v7625 = vmul.f32 %v7401, 0.35355338
      %v7627 = vsel %vm1622, %v7620, 0
      %v7630 = vsel %vm1622, %v7621, 0
      %v7633 = vsel %vm1622, %v7622, 0
      %v7636 = vsel %vm1622, %v7623, 0
      %v7639 = vsel %vm1622, %v7624, 0
      %v7642 = vsel %vm1622, %v7625, 0
      %v7645 = vsel %vm1622, %v7484, 0
      %v7648 = vsel %vm1622, %v7489, 0
      %v7651 = vsel %vm1622, %v7494, 0
      %v7654 = vsel %vm1622, %v7499, 0
      %v7657 = vsel %vm1622, %v7504, 0
      %v7660 = vsel %vm1622, %v7509, 0
      %7662 = vmatprep.subr.mxu0 0.0
      %7663 = vmatpush1.xpose.msra.mxu0 0.0
      %7664 = vmatprep.subr.mxu0 0.0
      %7665 = vmatpush1.xpose.msra.mxu0 0.0
      %7666 = vmatprep.subr.mxu0 0.0
      %7667 = vmatpush1.xpose.msra.mxu0 0.0
      %7668 = vmatprep.subr.mxu0 0.0
      %7669 = vmatpush1.xpose.msra.mxu0 0.0
      %7670 = vmatprep.subr.mxu0 0.0
      %7671 = vmatpush1.xpose.msra.mxu0 0.0
      %7672 = vmatprep.subr.mxu0 0.0
      %7673 = vmatpush1.xpose.msra.mxu0 0.0
      %7674 = vmatprep.subr.mxu0 0.0
      %7675 = vmatpush1.xpose.msra.mxu0 0.0
      %7676 = vmatprep.subr.mxu0 0.0
      %7677 = vmatpush1.xpose.msra.mxu0 0.0
      %7678 = vmatprep.subr.mxu0 0.0
      %7679 = vmatpush1.xpose.msra.mxu0 0.0
      %7680 = vmatprep.subr.mxu0 0.0
      %7681 = vmatpush1.xpose.msra.mxu0 0.0
      %7682 = vmatprep.subr.mxu0 0.0
      %7683 = vmatpush1.xpose.msra.mxu0 %v7660
      %7684 = vmatprep.subr.mxu0 0.0
      %7685 = vmatpush1.xpose.msra.mxu0 %v7657
      %7686 = vmatprep.subr.mxu0 0.0
      %7687 = vmatpush1.xpose.msra.mxu0 %v7654
      %7688 = vmatprep.subr.mxu0 0.0
      %7689 = vmatpush1.xpose.msra.mxu0 %v7651
      %7690 = vmatprep.subr.mxu0 0.0
      %7691 = vmatpush1.xpose.msra.mxu0 %v7648
      %7692 = vmatprep.subr.mxu0 0.0
      %7693 = vmatpush1.xpose.msra.mxu0 %v7645
      %7694 = vmatprep.subr.mxu0 0.0
      %7695 = vmatpush2.xpose.msra.mxu0 0.0
      %7696 = vmatprep.subr.mxu0 0.0
      %7697 = vmatpush2.xpose.msra.mxu0 0.0
      %7698 = vmatprep.subr.mxu0 0.0
      %7699 = vmatpush2.xpose.msra.mxu0 0.0
      %7700 = vmatprep.subr.mxu0 0.0
      %7701 = vmatpush2.xpose.msra.mxu0 0.0
      %7702 = vmatprep.subr.mxu0 0.0
      %7703 = vmatpush2.xpose.msra.mxu0 0.0
      %7704 = vmatprep.subr.mxu0 0.0
      %7705 = vmatpush2.xpose.msra.mxu0 0.0
      %7706 = vmatprep.subr.mxu0 0.0
      %7707 = vmatpush2.xpose.msra.mxu0 0.0
      %7708 = vmatprep.subr.mxu0 0.0
      %7709 = vmatpush2.xpose.msra.mxu0 0.0
      %7710 = vmatprep.subr.mxu0 0.0
      %7711 = vmatpush2.xpose.msra.mxu0 0.0
      %7712 = vmatprep.subr.mxu0 0.0
      %7713 = vmatpush2.xpose.msra.mxu0 0.0
      %7714 = vmatprep.subr.mxu0 0.0
      %7715 = vmatpush2.xpose.msra.mxu0 0.0
      %7716 = vmatprep.subr.mxu0 0.0
      %7717 = vmatpush2.xpose.msra.mxu0 0.0
      %7718 = vmatprep.subr.mxu0 0.0
      %7719 = vmatpush2.xpose.msra.mxu0 0.0
      %7720 = vmatprep.subr.mxu0 0.0
      %7721 = vmatpush2.xpose.msra.mxu0 0.0
      %7722 = vmatprep.subr.mxu0 0.0
      %7723 = vmatpush2.xpose.msra.mxu0 0.0
      %7724 = vmatprep.subr.mxu0 0.0
      %7725 = vmatpush2.xpose.msra.mxu0 0.0
      %7726 = vmatprep.mubr.f32.mxu0 0.0
      %7727 = vmatmul.mubr.f32.gmra.mxu0 %v7627
      %v7728 = vpop.f32.mrf.mxu0
      %v7729 = vadd.f32 0.0, %v7728
      %v7730 = vpop.f32.mrf.mxu0
      %7731 = vmatprep.mubr.f32.mxu0 0.0
      %7732 = vmatmul.mubr.f32.gmra.mxu0 %v7630
      %v7733 = vpop.f32.mrf.mxu0
      %v7734 = vadd.f32 0.0, %v7733
      %v7735 = vpop.f32.mrf.mxu0
      %7736 = vmatprep.mubr.f32.mxu0 0.0
      %7737 = vmatmul.mubr.f32.gmra.mxu0 %v7633
      %v7738 = vpop.f32.mrf.mxu0
      %v7739 = vadd.f32 0.0, %v7738
      %v7740 = vpop.f32.mrf.mxu0
      %7741 = vmatprep.mubr.f32.mxu0 0.0
      %7742 = vmatmul.mubr.f32.gmra.mxu0 %v7636
      %v7743 = vpop.f32.mrf.mxu0
      %v7744 = vadd.f32 0.0, %v7743
      %v7745 = vpop.f32.mrf.mxu0
      %7746 = vmatprep.mubr.f32.mxu0 0.0
      %7747 = vmatmul.mubr.f32.gmra.mxu0 %v7639
      %v7748 = vpop.f32.mrf.mxu0
      %v7749 = vadd.f32 0.0, %v7748
      %v7750 = vpop.f32.mrf.mxu0
      %7751 = vmatprep.mubr.f32.mxu0 0.0
      %7752 = vmatmul.mubr.f32.gmra.mxu0 %v7642
      %v7753 = vpop.f32.mrf.mxu0
      %v7754 = vadd.f32 0.0, %v7753
      %v7755 = vpop.f32.mrf.mxu0
      %7756 = vdwg.mxu0
      %v7757 = vsel %vm1754, %v7729, -inf
      %7758 = vmax.xlane.f32.xlu0 %v7757
      %v7759 = vpop.xlane.xlu0 %7758
      %v7760 = vsel %vm1754, %v7734, -inf
      %7761 = vmax.xlane.f32.xlu0 %v7760
      %v7762 = vpop.xlane.xlu0 %7761
      %v7763 = vsel %vm1754, %v7739, -inf
      %7764 = vmax.xlane.f32.xlu0 %v7763
      %v7765 = vpop.xlane.xlu0 %7764
      %v7766 = vsel %vm1754, %v7744, -inf
      %7767 = vmax.xlane.f32.xlu0 %v7766
      %v7768 = vpop.xlane.xlu0 %7767
      %v7769 = vsel %vm1754, %v7749, -inf
      %7770 = vmax.xlane.f32.xlu0 %v7769
      %v7771 = vpop.xlane.xlu0 %7770
      %v7772 = vsel %vm1770, %v7754, -inf
      %7773 = vmax.xlane.f32.xlu0 %v7772
      %v7774 = vpop.xlane.xlu0 %7773
      %v7775 = vsub.f32 %v7729, %v7759
      %v7776 = vsub.f32 %v7734, %v7762
      %v7777 = vsub.f32 %v7739, %v7765
      %v7778 = vsub.f32 %v7744, %v7768
      %v7779 = vsub.f32 %v7749, %v7771
      %v7780 = vsub.f32 %v7754, %v7774
      %v7781 = vmul.f32 %v7775, 1.442695
      %v7782 = vpow.pop %v7781
      %v7783 = vmul.f32 %v7776, 1.442695
      %v7784 = vpow.pop %v7783
      %v7785 = vmul.f32 %v7777, 1.442695
      %v7786 = vpow.pop %v7785
      %v7787 = vmul.f32 %v7778, 1.442695
      %v7788 = vpow.pop %v7787
      %v7789 = vmul.f32 %v7779, 1.442695
      %v7790 = vpow.pop %v7789
      %v7791 = vmul.f32 %v7780, 1.442695
      %v7792 = vpow.pop %v7791
      %v7793 = vsel %vm1754, %v7782, 0.0
      %7794 = vadd.xlane.f32.xlu0 %v7793
      %v7795 = vpop.xlane.xlu0 %7794
      %v7796 = vsel %vm1754, %v7784, 0.0
      %7797 = vadd.xlane.f32.xlu0 %v7796
      %v7798 = vpop.xlane.xlu0 %7797
      %v7799 = vsel %vm1754, %v7786, 0.0
      %7800 = vadd.xlane.f32.xlu0 %v7799
      %v7801 = vpop.xlane.xlu0 %7800
      %v7802 = vsel %vm1754, %v7788, 0.0
      %7803 = vadd.xlane.f32.xlu0 %v7802
      %v7804 = vpop.xlane.xlu0 %7803
      %v7805 = vsel %vm1754, %v7790, 0.0
      %7806 = vadd.xlane.f32.xlu0 %v7805
      %v7807 = vpop.xlane.xlu0 %7806
      %v7808 = vsel %vm1770, %v7792, 0.0
      %7809 = vadd.xlane.f32.xlu0 %v7808
      %v7810 = vpop.xlane.xlu0 %7809
      %v7811 = vrcp.pop %v7795
      %v7812 = vrcp.pop %v7798
      %v7813 = vrcp.pop %v7801
      %v7814 = vrcp.pop %v7804
      %v7815 = vrcp.pop %v7807
      %v7816 = vrcp.pop %v7810
      %v7817 = vmul.f32 %v7782, %v7811
      %v7818 = vmul.f32 %v7784, %v7812
      %v7819 = vmul.f32 %v7786, %v7813
      %v7820 = vmul.f32 %v7788, %v7814
      %v7821 = vmul.f32 %v7790, %v7815
      %v7822 = vmul.f32 %v7792, %v7816
      %v7824 = vsel %vm1754, %v7817, 0
      %v7827 = vsel %vm1754, %v7818, 0
      %v7830 = vsel %vm1754, %v7819, 0
      %v7833 = vsel %vm1754, %v7820, 0
      %v7836 = vsel %vm1754, %v7821, 0
      %v7839 = vsel %vm1754, %v7822, 0
      %v7842 = vsel %vm1840, %v7617, 0
      %7844 = vmatprep.subr.mxu0 0.0
      %7845 = vmatpush1.msra.mxu0 0.0
      %7846 = vmatprep.subr.mxu0 0.0
      %7847 = vmatpush1.msra.mxu0 0.0
      %7848 = vmatprep.subr.mxu0 0.0
      %7849 = vmatpush1.msra.mxu0 0.0
      %7850 = vmatprep.subr.mxu0 0.0
      %7851 = vmatpush1.msra.mxu0 0.0
      %7852 = vmatprep.subr.mxu0 0.0
      %7853 = vmatpush1.msra.mxu0 0.0
      %7854 = vmatprep.subr.mxu0 0.0
      %7855 = vmatpush1.msra.mxu0 0.0
      %7856 = vmatprep.subr.mxu0 0.0
      %7857 = vmatpush1.msra.mxu0 0.0
      %7858 = vmatprep.subr.mxu0 0.0
      %7859 = vmatpush1.msra.mxu0 0.0
      %7860 = vmatprep.subr.mxu0 0.0
      %7861 = vmatpush1.msra.mxu0 0.0
      %7862 = vmatprep.subr.mxu0 0.0
      %7863 = vmatpush1.msra.mxu0 0.0
      %7864 = vmatprep.subr.mxu0 0.0
      %7865 = vmatpush1.msra.mxu0 %v7842
      %7866 = vmatprep.subr.mxu0 0.0
      %7867 = vmatpush1.msra.mxu0 %v7612
      %7868 = vmatprep.subr.mxu0 0.0
      %7869 = vmatpush1.msra.mxu0 %v7607
      %7870 = vmatprep.subr.mxu0 0.0
      %7871 = vmatpush1.msra.mxu0 %v7602
      %7872 = vmatprep.subr.mxu0 0.0
      %7873 = vmatpush1.msra.mxu0 %v7597
      %7874 = vmatprep.subr.mxu0 0.0
      %7875 = vmatpush1.msra.mxu0 %v7592
      %7876 = vmatprep.subr.mxu0 0.0
      %7877 = vmatpush2.msra.mxu0 0.0
      %7878 = vmatprep.subr.mxu0 0.0
      %7879 = vmatpush2.msra.mxu0 0.0
      %7880 = vmatprep.subr.mxu0 0.0
      %7881 = vmatpush2.msra.mxu0 0.0
      %7882 = vmatprep.subr.mxu0 0.0
      %7883 = vmatpush2.msra.mxu0 0.0
      %7884 = vmatprep.subr.mxu0 0.0
      %7885 = vmatpush2.msra.mxu0 0.0
      %7886 = vmatprep.subr.mxu0 0.0
      %7887 = vmatpush2.msra.mxu0 0.0
      %7888 = vmatprep.subr.mxu0 0.0
      %7889 = vmatpush2.msra.mxu0 0.0
      %7890 = vmatprep.subr.mxu0 0.0
      %7891 = vmatpush2.msra.mxu0 0.0
      %7892 = vmatprep.subr.mxu0 0.0
      %7893 = vmatpush2.msra.mxu0 0.0
      %7894 = vmatprep.subr.mxu0 0.0
      %7895 = vmatpush2.msra.mxu0 0.0
      %7896 = vmatprep.subr.mxu0 0.0
      %7897 = vmatpush2.msra.mxu0 0.0
      %7898 = vmatprep.subr.mxu0 0.0
      %7899 = vmatpush2.msra.mxu0 0.0
      %7900 = vmatprep.subr.mxu0 0.0
      %7901 = vmatpush2.msra.mxu0 0.0
      %7902 = vmatprep.subr.mxu0 0.0
      %7903 = vmatpush2.msra.mxu0 0.0
      %7904 = vmatprep.subr.mxu0 0.0
      %7905 = vmatpush2.msra.mxu0 0.0
      %7906 = vmatprep.subr.mxu0 0.0
      %7907 = vmatpush2.msra.mxu0 0.0
      %7908 = vmatprep.mubr.f32.mxu0 0.0
      %7909 = vmatmul.mubr.f32.gmra.mxu0 %v7824
      %v7910 = vpop.f32.mrf.mxu0
      %v7911 = vadd.f32 0.0, %v7910
      %v7912 = vpop.f32.mrf.mxu0
      %7913 = vmatprep.mubr.f32.mxu0 0.0
      %7914 = vmatmul.mubr.f32.gmra.mxu0 %v7827
      %v7915 = vpop.f32.mrf.mxu0
      %v7916 = vadd.f32 0.0, %v7915
      %v7917 = vpop.f32.mrf.mxu0
      %7918 = vmatprep.mubr.f32.mxu0 0.0
      %7919 = vmatmul.mubr.f32.gmra.mxu0 %v7830
      %v7920 = vpop.f32.mrf.mxu0
      %v7921 = vadd.f32 0.0, %v7920
      %v7922 = vpop.f32.mrf.mxu0
      %7923 = vmatprep.mubr.f32.mxu0 0.0
      %7924 = vmatmul.mubr.f32.gmra.mxu0 %v7833
      %v7925 = vpop.f32.mrf.mxu0
      %v7926 = vadd.f32 0.0, %v7925
      %v7927 = vpop.f32.mrf.mxu0
      %7928 = vmatprep.mubr.f32.mxu0 0.0
      %7929 = vmatmul.mubr.f32.gmra.mxu0 %v7836
      %v7930 = vpop.f32.mrf.mxu0
      %v7931 = vadd.f32 0.0, %v7930
      %v7932 = vpop.f32.mrf.mxu0
      %7933 = vmatprep.mubr.f32.mxu0 0.0
      %7934 = vmatmul.mubr.f32.gmra.mxu0 %v7839
      %v7935 = vpop.f32.mrf.mxu0
      %v7936 = vadd.f32 0.0, %v7935
      %v7937 = vpop.f32.mrf.mxu0
      %7938 = vdwg.mxu0
      %s7939 = scalar_lea.vmem %s29, 56
      %v7940 = vld [vmem:[%s7939] sm:$0xff]
      %v7942 = vsel %vm1622, %v7911, 0
      %v7945 = vsel %vm1622, %v7916, 0
      %v7948 = vsel %vm1622, %v7921, 0
      %v7951 = vsel %vm1622, %v7926, 0
      %v7954 = vsel %vm1622, %v7931, 0
      %v7957 = vsel %vm1622, %v7936, 0
      %7959 = vmatprep.subr.mxu0 0.0
      %7960 = vmatpush1.msra.mxu0 0.0
      %7961 = vmatprep.subr.mxu0 0.0
      %7962 = vmatpush1.msra.mxu0 0.0
      %7963 = vmatprep.subr.mxu0 0.0
      %7964 = vmatpush1.msra.mxu0 0.0
      %7965 = vmatprep.subr.mxu0 0.0
      %7966 = vmatpush1.msra.mxu0 0.0
      %7967 = vmatprep.subr.mxu0 0.0
      %7968 = vmatpush1.msra.mxu0 0.0
      %7969 = vmatprep.subr.mxu0 0.0
      %7970 = vmatpush1.msra.mxu0 0.0
      %7971 = vmatprep.subr.mxu0 0.0
      %7972 = vmatpush1.msra.mxu0 0.0
      %7973 = vmatprep.subr.mxu0 0.0
      %7974 = vmatpush1.msra.mxu0 0.0
      %7975 = vmatprep.subr.mxu0 0.0
      %7976 = vmatpush1.msra.mxu0 0.0
      %7977 = vmatprep.subr.mxu0 0.0
      %7978 = vmatpush1.msra.mxu0 0.0
      %7979 = vmatprep.subr.mxu0 0.0
      %7980 = vmatpush1.msra.mxu0 0.0
      %7981 = vmatprep.subr.mxu0 0.0
      %7982 = vmatpush1.msra.mxu0 0.0
      %7983 = vmatprep.subr.mxu0 0.0
      %7984 = vmatpush1.msra.mxu0 0.0
      %7985 = vmatprep.subr.mxu0 0.0
      %7986 = vmatpush1.msra.mxu0 0.0
      %7987 = vmatprep.subr.mxu0 0.0
      %7988 = vmatpush1.msra.mxu0 0.0
      %7989 = vmatprep.subr.mxu0 0.0
      %7990 = vmatpush1.msra.mxu0 %v7940
      %7991 = vmatprep.subr.mxu0 0.0
      %7992 = vmatpush2.msra.mxu0 0.0
      %7993 = vmatprep.subr.mxu0 0.0
      %7994 = vmatpush2.msra.mxu0 0.0
      %7995 = vmatprep.subr.mxu0 0.0
      %7996 = vmatpush2.msra.mxu0 0.0
      %7997 = vmatprep.subr.mxu0 0.0
      %7998 = vmatpush2.msra.mxu0 0.0
      %7999 = vmatprep.subr.mxu0 0.0
      %8000 = vmatpush2.msra.mxu0 0.0
      %8001 = vmatprep.subr.mxu0 0.0
      %8002 = vmatpush2.msra.mxu0 0.0
      %8003 = vmatprep.subr.mxu0 0.0
      %8004 = vmatpush2.msra.mxu0 0.0
      %8005 = vmatprep.subr.mxu0 0.0
      %8006 = vmatpush2.msra.mxu0 0.0
      %8007 = vmatprep.subr.mxu0 0.0
      %8008 = vmatpush2.msra.mxu0 0.0
      %8009 = vmatprep.subr.mxu0 0.0
      %8010 = vmatpush2.msra.mxu0 0.0
      %8011 = vmatprep.subr.mxu0 0.0
      %8012 = vmatpush2.msra.mxu0 0.0
      %8013 = vmatprep.subr.mxu0 0.0
      %8014 = vmatpush2.msra.mxu0 0.0
      %8015 = vmatprep.subr.mxu0 0.0
      %8016 = vmatpush2.msra.mxu0 0.0
      %8017 = vmatprep.subr.mxu0 0.0
      %8018 = vmatpush2.msra.mxu0 0.0
      %8019 = vmatprep.subr.mxu0 0.0
      %8020 = vmatpush2.msra.mxu0 0.0
      %8021 = vmatprep.subr.mxu0 0.0
      %8022 = vmatpush2.msra.mxu0 0.0
      %8023 = vmatprep.mubr.f32.mxu0 0.0
      %8024 = vmatmul.mubr.f32.gmra.mxu0 %v7942
      %v8025 = vpop.f32.mrf.mxu0
      %v8026 = vadd.f32 0.0, %v8025
      %v8027 = vpop.f32.mrf.mxu0
      %8028 = vmatprep.mubr.f32.mxu0 0.0
      %8029 = vmatmul.mubr.f32.gmra.mxu0 %v7945
      %v8030 = vpop.f32.mrf.mxu0
      %v8031 = vadd.f32 0.0, %v8030
      %v8032 = vpop.f32.mrf.mxu0
      %8033 = vmatprep.mubr.f32.mxu0 0.0
      %8034 = vmatmul.mubr.f32.gmra.mxu0 %v7948
      %v8035 = vpop.f32.mrf.mxu0
      %v8036 = vadd.f32 0.0, %v8035
      %v8037 = vpop.f32.mrf.mxu0
      %8038 = vmatprep.mubr.f32.mxu0 0.0
      %8039 = vmatmul.mubr.f32.gmra.mxu0 %v7951
      %v8040 = vpop.f32.mrf.mxu0
      %v8041 = vadd.f32 0.0, %v8040
      %v8042 = vpop.f32.mrf.mxu0
      %8043 = vmatprep.mubr.f32.mxu0 0.0
      %8044 = vmatmul.mubr.f32.gmra.mxu0 %v7954
      %v8045 = vpop.f32.mrf.mxu0
      %v8046 = vadd.f32 0.0, %v8045
      %v8047 = vpop.f32.mrf.mxu0
      %8048 = vmatprep.mubr.f32.mxu0 0.0
      %8049 = vmatmul.mubr.f32.gmra.mxu0 %v7957
      %v8050 = vpop.f32.mrf.mxu0
      %v8051 = vadd.f32 0.0, %v8050
      %v8052 = vpop.f32.mrf.mxu0
      %8053 = vdwg.mxu0
      %v8054 = vadd.f32 %v7290, %v8026
      %v8055 = vadd.f32 %v7291, %v8031
      %v8056 = vadd.f32 %v7292, %v8036
      %v8057 = vadd.f32 %v7293, %v8041
      %v8058 = vadd.f32 %v7294, %v8046
      %v8059 = vadd.f32 %v7295, %v8051
      %v8060 = vadd.f32 %v4971, %v8054
      %v8061 = vadd.f32 %v4972, %v8055
      %v8062 = vadd.f32 %v4973, %v8056
      %v8063 = vadd.f32 %v4974, %v8057
      %v8064 = vadd.f32 %v4975, %v8058
      %v8065 = vadd.f32 %v4976, %v8059
      %s8066 = scalar_lea.vmem %s33, 1
      %v8067 = vld [vmem:[%s8066] sm:$0x1]
      %s8068 = scalar_lea.vmem %s35, 1
      %v8069 = vld [vmem:[%s8068] sm:$0x1]
      %v8070 = vsel %vm1090, %v8060, 0.0
      %8071 = vadd.xlane.f32.xlu0 %v8070
      %v8072 = vpop.xlane.xlu0 %8071
      %v8073 = vsel %vm1090, %v8061, 0.0
      %8074 = vadd.xlane.f32.xlu0 %v8073
      %v8075 = vpop.xlane.xlu0 %8074
      %v8076 = vsel %vm1090, %v8062, 0.0
      %8077 = vadd.xlane.f32.xlu0 %v8076
      %v8078 = vpop.xlane.xlu0 %8077
      %v8079 = vsel %vm1090, %v8063, 0.0
      %8080 = vadd.xlane.f32.xlu0 %v8079
      %v8081 = vpop.xlane.xlu0 %8080
      %v8082 = vsel %vm1090, %v8064, 0.0
      %8083 = vadd.xlane.f32.xlu0 %v8082
      %v8084 = vpop.xlane.xlu0 %8083
      %v8085 = vsel %vm4374, %v8065, 0.0
      %8086 = vadd.xlane.f32.xlu0 %v8085
      %v8087 = vpop.xlane.xlu0 %8086
      %v8088 = vmul.f32 %v8072, %v4378
      %v8089 = vmul.f32 %v8075, %v4378
      %v8090 = vmul.f32 %v8078, %v4378
      %v8091 = vmul.f32 %v8081, %v4378
      %v8092 = vmul.f32 %v8084, %v4378
      %v8093 = vmul.f32 %v8087, %v4378
      %v8094 = vsub.f32 %v8060, %v8088
      %v8095 = vsub.f32 %v8061, %v8089
      %v8096 = vsub.f32 %v8062, %v8090
      %v8097 = vsub.f32 %v8063, %v8091
      %v8098 = vsub.f32 %v8064, %v8092
      %v8099 = vsub.f32 %v8065, %v8093
      %v8100 = vmul.f32 %v8094, %v8094
      %v8101 = vmul.f32 %v8095, %v8095
      %v8102 = vmul.f32 %v8096, %v8096
      %v8103 = vmul.f32 %v8097, %v8097
      %v8104 = vmul.f32 %v8098, %v8098
      %v8105 = vmul.f32 %v8099, %v8099
      %v8106 = vsel %vm1090, %v8100, 0.0
      %8107 = vadd.xlane.f32.xlu0 %v8106
      %v8108 = vpop.xlane.xlu0 %8107
      %v8109 = vsel %vm1090, %v8101, 0.0
      %8110 = vadd.xlane.f32.xlu0 %v8109
      %v8111 = vpop.xlane.xlu0 %8110
      %v8112 = vsel %vm1090, %v8102, 0.0
      %8113 = vadd.xlane.f32.xlu0 %v8112
      %v8114 = vpop.xlane.xlu0 %8113
      %v8115 = vsel %vm1090, %v8103, 0.0
      %8116 = vadd.xlane.f32.xlu0 %v8115
      %v8117 = vpop.xlane.xlu0 %8116
      %v8118 = vsel %vm1090, %v8104, 0.0
      %8119 = vadd.xlane.f32.xlu0 %v8118
      %v8120 = vpop.xlane.xlu0 %8119
      %v8121 = vsel %vm4374, %v8105, 0.0
      %8122 = vadd.xlane.f32.xlu0 %v8121
      %v8123 = vpop.xlane.xlu0 %8122
      %v8124 = vmul.f32 %v8108, %v4378
      %v8125 = vmul.f32 %v8111, %v4378
      %v8126 = vmul.f32 %v8114, %v4378
      %v8127 = vmul.f32 %v8117, %v4378
      %v8128 = vmul.f32 %v8120, %v4378
      %v8129 = vmul.f32 %v8123, %v4378
      %v8130 = vadd.f32 %v8124, 1e-05
      %v8131 = vadd.f32 %v8125, 1e-05
      %v8132 = vadd.f32 %v8126, 1e-05
      %v8133 = vadd.f32 %v8127, 1e-05
      %v8134 = vadd.f32 %v8128, 1e-05
      %v8135 = vadd.f32 %v8129, 1e-05
      %v8136 = vrsqrt.pop %v8130
      %v8137 = vrsqrt.pop %v8131
      %v8138 = vrsqrt.pop %v8132
      %v8139 = vrsqrt.pop %v8133
      %v8140 = vrsqrt.pop %v8134
      %v8141 = vrsqrt.pop %v8135
      %v8142 = vmul.f32 %v8094, %v8136
      %v8143 = vmul.f32 %v8095, %v8137
      %v8144 = vmul.f32 %v8096, %v8138
      %v8145 = vmul.f32 %v8097, %v8139
      %v8146 = vmul.f32 %v8098, %v8140
      %v8147 = vmul.f32 %v8099, %v8141
      %v8149 = vlaneseq
      %v8150 = vshrl.u32 %v8149, 7
      %v8151 = vsub.s32 0, %v8150
      %v8152 = vrot.slane %v8067, %v8151
      %v8154 = vmul.f32 %v8142, %v8152
      %v8155 = vmul.f32 %v8143, %v8152
      %v8156 = vmul.f32 %v8144, %v8152
      %v8157 = vmul.f32 %v8145, %v8152
      %v8158 = vmul.f32 %v8146, %v8152
      %v8159 = vmul.f32 %v8147, %v8152
      %v8161 = vlaneseq
      %v8162 = vshrl.u32 %v8161, 7
      %v8163 = vsub.s32 0, %v8162
      %v8164 = vrot.slane %v8069, %v8163
      %v8166 = vadd.f32 %v8154, %v8164
      %v8167 = vadd.f32 %v8155, %v8164
      %v8168 = vadd.f32 %v8156, %v8164
      %v8169 = vadd.f32 %v8157, %v8164
      %v8170 = vadd.f32 %v8158, %v8164
      %v8171 = vadd.f32 %v8159, %v8164
      %s8172 = scalar_lea.vmem %s41, 32
      %v8173 = vld [vmem:[%s8172] sm:$0xff]
      %v8174 = vld [vmem:[%s8172 + $0x8] sm:$0xff]
      %v8175 = vld [vmem:[%s8172 + $0x10] sm:$0xff]
      %v8176 = vld [vmem:[%s8172 + $0x18] sm:$0xff]
      %s8177 = scalar_lea.vmem %s43, 1
      %v8178 = vld [vmem:[%s8177] sm:$0x1]
      %v8180 = vlaneseq
      %v8181 = vshrl.u32 %v8180, 7
      %v8182 = vsub.s32 0, %v8181
      %v8183 = vrot.slane %v8178, %v8182
      %v8186 = vsel %vm1090, %v8166, 0
      %v8189 = vsel %vm1090, %v8167, 0
      %v8192 = vsel %vm1090, %v8168, 0
      %v8195 = vsel %vm1090, %v8169, 0
      %v8198 = vsel %vm1090, %v8170, 0
      %v8201 = vsel %vm1090, %v8171, 0
      %8203 = vmatprep.subr.mxu0 0.0
      %8204 = vmatpush1.msra.mxu0 0.0
      %8205 = vmatprep.subr.mxu0 0.0
      %8206 = vmatpush1.msra.mxu0 0.0
      %8207 = vmatprep.subr.mxu0 0.0
      %8208 = vmatpush1.msra.mxu0 0.0
      %8209 = vmatprep.subr.mxu0 0.0
      %8210 = vmatpush1.msra.mxu0 0.0
      %8211 = vmatprep.subr.mxu0 0.0
      %8212 = vmatpush1.msra.mxu0 0.0
      %8213 = vmatprep.subr.mxu0 0.0
      %8214 = vmatpush1.msra.mxu0 0.0
      %8215 = vmatprep.subr.mxu0 0.0
      %8216 = vmatpush1.msra.mxu0 0.0
      %8217 = vmatprep.subr.mxu0 0.0
      %8218 = vmatpush1.msra.mxu0 0.0
      %8219 = vmatprep.subr.mxu0 0.0
      %8220 = vmatpush1.msra.mxu0 0.0
      %8221 = vmatprep.subr.mxu0 0.0
      %8222 = vmatpush1.msra.mxu0 0.0
      %8223 = vmatprep.subr.mxu0 0.0
      %8224 = vmatpush1.msra.mxu0 0.0
      %8225 = vmatprep.subr.mxu0 0.0
      %8226 = vmatpush1.msra.mxu0 0.0
      %8227 = vmatprep.subr.mxu0 0.0
      %8228 = vmatpush1.msra.mxu0 %v8176
      %8229 = vmatprep.subr.mxu0 0.0
      %8230 = vmatpush1.msra.mxu0 %v8175
      %8231 = vmatprep.subr.mxu0 0.0
      %8232 = vmatpush1.msra.mxu0 %v8174
      %8233 = vmatprep.subr.mxu0 0.0
      %8234 = vmatpush1.msra.mxu0 %v8173
      %8235 = vmatprep.subr.mxu0 0.0
      %8236 = vmatpush2.msra.mxu0 0.0
      %8237 = vmatprep.subr.mxu0 0.0
      %8238 = vmatpush2.msra.mxu0 0.0
      %8239 = vmatprep.subr.mxu0 0.0
      %8240 = vmatpush2.msra.mxu0 0.0
      %8241 = vmatprep.subr.mxu0 0.0
      %8242 = vmatpush2.msra.mxu0 0.0
      %8243 = vmatprep.subr.mxu0 0.0
      %8244 = vmatpush2.msra.mxu0 0.0
      %8245 = vmatprep.subr.mxu0 0.0
      %8246 = vmatpush2.msra.mxu0 0.0
      %8247 = vmatprep.subr.mxu0 0.0
      %8248 = vmatpush2.msra.mxu0 0.0
      %8249 = vmatprep.subr.mxu0 0.0
      %8250 = vmatpush2.msra.mxu0 0.0
      %8251 = vmatprep.subr.mxu0 0.0
      %8252 = vmatpush2.msra.mxu0 0.0
      %8253 = vmatprep.subr.mxu0 0.0
      %8254 = vmatpush2.msra.mxu0 0.0
      %8255 = vmatprep.subr.mxu0 0.0
      %8256 = vmatpush2.msra.mxu0 0.0
      %8257 = vmatprep.subr.mxu0 0.0
      %8258 = vmatpush2.msra.mxu0 0.0
      %8259 = vmatprep.subr.mxu0 0.0
      %8260 = vmatpush2.msra.mxu0 0.0
      %8261 = vmatprep.subr.mxu0 0.0
      %8262 = vmatpush2.msra.mxu0 0.0
      %8263 = vmatprep.subr.mxu0 0.0
      %8264 = vmatpush2.msra.mxu0 0.0
      %8265 = vmatprep.subr.mxu0 0.0
      %8266 = vmatpush2.msra.mxu0 0.0
      %8267 = vmatprep.mubr.f32.mxu0 0.0
      %8268 = vmatmul.mubr.f32.gmra.mxu0 %v8186
      %v8269 = vpop.f32.mrf.mxu0
      %v8270 = vadd.f32 %v8183, %v8269
      %v8271 = vpop.f32.mrf.mxu0
      %8272 = vmatprep.mubr.f32.mxu0 0.0
      %8273 = vmatmul.mubr.f32.gmra.mxu0 %v8189
      %v8274 = vpop.f32.mrf.mxu0
      %v8275 = vadd.f32 %v8183, %v8274
      %v8276 = vpop.f32.mrf.mxu0
      %8277 = vmatprep.mubr.f32.mxu0 0.0
      %8278 = vmatmul.mubr.f32.gmra.mxu0 %v8192
      %v8279 = vpop.f32.mrf.mxu0
      %v8280 = vadd.f32 %v8183, %v8279
      %v8281 = vpop.f32.mrf.mxu0
      %8282 = vmatprep.mubr.f32.mxu0 0.0
      %8283 = vmatmul.mubr.f32.gmra.mxu0 %v8195
      %v8284 = vpop.f32.mrf.mxu0
      %v8285 = vadd.f32 %v8183, %v8284
      %v8286 = vpop.f32.mrf.mxu0
      %8287 = vmatprep.mubr.f32.mxu0 0.0
      %8288 = vmatmul.mubr.f32.gmra.mxu0 %v8198
      %v8289 = vpop.f32.mrf.mxu0
      %v8290 = vadd.f32 %v8183, %v8289
      %v8291 = vpop.f32.mrf.mxu0
      %8292 = vmatprep.mubr.f32.mxu0 0.0
      %8293 = vmatmul.mubr.f32.gmra.mxu0 %v8201
      %v8294 = vpop.f32.mrf.mxu0
      %v8295 = vadd.f32 %v8183, %v8294
      %v8296 = vpop.f32.mrf.mxu0
      %8297 = vdwg.mxu0
      %v8298 = vmul.f32 %v8270, 0.70710677
      %v8299 = vmul.f32 %v8275, 0.70710677
      %v8300 = vmul.f32 %v8280, 0.70710677
      %v8301 = vmul.f32 %v8285, 0.70710677
      %v8302 = vmul.f32 %v8290, 0.70710677
      %v8303 = vmul.f32 %v8295, 0.70710677
      %v8304 = vand.u32 2147483647, %v8298
      %v8305 = vand.u32 2147483647, %v8299
      %v8306 = vand.u32 2147483647, %v8300
      %v8307 = vand.u32 2147483647, %v8301
      %v8308 = vand.u32 2147483647, %v8302
      %v8309 = vand.u32 2147483647, %v8303
      %v8310 = vmul.f32 %v8304, 0.3275911
      %v8311 = vmul.f32 %v8305, 0.3275911
      %v8312 = vmul.f32 %v8306, 0.3275911
      %v8313 = vmul.f32 %v8307, 0.3275911
      %v8314 = vmul.f32 %v8308, 0.3275911
      %v8315 = vmul.f32 %v8309, 0.3275911
      %v8316 = vadd.f32 %v8310, 1.0
      %v8317 = vadd.f32 %v8311, 1.0
      %v8318 = vadd.f32 %v8312, 1.0
      %v8319 = vadd.f32 %v8313, 1.0
      %v8320 = vadd.f32 %v8314, 1.0
      %v8321 = vadd.f32 %v8315, 1.0
      %v8322 = vrcp.pop %v8316
      %v8323 = vmul.f32 1.0, %v8322
      %v8324 = vrcp.pop %v8317
      %v8325 = vmul.f32 1.0, %v8324
      %v8326 = vrcp.pop %v8318
      %v8327 = vmul.f32 1.0, %v8326
      %v8328 = vrcp.pop %v8319
      %v8329 = vmul.f32 1.0, %v8328
      %v8330 = vrcp.pop %v8320
      %v8331 = vmul.f32 1.0, %v8330
      %v8332 = vrcp.pop %v8321
      %v8333 = vmul.f32 1.0, %v8332
      %v8334 = vmul.f32 %v8323, 1.0614054
      %v8335 = vmul.f32 %v8325, 1.0614054
      %v8336 = vmul.f32 %v8327, 1.0614054
      %v8337 = vmul.f32 %v8329, 1.0614054
      %v8338 = vmul.f32 %v8331, 1.0614054
      %v8339 = vmul.f32 %v8333, 1.0614054
      %v8340 = vsub.f32 %v8334, 1.4531521
      %v8341 = vsub.f32 %v8335, 1.4531521
      %v8342 = vsub.f32 %v8336, 1.4531521
      %v8343 = vsub.f32 %v8337, 1.4531521
      %v8344 = vsub.f32 %v8338, 1.4531521
      %v8345 = vsub.f32 %v8339, 1.4531521
      %v8346 = vmul.f32 %v8340, %v8323
      %v8347 = vmul.f32 %v8341, %v8325
      %v8348 = vmul.f32 %v8342, %v8327
      %v8349 = vmul.f32 %v8343, %v8329
      %v8350 = vmul.f32 %v8344, %v8331
      %v8351 = vmul.f32 %v8345, %v8333
      %v8352 = vadd.f32 %v8346, 1.4214138
      %v8353 = vadd.f32 %v8347, 1.4214138
      %v8354 = vadd.f32 %v8348, 1.4214138
      %v8355 = vadd.f32 %v8349, 1.4214138
      %v8356 = vadd.f32 %v8350, 1.4214138
      %v8357 = vadd.f32 %v8351, 1.4214138
      %v8358 = vmul.f32 %v8352, %v8323
      %v8359 = vmul.f32 %v8353, %v8325
      %v8360 = vmul.f32 %v8354, %v8327
      %v8361 = vmul.f32 %v8355, %v8329
      %v8362 = vmul.f32 %v8356, %v8331
      %v8363 = vmul.f32 %v8357, %v8333
      %v8364 = vsub.f32 %v8358, 0.28449672
      %v8365 = vsub.f32 %v8359, 0.28449672
      %v8366 = vsub.f32 %v8360, 0.28449672
      %v8367 = vsub.f32 %v8361, 0.28449672
      %v8368 = vsub.f32 %v8362, 0.28449672
      %v8369 = vsub.f32 %v8363, 0.28449672
      %v8370 = vmul.f32 %v8364, %v8323
      %v8371 = vmul.f32 %v8365, %v8325
      %v8372 = vmul.f32 %v8366, %v8327
      %v8373 = vmul.f32 %v8367, %v8329
      %v8374 = vmul.f32 %v8368, %v8331
      %v8375 = vmul.f32 %v8369, %v8333
      %v8376 = vadd.f32 %v8370, 0.2548296
      %v8377 = vadd.f32 %v8371, 0.2548296
      %v8378 = vadd.f32 %v8372, 0.2548296
      %v8379 = vadd.f32 %v8373, 0.2548296
      %v8380 = vadd.f32 %v8374, 0.2548296
      %v8381 = vadd.f32 %v8375, 0.2548296
      %v8382 = vmul.f32 %v8376, %v8323
      %v8383 = vmul.f32 %v8377, %v8325
      %v8384 = vmul.f32 %v8378, %v8327
      %v8385 = vmul.f32 %v8379, %v8329
      %v8386 = vmul.f32 %v8380, %v8331
      %v8387 = vmul.f32 %v8381, %v8333
      %v8388 = vsub.f32 0.0, %v8304
      %v8389 = vsub.f32 0.0, %v8305
      %v8390 = vsub.f32 0.0, %v8306
      %v8391 = vsub.f32 0.0, %v8307
      %v8392 = vsub.f32 0.0, %v8308
      %v8393 = vsub.f32 0.0, %v8309
      %v8394 = vmul.f32 %v8388, %v8304
      %v8395 = vmul.f32 %v8389, %v8305
      %v8396 = vmul.f32 %v8390, %v8306
      %v8397 = vmul.f32 %v8391, %v8307
      %v8398 = vmul.f32 %v8392, %v8308
      %v8399 = vmul.f32 %v8393, %v8309
      %v8400 = vmul.f32 %v8394, 1.442695
      %v8401 = vpow.pop %v8400
      %v8402 = vmul.f32 %v8395, 1.442695
      %v8403 = vpow.pop %v8402
      %v8404 = vmul.f32 %v8396, 1.442695
      %v8405 = vpow.pop %v8404
      %v8406 = vmul.f32 %v8397, 1.442695
      %v8407 = vpow.pop %v8406
      %v8408 = vmul.f32 %v8398, 1.442695
      %v8409 = vpow.pop %v8408
      %v8410 = vmul.f32 %v8399, 1.442695
      %v8411 = vpow.pop %v8410
      %v8412 = vmul.f32 %v8382, %v8401
      %v8413 = vmul.f32 %v8383, %v8403
      %v8414 = vmul.f32 %v8384, %v8405
      %v8415 = vmul.f32 %v8385, %v8407
      %v8416 = vmul.f32 %v8386, %v8409
      %v8417 = vmul.f32 %v8387, %v8411
      %v8418 = vsub.f32 1.0, %v8412
      %v8419 = vsub.f32 1.0, %v8413
      %v8420 = vsub.f32 1.0, %v8414
      %v8421 = vsub.f32 1.0, %v8415
      %v8422 = vsub.f32 1.0, %v8416
      %v8423 = vsub.f32 1.0, %v8417
      %vm8424 = vcmp.ge.f32.partialorder %v8298, 0.0
      %vm8425 = vcmp.ge.f32.partialorder %v8299, 0.0
      %vm8426 = vcmp.ge.f32.partialorder %v8300, 0.0
      %vm8427 = vcmp.ge.f32.partialorder %v8301, 0.0
      %vm8428 = vcmp.ge.f32.partialorder %v8302, 0.0
      %vm8429 = vcmp.ge.f32.partialorder %v8303, 0.0
      %v8430 = vsub.f32 0.0, %v8418
      %v8431 = vsub.f32 0.0, %v8419
      %v8432 = vsub.f32 0.0, %v8420
      %v8433 = vsub.f32 0.0, %v8421
      %v8434 = vsub.f32 0.0, %v8422
      %v8435 = vsub.f32 0.0, %v8423
      %v8436 = vsel %vm8424, %v8418, %v8430
      %v8437 = vsel %vm8425, %v8419, %v8431
      %v8438 = vsel %vm8426, %v8420, %v8432
      %v8439 = vsel %vm8427, %v8421, %v8433
      %v8440 = vsel %vm8428, %v8422, %v8434
      %v8441 = vsel %vm8429, %v8423, %v8435
      %v8442 = vmul.f32 %v8270, 0.5
      %v8443 = vmul.f32 %v8275, 0.5
      %v8444 = vmul.f32 %v8280, 0.5
      %v8445 = vmul.f32 %v8285, 0.5
      %v8446 = vmul.f32 %v8290, 0.5
      %v8447 = vmul.f32 %v8295, 0.5
      %v8448 = vadd.f32 %v8436, 1.0
      %v8449 = vadd.f32 %v8437, 1.0
      %v8450 = vadd.f32 %v8438, 1.0
      %v8451 = vadd.f32 %v8439, 1.0
      %v8452 = vadd.f32 %v8440, 1.0
      %v8453 = vadd.f32 %v8441, 1.0
      %v8454 = vmul.f32 %v8442, %v8448
      %v8455 = vmul.f32 %v8443, %v8449
      %v8456 = vmul.f32 %v8444, %v8450
      %v8457 = vmul.f32 %v8445, %v8451
      %v8458 = vmul.f32 %v8446, %v8452
      %v8459 = vmul.f32 %v8447, %v8453
      %s8460 = scalar_lea.vmem %s45, 128
      %v8461 = vld [vmem:[%s8460] sm:$0xff]
      %v8462 = vld [vmem:[%s8460 + $0x8] sm:$0xff]
      %v8463 = vld [vmem:[%s8460 + $0x10] sm:$0xff]
      %v8464 = vld [vmem:[%s8460 + $0x18] sm:$0xff]
      %v8465 = vld [vmem:[%s8460 + $0x20] sm:$0xff]
      %v8466 = vld [vmem:[%s8460 + $0x28] sm:$0xff]
      %v8467 = vld [vmem:[%s8460 + $0x30] sm:$0xff]
      %v8468 = vld [vmem:[%s8460 + $0x38] sm:$0xff]
      %v8469 = vld [vmem:[%s8460 + $0x40] sm:$0xff]
      %v8470 = vld [vmem:[%s8460 + $0x48] sm:$0xff]
      %v8471 = vld [vmem:[%s8460 + $0x50] sm:$0xff]
      %v8472 = vld [vmem:[%s8460 + $0x58] sm:$0xff]
      %v8473 = vld [vmem:[%s8460 + $0x60] sm:$0xff]
      %v8474 = vld [vmem:[%s8460 + $0x68] sm:$0xff]
      %v8475 = vld [vmem:[%s8460 + $0x70] sm:$0xff]
      %v8476 = vld [vmem:[%s8460 + $0x78] sm:$0xff]
      %s8477 = scalar_lea.vmem %s47, 1
      %v8478 = vld [vmem:[%s8477] sm:$0x1]
      %v8480 = vlaneseq
      %v8481 = vshrl.u32 %v8480, 7
      %v8482 = vsub.s32 0, %v8481
      %v8483 = vrot.slane %v8478, %v8482
      %8485 = vmatprep.subr.mxu0 0.0
      %8486 = vmatpush1.msra.mxu0 %v8476
      %8487 = vmatprep.subr.mxu0 0.0
      %8488 = vmatpush1.msra.mxu0 %v8475
      %8489 = vmatprep.subr.mxu0 0.0
      %8490 = vmatpush1.msra.mxu0 %v8474
      %8491 = vmatprep.subr.mxu0 0.0
      %8492 = vmatpush1.msra.mxu0 %v8473
      %8493 = vmatprep.subr.mxu0 0.0
      %8494 = vmatpush1.msra.mxu0 %v8472
      %8495 = vmatprep.subr.mxu0 0.0
      %8496 = vmatpush1.msra.mxu0 %v8471
      %8497 = vmatprep.subr.mxu0 0.0
      %8498 = vmatpush1.msra.mxu0 %v8470
      %8499 = vmatprep.subr.mxu0 0.0
      %8500 = vmatpush1.msra.mxu0 %v8469
      %8501 = vmatprep.subr.mxu0 0.0
      %8502 = vmatpush1.msra.mxu0 %v8468
      %8503 = vmatprep.subr.mxu0 0.0
      %8504 = vmatpush1.msra.mxu0 %v8467
      %8505 = vmatprep.subr.mxu0 0.0
      %8506 = vmatpush1.msra.mxu0 %v8466
      %8507 = vmatprep.subr.mxu0 0.0
      %8508 = vmatpush1.msra.mxu0 %v8465
      %8509 = vmatprep.subr.mxu0 0.0
      %8510 = vmatpush1.msra.mxu0 %v8464
      %8511 = vmatprep.subr.mxu0 0.0
      %8512 = vmatpush1.msra.mxu0 %v8463
      %8513 = vmatprep.subr.mxu0 0.0
      %8514 = vmatpush1.msra.mxu0 %v8462
      %8515 = vmatprep.subr.mxu0 0.0
      %8516 = vmatpush1.msra.mxu0 %v8461
      %8517 = vmatprep.subr.mxu0 0.0
      %8518 = vmatpush2.msra.mxu0 0.0
      %8519 = vmatprep.subr.mxu0 0.0
      %8520 = vmatpush2.msra.mxu0 0.0
      %8521 = vmatprep.subr.mxu0 0.0
      %8522 = vmatpush2.msra.mxu0 0.0
      %8523 = vmatprep.subr.mxu0 0.0
      %8524 = vmatpush2.msra.mxu0 0.0
      %8525 = vmatprep.subr.mxu0 0.0
      %8526 = vmatpush2.msra.mxu0 0.0
      %8527 = vmatprep.subr.mxu0 0.0
      %8528 = vmatpush2.msra.mxu0 0.0
      %8529 = vmatprep.subr.mxu0 0.0
      %8530 = vmatpush2.msra.mxu0 0.0
      %8531 = vmatprep.subr.mxu0 0.0
      %8532 = vmatpush2.msra.mxu0 0.0
      %8533 = vmatprep.subr.mxu0 0.0
      %8534 = vmatpush2.msra.mxu0 0.0
      %8535 = vmatprep.subr.mxu0 0.0
      %8536 = vmatpush2.msra.mxu0 0.0
      %8537 = vmatprep.subr.mxu0 0.0
      %8538 = vmatpush2.msra.mxu0 0.0
      %8539 = vmatprep.subr.mxu0 0.0
      %8540 = vmatpush2.msra.mxu0 0.0
      %8541 = vmatprep.subr.mxu0 0.0
      %8542 = vmatpush2.msra.mxu0 0.0
      %8543 = vmatprep.subr.mxu0 0.0
      %8544 = vmatpush2.msra.mxu0 0.0
      %8545 = vmatprep.subr.mxu0 0.0
      %8546 = vmatpush2.msra.mxu0 0.0
      %8547 = vmatprep.subr.mxu0 0.0
      %8548 = vmatpush2.msra.mxu0 0.0
      %8549 = vmatprep.mubr.f32.mxu0 0.0
      %8550 = vmatmul.mubr.f32.gmra.mxu0 %v8454
      %v8551 = vpop.f32.mrf.mxu0
      %v8552 = vadd.f32 %v8483, %v8551
      %v8553 = vpop.f32.mrf.mxu0
      %8554 = vmatprep.mubr.f32.mxu0 0.0
      %8555 = vmatmul.mubr.f32.gmra.mxu0 %v8455
      %v8556 = vpop.f32.mrf.mxu0
      %v8557 = vadd.f32 %v8483, %v8556
      %v8558 = vpop.f32.mrf.mxu0
      %8559 = vmatprep.mubr.f32.mxu0 0.0
      %8560 = vmatmul.mubr.f32.gmra.mxu0 %v8456
      %v8561 = vpop.f32.mrf.mxu0
      %v8562 = vadd.f32 %v8483, %v8561
      %v8563 = vpop.f32.mrf.mxu0
      %8564 = vmatprep.mubr.f32.mxu0 0.0
      %8565 = vmatmul.mubr.f32.gmra.mxu0 %v8457
      %v8566 = vpop.f32.mrf.mxu0
      %v8567 = vadd.f32 %v8483, %v8566
      %v8568 = vpop.f32.mrf.mxu0
      %8569 = vmatprep.mubr.f32.mxu0 0.0
      %8570 = vmatmul.mubr.f32.gmra.mxu0 %v8458
      %v8571 = vpop.f32.mrf.mxu0
      %v8572 = vadd.f32 %v8483, %v8571
      %v8573 = vpop.f32.mrf.mxu0
      %8574 = vmatprep.mubr.f32.mxu0 0.0
      %8575 = vmatmul.mubr.f32.gmra.mxu0 %v8459
      %v8576 = vpop.f32.mrf.mxu0
      %v8577 = vadd.f32 %v8483, %v8576
      %v8578 = vpop.f32.mrf.mxu0
      %8579 = vdwg.mxu0
      %v8580 = vadd.f32 %v8166, %v8552
      %v8581 = vadd.f32 %v8167, %v8557
      %v8582 = vadd.f32 %v8168, %v8562
      %v8583 = vadd.f32 %v8169, %v8567
      %v8584 = vadd.f32 %v8170, %v8572
      %v8585 = vadd.f32 %v8171, %v8577
      %s8586 = scalar_lea.vmem %s37, 1
      %v8587 = vld [vmem:[%s8586] sm:$0x1]
      %s8588 = scalar_lea.vmem %s39, 1
      %v8589 = vld [vmem:[%s8588] sm:$0x1]
      %v8590 = vsel %vm1090, %v8580, 0.0
      %8591 = vadd.xlane.f32.xlu0 %v8590
      %v8592 = vpop.xlane.xlu0 %8591
      %v8593 = vsel %vm1090, %v8581, 0.0
      %8594 = vadd.xlane.f32.xlu0 %v8593
      %v8595 = vpop.xlane.xlu0 %8594
      %v8596 = vsel %vm1090, %v8582, 0.0
      %8597 = vadd.xlane.f32.xlu0 %v8596
      %v8598 = vpop.xlane.xlu0 %8597
      %v8599 = vsel %vm1090, %v8583, 0.0
      %8600 = vadd.xlane.f32.xlu0 %v8599
      %v8601 = vpop.xlane.xlu0 %8600
      %v8602 = vsel %vm1090, %v8584, 0.0
      %8603 = vadd.xlane.f32.xlu0 %v8602
      %v8604 = vpop.xlane.xlu0 %8603
      %v8605 = vsel %vm4374, %v8585, 0.0
      %8606 = vadd.xlane.f32.xlu0 %v8605
      %v8607 = vpop.xlane.xlu0 %8606
      %v8608 = vmul.f32 %v8592, %v4378
      %v8609 = vmul.f32 %v8595, %v4378
      %v8610 = vmul.f32 %v8598, %v4378
      %v8611 = vmul.f32 %v8601, %v4378
      %v8612 = vmul.f32 %v8604, %v4378
      %v8613 = vmul.f32 %v8607, %v4378
      %v8614 = vsub.f32 %v8580, %v8608
      %v8615 = vsub.f32 %v8581, %v8609
      %v8616 = vsub.f32 %v8582, %v8610
      %v8617 = vsub.f32 %v8583, %v8611
      %v8618 = vsub.f32 %v8584, %v8612
      %v8619 = vsub.f32 %v8585, %v8613
      %v8620 = vmul.f32 %v8614, %v8614
      %v8621 = vmul.f32 %v8615, %v8615
      %v8622 = vmul.f32 %v8616, %v8616
      %v8623 = vmul.f32 %v8617, %v8617
      %v8624 = vmul.f32 %v8618, %v8618
      %v8625 = vmul.f32 %v8619, %v8619
      %v8626 = vsel %vm1090, %v8620, 0.0
      %8627 = vadd.xlane.f32.xlu0 %v8626
      %v8628 = vpop.xlane.xlu0 %8627
      %v8629 = vsel %vm1090, %v8621, 0.0
      %8630 = vadd.xlane.f32.xlu0 %v8629
      %v8631 = vpop.xlane.xlu0 %8630
      %v8632 = vsel %vm1090, %v8622, 0.0
      %8633 = vadd.xlane.f32.xlu0 %v8632
      %v8634 = vpop.xlane.xlu0 %8633
      %v8635 = vsel %vm1090, %v8623, 0.0
      %8636 = vadd.xlane.f32.xlu0 %v8635
      %v8637 = vpop.xlane.xlu0 %8636
      %v8638 = vsel %vm1090, %v8624, 0.0
      %8639 = vadd.xlane.f32.xlu0 %v8638
      %v8640 = vpop.xlane.xlu0 %8639
      %v8641 = vsel %vm4374, %v8625, 0.0
      %8642 = vadd.xlane.f32.xlu0 %v8641
      %v8643 = vpop.xlane.xlu0 %8642
      %v8644 = vmul.f32 %v8628, %v4378
      %v8645 = vmul.f32 %v8631, %v4378
      %v8646 = vmul.f32 %v8634, %v4378
      %v8647 = vmul.f32 %v8637, %v4378
      %v8648 = vmul.f32 %v8640, %v4378
      %v8649 = vmul.f32 %v8643, %v4378
      %v8650 = vadd.f32 %v8644, 1e-05
      %v8651 = vadd.f32 %v8645, 1e-05
      %v8652 = vadd.f32 %v8646, 1e-05
      %v8653 = vadd.f32 %v8647, 1e-05
      %v8654 = vadd.f32 %v8648, 1e-05
      %v8655 = vadd.f32 %v8649, 1e-05
      %v8656 = vrsqrt.pop %v8650
      %v8657 = vrsqrt.pop %v8651
      %v8658 = vrsqrt.pop %v8652
      %v8659 = vrsqrt.pop %v8653
      %v8660 = vrsqrt.pop %v8654
      %v8661 = vrsqrt.pop %v8655
      %v8662 = vmul.f32 %v8614, %v8656
      %v8663 = vmul.f32 %v8615, %v8657
      %v8664 = vmul.f32 %v8616, %v8658
      %v8665 = vmul.f32 %v8617, %v8659
      %v8666 = vmul.f32 %v8618, %v8660
      %v8667 = vmul.f32 %v8619, %v8661
      %v8669 = vlaneseq
      %v8670 = vshrl.u32 %v8669, 7
      %v8671 = vsub.s32 0, %v8670
      %v8672 = vrot.slane %v8587, %v8671
      %v8674 = vmul.f32 %v8662, %v8672
      %v8675 = vmul.f32 %v8663, %v8672
      %v8676 = vmul.f32 %v8664, %v8672
      %v8677 = vmul.f32 %v8665, %v8672
      %v8678 = vmul.f32 %v8666, %v8672
      %v8679 = vmul.f32 %v8667, %v8672
      %v8681 = vlaneseq
      %v8682 = vshrl.u32 %v8681, 7
      %v8683 = vsub.s32 0, %v8682
      %v8684 = vrot.slane %v8589, %v8683
      %v8686 = vadd.f32 %v8674, %v8684
      %v8687 = vadd.f32 %v8675, %v8684
      %v8688 = vadd.f32 %v8676, %v8684
      %v8689 = vadd.f32 %v8677, %v8684
      %v8690 = vadd.f32 %v8678, %v8684
      %v8691 = vadd.f32 %v8679, %v8684
      %v8692 = vld [vmem:[%s49] sm:$0x1]
      %v8693 = vld [vmem:[%s51] sm:$0x1]
      %v8694 = vsel %vm1090, %v8686, 0.0
      %8695 = vadd.xlane.f32.xlu0 %v8694
      %v8696 = vpop.xlane.xlu0 %8695
      %v8697 = vsel %vm1090, %v8687, 0.0
      %8698 = vadd.xlane.f32.xlu0 %v8697
      %v8699 = vpop.xlane.xlu0 %8698
      %v8700 = vsel %vm1090, %v8688, 0.0
      %8701 = vadd.xlane.f32.xlu0 %v8700
      %v8702 = vpop.xlane.xlu0 %8701
      %v8703 = vsel %vm1090, %v8689, 0.0
      %8704 = vadd.xlane.f32.xlu0 %v8703
      %v8705 = vpop.xlane.xlu0 %8704
      %v8706 = vsel %vm1090, %v8690, 0.0
      %8707 = vadd.xlane.f32.xlu0 %v8706
      %v8708 = vpop.xlane.xlu0 %8707
      %v8709 = vsel %vm4374, %v8691, 0.0
      %8710 = vadd.xlane.f32.xlu0 %v8709
      %v8711 = vpop.xlane.xlu0 %8710
      %v8712 = vmul.f32 %v8696, %v4378
      %v8713 = vmul.f32 %v8699, %v4378
      %v8714 = vmul.f32 %v8702, %v4378
      %v8715 = vmul.f32 %v8705, %v4378
      %v8716 = vmul.f32 %v8708, %v4378
      %v8717 = vmul.f32 %v8711, %v4378
      %v8718 = vsub.f32 %v8686, %v8712
      %v8719 = vsub.f32 %v8687, %v8713
      %v8720 = vsub.f32 %v8688, %v8714
      %v8721 = vsub.f32 %v8689, %v8715
      %v8722 = vsub.f32 %v8690, %v8716
      %v8723 = vsub.f32 %v8691, %v8717
      %v8724 = vmul.f32 %v8718, %v8718
      %v8725 = vmul.f32 %v8719, %v8719
      %v8726 = vmul.f32 %v8720, %v8720
      %v8727 = vmul.f32 %v8721, %v8721
      %v8728 = vmul.f32 %v8722, %v8722
      %v8729 = vmul.f32 %v8723, %v8723
      %v8730 = vsel %vm1090, %v8724, 0.0
      %8731 = vadd.xlane.f32.xlu0 %v8730
      %v8732 = vpop.xlane.xlu0 %8731
      %v8733 = vsel %vm1090, %v8725, 0.0
      %8734 = vadd.xlane.f32.xlu0 %v8733
      %v8735 = vpop.xlane.xlu0 %8734
      %v8736 = vsel %vm1090, %v8726, 0.0
      %8737 = vadd.xlane.f32.xlu0 %v8736
      %v8738 = vpop.xlane.xlu0 %8737
      %v8739 = vsel %vm1090, %v8727, 0.0
      %8740 = vadd.xlane.f32.xlu0 %v8739
      %v8741 = vpop.xlane.xlu0 %8740
      %v8742 = vsel %vm1090, %v8728, 0.0
      %8743 = vadd.xlane.f32.xlu0 %v8742
      %v8744 = vpop.xlane.xlu0 %8743
      %v8745 = vsel %vm4374, %v8729, 0.0
      %8746 = vadd.xlane.f32.xlu0 %v8745
      %v8747 = vpop.xlane.xlu0 %8746
      %v8748 = vmul.f32 %v8732, %v4378
      %v8749 = vmul.f32 %v8735, %v4378
      %v8750 = vmul.f32 %v8738, %v4378
      %v8751 = vmul.f32 %v8741, %v4378
      %v8752 = vmul.f32 %v8744, %v4378
      %v8753 = vmul.f32 %v8747, %v4378
      %v8754 = vadd.f32 %v8748, 1e-05
      %v8755 = vadd.f32 %v8749, 1e-05
      %v8756 = vadd.f32 %v8750, 1e-05
      %v8757 = vadd.f32 %v8751, 1e-05
      %v8758 = vadd.f32 %v8752, 1e-05
      %v8759 = vadd.f32 %v8753, 1e-05
      %v8760 = vrsqrt.pop %v8754
      %v8761 = vrsqrt.pop %v8755
      %v8762 = vrsqrt.pop %v8756
      %v8763 = vrsqrt.pop %v8757
      %v8764 = vrsqrt.pop %v8758
      %v8765 = vrsqrt.pop %v8759
      %v8766 = vmul.f32 %v8718, %v8760
      %v8767 = vmul.f32 %v8719, %v8761
      %v8768 = vmul.f32 %v8720, %v8762
      %v8769 = vmul.f32 %v8721, %v8763
      %v8770 = vmul.f32 %v8722, %v8764
      %v8771 = vmul.f32 %v8723, %v8765
      %v8773 = vlaneseq
      %v8774 = vshrl.u32 %v8773, 7
      %v8775 = vsub.s32 0, %v8774
      %v8776 = vrot.slane %v8692, %v8775
      %v8778 = vmul.f32 %v8766, %v8776
      %v8779 = vmul.f32 %v8767, %v8776
      %v8780 = vmul.f32 %v8768, %v8776
      %v8781 = vmul.f32 %v8769, %v8776
      %v8782 = vmul.f32 %v8770, %v8776
      %v8783 = vmul.f32 %v8771, %v8776
      %v8785 = vlaneseq
      %v8786 = vshrl.u32 %v8785, 7
      %v8787 = vsub.s32 0, %v8786
      %v8788 = vrot.slane %v8693, %v8787
      %v8790 = vadd.f32 %v8778, %v8788
      %v8791 = vadd.f32 %v8779, %v8788
      %v8792 = vadd.f32 %v8780, %v8788
      %v8793 = vadd.f32 %v8781, %v8788
      %v8794 = vadd.f32 %v8782, %v8788
      %v8795 = vadd.f32 %v8783, %v8788
      %8796 = vst.msk [vmem:[#allocation2] sm:$0xff] %vm1090, %v8790
      %8797 = vst.msk [vmem:[#allocation2 + $0x8] sm:$0xff] %vm1090, %v8791
      %8798 = vst.msk [vmem:[#allocation2 + $0x10] sm:$0xff] %vm1090, %v8792
      %8799 = vst.msk [vmem:[#allocation2 + $0x18] sm:$0xff] %vm1090, %v8793
      %8800 = vst.msk [vmem:[#allocation2 + $0x20] sm:$0xff] %vm1090, %v8794
      %8801 = vst.msk [vmem:[#allocation2 + $0x28] sm:$0x1f] %vm4374, %v8795
      %v8802 = vld [vmem:[#allocation2 + $0xf] sm:$0xff]
      %v8803 = vld [vmem:[#allocation2 + $0x17] sm:$0x7f]
      %v8804 = vld [vmem:[%s53] sm:$0xff]
      %v8805 = vld [vmem:[%s53 + $0x8] sm:$0xff]
      %v8806 = vld [vmem:[%s53 + $0x10] sm:$0xff]
      %v8807 = vld [vmem:[%s53 + $0x18] sm:$0xff]
      %v8809 = vsel %vm1090, %v8802, 0
      %v8812 = vsel %vm1090, %v8803, 0
      %8814 = vmatprep.subr.mxu0 0.0
      %8815 = vmatpush1.msra.mxu0 0.0
      %8816 = vmatprep.subr.mxu0 0.0
      %8817 = vmatpush1.msra.mxu0 0.0
      %8818 = vmatprep.subr.mxu0 0.0
      %8819 = vmatpush1.msra.mxu0 0.0
      %8820 = vmatprep.subr.mxu0 0.0
      %8821 = vmatpush1.msra.mxu0 0.0
      %8822 = vmatprep.subr.mxu0 0.0
      %8823 = vmatpush1.msra.mxu0 0.0
      %8824 = vmatprep.subr.mxu0 0.0
      %8825 = vmatpush1.msra.mxu0 0.0
      %8826 = vmatprep.subr.mxu0 0.0
      %8827 = vmatpush1.msra.mxu0 0.0
      %8828 = vmatprep.subr.mxu0 0.0
      %8829 = vmatpush1.msra.mxu0 0.0
      %8830 = vmatprep.subr.mxu0 0.0
      %8831 = vmatpush1.msra.mxu0 0.0
      %8832 = vmatprep.subr.mxu0 0.0
      %8833 = vmatpush1.msra.mxu0 0.0
      %8834 = vmatprep.subr.mxu0 0.0
      %8835 = vmatpush1.msra.mxu0 0.0
      %8836 = vmatprep.subr.mxu0 0.0
      %8837 = vmatpush1.msra.mxu0 0.0
      %8838 = vmatprep.subr.mxu0 0.0
      %8839 = vmatpush1.msra.mxu0 %v8807
      %8840 = vmatprep.subr.mxu0 0.0
      %8841 = vmatpush1.msra.mxu0 %v8806
      %8842 = vmatprep.subr.mxu0 0.0
      %8843 = vmatpush1.msra.mxu0 %v8805
      %8844 = vmatprep.subr.mxu0 0.0
      %8845 = vmatpush1.msra.mxu0 %v8804
      %8846 = vmatprep.subr.mxu0 0.0
      %8847 = vmatpush2.msra.mxu0 0.0
      %8848 = vmatprep.subr.mxu0 0.0
      %8849 = vmatpush2.msra.mxu0 0.0
      %8850 = vmatprep.subr.mxu0 0.0
      %8851 = vmatpush2.msra.mxu0 0.0
      %8852 = vmatprep.subr.mxu0 0.0
      %8853 = vmatpush2.msra.mxu0 0.0
      %8854 = vmatprep.subr.mxu0 0.0
      %8855 = vmatpush2.msra.mxu0 0.0
      %8856 = vmatprep.subr.mxu0 0.0
      %8857 = vmatpush2.msra.mxu0 0.0
      %8858 = vmatprep.subr.mxu0 0.0
      %8859 = vmatpush2.msra.mxu0 0.0
      %8860 = vmatprep.subr.mxu0 0.0
      %8861 = vmatpush2.msra.mxu0 0.0
      %8862 = vmatprep.subr.mxu0 0.0
      %8863 = vmatpush2.msra.mxu0 0.0
      %8864 = vmatprep.subr.mxu0 0.0
      %8865 = vmatpush2.msra.mxu0 0.0
      %8866 = vmatprep.subr.mxu0 0.0
      %8867 = vmatpush2.msra.mxu0 0.0
      %8868 = vmatprep.subr.mxu0 0.0
      %8869 = vmatpush2.msra.mxu0 0.0
      %8870 = vmatprep.subr.mxu0 0.0
      %8871 = vmatpush2.msra.mxu0 0.0
      %8872 = vmatprep.subr.mxu0 0.0
      %8873 = vmatpush2.msra.mxu0 0.0
      %8874 = vmatprep.subr.mxu0 0.0
      %8875 = vmatpush2.msra.mxu0 0.0
      %8876 = vmatprep.subr.mxu0 0.0
      %8877 = vmatpush2.msra.mxu0 0.0
      %8878 = vmatprep.mubr.f32.mxu0 0.0
      %8879 = vmatmul.mubr.f32.gmra.mxu0 %v8809
      %v8880 = vpop.f32.mrf.mxu0
      %v8881 = vadd.f32 0.0, %v8880
      %v8882 = vpop.f32.mrf.mxu0
      %8883 = vmatprep.mubr.f32.mxu0 0.0
      %8884 = vmatmul.mubr.f32.gmra.mxu0 %v8812
      %v8885 = vpop.f32.mrf.mxu0
      %v8886 = vadd.f32 0.0, %v8885
      %v8887 = vpop.f32.mrf.mxu0
      %8888 = vdwg.mxu0
      %v8889 = vld [vmem:[#allocation2 + $0x1e] sm:$0xff]
      %v8890 = vld [vmem:[#allocation2 + $0x26] sm:$0x7f]
      %v8891 = vld [vmem:[%s55] sm:$0xff]
      %v8892 = vld [vmem:[%s55 + $0x8] sm:$0xff]
      %v8893 = vld [vmem:[%s55 + $0x10] sm:$0xff]
      %v8894 = vld [vmem:[%s55 + $0x18] sm:$0xff]
      %v8896 = vsel %vm1090, %v8889, 0
      %v8899 = vsel %vm1090, %v8890, 0
      %8901 = vmatprep.subr.mxu0 0.0
      %8902 = vmatpush1.msra.mxu0 0.0
      %8903 = vmatprep.subr.mxu0 0.0
      %8904 = vmatpush1.msra.mxu0 0.0
      %8905 = vmatprep.subr.mxu0 0.0
      %8906 = vmatpush1.msra.mxu0 0.0
      %8907 = vmatprep.subr.mxu0 0.0
      %8908 = vmatpush1.msra.mxu0 0.0
      %8909 = vmatprep.subr.mxu0 0.0
      %8910 = vmatpush1.msra.mxu0 0.0
      %8911 = vmatprep.subr.mxu0 0.0
      %8912 = vmatpush1.msra.mxu0 0.0
      %8913 = vmatprep.subr.mxu0 0.0
      %8914 = vmatpush1.msra.mxu0 0.0
      %8915 = vmatprep.subr.mxu0 0.0
      %8916 = vmatpush1.msra.mxu0 0.0
      %8917 = vmatprep.subr.mxu0 0.0
      %8918 = vmatpush1.msra.mxu0 0.0
      %8919 = vmatprep.subr.mxu0 0.0
      %8920 = vmatpush1.msra.mxu0 0.0
      %8921 = vmatprep.subr.mxu0 0.0
      %8922 = vmatpush1.msra.mxu0 0.0
      %8923 = vmatprep.subr.mxu0 0.0
      %8924 = vmatpush1.msra.mxu0 0.0
      %8925 = vmatprep.subr.mxu0 0.0
      %8926 = vmatpush1.msra.mxu0 %v8894
      %8927 = vmatprep.subr.mxu0 0.0
      %8928 = vmatpush1.msra.mxu0 %v8893
      %8929 = vmatprep.subr.mxu0 0.0
      %8930 = vmatpush1.msra.mxu0 %v8892
      %8931 = vmatprep.subr.mxu0 0.0
      %8932 = vmatpush1.msra.mxu0 %v8891
      %8933 = vmatprep.subr.mxu0 0.0
      %8934 = vmatpush2.msra.mxu0 0.0
      %8935 = vmatprep.subr.mxu0 0.0
      %8936 = vmatpush2.msra.mxu0 0.0
      %8937 = vmatprep.subr.mxu0 0.0
      %8938 = vmatpush2.msra.mxu0 0.0
      %8939 = vmatprep.subr.mxu0 0.0
      %8940 = vmatpush2.msra.mxu0 0.0
      %8941 = vmatprep.subr.mxu0 0.0
      %8942 = vmatpush2.msra.mxu0 0.0
      %8943 = vmatprep.subr.mxu0 0.0
      %8944 = vmatpush2.msra.mxu0 0.0
      %8945 = vmatprep.subr.mxu0 0.0
      %8946 = vmatpush2.msra.mxu0 0.0
      %8947 = vmatprep.subr.mxu0 0.0
      %8948 = vmatpush2.msra.mxu0 0.0
      %8949 = vmatprep.subr.mxu0 0.0
      %8950 = vmatpush2.msra.mxu0 0.0
      %8951 = vmatprep.subr.mxu0 0.0
      %8952 = vmatpush2.msra.mxu0 0.0
      %8953 = vmatprep.subr.mxu0 0.0
      %8954 = vmatpush2.msra.mxu0 0.0
      %8955 = vmatprep.subr.mxu0 0.0
      %8956 = vmatpush2.msra.mxu0 0.0
      %8957 = vmatprep.subr.mxu0 0.0
      %8958 = vmatpush2.msra.mxu0 0.0
      %8959 = vmatprep.subr.mxu0 0.0
      %8960 = vmatpush2.msra.mxu0 0.0
      %8961 = vmatprep.subr.mxu0 0.0
      %8962 = vmatpush2.msra.mxu0 0.0
      %8963 = vmatprep.subr.mxu0 0.0
      %8964 = vmatpush2.msra.mxu0 0.0
      %8965 = vmatprep.mubr.f32.mxu0 0.0
      %8966 = vmatmul.mubr.f32.gmra.mxu0 %v8896
      %v8967 = vpop.f32.mrf.mxu0
      %v8968 = vadd.f32 0.0, %v8967
      %v8969 = vpop.f32.mrf.mxu0
      %8970 = vmatprep.mubr.f32.mxu0 0.0
      %8971 = vmatmul.mubr.f32.gmra.mxu0 %v8899
      %v8972 = vpop.f32.mrf.mxu0
      %v8973 = vadd.f32 0.0, %v8972
      %v8974 = vpop.f32.mrf.mxu0
      %8975 = vdwg.mxu0
      %v8976 = vsel %vm1096, %v8881, -inf
      %8977 = vmax.xlane.f32.xlu0 %v8976
      %v8978 = vpop.xlane.xlu0 %8977
      %vm8979 = vcmask 391168
      %v8980 = vsel %vm8979, %v8886, -inf
      %8981 = vmax.xlane.f32.xlu0 %v8980
      %v8982 = vpop.xlane.xlu0 %8981
      %vm8983 = vcmp.eq.f32.partialorder %v8881, %v8978
      %vm8984 = vcmp.eq.f32.partialorder %v8886, %v8982
      %v8985 = vsel %vm8983, %v959, 48
      %v8986 = vsel %vm8984, %v959, 48
      %v8987 = vsel %vm1096, %v8985, 2147483647
      %v8988 = vand.u32 %v8987, 65535
      %v8989 = vshra.s32 %v8987, 16
      %v8990 = vcvt.s32.f32 %v8988
      %v8991 = vcvt.s32.f32 %v8989
      %8992 = vmin.xlane.f32.xlu0 %v8991
      %v8993 = vpop.xlane.xlu0 %8992
      %vm8994 = vcmp.eq.f32.partialorder %v8991, %v8993
      %v8995 = vsel %vm8994, %v8990, inf
      %8996 = vmin.xlane.f32.xlu0 %v8995
      %v8997 = vpop.xlane.xlu0 %8996
      %v8998 = vcvt.f32.s32 %v8997
      %v8999 = vcvt.f32.s32 %v8993
      %v9000 = vshll.u32 %v8999, 16
      %v9001 = vadd.s32 %v9000, %v8998
      %v9002 = vsel %vm8979, %v8986, 2147483647
      %v9003 = vand.u32 %v9002, 65535
      %v9004 = vshra.s32 %v9002, 16
      %v9005 = vcvt.s32.f32 %v9003
      %v9006 = vcvt.s32.f32 %v9004
      %9007 = vmin.xlane.f32.xlu0 %v9006
      %v9008 = vpop.xlane.xlu0 %9007
      %vm9009 = vcmp.eq.f32.partialorder %v9006, %v9008
      %v9010 = vsel %vm9009, %v9005, inf
      %9011 = vmin.xlane.f32.xlu0 %v9010
      %v9012 = vpop.xlane.xlu0 %9011
      %v9013 = vcvt.f32.s32 %v9012
      %v9014 = vcvt.f32.s32 %v9008
      %v9015 = vshll.u32 %v9014, 16
      %v9016 = vadd.s32 %v9015, %v9013
      %vm9017 = vcmask 7168
      %9018 = vst.msk [vmem:[%s950] sm:$0xff] %vm9017, %v9001
      %vm9019 = vcmask 6144
      %9020 = vst.msk [vmem:[%s950 + $0x8] sm:$0x7f] %vm9019, %v9016
      %v9021 = vsel %vm1182, %v8968, -inf
      %9022 = vmax.xlane.f32.xlu0 %v9021
      %v9023 = vpop.xlane.xlu0 %9022
      %vm9024 = vcmask 325632
      %v9025 = vsel %vm9024, %v8973, -inf
      %9026 = vmax.xlane.f32.xlu0 %v9025
      %v9027 = vpop.xlane.xlu0 %9026
      %vm9028 = vcmp.eq.f32.partialorder %v8968, %v9023
      %vm9029 = vcmp.eq.f32.partialorder %v8973, %v9027
      %v9030 = vsel %vm9028, %v959, 40
      %v9031 = vsel %vm9029, %v959, 40
      %v9032 = vsel %vm1182, %v9030, 2147483647
      %v9033 = vand.u32 %v9032, 65535
      %v9034 = vshra.s32 %v9032, 16
      %v9035 = vcvt.s32.f32 %v9033
      %v9036 = vcvt.s32.f32 %v9034
      %9037 = vmin.xlane.f32.xlu0 %v9036
      %v9038 = vpop.xlane.xlu0 %9037
      %vm9039 = vcmp.eq.f32.partialorder %v9036, %v9038
      %v9040 = vsel %vm9039, %v9035, inf
      %9041 = vmin.xlane.f32.xlu0 %v9040
      %v9042 = vpop.xlane.xlu0 %9041
      %v9043 = vcvt.f32.s32 %v9042
      %v9044 = vcvt.f32.s32 %v9038
      %v9045 = vshll.u32 %v9044, 16
      %v9046 = vadd.s32 %v9045, %v9043
      %v9047 = vsel %vm9024, %v9031, 2147483647
      %v9048 = vand.u32 %v9047, 65535
      %v9049 = vshra.s32 %v9047, 16
      %v9050 = vcvt.s32.f32 %v9048
      %v9051 = vcvt.s32.f32 %v9049
      %9052 = vmin.xlane.f32.xlu0 %v9051
      %v9053 = vpop.xlane.xlu0 %9052
      %vm9054 = vcmp.eq.f32.partialorder %v9051, %v9053
      %v9055 = vsel %vm9054, %v9050, inf
      %9056 = vmin.xlane.f32.xlu0 %v9055
      %v9057 = vpop.xlane.xlu0 %9056
      %v9058 = vcvt.f32.s32 %v9057
      %v9059 = vcvt.f32.s32 %v9053
      %v9060 = vshll.u32 %v9059, 16
      %v9061 = vadd.s32 %v9060, %v9058
      %9062 = vst.msk [vmem:[%s955] sm:$0xff] %vm9017, %v9046
      %9063 = vst.msk [vmem:[%s955 + $0x8] sm:$0x7f] %vm9019, %v9061
      %p9064 = scmp.lt.s32.totalorder %s71, 1
      %s9065 = scalar_select %p9064, %s71, 1
      %s9066 = smul.addr %s9065, 2
      %s9067 = smul.addr %s9066, 8
      %s9068 = scalar_lea.vmem %s57, %s9067
      %p9069 = scmp.lt.s32.totalorder %s71, 1
      %s9070 = scalar_select %p9069, %s71, 1
      %s9071 = smul.addr %s9070, 2
      %s9072 = smul.addr %s9071, 8
      %s9073 = scalar_lea.vmem %s59, %s9072
      // Predicated region
      $region133: #{forward.1} parent=131 // pred_check
        %p9074 = pneg %p692
      $region134: #{forward.1} parent=131 // pred_check_branch
        %9076 = sbr.rel (%p9074) target = $region136
      $region135: #{forward.1} parent=131 // pred_region
        _
      $region136: #{forward.1} parent=131 // pred_fallthru
        _
      // Predicated region
      $region137: #{forward.1} parent=131 // pred_check
        %p9077 = pneg %p718
      $region138: #{forward.1} parent=131 // pred_check_branch
        %9079 = sbr.rel (%p9077) target = $region140
      $region139: #{forward.1} parent=131 // pred_region
        _
      $region140: #{forward.1} parent=131 // pred_fallthru
        _
    $region132: #{forward.1} parent=5 // pred_fallthru
      _
    %p9080 = scmp.le.s32.totalorder 2, %s66
    // Predicated region
    $region141: #{forward.1} parent=5 // pred_check
      %p9081 = pneg %p9080
    $region142: #{forward.1} parent=5 // pred_check_branch
      %9083 = sbr.rel (%p9081) target = $region144
    $region143: #{forward.1} parent=5 // pred_region
      %s9084 = ssub.s32 %s66, 2
      // Predicated region
      $region145: #{forward.1} parent=143 // pred_check
        %p9085 = pneg %p698
      $region146: #{forward.1} parent=143 // pred_check_branch
        %9087 = sbr.rel (%p9085) target = $region148
      $region147: #{forward.1} parent=143 // pred_region
        %p9088 = scmp.lt.s32.totalorder %s72, 1
        %s9089 = scalar_select %p9088, %s72, 1
        %s9090 = smul.addr %s9089, 2
        %s9091 = smul.addr %s9090, 8
        %s9092 = scalar_lea.vmem %s57, %s9091
      $region148: #{forward.1} parent=143 // pred_fallthru
        _
      // Predicated region
      $region149: #{forward.1} parent=143 // pred_check
        %p9093 = pneg %p724
      $region150: #{forward.1} parent=143 // pred_check_branch
        %9095 = sbr.rel (%p9093) target = $region152
      $region151: #{forward.1} parent=143 // pred_region
        %p9096 = scmp.lt.s32.totalorder %s72, 1
        %s9097 = scalar_select %p9096, %s72, 1
        %s9098 = smul.addr %s9097, 2
        %s9099 = smul.addr %s9098, 8
        %s9100 = scalar_lea.vmem %s59, %s9099
      $region152: #{forward.1} parent=143 // pred_fallthru
        _
    $region144: #{forward.1} parent=5 // pred_fallthru
      _
  $region6: #{forward.1} parent=0 // loop_footer
    %s70 = sadd.s32 1, %s66
  $region7: #{forward.1} parent=0 // loop_footer_branch
    %65 = sbr.rel target = $region3
  $region8: #{forward.1} parent=0 // loop_exit
    _

</llo_original>
